<compile_context>
chip_gen: v6e
topology: v6e:2x2x1
jax: 0.10.0
libtpu: 0.0.40
codegen_flags: <defaults>
</compile_context>

<pallas_src>
import functools

import jax
import jax.numpy as jnp
from jax.experimental import pallas as pl
from jax.experimental.pallas import tpu as pltpu


# -----------------------------------------------------------------------------
# Kernel
# -----------------------------------------------------------------------------
def _scn_lstm_kernel(n_layers, t_block, nh, *refs):
    # refs = (x, h0, c0, *per_layer_weights[n_layers*7], out, hn_out, cn_out)
    # per-layer weights: (tagWb, tagUb, Wc_all, Uc_all, WaBD, UaBD, bias_all)
    n_w = n_layers * 7
    x_ref, h0_ref, c0_ref = refs[0:3]
    w_refs = refs[3:3 + n_w]
    out_ref, hn_ref, cn_ref = refs[3 + n_w:3 + n_w + 3]

    B = x_ref.shape[0]

    # Initialize the recurrent state (held in the resident hn/cn output refs)
    # on the first grid step only.
    @pl.when(pl.program_id(0) == 0)
    def _():
        hn_ref[...] = h0_ref[...]
        cn_ref[...] = c0_ref[...]

    # Hoist per-layer time-invariant values out of the time loop
    # (tag projections + bias broadcast; avoids re-emitting broadcasts).
    layer_consts = []
    for layer in range(n_layers):
        tagWb_ref, tagUb_ref, _, _, _, _, b_ref = w_refs[7 * layer:7 * layer + 7]
        layer_consts.append((
            tagWb_ref[...],                                   # (B, 4*nf)
            tagUb_ref[...],                                   # (B, 4*nf)
            jnp.broadcast_to(b_ref[...], (B, 4 * nh)),        # (B, 4*nh)
        ))

    # Load the current recurrent state and the whole time block as values.
    x_blk = x_ref[...]                                        # (B, Tt, nx)
    h_all = hn_ref[...]                                       # (B, N, nh)
    c_all = cn_ref[...]
    h_state = [h_all[:, l, :] for l in range(n_layers)]
    c_state = [c_all[:, l, :] for l in range(n_layers)]

    outs = []
    for tt in range(t_block):
        inp = x_blk[:, tt, :]                                 # (B, nx_layer0)
        for layer in range(n_layers):
            _, _, Wc_ref, Uc_ref, Wa_ref, Ua_ref, _ = w_refs[7 * layer:7 * layer + 7]
            tagx, tagh, bias = layer_consts[layer]
            hn = h_state[layer]
            cn = c_state[layer]

            # First stage: fused over the 4 gates (lane dim = 4*nf).
            x1 = jnp.dot(inp.astype(Wc_ref.dtype), Wc_ref[...],
                         preferred_element_type=jnp.float32)   # (B, 4*nf)
            h1 = jnp.dot(hn.astype(Uc_ref.dtype), Uc_ref[...],
                         preferred_element_type=jnp.float32)   # (B, 4*nf)
            tmpx = tagx * x1
            tmph = tagh * h1

            # Second stage: block-diagonal gate-fused Wa/Ua -> (B, 4*nh).
            pre = (jnp.dot(tmpx.astype(Wa_ref.dtype), Wa_ref[...],
                           preferred_element_type=jnp.float32)
                   + jnp.dot(tmph.astype(Ua_ref.dtype), Ua_ref[...],
                             preferred_element_type=jnp.float32)
                   + bias)
            gate_acts = jax.nn.sigmoid(pre)                    # gate order: i, a, o, c
            gi = gate_acts[:, 0 * nh:1 * nh]
            ga = gate_acts[:, 1 * nh:2 * nh]
            go = gate_acts[:, 2 * nh:3 * nh]
            gc = gate_acts[:, 3 * nh:4 * nh]

            cn = gi * gc + ga * cn
            hn = go * jnp.tanh(cn)

            h_state[layer] = hn
            c_state[layer] = cn
            inp = hn
        outs.append(inp)                                       # top-layer hidden

    out_ref[...] = jnp.stack(outs, axis=1)                     # (B, Tt, nh)
    hn_ref[...] = jnp.stack(h_state, axis=1)                   # (B, N, nh)
    cn_ref[...] = jnp.stack(c_state, axis=1)


# -----------------------------------------------------------------------------
# Helpers
# -----------------------------------------------------------------------------
def _pick_time_block(T, cap=32):
    """Largest sensible number of timesteps per grid iteration."""
    if T <= cap:
        return T
    for d in range(cap, 0, -1):
        if T % d == 0 and d % 8 == 0:
            return d
    return T  # fall back to the whole sequence as one block


def _block_diag4(w):
    """(4, nf, nh) gate-stacked weight -> block-diagonal (4*nf, 4*nh)."""
    g, nf, nh = w.shape
    out = jnp.zeros((g * nf, g * nh), w.dtype)
    for i in range(g):
        out = out.at[i * nf:(i + 1) * nf, i * nh:(i + 1) * nh].set(w[i])
    return out


# -----------------------------------------------------------------------------
# Wrapper
# -----------------------------------------------------------------------------
def scn_lstm_forward(inps, hidden, keyword, params, *,
                     matmul_dtype=jnp.float32, time_block=None):
    """
    inps:    (B, T, nx)          float32   (batch_first, as in the PyTorch module)
    hidden:  tuple of (B, N, nh) float32   (hns, cns)
    keyword: (B, nk)                       (cast to float32, used as `tag`)
    params:  list (len N) of 7-tuples of gate-stacked weights:
             Wa (4,nf,nh), Wb (4,nk,nf), Wc (4,nx_l,nf),
             Ua (4,nf,nh), Ub (4,nk,nf), Uc (4,nh,nf), b (4,1,nh)
    returns: output (B, T, nh), (hns, cns) each (B, N, nh)
    """
    n_layers = len(params)
    x = inps.astype(jnp.float32)
    tag = keyword.astype(jnp.float32)
    h0 = hidden[0].astype(jnp.float32)        # (B, N, nh)
    c0 = hidden[1].astype(jnp.float32)

    B, T, nx = x.shape
    nh = h0.shape[-1]

    # Pad batch up to a multiple of 8 (f32 sublane count).
    B_pad = ((B + 7) // 8) * 8
    if B_pad != B:
        pb = B_pad - B
        x = jnp.pad(x, ((0, pb), (0, 0), (0, 0)))
        tag = jnp.pad(tag, ((0, pb), (0, 0)))
        h0 = jnp.pad(h0, ((0, pb), (0, 0), (0, 0)))
        c0 = jnp.pad(c0, ((0, pb), (0, 0), (0, 0)))

    Tt = time_block if time_block is not None else _pick_time_block(T)
    assert T % Tt == 0, "time_block must divide T"

    md = matmul_dtype

    # Pack / hoist weights per layer:
    #   tagWb, tagUb : (B_pad, 4*nf)  time-invariant tag projections (hoisted)
    #   Wc_all, Uc_all: (nx_l, 4*nf), (nh, 4*nf)  gate-fused first stage
    #   WaBD, UaBD   : (4*nf, 4*nh)   block-diagonal gate-fused second stage
    #   bias_all     : (1, 4*nh)
    flat_w = []
    for p in params:
        Wa, Wb, Wc, Ua, Ub, Uc, b = [w.astype(jnp.float32) for w in p]
        Wc_all = jnp.concatenate(list(Wc), axis=-1)
        Uc_all = jnp.concatenate(list(Uc), axis=-1)
        Wb_all = jnp.concatenate(list(Wb), axis=-1)
        Ub_all = jnp.concatenate(list(Ub), axis=-1)
        WaBD = _block_diag4(Wa)
        UaBD = _block_diag4(Ua)
        bias_all = b.reshape(1, 4 * nh)
        tagWb = jnp.dot(tag.astype(md), Wb_all.astype(md),
                        preferred_element_type=jnp.float32)
        tagUb = jnp.dot(tag.astype(md), Ub_all.astype(md),
                        preferred_element_type=jnp.float32)
        flat_w += [tagWb, tagUb,
                   Wc_all.astype(md), Uc_all.astype(md),
                   WaBD.astype(md), UaBD.astype(md),
                   bias_all]

    def full_spec(a):
        return pl.BlockSpec(a.shape, lambda t, _n=a.ndim: (0,) * _n)

    grid = (T // Tt,)
    in_specs = (
        [pl.BlockSpec((B_pad, Tt, nx), lambda t: (0, t, 0)),
         full_spec(h0),
         full_spec(c0)]
        + [full_spec(w) for w in flat_w]
    )
    out_specs = (
        pl.BlockSpec((B_pad, Tt, nh), lambda t: (0, t, 0)),
        pl.BlockSpec((B_pad, n_layers, nh), lambda t: (0, 0, 0)),
        pl.BlockSpec((B_pad, n_layers, nh), lambda t: (0, 0, 0)),
    )
    out_shape = (
        jax.ShapeDtypeStruct((B_pad, T, nh), jnp.float32),
        jax.ShapeDtypeStruct((B_pad, n_layers, nh), jnp.float32),
        jax.ShapeDtypeStruct((B_pad, n_layers, nh), jnp.float32),
    )

    kernel = functools.partial(_scn_lstm_kernel, n_layers, Tt, nh)

    out, hn, cn = pl.pallas_call(
        kernel,
        out_shape=out_shape,
        grid_spec=pltpu.PrefetchScalarGridSpec(
            num_scalar_prefetch=0,
            grid=grid,
            in_specs=in_specs,
            out_specs=out_specs,
        ),
        compiler_params=pltpu.CompilerParams(
            dimension_semantics=("arbitrary",),
            vmem_limit_bytes=64 * 1024 * 1024),
    )(x, h0, c0, *flat_w)

    return out[:B], (hn[:B], cn[:B])


# -----------------------------------------------------------------------------
# Deterministic parameter init (xavier_uniform for weights, zeros for bias)
# -----------------------------------------------------------------------------
def init_params(key, input_size, tag_size, hidden_size, n_layers):
    nh = hidden_size
    nf = hidden_size
    nk = tag_size

    def xavier(k, shape):
        fan_in, fan_out = shape
        bound = (6.0 / (fan_in + fan_out)) ** 0.5
        return jax.random.uniform(k, shape, jnp.float32, -bound, bound)

    params = []
    for layer in range(n_layers):
        nx = input_size if layer == 0 else nh
        keys = jax.random.split(jax.random.fold_in(key, layer), 4 * 6)
        Wa, Wb, Wc, Ua, Ub, Uc = [], [], [], [], [], []
        for g in range(4):
            k = keys[g * 6:(g + 1) * 6]
            Wa.append(xavier(k[0], (nf, nh)))
            Wb.append(xavier(k[1], (nk, nf)))
            Wc.append(xavier(k[2], (nx, nf)))
            Ua.append(xavier(k[3], (nf, nh)))
            Ub.append(xavier(k[4], (nk, nf)))
            Uc.append(xavier(k[5], (nh, nf)))
        b = jnp.zeros((4, 1, nh), jnp.float32)
        params.append((jnp.stack(Wa), jnp.stack(Wb), jnp.stack(Wc),
                       jnp.stack(Ua), jnp.stack(Ub), jnp.stack(Uc), b))
    return params


# -----------------------------------------------------------------------------
# Pure-JAX reference (mirrors the PyTorch forward exactly) for validation
# -----------------------------------------------------------------------------
def scn_lstm_reference(inps, hidden, keyword, params):
    tag = keyword.astype(jnp.float32)
    hns = jnp.transpose(hidden[0], (1, 0, 2))
    cns = jnp.transpose(hidden[1], (1, 0, 2))
    n_layers = len(params)
    hn_list = [hns[l] for l in range(n_layers)]
    cn_list = [cns[l] for l in range(n_layers)]
    T = inps.shape[1]
    output = []
    for i in range(T):
        inp = inps[:, i, :]
        for layer in range(n_layers):
            Wa, Wb, Wc, Ua, Ub, Uc, b = params[layer]
            hn = hn_list[layer]
            cn = cn_list[layer]
            gates = []
            for g in range(4):
                tmpx = (tag @ Wb[g]) * (inp @ Wc[g])
                tmph = (tag @ Ub[g]) * (hn @ Uc[g])
                gates.append(jax.nn.sigmoid(tmpx @ Wa[g] + tmph @ Ua[g] + b[g]))
            cn = gates[0] * gates[3] + gates[1] * cn
            hn = gates[2] * jnp.tanh(cn)
            inp = hn
            hn_list[layer] = hn
            cn_list[layer] = cn
        output.append(hn)
    output = jnp.stack(output, 1)
    hns = jnp.transpose(jnp.stack(hn_list, 0), (1, 0, 2))
    cns = jnp.transpose(jnp.stack(cn_list, 0), (1, 0, 2))
    return output, (hns, cns)


# -----------------------------------------------------------------------------
if __name__ == "__main__":
    B, T = 2, 8
    input_size, tag_size, hidden_size, n_layers = 16, 10, 32, 2

    key = jax.random.PRNGKey(0)
    k_x, k_tag, k_p = jax.random.split(key, 3)

    inps = jax.random.normal(k_x, (B, T, input_size), jnp.float32)
    keyword = jax.random.uniform(k_tag, (B, tag_size), jnp.float32)
    # init_h / init_c: zeros, shape (B, n_layers, nh)
    h0 = jnp.zeros((B, n_layers, hidden_size), jnp.float32)
    c0 = jnp.zeros((B, n_layers, hidden_size), jnp.float32)

    params = init_params(k_p, input_size, tag_size, hidden_size, n_layers)

    # f32 path (matches the PyTorch module semantics)
    out, (hns, cns) = scn_lstm_forward(inps, (h0, c0), keyword, params)
    jax.block_until_ready(out)
    jax.block_until_ready(hns)
    jax.block_until_ready(cns)

    ref_out, (ref_h, ref_c) = scn_lstm_reference(inps, (h0, c0), keyword, params)
    assert out.shape == (B, T, hidden_size)
    assert hns.shape == (B, n_layers, hidden_size)
    assert cns.shape == (B, n_layers, hidden_size)
    assert jnp.allclose(out, ref_out, atol=1e-4, rtol=1e-4)
    assert jnp.allclose(hns, ref_h, atol=1e-4, rtol=1e-4)
    assert jnp.allclose(cns, ref_c, atol=1e-4, rtol=1e-4)

    # bf16-matmul path (MXU-rate / VMEM optimization for v6e/v7x); loose check.
    out_bf, (h_bf, c_bf) = scn_lstm_forward(inps, (h0, c0), keyword, params,
                                            matmul_dtype=jnp.bfloat16)
    jax.block_until_ready(out_bf)
    assert bool(jnp.all(jnp.isfinite(out_bf)))
    assert float(jnp.max(jnp.abs(out_bf - ref_out))) < 0.25

    print("KERNEL_OK")
</pallas_src>

<mosaic_0001>
module attributes {stable_mosaic.version = 11 : i64} {
  func.func @_scn_lstm_kernel(%arg0: i32, %arg1: memref<8x8x16xf32, #tpu.memory_space<vmem>>, %arg2: memref<8x2x32xf32, #tpu.memory_space<vmem>>, %arg3: memref<8x2x32xf32, #tpu.memory_space<vmem>>, %arg4: memref<8x128xf32, #tpu.memory_space<vmem>>, %arg5: memref<8x128xf32, #tpu.memory_space<vmem>>, %arg6: memref<16x128xf32, #tpu.memory_space<vmem>>, %arg7: memref<32x128xf32, #tpu.memory_space<vmem>>, %arg8: memref<128x128xf32, #tpu.memory_space<vmem>>, %arg9: memref<128x128xf32, #tpu.memory_space<vmem>>, %arg10: memref<1x128xf32, #tpu.memory_space<vmem>>, %arg11: memref<8x128xf32, #tpu.memory_space<vmem>>, %arg12: memref<8x128xf32, #tpu.memory_space<vmem>>, %arg13: memref<32x128xf32, #tpu.memory_space<vmem>>, %arg14: memref<32x128xf32, #tpu.memory_space<vmem>>, %arg15: memref<128x128xf32, #tpu.memory_space<vmem>>, %arg16: memref<128x128xf32, #tpu.memory_space<vmem>>, %arg17: memref<1x128xf32, #tpu.memory_space<vmem>>, %arg18: memref<8x8x32xf32, #tpu.memory_space<vmem>>, %arg19: memref<8x2x32xf32, #tpu.memory_space<vmem>>, %arg20: memref<8x2x32xf32, #tpu.memory_space<vmem>>) attributes {dimension_semantics = [#tpu.dimension_semantics<arbitrary>], iteration_bounds = array<i64: 1>, scalar_prefetch = 0 : i64, scratch_operands = 0 : i64, tpu.core_type = #tpu.core_type<tc>, window_params = [{transform_indices = @transform_0, window_bounds = array<i64: 8, 8, 16>}, {pipeline_mode = #tpu.pipeline_mode<synchronous>, transform_indices = @transform_1, window_bounds = array<i64: 8, 2, 32>}, {pipeline_mode = #tpu.pipeline_mode<synchronous>, transform_indices = @transform_2, window_bounds = array<i64: 8, 2, 32>}, {pipeline_mode = #tpu.pipeline_mode<synchronous>, transform_indices = @transform_3, window_bounds = array<i64: 8, 128>}, {pipeline_mode = #tpu.pipeline_mode<synchronous>, transform_indices = @transform_4, window_bounds = array<i64: 8, 128>}, {pipeline_mode = #tpu.pipeline_mode<synchronous>, transform_indices = @transform_5, window_bounds = array<i64: 16, 128>}, {pipeline_mode = #tpu.pipeline_mode<synchronous>, transform_indices = @transform_6, window_bounds = array<i64: 32, 128>}, {pipeline_mode = #tpu.pipeline_mode<synchronous>, transform_indices = @transform_7, window_bounds = array<i64: 128, 128>}, {pipeline_mode = #tpu.pipeline_mode<synchronous>, transform_indices = @transform_8, window_bounds = array<i64: 128, 128>}, {pipeline_mode = #tpu.pipeline_mode<synchronous>, transform_indices = @transform_9, window_bounds = array<i64: 1, 128>}, {pipeline_mode = #tpu.pipeline_mode<synchronous>, transform_indices = @transform_10, window_bounds = array<i64: 8, 128>}, {pipeline_mode = #tpu.pipeline_mode<synchronous>, transform_indices = @transform_11, window_bounds = array<i64: 8, 128>}, {pipeline_mode = #tpu.pipeline_mode<synchronous>, transform_indices = @transform_12, window_bounds = array<i64: 32, 128>}, {pipeline_mode = #tpu.pipeline_mode<synchronous>, transform_indices = @transform_13, window_bounds = array<i64: 32, 128>}, {pipeline_mode = #tpu.pipeline_mode<synchronous>, transform_indices = @transform_14, window_bounds = array<i64: 128, 128>}, {pipeline_mode = #tpu.pipeline_mode<synchronous>, transform_indices = @transform_15, window_bounds = array<i64: 128, 128>}, {pipeline_mode = #tpu.pipeline_mode<synchronous>, transform_indices = @transform_16, window_bounds = array<i64: 1, 128>}, {transform_indices = @transform_17, window_bounds = array<i64: 8, 8, 32>}, {pipeline_mode = #tpu.pipeline_mode<synchronous>, transform_indices = @transform_18, window_bounds = array<i64: 8, 2, 32>}, {pipeline_mode = #tpu.pipeline_mode<synchronous>, transform_indices = @transform_19, window_bounds = array<i64: 8, 2, 32>}]} {
    %c0_i32 = arith.constant 0 : i32
    %0 = arith.cmpi eq, %arg0, %c0_i32 : i32
    %1 = arith.extui %0 : i1 to i32
    %c0_i32_0 = arith.constant 0 : i32
    %2 = arith.cmpi ne, %1, %c0_i32_0 : i32
    scf.if %2 {
      %c0_237 = arith.constant 0 : index
      %c0_238 = arith.constant 0 : index
      %c0_239 = arith.constant 0 : index
      %474 = vector.load %arg2[%c0_237, %c0_238, %c0_239] : memref<8x2x32xf32, #tpu.memory_space<vmem>>, vector<8x2x32xf32>
      %c0_240 = arith.constant 0 : index
      %c0_241 = arith.constant 0 : index
      %c0_242 = arith.constant 0 : index
      %475 = vector.load %arg19[%c0_240, %c0_241, %c0_242] : memref<8x2x32xf32, #tpu.memory_space<vmem>>, vector<8x2x32xf32>
      tpu.vector_store %arg19[%c0_240, %c0_241, %c0_242], %474 {strides = array<i32>} : memref<8x2x32xf32, #tpu.memory_space<vmem>>, vector<8x2x32xf32>,
      %c0_243 = arith.constant 0 : index
      %c0_244 = arith.constant 0 : index
      %c0_245 = arith.constant 0 : index
      %476 = vector.load %arg3[%c0_243, %c0_244, %c0_245] : memref<8x2x32xf32, #tpu.memory_space<vmem>>, vector<8x2x32xf32>
      %c0_246 = arith.constant 0 : index
      %c0_247 = arith.constant 0 : index
      %c0_248 = arith.constant 0 : index
      %477 = vector.load %arg20[%c0_246, %c0_247, %c0_248] : memref<8x2x32xf32, #tpu.memory_space<vmem>>, vector<8x2x32xf32>
      tpu.vector_store %arg20[%c0_246, %c0_247, %c0_248], %476 {strides = array<i32>} : memref<8x2x32xf32, #tpu.memory_space<vmem>>, vector<8x2x32xf32>,
    } else {
    }
    %c0 = arith.constant 0 : index
    %c0_1 = arith.constant 0 : index
    %3 = vector.load %arg4[%c0, %c0_1] : memref<8x128xf32, #tpu.memory_space<vmem>>, vector<8x128xf32>
    %c0_2 = arith.constant 0 : index
    %c0_3 = arith.constant 0 : index
    %4 = vector.load %arg5[%c0_2, %c0_3] : memref<8x128xf32, #tpu.memory_space<vmem>>, vector<8x128xf32>
    %c0_4 = arith.constant 0 : index
    %c0_5 = arith.constant 0 : index
    %5 = vector.load %arg10[%c0_4, %c0_5] : memref<1x128xf32, #tpu.memory_space<vmem>>, vector<1x128xf32>
    %6 = vector.shape_cast %5 : vector<1x128xf32> to vector<1x128xf32>
    %7 = vector.broadcast %6 : vector<1x128xf32> to vector<8x128xf32>
    %c0_6 = arith.constant 0 : index
    %c0_7 = arith.constant 0 : index
    %8 = vector.load %arg11[%c0_6, %c0_7] : memref<8x128xf32, #tpu.memory_space<vmem>>, vector<8x128xf32>
    %c0_8 = arith.constant 0 : index
    %c0_9 = arith.constant 0 : index
    %9 = vector.load %arg12[%c0_8, %c0_9] : memref<8x128xf32, #tpu.memory_space<vmem>>, vector<8x128xf32>
    %c0_10 = arith.constant 0 : index
    %c0_11 = arith.constant 0 : index
    %10 = vector.load %arg17[%c0_10, %c0_11] : memref<1x128xf32, #tpu.memory_space<vmem>>, vector<1x128xf32>
    %11 = vector.shape_cast %10 : vector<1x128xf32> to vector<1x128xf32>
    %12 = vector.broadcast %11 : vector<1x128xf32> to vector<8x128xf32>
    %c0_12 = arith.constant 0 : index
    %c0_13 = arith.constant 0 : index
    %c0_14 = arith.constant 0 : index
    %13 = vector.load %arg1[%c0_12, %c0_13, %c0_14] : memref<8x8x16xf32, #tpu.memory_space<vmem>>, vector<8x8x16xf32>
    %c0_15 = arith.constant 0 : index
    %c0_16 = arith.constant 0 : index
    %c0_17 = arith.constant 0 : index
    %14 = vector.load %arg19[%c0_15, %c0_16, %c0_17] : memref<8x2x32xf32, #tpu.memory_space<vmem>>, vector<8x2x32xf32>
    %c0_18 = arith.constant 0 : index
    %c0_19 = arith.constant 0 : index
    %c0_20 = arith.constant 0 : index
    %15 = vector.load %arg20[%c0_18, %c0_19, %c0_20] : memref<8x2x32xf32, #tpu.memory_space<vmem>>, vector<8x2x32xf32>
    %16 = vector.extract_strided_slice %14 {offsets = [0, 0, 0], sizes = [8, 1, 32], strides = [1, 1, 1]} : vector<8x2x32xf32> to vector<8x1x32xf32>
    %17 = vector.shape_cast %16 : vector<8x1x32xf32> to vector<8x32xf32>
    %18 = vector.extract_strided_slice %14 {offsets = [0, 1, 0], sizes = [8, 1, 32], strides = [1, 1, 1]} : vector<8x2x32xf32> to vector<8x1x32xf32>
    %19 = vector.shape_cast %18 : vector<8x1x32xf32> to vector<8x32xf32>
    %20 = vector.extract_strided_slice %15 {offsets = [0, 0, 0], sizes = [8, 1, 32], strides = [1, 1, 1]} : vector<8x2x32xf32> to vector<8x1x32xf32>
    %21 = vector.shape_cast %20 : vector<8x1x32xf32> to vector<8x32xf32>
    %22 = vector.extract_strided_slice %15 {offsets = [0, 1, 0], sizes = [8, 1, 32], strides = [1, 1, 1]} : vector<8x2x32xf32> to vector<8x1x32xf32>
    %23 = vector.shape_cast %22 : vector<8x1x32xf32> to vector<8x32xf32>
    %24 = vector.extract_strided_slice %13 {offsets = [0, 0, 0], sizes = [8, 1, 16], strides = [1, 1, 1]} : vector<8x8x16xf32> to vector<8x1x16xf32>
    %25 = vector.shape_cast %24 : vector<8x1x16xf32> to vector<8x16xf32>
    %c0_21 = arith.constant 0 : index
    %c0_22 = arith.constant 0 : index
    %26 = vector.load %arg6[%c0_21, %c0_22] : memref<16x128xf32, #tpu.memory_space<vmem>>, vector<16x128xf32>
    %cst = arith.constant dense<0.000000e+00> : vector<8x128xf32>
    %27 = tpu.matmul %25, %26, %cst {dimension_numbers = #tpu.dot_dimension_numbers<[1], [0], [0], [1], [0, 0, 1, 1], [], []>} : vector<8x16xf32>, vector<16x128xf32>, vector<8x128xf32> -> vector<8x128xf32>
    %c0_23 = arith.constant 0 : index
    %c0_24 = arith.constant 0 : index
    %28 = vector.load %arg7[%c0_23, %c0_24] : memref<32x128xf32, #tpu.memory_space<vmem>>, vector<32x128xf32>
    %cst_25 = arith.constant dense<0.000000e+00> : vector<8x128xf32>
    %29 = tpu.matmul %17, %28, %cst_25 {dimension_numbers = #tpu.dot_dimension_numbers<[1], [0], [0], [1], [0, 0, 1, 1], [], []>} : vector<8x32xf32>, vector<32x128xf32>, vector<8x128xf32> -> vector<8x128xf32>
    %30 = arith.mulf %3, %27 : vector<8x128xf32>
    %31 = arith.mulf %4, %29 : vector<8x128xf32>
    %c0_26 = arith.constant 0 : index
    %c0_27 = arith.constant 0 : index
    %32 = vector.load %arg8[%c0_26, %c0_27] : memref<128x128xf32, #tpu.memory_space<vmem>>, vector<128x128xf32>
    %cst_28 = arith.constant dense<0.000000e+00> : vector<8x128xf32>
    %33 = tpu.matmul %30, %32, %cst_28 {dimension_numbers = #tpu.dot_dimension_numbers<[1], [0], [0], [1], [0, 0, 1, 1], [], []>} : vector<8x128xf32>, vector<128x128xf32>, vector<8x128xf32> -> vector<8x128xf32>
    %c0_29 = arith.constant 0 : index
    %c0_30 = arith.constant 0 : index
    %34 = vector.load %arg9[%c0_29, %c0_30] : memref<128x128xf32, #tpu.memory_space<vmem>>, vector<128x128xf32>
    %cst_31 = arith.constant dense<0.000000e+00> : vector<8x128xf32>
    %35 = tpu.matmul %31, %34, %cst_31 {dimension_numbers = #tpu.dot_dimension_numbers<[1], [0], [0], [1], [0, 0, 1, 1], [], []>} : vector<8x128xf32>, vector<128x128xf32>, vector<8x128xf32> -> vector<8x128xf32>
    %36 = arith.addf %33, %35 : vector<8x128xf32>
    %37 = arith.addf %36, %7 : vector<8x128xf32>
    %38 = arith.negf %37 : vector<8x128xf32>
    %39 = math.exp %38 : vector<8x128xf32>
    %cst_32 = arith.constant 1.000000e+00 : f32
    %40 = vector.broadcast %cst_32 : f32 to vector<8x128xf32>
    %41 = arith.addf %40, %39 : vector<8x128xf32>
    %42 = arith.divf %40, %41 : vector<8x128xf32>
    %43 = vector.extract_strided_slice %42 {offsets = [0, 0], sizes = [8, 32], strides = [1, 1]} : vector<8x128xf32> to vector<8x32xf32>
    %44 = vector.extract_strided_slice %42 {offsets = [0, 32], sizes = [8, 32], strides = [1, 1]} : vector<8x128xf32> to vector<8x32xf32>
    %45 = vector.extract_strided_slice %42 {offsets = [0, 64], sizes = [8, 32], strides = [1, 1]} : vector<8x128xf32> to vector<8x32xf32>
    %46 = vector.extract_strided_slice %42 {offsets = [0, 96], sizes = [8, 32], strides = [1, 1]} : vector<8x128xf32> to vector<8x32xf32>
    %47 = arith.mulf %43, %46 : vector<8x32xf32>
    %48 = arith.mulf %44, %21 : vector<8x32xf32>
    %49 = arith.addf %47, %48 : vector<8x32xf32>
    %50 = math.tanh %49 : vector<8x32xf32>
    %51 = arith.mulf %45, %50 : vector<8x32xf32>
    %c0_33 = arith.constant 0 : index
    %c0_34 = arith.constant 0 : index
    %52 = vector.load %arg13[%c0_33, %c0_34] : memref<32x128xf32, #tpu.memory_space<vmem>>, vector<32x128xf32>
    %cst_35 = arith.constant dense<0.000000e+00> : vector<8x128xf32>
    %53 = tpu.matmul %51, %52, %cst_35 {dimension_numbers = #tpu.dot_dimension_numbers<[1], [0], [0], [1], [0, 0, 1, 1], [], []>} : vector<8x32xf32>, vector<32x128xf32>, vector<8x128xf32> -> vector<8x128xf32>
    %c0_36 = arith.constant 0 : index
    %c0_37 = arith.constant 0 : index
    %54 = vector.load %arg14[%c0_36, %c0_37] : memref<32x128xf32, #tpu.memory_space<vmem>>, vector<32x128xf32>
    %cst_38 = arith.constant dense<0.000000e+00> : vector<8x128xf32>
    %55 = tpu.matmul %19, %54, %cst_38 {dimension_numbers = #tpu.dot_dimension_numbers<[1], [0], [0], [1], [0, 0, 1, 1], [], []>} : vector<8x32xf32>, vector<32x128xf32>, vector<8x128xf32> -> vector<8x128xf32>
    %56 = arith.mulf %8, %53 : vector<8x128xf32>
    %57 = arith.mulf %9, %55 : vector<8x128xf32>
    %c0_39 = arith.constant 0 : index
    %c0_40 = arith.constant 0 : index
    %58 = vector.load %arg15[%c0_39, %c0_40] : memref<128x128xf32, #tpu.memory_space<vmem>>, vector<128x128xf32>
    %cst_41 = arith.constant dense<0.000000e+00> : vector<8x128xf32>
    %59 = tpu.matmul %56, %58, %cst_41 {dimension_numbers = #tpu.dot_dimension_numbers<[1], [0], [0], [1], [0, 0, 1, 1], [], []>} : vector<8x128xf32>, vector<128x128xf32>, vector<8x128xf32> -> vector<8x128xf32>
    %c0_42 = arith.constant 0 : index
    %c0_43 = arith.constant 0 : index
    %60 = vector.load %arg16[%c0_42, %c0_43] : memref<128x128xf32, #tpu.memory_space<vmem>>, vector<128x128xf32>
    %cst_44 = arith.constant dense<0.000000e+00> : vector<8x128xf32>
    %61 = tpu.matmul %57, %60, %cst_44 {dimension_numbers = #tpu.dot_dimension_numbers<[1], [0], [0], [1], [0, 0, 1, 1], [], []>} : vector<8x128xf32>, vector<128x128xf32>, vector<8x128xf32> -> vector<8x128xf32>
    %62 = arith.addf %59, %61 : vector<8x128xf32>
    %63 = arith.addf %62, %12 : vector<8x128xf32>
    %64 = arith.negf %63 : vector<8x128xf32>
    %65 = math.exp %64 : vector<8x128xf32>
    %cst_45 = arith.constant 1.000000e+00 : f32
    %66 = vector.broadcast %cst_45 : f32 to vector<8x128xf32>
    %67 = arith.addf %66, %65 : vector<8x128xf32>
    %68 = arith.divf %66, %67 : vector<8x128xf32>
    %69 = vector.extract_strided_slice %68 {offsets = [0, 0], sizes = [8, 32], strides = [1, 1]} : vector<8x128xf32> to vector<8x32xf32>
    %70 = vector.extract_strided_slice %68 {offsets = [0, 32], sizes = [8, 32], strides = [1, 1]} : vector<8x128xf32> to vector<8x32xf32>
    %71 = vector.extract_strided_slice %68 {offsets = [0, 64], sizes = [8, 32], strides = [1, 1]} : vector<8x128xf32> to vector<8x32xf32>
    %72 = vector.extract_strided_slice %68 {offsets = [0, 96], sizes = [8, 32], strides = [1, 1]} : vector<8x128xf32> to vector<8x32xf32>
    %73 = arith.mulf %69, %72 : vector<8x32xf32>
    %74 = arith.mulf %70, %23 : vector<8x32xf32>
    %75 = arith.addf %73, %74 : vector<8x32xf32>
    %76 = math.tanh %75 : vector<8x32xf32>
    %77 = arith.mulf %71, %76 : vector<8x32xf32>
    %78 = vector.extract_strided_slice %13 {offsets = [0, 1, 0], sizes = [8, 1, 16], strides = [1, 1, 1]} : vector<8x8x16xf32> to vector<8x1x16xf32>
    %79 = vector.shape_cast %78 : vector<8x1x16xf32> to vector<8x16xf32>
    %c0_46 = arith.constant 0 : index
    %c0_47 = arith.constant 0 : index
    %80 = vector.load %arg6[%c0_46, %c0_47] : memref<16x128xf32, #tpu.memory_space<vmem>>, vector<16x128xf32>
    %cst_48 = arith.constant dense<0.000000e+00> : vector<8x128xf32>
    %81 = tpu.matmul %79, %80, %cst_48 {dimension_numbers = #tpu.dot_dimension_numbers<[1], [0], [0], [1], [0, 0, 1, 1], [], []>} : vector<8x16xf32>, vector<16x128xf32>, vector<8x128xf32> -> vector<8x128xf32>
    %c0_49 = arith.constant 0 : index
    %c0_50 = arith.constant 0 : index
    %82 = vector.load %arg7[%c0_49, %c0_50] : memref<32x128xf32, #tpu.memory_space<vmem>>, vector<32x128xf32>
    %cst_51 = arith.constant dense<0.000000e+00> : vector<8x128xf32>
    %83 = tpu.matmul %51, %82, %cst_51 {dimension_numbers = #tpu.dot_dimension_numbers<[1], [0], [0], [1], [0, 0, 1, 1], [], []>} : vector<8x32xf32>, vector<32x128xf32>, vector<8x128xf32> -> vector<8x128xf32>
    %84 = arith.mulf %3, %81 : vector<8x128xf32>
    %85 = arith.mulf %4, %83 : vector<8x128xf32>
    %c0_52 = arith.constant 0 : index
    %c0_53 = arith.constant 0 : index
    %86 = vector.load %arg8[%c0_52, %c0_53] : memref<128x128xf32, #tpu.memory_space<vmem>>, vector<128x128xf32>
    %cst_54 = arith.constant dense<0.000000e+00> : vector<8x128xf32>
    %87 = tpu.matmul %84, %86, %cst_54 {dimension_numbers = #tpu.dot_dimension_numbers<[1], [0], [0], [1], [0, 0, 1, 1], [], []>} : vector<8x128xf32>, vector<128x128xf32>, vector<8x128xf32> -> vector<8x128xf32>
    %c0_55 = arith.constant 0 : index
    %c0_56 = arith.constant 0 : index
    %88 = vector.load %arg9[%c0_55, %c0_56] : memref<128x128xf32, #tpu.memory_space<vmem>>, vector<128x128xf32>
    %cst_57 = arith.constant dense<0.000000e+00> : vector<8x128xf32>
    %89 = tpu.matmul %85, %88, %cst_57 {dimension_numbers = #tpu.dot_dimension_numbers<[1], [0], [0], [1], [0, 0, 1, 1], [], []>} : vector<8x128xf32>, vector<128x128xf32>, vector<8x128xf32> -> vector<8x128xf32>
    %90 = arith.addf %87, %89 : vector<8x128xf32>
    %91 = arith.addf %90, %7 : vector<8x128xf32>
    %92 = arith.negf %91 : vector<8x128xf32>
    %93 = math.exp %92 : vector<8x128xf32>
    %cst_58 = arith.constant 1.000000e+00 : f32
    %94 = vector.broadcast %cst_58 : f32 to vector<8x128xf32>
    %95 = arith.addf %94, %93 : vector<8x128xf32>
    %96 = arith.divf %94, %95 : vector<8x128xf32>
    %97 = vector.extract_strided_slice %96 {offsets = [0, 0], sizes = [8, 32], strides = [1, 1]} : vector<8x128xf32> to vector<8x32xf32>
    %98 = vector.extract_strided_slice %96 {offsets = [0, 32], sizes = [8, 32], strides = [1, 1]} : vector<8x128xf32> to vector<8x32xf32>
    %99 = vector.extract_strided_slice %96 {offsets = [0, 64], sizes = [8, 32], strides = [1, 1]} : vector<8x128xf32> to vector<8x32xf32>
    %100 = vector.extract_strided_slice %96 {offsets = [0, 96], sizes = [8, 32], strides = [1, 1]} : vector<8x128xf32> to vector<8x32xf32>
    %101 = arith.mulf %97, %100 : vector<8x32xf32>
    %102 = arith.mulf %98, %49 : vector<8x32xf32>
    %103 = arith.addf %101, %102 : vector<8x32xf32>
    %104 = math.tanh %103 : vector<8x32xf32>
    %105 = arith.mulf %99, %104 : vector<8x32xf32>
    %c0_59 = arith.constant 0 : index
    %c0_60 = arith.constant 0 : index
    %106 = vector.load %arg13[%c0_59, %c0_60] : memref<32x128xf32, #tpu.memory_space<vmem>>, vector<32x128xf32>
    %cst_61 = arith.constant dense<0.000000e+00> : vector<8x128xf32>
    %107 = tpu.matmul %105, %106, %cst_61 {dimension_numbers = #tpu.dot_dimension_numbers<[1], [0], [0], [1], [0, 0, 1, 1], [], []>} : vector<8x32xf32>, vector<32x128xf32>, vector<8x128xf32> -> vector<8x128xf32>
    %c0_62 = arith.constant 0 : index
    %c0_63 = arith.constant 0 : index
    %108 = vector.load %arg14[%c0_62, %c0_63] : memref<32x128xf32, #tpu.memory_space<vmem>>, vector<32x128xf32>
    %cst_64 = arith.constant dense<0.000000e+00> : vector<8x128xf32>
    %109 = tpu.matmul %77, %108, %cst_64 {dimension_numbers = #tpu.dot_dimension_numbers<[1], [0], [0], [1], [0, 0, 1, 1], [], []>} : vector<8x32xf32>, vector<32x128xf32>, vector<8x128xf32> -> vector<8x128xf32>
    %110 = arith.mulf %8, %107 : vector<8x128xf32>
    %111 = arith.mulf %9, %109 : vector<8x128xf32>
    %c0_65 = arith.constant 0 : index
    %c0_66 = arith.constant 0 : index
    %112 = vector.load %arg15[%c0_65, %c0_66] : memref<128x128xf32, #tpu.memory_space<vmem>>, vector<128x128xf32>
    %cst_67 = arith.constant dense<0.000000e+00> : vector<8x128xf32>
    %113 = tpu.matmul %110, %112, %cst_67 {dimension_numbers = #tpu.dot_dimension_numbers<[1], [0], [0], [1], [0, 0, 1, 1], [], []>} : vector<8x128xf32>, vector<128x128xf32>, vector<8x128xf32> -> vector<8x128xf32>
    %c0_68 = arith.constant 0 : index
    %c0_69 = arith.constant 0 : index
    %114 = vector.load %arg16[%c0_68, %c0_69] : memref<128x128xf32, #tpu.memory_space<vmem>>, vector<128x128xf32>
    %cst_70 = arith.constant dense<0.000000e+00> : vector<8x128xf32>
    %115 = tpu.matmul %111, %114, %cst_70 {dimension_numbers = #tpu.dot_dimension_numbers<[1], [0], [0], [1], [0, 0, 1, 1], [], []>} : vector<8x128xf32>, vector<128x128xf32>, vector<8x128xf32> -> vector<8x128xf32>
    %116 = arith.addf %113, %115 : vector<8x128xf32>
    %117 = arith.addf %116, %12 : vector<8x128xf32>
    %118 = arith.negf %117 : vector<8x128xf32>
    %119 = math.exp %118 : vector<8x128xf32>
    %cst_71 = arith.constant 1.000000e+00 : f32
    %120 = vector.broadcast %cst_71 : f32 to vector<8x128xf32>
    %121 = arith.addf %120, %119 : vector<8x128xf32>
    %122 = arith.divf %120, %121 : vector<8x128xf32>
    %123 = vector.extract_strided_slice %122 {offsets = [0, 0], sizes = [8, 32], strides = [1, 1]} : vector<8x128xf32> to vector<8x32xf32>
    %124 = vector.extract_strided_slice %122 {offsets = [0, 32], sizes = [8, 32], strides = [1, 1]} : vector<8x128xf32> to vector<8x32xf32>
    %125 = vector.extract_strided_slice %122 {offsets = [0, 64], sizes = [8, 32], strides = [1, 1]} : vector<8x128xf32> to vector<8x32xf32>
    %126 = vector.extract_strided_slice %122 {offsets = [0, 96], sizes = [8, 32], strides = [1, 1]} : vector<8x128xf32> to vector<8x32xf32>
    %127 = arith.mulf %123, %126 : vector<8x32xf32>
    %128 = arith.mulf %124, %75 : vector<8x32xf32>
    %129 = arith.addf %127, %128 : vector<8x32xf32>
    %130 = math.tanh %129 : vector<8x32xf32>
    %131 = arith.mulf %125, %130 : vector<8x32xf32>
    %132 = vector.extract_strided_slice %13 {offsets = [0, 2, 0], sizes = [8, 1, 16], strides = [1, 1, 1]} : vector<8x8x16xf32> to vector<8x1x16xf32>
    %133 = vector.shape_cast %132 : vector<8x1x16xf32> to vector<8x16xf32>
    %c0_72 = arith.constant 0 : index
    %c0_73 = arith.constant 0 : index
    %134 = vector.load %arg6[%c0_72, %c0_73] : memref<16x128xf32, #tpu.memory_space<vmem>>, vector<16x128xf32>
    %cst_74 = arith.constant dense<0.000000e+00> : vector<8x128xf32>
    %135 = tpu.matmul %133, %134, %cst_74 {dimension_numbers = #tpu.dot_dimension_numbers<[1], [0], [0], [1], [0, 0, 1, 1], [], []>} : vector<8x16xf32>, vector<16x128xf32>, vector<8x128xf32> -> vector<8x128xf32>
    %c0_75 = arith.constant 0 : index
    %c0_76 = arith.constant 0 : index
    %136 = vector.load %arg7[%c0_75, %c0_76] : memref<32x128xf32, #tpu.memory_space<vmem>>, vector<32x128xf32>
    %cst_77 = arith.constant dense<0.000000e+00> : vector<8x128xf32>
    %137 = tpu.matmul %105, %136, %cst_77 {dimension_numbers = #tpu.dot_dimension_numbers<[1], [0], [0], [1], [0, 0, 1, 1], [], []>} : vector<8x32xf32>, vector<32x128xf32>, vector<8x128xf32> -> vector<8x128xf32>
    %138 = arith.mulf %3, %135 : vector<8x128xf32>
    %139 = arith.mulf %4, %137 : vector<8x128xf32>
    %c0_78 = arith.constant 0 : index
    %c0_79 = arith.constant 0 : index
    %140 = vector.load %arg8[%c0_78, %c0_79] : memref<128x128xf32, #tpu.memory_space<vmem>>, vector<128x128xf32>
    %cst_80 = arith.constant dense<0.000000e+00> : vector<8x128xf32>
    %141 = tpu.matmul %138, %140, %cst_80 {dimension_numbers = #tpu.dot_dimension_numbers<[1], [0], [0], [1], [0, 0, 1, 1], [], []>} : vector<8x128xf32>, vector<128x128xf32>, vector<8x128xf32> -> vector<8x128xf32>
    %c0_81 = arith.constant 0 : index
    %c0_82 = arith.constant 0 : index
    %142 = vector.load %arg9[%c0_81, %c0_82] : memref<128x128xf32, #tpu.memory_space<vmem>>, vector<128x128xf32>
    %cst_83 = arith.constant dense<0.000000e+00> : vector<8x128xf32>
    %143 = tpu.matmul %139, %142, %cst_83 {dimension_numbers = #tpu.dot_dimension_numbers<[1], [0], [0], [1], [0, 0, 1, 1], [], []>} : vector<8x128xf32>, vector<128x128xf32>, vector<8x128xf32> -> vector<8x128xf32>
    %144 = arith.addf %141, %143 : vector<8x128xf32>
    %145 = arith.addf %144, %7 : vector<8x128xf32>
    %146 = arith.negf %145 : vector<8x128xf32>
    %147 = math.exp %146 : vector<8x128xf32>
    %cst_84 = arith.constant 1.000000e+00 : f32
    %148 = vector.broadcast %cst_84 : f32 to vector<8x128xf32>
    %149 = arith.addf %148, %147 : vector<8x128xf32>
    %150 = arith.divf %148, %149 : vector<8x128xf32>
    %151 = vector.extract_strided_slice %150 {offsets = [0, 0], sizes = [8, 32], strides = [1, 1]} : vector<8x128xf32> to vector<8x32xf32>
    %152 = vector.extract_strided_slice %150 {offsets = [0, 32], sizes = [8, 32], strides = [1, 1]} : vector<8x128xf32> to vector<8x32xf32>
    %153 = vector.extract_strided_slice %150 {offsets = [0, 64], sizes = [8, 32], strides = [1, 1]} : vector<8x128xf32> to vector<8x32xf32>
    %154 = vector.extract_strided_slice %150 {offsets = [0, 96], sizes = [8, 32], strides = [1, 1]} : vector<8x128xf32> to vector<8x32xf32>
    %155 = arith.mulf %151, %154 : vector<8x32xf32>
    %156 = arith.mulf %152, %103 : vector<8x32xf32>
    %157 = arith.addf %155, %156 : vector<8x32xf32>
    %158 = math.tanh %157 : vector<8x32xf32>
    %159 = arith.mulf %153, %158 : vector<8x32xf32>
    %c0_85 = arith.constant 0 : index
    %c0_86 = arith.constant 0 : index
    %160 = vector.load %arg13[%c0_85, %c0_86] : memref<32x128xf32, #tpu.memory_space<vmem>>, vector<32x128xf32>
    %cst_87 = arith.constant dense<0.000000e+00> : vector<8x128xf32>
    %161 = tpu.matmul %159, %160, %cst_87 {dimension_numbers = #tpu.dot_dimension_numbers<[1], [0], [0], [1], [0, 0, 1, 1], [], []>} : vector<8x32xf32>, vector<32x128xf32>, vector<8x128xf32> -> vector<8x128xf32>
    %c0_88 = arith.constant 0 : index
    %c0_89 = arith.constant 0 : index
    %162 = vector.load %arg14[%c0_88, %c0_89] : memref<32x128xf32, #tpu.memory_space<vmem>>, vector<32x128xf32>
    %cst_90 = arith.constant dense<0.000000e+00> : vector<8x128xf32>
    %163 = tpu.matmul %131, %162, %cst_90 {dimension_numbers = #tpu.dot_dimension_numbers<[1], [0], [0], [1], [0, 0, 1, 1], [], []>} : vector<8x32xf32>, vector<32x128xf32>, vector<8x128xf32> -> vector<8x128xf32>
    %164 = arith.mulf %8, %161 : vector<8x128xf32>
    %165 = arith.mulf %9, %163 : vector<8x128xf32>
    %c0_91 = arith.constant 0 : index
    %c0_92 = arith.constant 0 : index
    %166 = vector.load %arg15[%c0_91, %c0_92] : memref<128x128xf32, #tpu.memory_space<vmem>>, vector<128x128xf32>
    %cst_93 = arith.constant dense<0.000000e+00> : vector<8x128xf32>
    %167 = tpu.matmul %164, %166, %cst_93 {dimension_numbers = #tpu.dot_dimension_numbers<[1], [0], [0], [1], [0, 0, 1, 1], [], []>} : vector<8x128xf32>, vector<128x128xf32>, vector<8x128xf32> -> vector<8x128xf32>
    %c0_94 = arith.constant 0 : index
    %c0_95 = arith.constant 0 : index
    %168 = vector.load %arg16[%c0_94, %c0_95] : memref<128x128xf32, #tpu.memory_space<vmem>>, vector<128x128xf32>
    %cst_96 = arith.constant dense<0.000000e+00> : vector<8x128xf32>
    %169 = tpu.matmul %165, %168, %cst_96 {dimension_numbers = #tpu.dot_dimension_numbers<[1], [0], [0], [1], [0, 0, 1, 1], [], []>} : vector<8x128xf32>, vector<128x128xf32>, vector<8x128xf32> -> vector<8x128xf32>
    %170 = arith.addf %167, %169 : vector<8x128xf32>
    %171 = arith.addf %170, %12 : vector<8x128xf32>
    %172 = arith.negf %171 : vector<8x128xf32>
    %173 = math.exp %172 : vector<8x128xf32>
    %cst_97 = arith.constant 1.000000e+00 : f32
    %174 = vector.broadcast %cst_97 : f32 to vector<8x128xf32>
    %175 = arith.addf %174, %173 : vector<8x128xf32>
    %176 = arith.divf %174, %175 : vector<8x128xf32>
    %177 = vector.extract_strided_slice %176 {offsets = [0, 0], sizes = [8, 32], strides = [1, 1]} : vector<8x128xf32> to vector<8x32xf32>
    %178 = vector.extract_strided_slice %176 {offsets = [0, 32], sizes = [8, 32], strides = [1, 1]} : vector<8x128xf32> to vector<8x32xf32>
    %179 = vector.extract_strided_slice %176 {offsets = [0, 64], sizes = [8, 32], strides = [1, 1]} : vector<8x128xf32> to vector<8x32xf32>
    %180 = vector.extract_strided_slice %176 {offsets = [0, 96], sizes = [8, 32], strides = [1, 1]} : vector<8x128xf32> to vector<8x32xf32>
    %181 = arith.mulf %177, %180 : vector<8x32xf32>
    %182 = arith.mulf %178, %129 : vector<8x32xf32>
    %183 = arith.addf %181, %182 : vector<8x32xf32>
    %184 = math.tanh %183 : vector<8x32xf32>
    %185 = arith.mulf %179, %184 : vector<8x32xf32>
    %186 = vector.extract_strided_slice %13 {offsets = [0, 3, 0], sizes = [8, 1, 16], strides = [1, 1, 1]} : vector<8x8x16xf32> to vector<8x1x16xf32>
    %187 = vector.shape_cast %186 : vector<8x1x16xf32> to vector<8x16xf32>
    %c0_98 = arith.constant 0 : index
    %c0_99 = arith.constant 0 : index
    %188 = vector.load %arg6[%c0_98, %c0_99] : memref<16x128xf32, #tpu.memory_space<vmem>>, vector<16x128xf32>
    %cst_100 = arith.constant dense<0.000000e+00> : vector<8x128xf32>
    %189 = tpu.matmul %187, %188, %cst_100 {dimension_numbers = #tpu.dot_dimension_numbers<[1], [0], [0], [1], [0, 0, 1, 1], [], []>} : vector<8x16xf32>, vector<16x128xf32>, vector<8x128xf32> -> vector<8x128xf32>
    %c0_101 = arith.constant 0 : index
    %c0_102 = arith.constant 0 : index
    %190 = vector.load %arg7[%c0_101, %c0_102] : memref<32x128xf32, #tpu.memory_space<vmem>>, vector<32x128xf32>
    %cst_103 = arith.constant dense<0.000000e+00> : vector<8x128xf32>
    %191 = tpu.matmul %159, %190, %cst_103 {dimension_numbers = #tpu.dot_dimension_numbers<[1], [0], [0], [1], [0, 0, 1, 1], [], []>} : vector<8x32xf32>, vector<32x128xf32>, vector<8x128xf32> -> vector<8x128xf32>
    %192 = arith.mulf %3, %189 : vector<8x128xf32>
    %193 = arith.mulf %4, %191 : vector<8x128xf32>
    %c0_104 = arith.constant 0 : index
    %c0_105 = arith.constant 0 : index
    %194 = vector.load %arg8[%c0_104, %c0_105] : memref<128x128xf32, #tpu.memory_space<vmem>>, vector<128x128xf32>
    %cst_106 = arith.constant dense<0.000000e+00> : vector<8x128xf32>
    %195 = tpu.matmul %192, %194, %cst_106 {dimension_numbers = #tpu.dot_dimension_numbers<[1], [0], [0], [1], [0, 0, 1, 1], [], []>} : vector<8x128xf32>, vector<128x128xf32>, vector<8x128xf32> -> vector<8x128xf32>
    %c0_107 = arith.constant 0 : index
    %c0_108 = arith.constant 0 : index
    %196 = vector.load %arg9[%c0_107, %c0_108] : memref<128x128xf32, #tpu.memory_space<vmem>>, vector<128x128xf32>
    %cst_109 = arith.constant dense<0.000000e+00> : vector<8x128xf32>
    %197 = tpu.matmul %193, %196, %cst_109 {dimension_numbers = #tpu.dot_dimension_numbers<[1], [0], [0], [1], [0, 0, 1, 1], [], []>} : vector<8x128xf32>, vector<128x128xf32>, vector<8x128xf32> -> vector<8x128xf32>
    %198 = arith.addf %195, %197 : vector<8x128xf32>
    %199 = arith.addf %198, %7 : vector<8x128xf32>
    %200 = arith.negf %199 : vector<8x128xf32>
    %201 = math.exp %200 : vector<8x128xf32>
    %cst_110 = arith.constant 1.000000e+00 : f32
    %202 = vector.broadcast %cst_110 : f32 to vector<8x128xf32>
    %203 = arith.addf %202, %201 : vector<8x128xf32>
    %204 = arith.divf %202, %203 : vector<8x128xf32>
    %205 = vector.extract_strided_slice %204 {offsets = [0, 0], sizes = [8, 32], strides = [1, 1]} : vector<8x128xf32> to vector<8x32xf32>
    %206 = vector.extract_strided_slice %204 {offsets = [0, 32], sizes = [8, 32], strides = [1, 1]} : vector<8x128xf32> to vector<8x32xf32>
    %207 = vector.extract_strided_slice %204 {offsets = [0, 64], sizes = [8, 32], strides = [1, 1]} : vector<8x128xf32> to vector<8x32xf32>
    %208 = vector.extract_strided_slice %204 {offsets = [0, 96], sizes = [8, 32], strides = [1, 1]} : vector<8x128xf32> to vector<8x32xf32>
    %209 = arith.mulf %205, %208 : vector<8x32xf32>
    %210 = arith.mulf %206, %157 : vector<8x32xf32>
    %211 = arith.addf %209, %210 : vector<8x32xf32>
    %212 = math.tanh %211 : vector<8x32xf32>
    %213 = arith.mulf %207, %212 : vector<8x32xf32>
    %c0_111 = arith.constant 0 : index
    %c0_112 = arith.constant 0 : index
    %214 = vector.load %arg13[%c0_111, %c0_112] : memref<32x128xf32, #tpu.memory_space<vmem>>, vector<32x128xf32>
    %cst_113 = arith.constant dense<0.000000e+00> : vector<8x128xf32>
    %215 = tpu.matmul %213, %214, %cst_113 {dimension_numbers = #tpu.dot_dimension_numbers<[1], [0], [0], [1], [0, 0, 1, 1], [], []>} : vector<8x32xf32>, vector<32x128xf32>, vector<8x128xf32> -> vector<8x128xf32>
    %c0_114 = arith.constant 0 : index
    %c0_115 = arith.constant 0 : index
    %216 = vector.load %arg14[%c0_114, %c0_115] : memref<32x128xf32, #tpu.memory_space<vmem>>, vector<32x128xf32>
    %cst_116 = arith.constant dense<0.000000e+00> : vector<8x128xf32>
    %217 = tpu.matmul %185, %216, %cst_116 {dimension_numbers = #tpu.dot_dimension_numbers<[1], [0], [0], [1], [0, 0, 1, 1], [], []>} : vector<8x32xf32>, vector<32x128xf32>, vector<8x128xf32> -> vector<8x128xf32>
    %218 = arith.mulf %8, %215 : vector<8x128xf32>
    %219 = arith.mulf %9, %217 : vector<8x128xf32>
    %c0_117 = arith.constant 0 : index
    %c0_118 = arith.constant 0 : index
    %220 = vector.load %arg15[%c0_117, %c0_118] : memref<128x128xf32, #tpu.memory_space<vmem>>, vector<128x128xf32>
    %cst_119 = arith.constant dense<0.000000e+00> : vector<8x128xf32>
    %221 = tpu.matmul %218, %220, %cst_119 {dimension_numbers = #tpu.dot_dimension_numbers<[1], [0], [0], [1], [0, 0, 1, 1], [], []>} : vector<8x128xf32>, vector<128x128xf32>, vector<8x128xf32> -> vector<8x128xf32>
    %c0_120 = arith.constant 0 : index
    %c0_121 = arith.constant 0 : index
    %222 = vector.load %arg16[%c0_120, %c0_121] : memref<128x128xf32, #tpu.memory_space<vmem>>, vector<128x128xf32>
    %cst_122 = arith.constant dense<0.000000e+00> : vector<8x128xf32>
    %223 = tpu.matmul %219, %222, %cst_122 {dimension_numbers = #tpu.dot_dimension_numbers<[1], [0], [0], [1], [0, 0, 1, 1], [], []>} : vector<8x128xf32>, vector<128x128xf32>, vector<8x128xf32> -> vector<8x128xf32>
    %224 = arith.addf %221, %223 : vector<8x128xf32>
    %225 = arith.addf %224, %12 : vector<8x128xf32>
    %226 = arith.negf %225 : vector<8x128xf32>
    %227 = math.exp %226 : vector<8x128xf32>
    %cst_123 = arith.constant 1.000000e+00 : f32
    %228 = vector.broadcast %cst_123 : f32 to vector<8x128xf32>
    %229 = arith.addf %228, %227 : vector<8x128xf32>
    %230 = arith.divf %228, %229 : vector<8x128xf32>
    %231 = vector.extract_strided_slice %230 {offsets = [0, 0], sizes = [8, 32], strides = [1, 1]} : vector<8x128xf32> to vector<8x32xf32>
    %232 = vector.extract_strided_slice %230 {offsets = [0, 32], sizes = [8, 32], strides = [1, 1]} : vector<8x128xf32> to vector<8x32xf32>
    %233 = vector.extract_strided_slice %230 {offsets = [0, 64], sizes = [8, 32], strides = [1, 1]} : vector<8x128xf32> to vector<8x32xf32>
    %234 = vector.extract_strided_slice %230 {offsets = [0, 96], sizes = [8, 32], strides = [1, 1]} : vector<8x128xf32> to vector<8x32xf32>
    %235 = arith.mulf %231, %234 : vector<8x32xf32>
    %236 = arith.mulf %232, %183 : vector<8x32xf32>
    %237 = arith.addf %235, %236 : vector<8x32xf32>
    %238 = math.tanh %237 : vector<8x32xf32>
    %239 = arith.mulf %233, %238 : vector<8x32xf32>
    %240 = vector.extract_strided_slice %13 {offsets = [0, 4, 0], sizes = [8, 1, 16], strides = [1, 1, 1]} : vector<8x8x16xf32> to vector<8x1x16xf32>
    %241 = vector.shape_cast %240 : vector<8x1x16xf32> to vector<8x16xf32>
    %c0_124 = arith.constant 0 : index
    %c0_125 = arith.constant 0 : index
    %242 = vector.load %arg6[%c0_124, %c0_125] : memref<16x128xf32, #tpu.memory_space<vmem>>, vector<16x128xf32>
    %cst_126 = arith.constant dense<0.000000e+00> : vector<8x128xf32>
    %243 = tpu.matmul %241, %242, %cst_126 {dimension_numbers = #tpu.dot_dimension_numbers<[1], [0], [0], [1], [0, 0, 1, 1], [], []>} : vector<8x16xf32>, vector<16x128xf32>, vector<8x128xf32> -> vector<8x128xf32>
    %c0_127 = arith.constant 0 : index
    %c0_128 = arith.constant 0 : index
    %244 = vector.load %arg7[%c0_127, %c0_128] : memref<32x128xf32, #tpu.memory_space<vmem>>, vector<32x128xf32>
    %cst_129 = arith.constant dense<0.000000e+00> : vector<8x128xf32>
    %245 = tpu.matmul %213, %244, %cst_129 {dimension_numbers = #tpu.dot_dimension_numbers<[1], [0], [0], [1], [0, 0, 1, 1], [], []>} : vector<8x32xf32>, vector<32x128xf32>, vector<8x128xf32> -> vector<8x128xf32>
    %246 = arith.mulf %3, %243 : vector<8x128xf32>
    %247 = arith.mulf %4, %245 : vector<8x128xf32>
    %c0_130 = arith.constant 0 : index
    %c0_131 = arith.constant 0 : index
    %248 = vector.load %arg8[%c0_130, %c0_131] : memref<128x128xf32, #tpu.memory_space<vmem>>, vector<128x128xf32>
    %cst_132 = arith.constant dense<0.000000e+00> : vector<8x128xf32>
    %249 = tpu.matmul %246, %248, %cst_132 {dimension_numbers = #tpu.dot_dimension_numbers<[1], [0], [0], [1], [0, 0, 1, 1], [], []>} : vector<8x128xf32>, vector<128x128xf32>, vector<8x128xf32> -> vector<8x128xf32>
    %c0_133 = arith.constant 0 : index
    %c0_134 = arith.constant 0 : index
    %250 = vector.load %arg9[%c0_133, %c0_134] : memref<128x128xf32, #tpu.memory_space<vmem>>, vector<128x128xf32>
    %cst_135 = arith.constant dense<0.000000e+00> : vector<8x128xf32>
    %251 = tpu.matmul %247, %250, %cst_135 {dimension_numbers = #tpu.dot_dimension_numbers<[1], [0], [0], [1], [0, 0, 1, 1], [], []>} : vector<8x128xf32>, vector<128x128xf32>, vector<8x128xf32> -> vector<8x128xf32>
    %252 = arith.addf %249, %251 : vector<8x128xf32>
    %253 = arith.addf %252, %7 : vector<8x128xf32>
    %254 = arith.negf %253 : vector<8x128xf32>
    %255 = math.exp %254 : vector<8x128xf32>
    %cst_136 = arith.constant 1.000000e+00 : f32
    %256 = vector.broadcast %cst_136 : f32 to vector<8x128xf32>
    %257 = arith.addf %256, %255 : vector<8x128xf32>
    %258 = arith.divf %256, %257 : vector<8x128xf32>
    %259 = vector.extract_strided_slice %258 {offsets = [0, 0], sizes = [8, 32], strides = [1, 1]} : vector<8x128xf32> to vector<8x32xf32>
    %260 = vector.extract_strided_slice %258 {offsets = [0, 32], sizes = [8, 32], strides = [1, 1]} : vector<8x128xf32> to vector<8x32xf32>
    %261 = vector.extract_strided_slice %258 {offsets = [0, 64], sizes = [8, 32], strides = [1, 1]} : vector<8x128xf32> to vector<8x32xf32>
    %262 = vector.extract_strided_slice %258 {offsets = [0, 96], sizes = [8, 32], strides = [1, 1]} : vector<8x128xf32> to vector<8x32xf32>
    %263 = arith.mulf %259, %262 : vector<8x32xf32>
    %264 = arith.mulf %260, %211 : vector<8x32xf32>
    %265 = arith.addf %263, %264 : vector<8x32xf32>
    %266 = math.tanh %265 : vector<8x32xf32>
    %267 = arith.mulf %261, %266 : vector<8x32xf32>
    %c0_137 = arith.constant 0 : index
    %c0_138 = arith.constant 0 : index
    %268 = vector.load %arg13[%c0_137, %c0_138] : memref<32x128xf32, #tpu.memory_space<vmem>>, vector<32x128xf32>
    %cst_139 = arith.constant dense<0.000000e+00> : vector<8x128xf32>
    %269 = tpu.matmul %267, %268, %cst_139 {dimension_numbers = #tpu.dot_dimension_numbers<[1], [0], [0], [1], [0, 0, 1, 1], [], []>} : vector<8x32xf32>, vector<32x128xf32>, vector<8x128xf32> -> vector<8x128xf32>
    %c0_140 = arith.constant 0 : index
    %c0_141 = arith.constant 0 : index
    %270 = vector.load %arg14[%c0_140, %c0_141] : memref<32x128xf32, #tpu.memory_space<vmem>>, vector<32x128xf32>
    %cst_142 = arith.constant dense<0.000000e+00> : vector<8x128xf32>
    %271 = tpu.matmul %239, %270, %cst_142 {dimension_numbers = #tpu.dot_dimension_numbers<[1], [0], [0], [1], [0, 0, 1, 1], [], []>} : vector<8x32xf32>, vector<32x128xf32>, vector<8x128xf32> -> vector<8x128xf32>
    %272 = arith.mulf %8, %269 : vector<8x128xf32>
    %273 = arith.mulf %9, %271 : vector<8x128xf32>
    %c0_143 = arith.constant 0 : index
    %c0_144 = arith.constant 0 : index
    %274 = vector.load %arg15[%c0_143, %c0_144] : memref<128x128xf32, #tpu.memory_space<vmem>>, vector<128x128xf32>
    %cst_145 = arith.constant dense<0.000000e+00> : vector<8x128xf32>
    %275 = tpu.matmul %272, %274, %cst_145 {dimension_numbers = #tpu.dot_dimension_numbers<[1], [0], [0], [1], [0, 0, 1, 1], [], []>} : vector<8x128xf32>, vector<128x128xf32>, vector<8x128xf32> -> vector<8x128xf32>
    %c0_146 = arith.constant 0 : index
    %c0_147 = arith.constant 0 : index
    %276 = vector.load %arg16[%c0_146, %c0_147] : memref<128x128xf32, #tpu.memory_space<vmem>>, vector<128x128xf32>
    %cst_148 = arith.constant dense<0.000000e+00> : vector<8x128xf32>
    %277 = tpu.matmul %273, %276, %cst_148 {dimension_numbers = #tpu.dot_dimension_numbers<[1], [0], [0], [1], [0, 0, 1, 1], [], []>} : vector<8x128xf32>, vector<128x128xf32>, vector<8x128xf32> -> vector<8x128xf32>
    %278 = arith.addf %275, %277 : vector<8x128xf32>
    %279 = arith.addf %278, %12 : vector<8x128xf32>
    %280 = arith.negf %279 : vector<8x128xf32>
    %281 = math.exp %280 : vector<8x128xf32>
    %cst_149 = arith.constant 1.000000e+00 : f32
    %282 = vector.broadcast %cst_149 : f32 to vector<8x128xf32>
    %283 = arith.addf %282, %281 : vector<8x128xf32>
    %284 = arith.divf %282, %283 : vector<8x128xf32>
    %285 = vector.extract_strided_slice %284 {offsets = [0, 0], sizes = [8, 32], strides = [1, 1]} : vector<8x128xf32> to vector<8x32xf32>
    %286 = vector.extract_strided_slice %284 {offsets = [0, 32], sizes = [8, 32], strides = [1, 1]} : vector<8x128xf32> to vector<8x32xf32>
    %287 = vector.extract_strided_slice %284 {offsets = [0, 64], sizes = [8, 32], strides = [1, 1]} : vector<8x128xf32> to vector<8x32xf32>
    %288 = vector.extract_strided_slice %284 {offsets = [0, 96], sizes = [8, 32], strides = [1, 1]} : vector<8x128xf32> to vector<8x32xf32>
    %289 = arith.mulf %285, %288 : vector<8x32xf32>
    %290 = arith.mulf %286, %237 : vector<8x32xf32>
    %291 = arith.addf %289, %290 : vector<8x32xf32>
    %292 = math.tanh %291 : vector<8x32xf32>
    %293 = arith.mulf %287, %292 : vector<8x32xf32>
    %294 = vector.extract_strided_slice %13 {offsets = [0, 5, 0], sizes = [8, 1, 16], strides = [1, 1, 1]} : vector<8x8x16xf32> to vector<8x1x16xf32>
    %295 = vector.shape_cast %294 : vector<8x1x16xf32> to vector<8x16xf32>
    %c0_150 = arith.constant 0 : index
    %c0_151 = arith.constant 0 : index
    %296 = vector.load %arg6[%c0_150, %c0_151] : memref<16x128xf32, #tpu.memory_space<vmem>>, vector<16x128xf32>
    %cst_152 = arith.constant dense<0.000000e+00> : vector<8x128xf32>
    %297 = tpu.matmul %295, %296, %cst_152 {dimension_numbers = #tpu.dot_dimension_numbers<[1], [0], [0], [1], [0, 0, 1, 1], [], []>} : vector<8x16xf32>, vector<16x128xf32>, vector<8x128xf32> -> vector<8x128xf32>
    %c0_153 = arith.constant 0 : index
    %c0_154 = arith.constant 0 : index
    %298 = vector.load %arg7[%c0_153, %c0_154] : memref<32x128xf32, #tpu.memory_space<vmem>>, vector<32x128xf32>
    %cst_155 = arith.constant dense<0.000000e+00> : vector<8x128xf32>
    %299 = tpu.matmul %267, %298, %cst_155 {dimension_numbers = #tpu.dot_dimension_numbers<[1], [0], [0], [1], [0, 0, 1, 1], [], []>} : vector<8x32xf32>, vector<32x128xf32>, vector<8x128xf32> -> vector<8x128xf32>
    %300 = arith.mulf %3, %297 : vector<8x128xf32>
    %301 = arith.mulf %4, %299 : vector<8x128xf32>
    %c0_156 = arith.constant 0 : index
    %c0_157 = arith.constant 0 : index
    %302 = vector.load %arg8[%c0_156, %c0_157] : memref<128x128xf32, #tpu.memory_space<vmem>>, vector<128x128xf32>
    %cst_158 = arith.constant dense<0.000000e+00> : vector<8x128xf32>
    %303 = tpu.matmul %300, %302, %cst_158 {dimension_numbers = #tpu.dot_dimension_numbers<[1], [0], [0], [1], [0, 0, 1, 1], [], []>} : vector<8x128xf32>, vector<128x128xf32>, vector<8x128xf32> -> vector<8x128xf32>
    %c0_159 = arith.constant 0 : index
    %c0_160 = arith.constant 0 : index
    %304 = vector.load %arg9[%c0_159, %c0_160] : memref<128x128xf32, #tpu.memory_space<vmem>>, vector<128x128xf32>
    %cst_161 = arith.constant dense<0.000000e+00> : vector<8x128xf32>
    %305 = tpu.matmul %301, %304, %cst_161 {dimension_numbers = #tpu.dot_dimension_numbers<[1], [0], [0], [1], [0, 0, 1, 1], [], []>} : vector<8x128xf32>, vector<128x128xf32>, vector<8x128xf32> -> vector<8x128xf32>
    %306 = arith.addf %303, %305 : vector<8x128xf32>
    %307 = arith.addf %306, %7 : vector<8x128xf32>
    %308 = arith.negf %307 : vector<8x128xf32>
    %309 = math.exp %308 : vector<8x128xf32>
    %cst_162 = arith.constant 1.000000e+00 : f32
    %310 = vector.broadcast %cst_162 : f32 to vector<8x128xf32>
    %311 = arith.addf %310, %309 : vector<8x128xf32>
    %312 = arith.divf %310, %311 : vector<8x128xf32>
    %313 = vector.extract_strided_slice %312 {offsets = [0, 0], sizes = [8, 32], strides = [1, 1]} : vector<8x128xf32> to vector<8x32xf32>
    %314 = vector.extract_strided_slice %312 {offsets = [0, 32], sizes = [8, 32], strides = [1, 1]} : vector<8x128xf32> to vector<8x32xf32>
    %315 = vector.extract_strided_slice %312 {offsets = [0, 64], sizes = [8, 32], strides = [1, 1]} : vector<8x128xf32> to vector<8x32xf32>
    %316 = vector.extract_strided_slice %312 {offsets = [0, 96], sizes = [8, 32], strides = [1, 1]} : vector<8x128xf32> to vector<8x32xf32>
    %317 = arith.mulf %313, %316 : vector<8x32xf32>
    %318 = arith.mulf %314, %265 : vector<8x32xf32>
    %319 = arith.addf %317, %318 : vector<8x32xf32>
    %320 = math.tanh %319 : vector<8x32xf32>
    %321 = arith.mulf %315, %320 : vector<8x32xf32>
    %c0_163 = arith.constant 0 : index
    %c0_164 = arith.constant 0 : index
    %322 = vector.load %arg13[%c0_163, %c0_164] : memref<32x128xf32, #tpu.memory_space<vmem>>, vector<32x128xf32>
    %cst_165 = arith.constant dense<0.000000e+00> : vector<8x128xf32>
    %323 = tpu.matmul %321, %322, %cst_165 {dimension_numbers = #tpu.dot_dimension_numbers<[1], [0], [0], [1], [0, 0, 1, 1], [], []>} : vector<8x32xf32>, vector<32x128xf32>, vector<8x128xf32> -> vector<8x128xf32>
    %c0_166 = arith.constant 0 : index
    %c0_167 = arith.constant 0 : index
    %324 = vector.load %arg14[%c0_166, %c0_167] : memref<32x128xf32, #tpu.memory_space<vmem>>, vector<32x128xf32>
    %cst_168 = arith.constant dense<0.000000e+00> : vector<8x128xf32>
    %325 = tpu.matmul %293, %324, %cst_168 {dimension_numbers = #tpu.dot_dimension_numbers<[1], [0], [0], [1], [0, 0, 1, 1], [], []>} : vector<8x32xf32>, vector<32x128xf32>, vector<8x128xf32> -> vector<8x128xf32>
    %326 = arith.mulf %8, %323 : vector<8x128xf32>
    %327 = arith.mulf %9, %325 : vector<8x128xf32>
    %c0_169 = arith.constant 0 : index
    %c0_170 = arith.constant 0 : index
    %328 = vector.load %arg15[%c0_169, %c0_170] : memref<128x128xf32, #tpu.memory_space<vmem>>, vector<128x128xf32>
    %cst_171 = arith.constant dense<0.000000e+00> : vector<8x128xf32>
    %329 = tpu.matmul %326, %328, %cst_171 {dimension_numbers = #tpu.dot_dimension_numbers<[1], [0], [0], [1], [0, 0, 1, 1], [], []>} : vector<8x128xf32>, vector<128x128xf32>, vector<8x128xf32> -> vector<8x128xf32>
    %c0_172 = arith.constant 0 : index
    %c0_173 = arith.constant 0 : index
    %330 = vector.load %arg16[%c0_172, %c0_173] : memref<128x128xf32, #tpu.memory_space<vmem>>, vector<128x128xf32>
    %cst_174 = arith.constant dense<0.000000e+00> : vector<8x128xf32>
    %331 = tpu.matmul %327, %330, %cst_174 {dimension_numbers = #tpu.dot_dimension_numbers<[1], [0], [0], [1], [0, 0, 1, 1], [], []>} : vector<8x128xf32>, vector<128x128xf32>, vector<8x128xf32> -> vector<8x128xf32>
    %332 = arith.addf %329, %331 : vector<8x128xf32>
    %333 = arith.addf %332, %12 : vector<8x128xf32>
    %334 = arith.negf %333 : vector<8x128xf32>
    %335 = math.exp %334 : vector<8x128xf32>
    %cst_175 = arith.constant 1.000000e+00 : f32
    %336 = vector.broadcast %cst_175 : f32 to vector<8x128xf32>
    %337 = arith.addf %336, %335 : vector<8x128xf32>
    %338 = arith.divf %336, %337 : vector<8x128xf32>
    %339 = vector.extract_strided_slice %338 {offsets = [0, 0], sizes = [8, 32], strides = [1, 1]} : vector<8x128xf32> to vector<8x32xf32>
    %340 = vector.extract_strided_slice %338 {offsets = [0, 32], sizes = [8, 32], strides = [1, 1]} : vector<8x128xf32> to vector<8x32xf32>
    %341 = vector.extract_strided_slice %338 {offsets = [0, 64], sizes = [8, 32], strides = [1, 1]} : vector<8x128xf32> to vector<8x32xf32>
    %342 = vector.extract_strided_slice %338 {offsets = [0, 96], sizes = [8, 32], strides = [1, 1]} : vector<8x128xf32> to vector<8x32xf32>
    %343 = arith.mulf %339, %342 : vector<8x32xf32>
    %344 = arith.mulf %340, %291 : vector<8x32xf32>
    %345 = arith.addf %343, %344 : vector<8x32xf32>
    %346 = math.tanh %345 : vector<8x32xf32>
    %347 = arith.mulf %341, %346 : vector<8x32xf32>
    %348 = vector.extract_strided_slice %13 {offsets = [0, 6, 0], sizes = [8, 1, 16], strides = [1, 1, 1]} : vector<8x8x16xf32> to vector<8x1x16xf32>
    %349 = vector.shape_cast %348 : vector<8x1x16xf32> to vector<8x16xf32>
    %c0_176 = arith.constant 0 : index
    %c0_177 = arith.constant 0 : index
    %350 = vector.load %arg6[%c0_176, %c0_177] : memref<16x128xf32, #tpu.memory_space<vmem>>, vector<16x128xf32>
    %cst_178 = arith.constant dense<0.000000e+00> : vector<8x128xf32>
    %351 = tpu.matmul %349, %350, %cst_178 {dimension_numbers = #tpu.dot_dimension_numbers<[1], [0], [0], [1], [0, 0, 1, 1], [], []>} : vector<8x16xf32>, vector<16x128xf32>, vector<8x128xf32> -> vector<8x128xf32>
    %c0_179 = arith.constant 0 : index
    %c0_180 = arith.constant 0 : index
    %352 = vector.load %arg7[%c0_179, %c0_180] : memref<32x128xf32, #tpu.memory_space<vmem>>, vector<32x128xf32>
    %cst_181 = arith.constant dense<0.000000e+00> : vector<8x128xf32>
    %353 = tpu.matmul %321, %352, %cst_181 {dimension_numbers = #tpu.dot_dimension_numbers<[1], [0], [0], [1], [0, 0, 1, 1], [], []>} : vector<8x32xf32>, vector<32x128xf32>, vector<8x128xf32> -> vector<8x128xf32>
    %354 = arith.mulf %3, %351 : vector<8x128xf32>
    %355 = arith.mulf %4, %353 : vector<8x128xf32>
    %c0_182 = arith.constant 0 : index
    %c0_183 = arith.constant 0 : index
    %356 = vector.load %arg8[%c0_182, %c0_183] : memref<128x128xf32, #tpu.memory_space<vmem>>, vector<128x128xf32>
    %cst_184 = arith.constant dense<0.000000e+00> : vector<8x128xf32>
    %357 = tpu.matmul %354, %356, %cst_184 {dimension_numbers = #tpu.dot_dimension_numbers<[1], [0], [0], [1], [0, 0, 1, 1], [], []>} : vector<8x128xf32>, vector<128x128xf32>, vector<8x128xf32> -> vector<8x128xf32>
    %c0_185 = arith.constant 0 : index
    %c0_186 = arith.constant 0 : index
    %358 = vector.load %arg9[%c0_185, %c0_186] : memref<128x128xf32, #tpu.memory_space<vmem>>, vector<128x128xf32>
    %cst_187 = arith.constant dense<0.000000e+00> : vector<8x128xf32>
    %359 = tpu.matmul %355, %358, %cst_187 {dimension_numbers = #tpu.dot_dimension_numbers<[1], [0], [0], [1], [0, 0, 1, 1], [], []>} : vector<8x128xf32>, vector<128x128xf32>, vector<8x128xf32> -> vector<8x128xf32>
    %360 = arith.addf %357, %359 : vector<8x128xf32>
    %361 = arith.addf %360, %7 : vector<8x128xf32>
    %362 = arith.negf %361 : vector<8x128xf32>
    %363 = math.exp %362 : vector<8x128xf32>
    %cst_188 = arith.constant 1.000000e+00 : f32
    %364 = vector.broadcast %cst_188 : f32 to vector<8x128xf32>
    %365 = arith.addf %364, %363 : vector<8x128xf32>
    %366 = arith.divf %364, %365 : vector<8x128xf32>
    %367 = vector.extract_strided_slice %366 {offsets = [0, 0], sizes = [8, 32], strides = [1, 1]} : vector<8x128xf32> to vector<8x32xf32>
    %368 = vector.extract_strided_slice %366 {offsets = [0, 32], sizes = [8, 32], strides = [1, 1]} : vector<8x128xf32> to vector<8x32xf32>
    %369 = vector.extract_strided_slice %366 {offsets = [0, 64], sizes = [8, 32], strides = [1, 1]} : vector<8x128xf32> to vector<8x32xf32>
    %370 = vector.extract_strided_slice %366 {offsets = [0, 96], sizes = [8, 32], strides = [1, 1]} : vector<8x128xf32> to vector<8x32xf32>
    %371 = arith.mulf %367, %370 : vector<8x32xf32>
    %372 = arith.mulf %368, %319 : vector<8x32xf32>
    %373 = arith.addf %371, %372 : vector<8x32xf32>
    %374 = math.tanh %373 : vector<8x32xf32>
    %375 = arith.mulf %369, %374 : vector<8x32xf32>
    %c0_189 = arith.constant 0 : index
    %c0_190 = arith.constant 0 : index
    %376 = vector.load %arg13[%c0_189, %c0_190] : memref<32x128xf32, #tpu.memory_space<vmem>>, vector<32x128xf32>
    %cst_191 = arith.constant dense<0.000000e+00> : vector<8x128xf32>
    %377 = tpu.matmul %375, %376, %cst_191 {dimension_numbers = #tpu.dot_dimension_numbers<[1], [0], [0], [1], [0, 0, 1, 1], [], []>} : vector<8x32xf32>, vector<32x128xf32>, vector<8x128xf32> -> vector<8x128xf32>
    %c0_192 = arith.constant 0 : index
    %c0_193 = arith.constant 0 : index
    %378 = vector.load %arg14[%c0_192, %c0_193] : memref<32x128xf32, #tpu.memory_space<vmem>>, vector<32x128xf32>
    %cst_194 = arith.constant dense<0.000000e+00> : vector<8x128xf32>
    %379 = tpu.matmul %347, %378, %cst_194 {dimension_numbers = #tpu.dot_dimension_numbers<[1], [0], [0], [1], [0, 0, 1, 1], [], []>} : vector<8x32xf32>, vector<32x128xf32>, vector<8x128xf32> -> vector<8x128xf32>
    %380 = arith.mulf %8, %377 : vector<8x128xf32>
    %381 = arith.mulf %9, %379 : vector<8x128xf32>
    %c0_195 = arith.constant 0 : index
    %c0_196 = arith.constant 0 : index
    %382 = vector.load %arg15[%c0_195, %c0_196] : memref<128x128xf32, #tpu.memory_space<vmem>>, vector<128x128xf32>
    %cst_197 = arith.constant dense<0.000000e+00> : vector<8x128xf32>
    %383 = tpu.matmul %380, %382, %cst_197 {dimension_numbers = #tpu.dot_dimension_numbers<[1], [0], [0], [1], [0, 0, 1, 1], [], []>} : vector<8x128xf32>, vector<128x128xf32>, vector<8x128xf32> -> vector<8x128xf32>
    %c0_198 = arith.constant 0 : index
    %c0_199 = arith.constant 0 : index
    %384 = vector.load %arg16[%c0_198, %c0_199] : memref<128x128xf32, #tpu.memory_space<vmem>>, vector<128x128xf32>
    %cst_200 = arith.constant dense<0.000000e+00> : vector<8x128xf32>
    %385 = tpu.matmul %381, %384, %cst_200 {dimension_numbers = #tpu.dot_dimension_numbers<[1], [0], [0], [1], [0, 0, 1, 1], [], []>} : vector<8x128xf32>, vector<128x128xf32>, vector<8x128xf32> -> vector<8x128xf32>
    %386 = arith.addf %383, %385 : vector<8x128xf32>
    %387 = arith.addf %386, %12 : vector<8x128xf32>
    %388 = arith.negf %387 : vector<8x128xf32>
    %389 = math.exp %388 : vector<8x128xf32>
    %cst_201 = arith.constant 1.000000e+00 : f32
    %390 = vector.broadcast %cst_201 : f32 to vector<8x128xf32>
    %391 = arith.addf %390, %389 : vector<8x128xf32>
    %392 = arith.divf %390, %391 : vector<8x128xf32>
    %393 = vector.extract_strided_slice %392 {offsets = [0, 0], sizes = [8, 32], strides = [1, 1]} : vector<8x128xf32> to vector<8x32xf32>
    %394 = vector.extract_strided_slice %392 {offsets = [0, 32], sizes = [8, 32], strides = [1, 1]} : vector<8x128xf32> to vector<8x32xf32>
    %395 = vector.extract_strided_slice %392 {offsets = [0, 64], sizes = [8, 32], strides = [1, 1]} : vector<8x128xf32> to vector<8x32xf32>
    %396 = vector.extract_strided_slice %392 {offsets = [0, 96], sizes = [8, 32], strides = [1, 1]} : vector<8x128xf32> to vector<8x32xf32>
    %397 = arith.mulf %393, %396 : vector<8x32xf32>
    %398 = arith.mulf %394, %345 : vector<8x32xf32>
    %399 = arith.addf %397, %398 : vector<8x32xf32>
    %400 = math.tanh %399 : vector<8x32xf32>
    %401 = arith.mulf %395, %400 : vector<8x32xf32>
    %402 = vector.extract_strided_slice %13 {offsets = [0, 7, 0], sizes = [8, 1, 16], strides = [1, 1, 1]} : vector<8x8x16xf32> to vector<8x1x16xf32>
    %403 = vector.shape_cast %402 : vector<8x1x16xf32> to vector<8x16xf32>
    %c0_202 = arith.constant 0 : index
    %c0_203 = arith.constant 0 : index
    %404 = vector.load %arg6[%c0_202, %c0_203] : memref<16x128xf32, #tpu.memory_space<vmem>>, vector<16x128xf32>
    %cst_204 = arith.constant dense<0.000000e+00> : vector<8x128xf32>
    %405 = tpu.matmul %403, %404, %cst_204 {dimension_numbers = #tpu.dot_dimension_numbers<[1], [0], [0], [1], [0, 0, 1, 1], [], []>} : vector<8x16xf32>, vector<16x128xf32>, vector<8x128xf32> -> vector<8x128xf32>
    %c0_205 = arith.constant 0 : index
    %c0_206 = arith.constant 0 : index
    %406 = vector.load %arg7[%c0_205, %c0_206] : memref<32x128xf32, #tpu.memory_space<vmem>>, vector<32x128xf32>
    %cst_207 = arith.constant dense<0.000000e+00> : vector<8x128xf32>
    %407 = tpu.matmul %375, %406, %cst_207 {dimension_numbers = #tpu.dot_dimension_numbers<[1], [0], [0], [1], [0, 0, 1, 1], [], []>} : vector<8x32xf32>, vector<32x128xf32>, vector<8x128xf32> -> vector<8x128xf32>
    %408 = arith.mulf %3, %405 : vector<8x128xf32>
    %409 = arith.mulf %4, %407 : vector<8x128xf32>
    %c0_208 = arith.constant 0 : index
    %c0_209 = arith.constant 0 : index
    %410 = vector.load %arg8[%c0_208, %c0_209] : memref<128x128xf32, #tpu.memory_space<vmem>>, vector<128x128xf32>
    %cst_210 = arith.constant dense<0.000000e+00> : vector<8x128xf32>
    %411 = tpu.matmul %408, %410, %cst_210 {dimension_numbers = #tpu.dot_dimension_numbers<[1], [0], [0], [1], [0, 0, 1, 1], [], []>} : vector<8x128xf32>, vector<128x128xf32>, vector<8x128xf32> -> vector<8x128xf32>
    %c0_211 = arith.constant 0 : index
    %c0_212 = arith.constant 0 : index
    %412 = vector.load %arg9[%c0_211, %c0_212] : memref<128x128xf32, #tpu.memory_space<vmem>>, vector<128x128xf32>
    %cst_213 = arith.constant dense<0.000000e+00> : vector<8x128xf32>
    %413 = tpu.matmul %409, %412, %cst_213 {dimension_numbers = #tpu.dot_dimension_numbers<[1], [0], [0], [1], [0, 0, 1, 1], [], []>} : vector<8x128xf32>, vector<128x128xf32>, vector<8x128xf32> -> vector<8x128xf32>
    %414 = arith.addf %411, %413 : vector<8x128xf32>
    %415 = arith.addf %414, %7 : vector<8x128xf32>
    %416 = arith.negf %415 : vector<8x128xf32>
    %417 = math.exp %416 : vector<8x128xf32>
    %cst_214 = arith.constant 1.000000e+00 : f32
    %418 = vector.broadcast %cst_214 : f32 to vector<8x128xf32>
    %419 = arith.addf %418, %417 : vector<8x128xf32>
    %420 = arith.divf %418, %419 : vector<8x128xf32>
    %421 = vector.extract_strided_slice %420 {offsets = [0, 0], sizes = [8, 32], strides = [1, 1]} : vector<8x128xf32> to vector<8x32xf32>
    %422 = vector.extract_strided_slice %420 {offsets = [0, 32], sizes = [8, 32], strides = [1, 1]} : vector<8x128xf32> to vector<8x32xf32>
    %423 = vector.extract_strided_slice %420 {offsets = [0, 64], sizes = [8, 32], strides = [1, 1]} : vector<8x128xf32> to vector<8x32xf32>
    %424 = vector.extract_strided_slice %420 {offsets = [0, 96], sizes = [8, 32], strides = [1, 1]} : vector<8x128xf32> to vector<8x32xf32>
    %425 = arith.mulf %421, %424 : vector<8x32xf32>
    %426 = arith.mulf %422, %373 : vector<8x32xf32>
    %427 = arith.addf %425, %426 : vector<8x32xf32>
    %428 = math.tanh %427 : vector<8x32xf32>
    %429 = arith.mulf %423, %428 : vector<8x32xf32>
    %c0_215 = arith.constant 0 : index
    %c0_216 = arith.constant 0 : index
    %430 = vector.load %arg13[%c0_215, %c0_216] : memref<32x128xf32, #tpu.memory_space<vmem>>, vector<32x128xf32>
    %cst_217 = arith.constant dense<0.000000e+00> : vector<8x128xf32>
    %431 = tpu.matmul %429, %430, %cst_217 {dimension_numbers = #tpu.dot_dimension_numbers<[1], [0], [0], [1], [0, 0, 1, 1], [], []>} : vector<8x32xf32>, vector<32x128xf32>, vector<8x128xf32> -> vector<8x128xf32>
    %c0_218 = arith.constant 0 : index
    %c0_219 = arith.constant 0 : index
    %432 = vector.load %arg14[%c0_218, %c0_219] : memref<32x128xf32, #tpu.memory_space<vmem>>, vector<32x128xf32>
    %cst_220 = arith.constant dense<0.000000e+00> : vector<8x128xf32>
    %433 = tpu.matmul %401, %432, %cst_220 {dimension_numbers = #tpu.dot_dimension_numbers<[1], [0], [0], [1], [0, 0, 1, 1], [], []>} : vector<8x32xf32>, vector<32x128xf32>, vector<8x128xf32> -> vector<8x128xf32>
    %434 = arith.mulf %8, %431 : vector<8x128xf32>
    %435 = arith.mulf %9, %433 : vector<8x128xf32>
    %c0_221 = arith.constant 0 : index
    %c0_222 = arith.constant 0 : index
    %436 = vector.load %arg15[%c0_221, %c0_222] : memref<128x128xf32, #tpu.memory_space<vmem>>, vector<128x128xf32>
    %cst_223 = arith.constant dense<0.000000e+00> : vector<8x128xf32>
    %437 = tpu.matmul %434, %436, %cst_223 {dimension_numbers = #tpu.dot_dimension_numbers<[1], [0], [0], [1], [0, 0, 1, 1], [], []>} : vector<8x128xf32>, vector<128x128xf32>, vector<8x128xf32> -> vector<8x128xf32>
    %c0_224 = arith.constant 0 : index
    %c0_225 = arith.constant 0 : index
    %438 = vector.load %arg16[%c0_224, %c0_225] : memref<128x128xf32, #tpu.memory_space<vmem>>, vector<128x128xf32>
    %cst_226 = arith.constant dense<0.000000e+00> : vector<8x128xf32>
    %439 = tpu.matmul %435, %438, %cst_226 {dimension_numbers = #tpu.dot_dimension_numbers<[1], [0], [0], [1], [0, 0, 1, 1], [], []>} : vector<8x128xf32>, vector<128x128xf32>, vector<8x128xf32> -> vector<8x128xf32>
    %440 = arith.addf %437, %439 : vector<8x128xf32>
    %441 = arith.addf %440, %12 : vector<8x128xf32>
    %442 = arith.negf %441 : vector<8x128xf32>
    %443 = math.exp %442 : vector<8x128xf32>
    %cst_227 = arith.constant 1.000000e+00 : f32
    %444 = vector.broadcast %cst_227 : f32 to vector<8x128xf32>
    %445 = arith.addf %444, %443 : vector<8x128xf32>
    %446 = arith.divf %444, %445 : vector<8x128xf32>
    %447 = vector.extract_strided_slice %446 {offsets = [0, 0], sizes = [8, 32], strides = [1, 1]} : vector<8x128xf32> to vector<8x32xf32>
    %448 = vector.extract_strided_slice %446 {offsets = [0, 32], sizes = [8, 32], strides = [1, 1]} : vector<8x128xf32> to vector<8x32xf32>
    %449 = vector.extract_strided_slice %446 {offsets = [0, 64], sizes = [8, 32], strides = [1, 1]} : vector<8x128xf32> to vector<8x32xf32>
    %450 = vector.extract_strided_slice %446 {offsets = [0, 96], sizes = [8, 32], strides = [1, 1]} : vector<8x128xf32> to vector<8x32xf32>
    %451 = arith.mulf %447, %450 : vector<8x32xf32>
    %452 = arith.mulf %448, %399 : vector<8x32xf32>
    %453 = arith.addf %451, %452 : vector<8x32xf32>
    %454 = math.tanh %453 : vector<8x32xf32>
    %455 = arith.mulf %449, %454 : vector<8x32xf32>
    %456 = vector.shape_cast %77 : vector<8x32xf32> to vector<8x1x32xf32>
    %457 = vector.shape_cast %131 : vector<8x32xf32> to vector<8x1x32xf32>
    %458 = vector.shape_cast %185 : vector<8x32xf32> to vector<8x1x32xf32>
    %459 = vector.shape_cast %239 : vector<8x32xf32> to vector<8x1x32xf32>
    %460 = vector.shape_cast %293 : vector<8x32xf32> to vector<8x1x32xf32>
    %461 = vector.shape_cast %347 : vector<8x32xf32> to vector<8x1x32xf32>
    %462 = vector.shape_cast %401 : vector<8x32xf32> to vector<8x1x32xf32>
    %463 = vector.shape_cast %455 : vector<8x32xf32> to vector<8x1x32xf32>
    %464 = tpu.concatenate %456, %457, %458, %459, %460, %461, %462, %463 in 1 : vector<8x1x32xf32>, vector<8x1x32xf32>, vector<8x1x32xf32>, vector<8x1x32xf32>, vector<8x1x32xf32>, vector<8x1x32xf32>, vector<8x1x32xf32>, vector<8x1x32xf32> -> vector<8x8x32xf32>
    %c0_228 = arith.constant 0 : index
    %c0_229 = arith.constant 0 : index
    %c0_230 = arith.constant 0 : index
    %465 = vector.load %arg18[%c0_228, %c0_229, %c0_230] : memref<8x8x32xf32, #tpu.memory_space<vmem>>, vector<8x8x32xf32>
    tpu.vector_store %arg18[%c0_228, %c0_229, %c0_230], %464 {strides = array<i32>} : memref<8x8x32xf32, #tpu.memory_space<vmem>>, vector<8x8x32xf32>,
    %466 = vector.shape_cast %429 : vector<8x32xf32> to vector<8x1x32xf32>
    %467 = vector.shape_cast %455 : vector<8x32xf32> to vector<8x1x32xf32>
    %468 = tpu.concatenate %466, %467 in 1 : vector<8x1x32xf32>, vector<8x1x32xf32> -> vector<8x2x32xf32>
    %c0_231 = arith.constant 0 : index
    %c0_232 = arith.constant 0 : index
    %c0_233 = arith.constant 0 : index
    %469 = vector.load %arg19[%c0_231, %c0_232, %c0_233] : memref<8x2x32xf32, #tpu.memory_space<vmem>>, vector<8x2x32xf32>
    tpu.vector_store %arg19[%c0_231, %c0_232, %c0_233], %468 {strides = array<i32>} : memref<8x2x32xf32, #tpu.memory_space<vmem>>, vector<8x2x32xf32>,
    %470 = vector.shape_cast %427 : vector<8x32xf32> to vector<8x1x32xf32>
    %471 = vector.shape_cast %453 : vector<8x32xf32> to vector<8x1x32xf32>
    %472 = tpu.concatenate %470, %471 in 1 : vector<8x1x32xf32>, vector<8x1x32xf32> -> vector<8x2x32xf32>
    %c0_234 = arith.constant 0 : index
    %c0_235 = arith.constant 0 : index
    %c0_236 = arith.constant 0 : index
    %473 = vector.load %arg20[%c0_234, %c0_235, %c0_236] : memref<8x2x32xf32, #tpu.memory_space<vmem>>, vector<8x2x32xf32>
    tpu.vector_store %arg20[%c0_234, %c0_235, %c0_236], %472 {strides = array<i32>} : memref<8x2x32xf32, #tpu.memory_space<vmem>>, vector<8x2x32xf32>,
    return
  }
  func.func @transform_0(%arg0: i32) -> (i32, i32, i32) {
    %c0_i32 = arith.constant 0 : i32
    %c0_i32_0 = arith.constant 0 : i32
    %c0_i32_1 = arith.constant 0 : i32
    return %c0_i32, %arg0, %c0_i32_0 : i32, i32, i32
  }
  func.func @transform_1(%arg0: i32) -> (i32, i32, i32) {
    %c0_i32 = arith.constant 0 : i32
    %c0_i32_0 = arith.constant 0 : i32
    %c0_i32_1 = arith.constant 0 : i32
    %c0_i32_2 = arith.constant 0 : i32
    return %c0_i32, %c0_i32_0, %c0_i32_1 : i32, i32, i32
  }
  func.func @transform_2(%arg0: i32) -> (i32, i32, i32) {
    %c0_i32 = arith.constant 0 : i32
    %c0_i32_0 = arith.constant 0 : i32
    %c0_i32_1 = arith.constant 0 : i32
    %c0_i32_2 = arith.constant 0 : i32
    return %c0_i32, %c0_i32_0, %c0_i32_1 : i32, i32, i32
  }
  func.func @transform_3(%arg0: i32) -> (i32, i32) {
    %c0_i32 = arith.constant 0 : i32
    %c0_i32_0 = arith.constant 0 : i32
    %c0_i32_1 = arith.constant 0 : i32
    return %c0_i32, %c0_i32_0 : i32, i32
  }
  func.func @transform_4(%arg0: i32) -> (i32, i32) {
    %c0_i32 = arith.constant 0 : i32
    %c0_i32_0 = arith.constant 0 : i32
    %c0_i32_1 = arith.constant 0 : i32
    return %c0_i32, %c0_i32_0 : i32, i32
  }
  func.func @transform_5(%arg0: i32) -> (i32, i32) {
    %c0_i32 = arith.constant 0 : i32
    %c0_i32_0 = arith.constant 0 : i32
    %c0_i32_1 = arith.constant 0 : i32
    return %c0_i32, %c0_i32_0 : i32, i32
  }
  func.func @transform_6(%arg0: i32) -> (i32, i32) {
    %c0_i32 = arith.constant 0 : i32
    %c0_i32_0 = arith.constant 0 : i32
    %c0_i32_1 = arith.constant 0 : i32
    return %c0_i32, %c0_i32_0 : i32, i32
  }
  func.func @transform_7(%arg0: i32) -> (i32, i32) {
    %c0_i32 = arith.constant 0 : i32
    %c0_i32_0 = arith.constant 0 : i32
    %c0_i32_1 = arith.constant 0 : i32
    return %c0_i32, %c0_i32_0 : i32, i32
  }
  func.func @transform_8(%arg0: i32) -> (i32, i32) {
    %c0_i32 = arith.constant 0 : i32
    %c0_i32_0 = arith.constant 0 : i32
    %c0_i32_1 = arith.constant 0 : i32
    return %c0_i32, %c0_i32_0 : i32, i32
  }
  func.func @transform_9(%arg0: i32) -> (i32, i32) {
    %c0_i32 = arith.constant 0 : i32
    %c0_i32_0 = arith.constant 0 : i32
    %c0_i32_1 = arith.constant 0 : i32
    return %c0_i32, %c0_i32_0 : i32, i32
  }
  func.func @transform_10(%arg0: i32) -> (i32, i32) {
    %c0_i32 = arith.constant 0 : i32
    %c0_i32_0 = arith.constant 0 : i32
    %c0_i32_1 = arith.constant 0 : i32
    return %c0_i32, %c0_i32_0 : i32, i32
  }
  func.func @transform_11(%arg0: i32) -> (i32, i32) {
    %c0_i32 = arith.constant 0 : i32
    %c0_i32_0 = arith.constant 0 : i32
    %c0_i32_1 = arith.constant 0 : i32
    return %c0_i32, %c0_i32_0 : i32, i32
  }
  func.func @transform_12(%arg0: i32) -> (i32, i32) {
    %c0_i32 = arith.constant 0 : i32
    %c0_i32_0 = arith.constant 0 : i32
    %c0_i32_1 = arith.constant 0 : i32
    return %c0_i32, %c0_i32_0 : i32, i32
  }
  func.func @transform_13(%arg0: i32) -> (i32, i32) {
    %c0_i32 = arith.constant 0 : i32
    %c0_i32_0 = arith.constant 0 : i32
    %c0_i32_1 = arith.constant 0 : i32
    return %c0_i32, %c0_i32_0 : i32, i32
  }
  func.func @transform_14(%arg0: i32) -> (i32, i32) {
    %c0_i32 = arith.constant 0 : i32
    %c0_i32_0 = arith.constant 0 : i32
    %c0_i32_1 = arith.constant 0 : i32
    return %c0_i32, %c0_i32_0 : i32, i32
  }
  func.func @transform_15(%arg0: i32) -> (i32, i32) {
    %c0_i32 = arith.constant 0 : i32
    %c0_i32_0 = arith.constant 0 : i32
    %c0_i32_1 = arith.constant 0 : i32
    return %c0_i32, %c0_i32_0 : i32, i32
  }
  func.func @transform_16(%arg0: i32) -> (i32, i32) {
    %c0_i32 = arith.constant 0 : i32
    %c0_i32_0 = arith.constant 0 : i32
    %c0_i32_1 = arith.constant 0 : i32
    return %c0_i32, %c0_i32_0 : i32, i32
  }
  func.func @transform_17(%arg0: i32) -> (i32, i32, i32) {
    %c0_i32 = arith.constant 0 : i32
    %c0_i32_0 = arith.constant 0 : i32
    %c0_i32_1 = arith.constant 0 : i32
    return %c0_i32, %arg0, %c0_i32_0 : i32, i32, i32
  }
  func.func @transform_18(%arg0: i32) -> (i32, i32, i32) {
    %c0_i32 = arith.constant 0 : i32
    %c0_i32_0 = arith.constant 0 : i32
    %c0_i32_1 = arith.constant 0 : i32
    %c0_i32_2 = arith.constant 0 : i32
    return %c0_i32, %c0_i32_0, %c0_i32_1 : i32, i32, i32
  }
  func.func @transform_19(%arg0: i32) -> (i32, i32, i32) {
    %c0_i32 = arith.constant 0 : i32
    %c0_i32_0 = arith.constant 0 : i32
    %c0_i32_1 = arith.constant 0 : i32
    %c0_i32_2 = arith.constant 0 : i32
    return %c0_i32, %c0_i32_0, %c0_i32_1 : i32, i32, i32
  }
}

</mosaic_0001>

<llo_original>
// kernel: tpu_custom_call.1
$region0: #{tpu_custom_call.1}
  #allocation0 [shape = 'u32[]', space=smem, size = 0x4, offset = 0x4, fixed_abs, tag = 'smem constant byte address 0x4 - core index']
  #allocation1 [shape = 'u32[144,128]{1,0:T(1,128)}', space=vmem, size = 0x12000, scoped, tag = 'internal scratch']
  %s0 = inlined_call_operand.hbm [shape: f32[8,8,16], index: 0, kind: input, shape index: {}]
  %s1 = inlined_call_operand.hbm [shape: f32[8,2,32], index: 1, kind: input, shape index: {}]
  %s2 = inlined_call_operand.hbm [shape: f32[8,2,32], index: 2, kind: input, shape index: {}]
  %s3 = inlined_call_operand.hbm [shape: f32[8,128], index: 3, kind: input, shape index: {}]
  %s4 = inlined_call_operand.hbm [shape: f32[8,128], index: 4, kind: input, shape index: {}]
  %s5 = inlined_call_operand.hbm [shape: f32[16,128], index: 5, kind: input, shape index: {}]
  %s6 = inlined_call_operand.hbm [shape: f32[32,128], index: 6, kind: input, shape index: {}]
  %s7 = inlined_call_operand.hbm [shape: f32[128,128], index: 7, kind: input, shape index: {}]
  %s8 = inlined_call_operand.hbm [shape: f32[128,128], index: 8, kind: input, shape index: {}]
  %s9 = inlined_call_operand.hbm [shape: f32[1,128], index: 9, kind: input, shape index: {}]
  %s10 = inlined_call_operand.vmem [shape: f32[8,128], index: 10, kind: input, shape index: {}]
  %s11 = inlined_call_operand.vmem [shape: f32[8,128], index: 11, kind: input, shape index: {}]
  %s12 = inlined_call_operand.hbm [shape: f32[32,128], index: 12, kind: input, shape index: {}]
  %s13 = inlined_call_operand.hbm [shape: f32[32,128], index: 13, kind: input, shape index: {}]
  %s14 = inlined_call_operand.hbm [shape: f32[128,128], index: 14, kind: input, shape index: {}]
  %s15 = inlined_call_operand.hbm [shape: f32[128,128], index: 15, kind: input, shape index: {}]
  %s16 = inlined_call_operand.vmem [shape: f32[1,128], index: 16, kind: input, shape index: {}]
  %s17 = inlined_call_operand.hbm [shape: f32[8,8,32], index: 17, kind: output, shape index: {0}]
  %s18 = inlined_call_operand.hbm [shape: f32[8,2,32], index: 18, kind: output, shape index: {1}]
  %s19 = inlined_call_operand.hbm [shape: f32[8,2,32], index: 19, kind: output, shape index: {2}]
  %20 = xla_tuple %s17, %s18, %s19
  %s21 = sld [smem:[#allocation0]]
  $region154: #{tpu_custom_call.1} parent=0
    _
  %s23 = ssub.s32 1, %s21
  %s24 = scalar_select 0, %s23, %s21
  $region1: #{tpu_custom_call.1} parent=0
    #allocation2 [shape = 'u8[32768]{0}', space=vmem, size = 0x8000, scoped, tag = 'input window, operand 0, single buffered']
    #allocation3 [shape = 's32[1]{0}', space=sflag, size = 0x4, scoped, tag = 'scoped memory for tpu_custom_call.1']
    #allocation4 [shape = 's32[1]{0}', space=sflag, size = 0x4, scoped, tag = 'scoped memory for tpu_custom_call.1']
    #allocation5 [shape = 'u8[8192]{0}', space=vmem, size = 0x2000, scoped, tag = 'input window, operand 1, single buffered']
    #allocation6 [shape = 's32[1]{0}', space=sflag, size = 0x4, scoped, tag = 'scoped memory for tpu_custom_call.1']
    #allocation7 [shape = 'u8[8192]{0}', space=vmem, size = 0x2000, scoped, tag = 'input window, operand 2, single buffered']
    #allocation8 [shape = 'u8[4096]{0}', space=vmem, size = 0x1000, scoped, tag = 'input window, operand 3, single buffered']
    #allocation9 [shape = 's32[1]{0}', space=sflag, size = 0x4, scoped, tag = 'scoped memory for tpu_custom_call.1']
    #allocation10 [shape = 'u8[4096]{0}', space=vmem, size = 0x1000, scoped, tag = 'input window, operand 4, single buffered']
    #allocation11 [shape = 'u8[8192]{0}', space=vmem, size = 0x2000, scoped, tag = 'input window, operand 5, single buffered']
    #allocation12 [shape = 's32[1]{0}', space=sflag, size = 0x4, scoped, tag = 'scoped memory for tpu_custom_call.1']
    #allocation13 [shape = 'u8[16384]{0}', space=vmem, size = 0x4000, scoped, tag = 'input window, operand 6, single buffered']
    #allocation14 [shape = 'u8[65536]{0}', space=vmem, size = 0x10000, scoped, tag = 'input window, operand 7, single buffered']
    #allocation15 [shape = 's32[1]{0}', space=sflag, size = 0x4, scoped, tag = 'scoped memory for tpu_custom_call.1']
    #allocation16 [shape = 'u8[65536]{0}', space=vmem, size = 0x10000, scoped, tag = 'input window, operand 8, single buffered']
    #allocation17 [shape = 'u8[512]{0}', space=vmem, size = 0x400, scoped, tag = 'input window, operand 9, single buffered']
    #allocation18 [shape = 's32[1]{0}', space=sflag, size = 0x4, scoped, tag = 'scoped memory for tpu_custom_call.1']
    #allocation19 [shape = 'u8[16384]{0}', space=vmem, size = 0x4000, scoped, tag = 'input window, operand 12, single buffered']
    #allocation20 [shape = 'u8[16384]{0}', space=vmem, size = 0x4000, scoped, tag = 'input window, operand 13, single buffered']
    #allocation21 [shape = 's32[1]{0}', space=sflag, size = 0x4, scoped, tag = 'scoped memory for tpu_custom_call.1']
    #allocation22 [shape = 'u8[65536]{0}', space=vmem, size = 0x10000, scoped, tag = 'input window, operand 14, single buffered']
    #allocation23 [shape = 'u8[65536]{0}', space=vmem, size = 0x10000, scoped, tag = 'input window, operand 15, single buffered']
    #allocation24 [shape = 's32[1]{0}', space=sflag, size = 0x4, scoped, tag = 'scoped memory for tpu_custom_call.1']
    #allocation25 [shape = 'u8[32768]{0}', space=vmem, size = 0x8000, scoped, tag = 'output window, operand 0, single buffered']
    #allocation26 [shape = 'u8[8192]{0}', space=vmem, size = 0x2000, scoped, tag = 'output window, operand 1, single buffered']
    #allocation27 [shape = 's32[1]{0}', space=sflag, size = 0x4, scoped, tag = 'scoped memory for tpu_custom_call.1']
    #allocation28 [shape = 'u8[8192]{0}', space=vmem, size = 0x2000, scoped, tag = 'output window, operand 2, single buffered']
    %25 = vsyncpa [#allocation3], 0
    %26 = vsyncpa [#allocation6], 0
    %27 = vsyncpa [#allocation9], 0
    %28 = vsyncpa [#allocation12], 0
    %29 = vsyncpa [#allocation15], 0
    %30 = vsyncpa [#allocation18], 0
    %31 = vsyncpa [#allocation21], 0
    %32 = vsyncpa [#allocation24], 0
    %33 = vsyncpa [#allocation4], 0
    %34 = vsyncpa [#allocation27], 0
    // Predicated region
    $region2: #{tpu_custom_call.1} parent=1 // pred_check
      _
    $region3: #{tpu_custom_call.1} parent=1 // pred_check_branch
      %36 = sbr.rel (0) target = $region5
    $region4: #{tpu_custom_call.1} parent=1 // pred_region
      %s38 = ssub.s32 1024, 1024
      %39 = vsyncadd [#allocation3], %s38
      %s40 = sshll.u32 [#allocation2], 4
      %s41 = int_to_ptr.vmem [resolvable:$true] %s40
      %46 = dma.hbm_to_vmem [thread:$0]  %s0, 1024, %s41, [#allocation3], 128, 128, 8
    $region5: #{tpu_custom_call.1} parent=1 // pred_fallthru
      _
    // Predicated region
    $region6: #{tpu_custom_call.1} parent=1 // pred_check
      _
    $region7: #{tpu_custom_call.1} parent=1 // pred_check_branch
      %48 = sbr.rel (0) target = $region9
    $region8: #{tpu_custom_call.1} parent=1 // pred_region
      %s50 = ssub.s32 256, 256
      %51 = vsyncadd [#allocation6], %s50
      %s52 = sshll.u32 [#allocation5], 4
      %s53 = int_to_ptr.vmem [resolvable:$true] %s52
      %58 = dma.hbm_to_vmem [thread:$0]  %s1, 256, %s53, [#allocation6], 32, 32, 2
    $region9: #{tpu_custom_call.1} parent=1 // pred_fallthru
      _
    // Predicated region
    $region10: #{tpu_custom_call.1} parent=1 // pred_check
      _
    $region11: #{tpu_custom_call.1} parent=1 // pred_check_branch
      %60 = sbr.rel (0) target = $region13
    $region12: #{tpu_custom_call.1} parent=1 // pred_region
      %s62 = ssub.s32 256, 256
      %63 = vsyncadd [#allocation6], %s62
      %s64 = sshll.u32 [#allocation7], 4
      %s65 = int_to_ptr.vmem [resolvable:$true] %s64
      %70 = dma.hbm_to_vmem [thread:$0]  %s2, 256, %s65, [#allocation6], 32, 32, 2
    $region13: #{tpu_custom_call.1} parent=1 // pred_fallthru
      _
    // Predicated region
    $region14: #{tpu_custom_call.1} parent=1 // pred_check
      _
    $region15: #{tpu_custom_call.1} parent=1 // pred_check_branch
      %72 = sbr.rel (0) target = $region17
    $region16: #{tpu_custom_call.1} parent=1 // pred_region
      %s74 = ssub.s32 128, 128
      %75 = vsyncadd [#allocation9], %s74
      %s77 = sshll.u32 [#allocation8], 4
      %s78 = int_to_ptr.vmem [resolvable:$true] %s77
      %80 = dma.hbm_to_vmem [thread:$0]  %s3, 128, %s78, [#allocation9]
    $region17: #{tpu_custom_call.1} parent=1 // pred_fallthru
      _
    // Predicated region
    $region18: #{tpu_custom_call.1} parent=1 // pred_check
      _
    $region19: #{tpu_custom_call.1} parent=1 // pred_check_branch
      %82 = sbr.rel (0) target = $region21
    $region20: #{tpu_custom_call.1} parent=1 // pred_region
      %s84 = ssub.s32 128, 128
      %85 = vsyncadd [#allocation9], %s84
      %s87 = sshll.u32 [#allocation10], 4
      %s88 = int_to_ptr.vmem [resolvable:$true] %s87
      %90 = dma.hbm_to_vmem [thread:$0]  %s4, 128, %s88, [#allocation9]
    $region21: #{tpu_custom_call.1} parent=1 // pred_fallthru
      _
    // Predicated region
    $region22: #{tpu_custom_call.1} parent=1 // pred_check
      _
    $region23: #{tpu_custom_call.1} parent=1 // pred_check_branch
      %92 = sbr.rel (0) target = $region25
    $region24: #{tpu_custom_call.1} parent=1 // pred_region
      %s94 = ssub.s32 256, 256
      %95 = vsyncadd [#allocation12], %s94
      %s96 = sshll.u32 [#allocation11], 4
      %s97 = int_to_ptr.vmem [resolvable:$true] %s96
      %102 = dma.hbm_to_vmem [thread:$0]  %s5, 256, %s97, [#allocation12], 128, 128, 8
    $region25: #{tpu_custom_call.1} parent=1 // pred_fallthru
      _
    // Predicated region
    $region26: #{tpu_custom_call.1} parent=1 // pred_check
      _
    $region27: #{tpu_custom_call.1} parent=1 // pred_check_branch
      %104 = sbr.rel (0) target = $region29
    $region28: #{tpu_custom_call.1} parent=1 // pred_region
      %s106 = ssub.s32 512, 512
      %107 = vsyncadd [#allocation12], %s106
      %s108 = sshll.u32 [#allocation13], 4
      %s109 = int_to_ptr.vmem [resolvable:$true] %s108
      %114 = dma.hbm_to_vmem [thread:$0]  %s6, 512, %s109, [#allocation12], 128, 128, 8
    $region29: #{tpu_custom_call.1} parent=1 // pred_fallthru
      _
    // Predicated region
    $region30: #{tpu_custom_call.1} parent=1 // pred_check
      _
    $region31: #{tpu_custom_call.1} parent=1 // pred_check_branch
      %116 = sbr.rel (0) target = $region33
    $region32: #{tpu_custom_call.1} parent=1 // pred_region
      %s118 = ssub.s32 2048, 2048
      %119 = vsyncadd [#allocation15], %s118
      %s120 = sshll.u32 [#allocation14], 4
      %s121 = int_to_ptr.vmem [resolvable:$true] %s120
      %126 = dma.hbm_to_vmem [thread:$0]  %s7, 2048, %s121, [#allocation15], 128, 128, 8
    $region33: #{tpu_custom_call.1} parent=1 // pred_fallthru
      _
    // Predicated region
    $region34: #{tpu_custom_call.1} parent=1 // pred_check
      _
    $region35: #{tpu_custom_call.1} parent=1 // pred_check_branch
      %128 = sbr.rel (0) target = $region37
    $region36: #{tpu_custom_call.1} parent=1 // pred_region
      %s130 = ssub.s32 2048, 2048
      %131 = vsyncadd [#allocation15], %s130
      %s132 = sshll.u32 [#allocation16], 4
      %s133 = int_to_ptr.vmem [resolvable:$true] %s132
      %138 = dma.hbm_to_vmem [thread:$0]  %s8, 2048, %s133, [#allocation15], 128, 128, 8
    $region37: #{tpu_custom_call.1} parent=1 // pred_fallthru
      _
    // Predicated region
    $region38: #{tpu_custom_call.1} parent=1 // pred_check
      _
    $region39: #{tpu_custom_call.1} parent=1 // pred_check_branch
      %140 = sbr.rel (0) target = $region41
    $region40: #{tpu_custom_call.1} parent=1 // pred_region
      %s142 = ssub.s32 16, 16
      %143 = vsyncadd [#allocation18], %s142
      %s145 = sshll.u32 [#allocation17], 4
      %s146 = int_to_ptr.vmem [resolvable:$true] %s145
      %148 = dma.hbm_to_vmem [thread:$0]  %s9, 16, %s146, [#allocation18]
    $region41: #{tpu_custom_call.1} parent=1 // pred_fallthru
      _
    // Predicated region
    $region42: #{tpu_custom_call.1} parent=1 // pred_check
      _
    $region43: #{tpu_custom_call.1} parent=1 // pred_check_branch
      %150 = sbr.rel (0) target = $region45
    $region44: #{tpu_custom_call.1} parent=1 // pred_region
      _
    $region45: #{tpu_custom_call.1} parent=1 // pred_fallthru
      _
    // Predicated region
    $region46: #{tpu_custom_call.1} parent=1 // pred_check
      _
    $region47: #{tpu_custom_call.1} parent=1 // pred_check_branch
      %152 = sbr.rel (0) target = $region49
    $region48: #{tpu_custom_call.1} parent=1 // pred_region
      _
    $region49: #{tpu_custom_call.1} parent=1 // pred_fallthru
      _
    // Predicated region
    $region50: #{tpu_custom_call.1} parent=1 // pred_check
      _
    $region51: #{tpu_custom_call.1} parent=1 // pred_check_branch
      %154 = sbr.rel (0) target = $region53
    $region52: #{tpu_custom_call.1} parent=1 // pred_region
      %s156 = ssub.s32 512, 512
      %157 = vsyncadd [#allocation18], %s156
      %s158 = sshll.u32 [#allocation19], 4
      %s159 = int_to_ptr.vmem [resolvable:$true] %s158
      %164 = dma.hbm_to_vmem [thread:$0]  %s12, 512, %s159, [#allocation18], 128, 128, 8
    $region53: #{tpu_custom_call.1} parent=1 // pred_fallthru
      _
    // Predicated region
    $region54: #{tpu_custom_call.1} parent=1 // pred_check
      _
    $region55: #{tpu_custom_call.1} parent=1 // pred_check_branch
      %166 = sbr.rel (0) target = $region57
    $region56: #{tpu_custom_call.1} parent=1 // pred_region
      %s168 = ssub.s32 512, 512
      %169 = vsyncadd [#allocation21], %s168
      %s170 = sshll.u32 [#allocation20], 4
      %s171 = int_to_ptr.vmem [resolvable:$true] %s170
      %176 = dma.hbm_to_vmem [thread:$0]  %s13, 512, %s171, [#allocation21], 128, 128, 8
    $region57: #{tpu_custom_call.1} parent=1 // pred_fallthru
      _
    // Predicated region
    $region58: #{tpu_custom_call.1} parent=1 // pred_check
      _
    $region59: #{tpu_custom_call.1} parent=1 // pred_check_branch
      %178 = sbr.rel (0) target = $region61
    $region60: #{tpu_custom_call.1} parent=1 // pred_region
      %s180 = ssub.s32 2048, 2048
      %181 = vsyncadd [#allocation21], %s180
      %s182 = sshll.u32 [#allocation22], 4
      %s183 = int_to_ptr.vmem [resolvable:$true] %s182
      %188 = dma.hbm_to_vmem [thread:$0]  %s14, 2048, %s183, [#allocation21], 128, 128, 8
    $region61: #{tpu_custom_call.1} parent=1 // pred_fallthru
      _
    // Predicated region
    $region62: #{tpu_custom_call.1} parent=1 // pred_check
      _
    $region63: #{tpu_custom_call.1} parent=1 // pred_check_branch
      %190 = sbr.rel (0) target = $region65
    $region64: #{tpu_custom_call.1} parent=1 // pred_region
      %s192 = ssub.s32 2048, 2048
      %193 = vsyncadd [#allocation24], %s192
      %s194 = sshll.u32 [#allocation23], 4
      %s195 = int_to_ptr.vmem [resolvable:$true] %s194
      %200 = dma.hbm_to_vmem [thread:$0]  %s15, 2048, %s195, [#allocation24], 128, 128, 8
    $region65: #{tpu_custom_call.1} parent=1 // pred_fallthru
      _
    // Predicated region
    $region66: #{tpu_custom_call.1} parent=1 // pred_check
      _
    $region67: #{tpu_custom_call.1} parent=1 // pred_check_branch
      %202 = sbr.rel (0) target = $region69
    $region68: #{tpu_custom_call.1} parent=1 // pred_region
      _
    $region69: #{tpu_custom_call.1} parent=1 // pred_fallthru
      _
    // Predicated region
    $region70: #{tpu_custom_call.1} parent=1 // pred_check
      _
    $region71: #{tpu_custom_call.1} parent=1 // pred_check_branch
      %204 = sbr.rel (0) target = $region73
    $region72: #{tpu_custom_call.1} parent=1 // pred_region
      %205 = dma.done [#allocation3], 1024
    $region73: #{tpu_custom_call.1} parent=1 // pred_fallthru
      _
    // Predicated region
    $region74: #{tpu_custom_call.1} parent=1 // pred_check
      _
    $region75: #{tpu_custom_call.1} parent=1 // pred_check_branch
      %207 = sbr.rel (0) target = $region77
    $region76: #{tpu_custom_call.1} parent=1 // pred_region
      %208 = dma.done [#allocation6], 256
    $region77: #{tpu_custom_call.1} parent=1 // pred_fallthru
      _
    // Predicated region
    $region78: #{tpu_custom_call.1} parent=1 // pred_check
      _
    $region79: #{tpu_custom_call.1} parent=1 // pred_check_branch
      %210 = sbr.rel (0) target = $region81
    $region80: #{tpu_custom_call.1} parent=1 // pred_region
      %211 = dma.done [#allocation6], 256
    $region81: #{tpu_custom_call.1} parent=1 // pred_fallthru
      _
    // Predicated region
    $region82: #{tpu_custom_call.1} parent=1 // pred_check
      _
    $region83: #{tpu_custom_call.1} parent=1 // pred_check_branch
      %213 = sbr.rel (0) target = $region85
    $region84: #{tpu_custom_call.1} parent=1 // pred_region
      %214 = dma.done [#allocation9], 128
    $region85: #{tpu_custom_call.1} parent=1 // pred_fallthru
      _
    // Predicated region
    $region86: #{tpu_custom_call.1} parent=1 // pred_check
      _
    $region87: #{tpu_custom_call.1} parent=1 // pred_check_branch
      %216 = sbr.rel (0) target = $region89
    $region88: #{tpu_custom_call.1} parent=1 // pred_region
      %217 = dma.done [#allocation9], 128
    $region89: #{tpu_custom_call.1} parent=1 // pred_fallthru
      _
    // Predicated region
    $region90: #{tpu_custom_call.1} parent=1 // pred_check
      _
    $region91: #{tpu_custom_call.1} parent=1 // pred_check_branch
      %219 = sbr.rel (0) target = $region93
    $region92: #{tpu_custom_call.1} parent=1 // pred_region
      %220 = dma.done [#allocation12], 256
    $region93: #{tpu_custom_call.1} parent=1 // pred_fallthru
      _
    // Predicated region
    $region94: #{tpu_custom_call.1} parent=1 // pred_check
      _
    $region95: #{tpu_custom_call.1} parent=1 // pred_check_branch
      %222 = sbr.rel (0) target = $region97
    $region96: #{tpu_custom_call.1} parent=1 // pred_region
      %223 = dma.done [#allocation12], 512
    $region97: #{tpu_custom_call.1} parent=1 // pred_fallthru
      _
    // Predicated region
    $region98: #{tpu_custom_call.1} parent=1 // pred_check
      _
    $region99: #{tpu_custom_call.1} parent=1 // pred_check_branch
      %225 = sbr.rel (0) target = $region101
    $region100: #{tpu_custom_call.1} parent=1 // pred_region
      %226 = dma.done [#allocation15], 2048
    $region101: #{tpu_custom_call.1} parent=1 // pred_fallthru
      _
    // Predicated region
    $region102: #{tpu_custom_call.1} parent=1 // pred_check
      _
    $region103: #{tpu_custom_call.1} parent=1 // pred_check_branch
      %228 = sbr.rel (0) target = $region105
    $region104: #{tpu_custom_call.1} parent=1 // pred_region
      %229 = dma.done [#allocation15], 2048
    $region105: #{tpu_custom_call.1} parent=1 // pred_fallthru
      _
    // Predicated region
    $region106: #{tpu_custom_call.1} parent=1 // pred_check
      _
    $region107: #{tpu_custom_call.1} parent=1 // pred_check_branch
      %231 = sbr.rel (0) target = $region109
    $region108: #{tpu_custom_call.1} parent=1 // pred_region
      %232 = dma.done [#allocation18], 16
    $region109: #{tpu_custom_call.1} parent=1 // pred_fallthru
      _
    // Predicated region
    $region110: #{tpu_custom_call.1} parent=1 // pred_check
      _
    $region111: #{tpu_custom_call.1} parent=1 // pred_check_branch
      %234 = sbr.rel (0) target = $region113
    $region112: #{tpu_custom_call.1} parent=1 // pred_region
      %235 = dma.done [#allocation18], 512
    $region113: #{tpu_custom_call.1} parent=1 // pred_fallthru
      _
    // Predicated region
    $region114: #{tpu_custom_call.1} parent=1 // pred_check
      _
    $region115: #{tpu_custom_call.1} parent=1 // pred_check_branch
      %237 = sbr.rel (0) target = $region117
    $region116: #{tpu_custom_call.1} parent=1 // pred_region
      %238 = dma.done [#allocation21], 512
    $region117: #{tpu_custom_call.1} parent=1 // pred_fallthru
      _
    // Predicated region
    $region118: #{tpu_custom_call.1} parent=1 // pred_check
      _
    $region119: #{tpu_custom_call.1} parent=1 // pred_check_branch
      %240 = sbr.rel (0) target = $region121
    $region120: #{tpu_custom_call.1} parent=1 // pred_region
      %241 = dma.done [#allocation21], 2048
    $region121: #{tpu_custom_call.1} parent=1 // pred_fallthru
      _
    // Predicated region
    $region122: #{tpu_custom_call.1} parent=1 // pred_check
      _
    $region123: #{tpu_custom_call.1} parent=1 // pred_check_branch
      %243 = sbr.rel (0) target = $region125
    $region124: #{tpu_custom_call.1} parent=1 // pred_region
      %244 = dma.done [#allocation24], 2048
    $region125: #{tpu_custom_call.1} parent=1 // pred_fallthru
      _
    %p245 = scmp.eq.s32.totalorder 0, 0
    // Predicated region
    $region126: #{tpu_custom_call.1} parent=1 // pred_check
      %p246 = pneg %p245
    $region127: #{tpu_custom_call.1} parent=1 // pred_check_branch
      %248 = sbr.rel (%p246) target = $region129
    $region128: #{tpu_custom_call.1} parent=1 // pred_region
      %v249 = vld [vmem:[#allocation5] sm:$0x3]
      %v250 = vld [vmem:[#allocation5 + $0x2] sm:$0x3]
      %v251 = vld [vmem:[#allocation5 + $0x4] sm:$0x3]
      %v252 = vld [vmem:[#allocation5 + $0x6] sm:$0x3]
      %v253 = vld [vmem:[#allocation5 + $0x8] sm:$0x3]
      %v254 = vld [vmem:[#allocation5 + $0xa] sm:$0x3]
      %v255 = vld [vmem:[#allocation5 + $0xc] sm:$0x3]
      %v256 = vld [vmem:[#allocation5 + $0xe] sm:$0x3]
      %vm257 = vcmask 254976
      %258 = vst.msk [vmem:[#allocation26] sm:$0x3] %vm257, %v249
      %259 = vst.msk [vmem:[#allocation26 + $0x2] sm:$0x3] %vm257, %v250
      %260 = vst.msk [vmem:[#allocation26 + $0x4] sm:$0x3] %vm257, %v251
      %261 = vst.msk [vmem:[#allocation26 + $0x6] sm:$0x3] %vm257, %v252
      %262 = vst.msk [vmem:[#allocation26 + $0x8] sm:$0x3] %vm257, %v253
      %263 = vst.msk [vmem:[#allocation26 + $0xa] sm:$0x3] %vm257, %v254
      %264 = vst.msk [vmem:[#allocation26 + $0xc] sm:$0x3] %vm257, %v255
      %265 = vst.msk [vmem:[#allocation26 + $0xe] sm:$0x3] %vm257, %v256
      %v266 = vld [vmem:[#allocation7] sm:$0x3]
      %v267 = vld [vmem:[#allocation7 + $0x2] sm:$0x3]
      %v268 = vld [vmem:[#allocation7 + $0x4] sm:$0x3]
      %v269 = vld [vmem:[#allocation7 + $0x6] sm:$0x3]
      %v270 = vld [vmem:[#allocation7 + $0x8] sm:$0x3]
      %v271 = vld [vmem:[#allocation7 + $0xa] sm:$0x3]
      %v272 = vld [vmem:[#allocation7 + $0xc] sm:$0x3]
      %v273 = vld [vmem:[#allocation7 + $0xe] sm:$0x3]
      %274 = vst.msk [vmem:[#allocation28] sm:$0x3] %vm257, %v266
      %275 = vst.msk [vmem:[#allocation28 + $0x2] sm:$0x3] %vm257, %v267
      %276 = vst.msk [vmem:[#allocation28 + $0x4] sm:$0x3] %vm257, %v268
      %277 = vst.msk [vmem:[#allocation28 + $0x6] sm:$0x3] %vm257, %v269
      %278 = vst.msk [vmem:[#allocation28 + $0x8] sm:$0x3] %vm257, %v270
      %279 = vst.msk [vmem:[#allocation28 + $0xa] sm:$0x3] %vm257, %v271
      %280 = vst.msk [vmem:[#allocation28 + $0xc] sm:$0x3] %vm257, %v272
      %281 = vst.msk [vmem:[#allocation28 + $0xe] sm:$0x3] %vm257, %v273
    $region129: #{tpu_custom_call.1} parent=1 // pred_fallthru
      _
    %v282 = vld [vmem:[#allocation8] sm:$0xff]
    %v283 = vld [vmem:[#allocation10] sm:$0xff]
    %v284 = vld [vmem:[#allocation17] sm:$0x1]
    %v286 = vlaneseq
    %v287 = vshrl.u32 %v286, 7
    %v288 = vsub.s32 0, %v287
    %v289 = vrot.slane %v284, %v288
    %v291 = vld [vmem:[%s10] sm:$0xff]
    %v292 = vld [vmem:[%s11] sm:$0xff]
    %v293 = vld [vmem:[%s16] sm:$0x1]
    %v295 = vlaneseq
    %v296 = vshrl.u32 %v295, 7
    %v297 = vsub.s32 0, %v296
    %v298 = vrot.slane %v293, %v297
    %v300 = vld [vmem:[#allocation2] sm:$0xff]
    %v301 = vld [vmem:[#allocation2 + $0x8] sm:$0xff]
    %v302 = vld [vmem:[#allocation2 + $0x10] sm:$0xff]
    %v303 = vld [vmem:[#allocation2 + $0x18] sm:$0xff]
    %v304 = vld [vmem:[#allocation2 + $0x20] sm:$0xff]
    %v305 = vld [vmem:[#allocation2 + $0x28] sm:$0xff]
    %v306 = vld [vmem:[#allocation2 + $0x30] sm:$0xff]
    %v307 = vld [vmem:[#allocation2 + $0x38] sm:$0xff]
    %v308 = vld [vmem:[#allocation26] sm:$0x3]
    %v309 = vld [vmem:[#allocation26 + $0x2] sm:$0x3]
    %v310 = vld [vmem:[#allocation26 + $0x4] sm:$0x3]
    %v311 = vld [vmem:[#allocation26 + $0x6] sm:$0x3]
    %v312 = vld [vmem:[#allocation26 + $0x8] sm:$0x3]
    %v313 = vld [vmem:[#allocation26 + $0xa] sm:$0x3]
    %v314 = vld [vmem:[#allocation26 + $0xc] sm:$0x3]
    %v315 = vld [vmem:[#allocation26 + $0xe] sm:$0x3]
    %v316 = vld [vmem:[#allocation28] sm:$0x3]
    %v317 = vld [vmem:[#allocation28 + $0x2] sm:$0x3]
    %v318 = vld [vmem:[#allocation28 + $0x4] sm:$0x3]
    %v319 = vld [vmem:[#allocation28 + $0x6] sm:$0x3]
    %v320 = vld [vmem:[#allocation28 + $0x8] sm:$0x3]
    %v321 = vld [vmem:[#allocation28 + $0xa] sm:$0x3]
    %v322 = vld [vmem:[#allocation28 + $0xc] sm:$0x3]
    %v323 = vld [vmem:[#allocation28 + $0xe] sm:$0x3]
    %v324 = vld [vmem:[#allocation11] sm:$0xff]
    %v325 = vld [vmem:[#allocation11 + $0x8] sm:$0xff]
    %v334 = vrot.slane %v301, 7
    %vm335 = vcmask 1041409
    %v336 = vsel %vm335, %v334, %v300
    %v337 = vrot.slane %v302, 6
    %vm338 = vcmask 1042434
    %v339 = vsel %vm338, %v337, %v336
    %v340 = vrot.slane %v303, 5
    %vm341 = vcmask 1043459
    %v342 = vsel %vm341, %v340, %v339
    %v343 = vrot.slane %v304, 4
    %vm344 = vcmask 1044484
    %v345 = vsel %vm344, %v343, %v342
    %v346 = vrot.slane %v305, 3
    %vm347 = vcmask 1045509
    %v348 = vsel %vm347, %v346, %v345
    %v349 = vrot.slane %v306, 2
    %vm350 = vcmask 1046534
    %v351 = vsel %vm350, %v349, %v348
    %v352 = vrot.slane %v307, 1
    %vm353 = vcmask 1047559
    %v354 = vsel %vm353, %v352, %v351
    %vm355 = vcmask 130048
    %v356 = vsel %vm355, %v354, 0
    %358 = vmatprep.subr.mxu0 0.0
    %359 = vmatpush1.msra.mxu0 0.0
    %360 = vmatprep.subr.mxu0 0.0
    %361 = vmatpush1.msra.mxu0 0.0
    %362 = vmatprep.subr.mxu0 0.0
    %363 = vmatpush1.msra.mxu0 0.0
    %364 = vmatprep.subr.mxu0 0.0
    %365 = vmatpush1.msra.mxu0 0.0
    %366 = vmatprep.subr.mxu0 0.0
    %367 = vmatpush1.msra.mxu0 0.0
    %368 = vmatprep.subr.mxu0 0.0
    %369 = vmatpush1.msra.mxu0 0.0
    %370 = vmatprep.subr.mxu0 0.0
    %371 = vmatpush1.msra.mxu0 0.0
    %372 = vmatprep.subr.mxu0 0.0
    %373 = vmatpush1.msra.mxu0 0.0
    %374 = vmatprep.subr.mxu0 0.0
    %375 = vmatpush1.msra.mxu0 0.0
    %376 = vmatprep.subr.mxu0 0.0
    %377 = vmatpush1.msra.mxu0 0.0
    %378 = vmatprep.subr.mxu0 0.0
    %379 = vmatpush1.msra.mxu0 0.0
    %380 = vmatprep.subr.mxu0 0.0
    %381 = vmatpush1.msra.mxu0 0.0
    %382 = vmatprep.subr.mxu0 0.0
    %383 = vmatpush1.msra.mxu0 0.0
    %384 = vmatprep.subr.mxu0 0.0
    %385 = vmatpush1.msra.mxu0 0.0
    %386 = vmatprep.subr.mxu0 0.0
    %387 = vmatpush1.msra.mxu0 %v325
    %388 = vmatprep.subr.mxu0 0.0
    %389 = vmatpush1.msra.mxu0 %v324
    %390 = vmatprep.subr.mxu0 0.0
    %391 = vmatpush2.msra.mxu0 0.0
    %392 = vmatprep.subr.mxu0 0.0
    %393 = vmatpush2.msra.mxu0 0.0
    %394 = vmatprep.subr.mxu0 0.0
    %395 = vmatpush2.msra.mxu0 0.0
    %396 = vmatprep.subr.mxu0 0.0
    %397 = vmatpush2.msra.mxu0 0.0
    %398 = vmatprep.subr.mxu0 0.0
    %399 = vmatpush2.msra.mxu0 0.0
    %400 = vmatprep.subr.mxu0 0.0
    %401 = vmatpush2.msra.mxu0 0.0
    %402 = vmatprep.subr.mxu0 0.0
    %403 = vmatpush2.msra.mxu0 0.0
    %404 = vmatprep.subr.mxu0 0.0
    %405 = vmatpush2.msra.mxu0 0.0
    %406 = vmatprep.subr.mxu0 0.0
    %407 = vmatpush2.msra.mxu0 0.0
    %408 = vmatprep.subr.mxu0 0.0
    %409 = vmatpush2.msra.mxu0 0.0
    %410 = vmatprep.subr.mxu0 0.0
    %411 = vmatpush2.msra.mxu0 0.0
    %412 = vmatprep.subr.mxu0 0.0
    %413 = vmatpush2.msra.mxu0 0.0
    %414 = vmatprep.subr.mxu0 0.0
    %415 = vmatpush2.msra.mxu0 0.0
    %416 = vmatprep.subr.mxu0 0.0
    %417 = vmatpush2.msra.mxu0 0.0
    %418 = vmatprep.subr.mxu0 0.0
    %419 = vmatpush2.msra.mxu0 0.0
    %420 = vmatprep.subr.mxu0 0.0
    %421 = vmatpush2.msra.mxu0 0.0
    %422 = vmatprep.mubr.f32.mxu0 0.0
    %423 = vmatmul.mubr.f32.gmra.mxu0 %v356
    %v424 = vpop.f32.mrf.mxu0
    %v425 = vadd.f32 0.0, %v424
    %v426 = vpop.f32.mrf.mxu0
    %427 = vdwg.mxu0
    %v428 = vld [vmem:[#allocation13] sm:$0xff]
    %v429 = vld [vmem:[#allocation13 + $0x8] sm:$0xff]
    %v430 = vld [vmem:[#allocation13 + $0x10] sm:$0xff]
    %v431 = vld [vmem:[#allocation13 + $0x18] sm:$0xff]
    %v440 = vrot.slane %v309, 7
    %v441 = vsel %vm335, %v440, %v308
    %v442 = vrot.slane %v310, 6
    %v443 = vsel %vm338, %v442, %v441
    %v444 = vrot.slane %v311, 5
    %v445 = vsel %vm341, %v444, %v443
    %v446 = vrot.slane %v312, 4
    %v447 = vsel %vm344, %v446, %v445
    %v448 = vrot.slane %v313, 3
    %v449 = vsel %vm347, %v448, %v447
    %v450 = vrot.slane %v314, 2
    %v451 = vsel %vm350, %v450, %v449
    %v452 = vrot.slane %v315, 1
    %v453 = vsel %vm353, %v452, %v451
    %vm454 = vcmask 261120
    %v455 = vsel %vm454, %v453, 0
    %457 = vmatprep.subr.mxu0 0.0
    %458 = vmatpush1.msra.mxu0 0.0
    %459 = vmatprep.subr.mxu0 0.0
    %460 = vmatpush1.msra.mxu0 0.0
    %461 = vmatprep.subr.mxu0 0.0
    %462 = vmatpush1.msra.mxu0 0.0
    %463 = vmatprep.subr.mxu0 0.0
    %464 = vmatpush1.msra.mxu0 0.0
    %465 = vmatprep.subr.mxu0 0.0
    %466 = vmatpush1.msra.mxu0 0.0
    %467 = vmatprep.subr.mxu0 0.0
    %468 = vmatpush1.msra.mxu0 0.0
    %469 = vmatprep.subr.mxu0 0.0
    %470 = vmatpush1.msra.mxu0 0.0
    %471 = vmatprep.subr.mxu0 0.0
    %472 = vmatpush1.msra.mxu0 0.0
    %473 = vmatprep.subr.mxu0 0.0
    %474 = vmatpush1.msra.mxu0 0.0
    %475 = vmatprep.subr.mxu0 0.0
    %476 = vmatpush1.msra.mxu0 0.0
    %477 = vmatprep.subr.mxu0 0.0
    %478 = vmatpush1.msra.mxu0 0.0
    %479 = vmatprep.subr.mxu0 0.0
    %480 = vmatpush1.msra.mxu0 0.0
    %481 = vmatprep.subr.mxu0 0.0
    %482 = vmatpush1.msra.mxu0 %v431
    %483 = vmatprep.subr.mxu0 0.0
    %484 = vmatpush1.msra.mxu0 %v430
    %485 = vmatprep.subr.mxu0 0.0
    %486 = vmatpush1.msra.mxu0 %v429
    %487 = vmatprep.subr.mxu0 0.0
    %488 = vmatpush1.msra.mxu0 %v428
    %489 = vmatprep.subr.mxu0 0.0
    %490 = vmatpush2.msra.mxu0 0.0
    %491 = vmatprep.subr.mxu0 0.0
    %492 = vmatpush2.msra.mxu0 0.0
    %493 = vmatprep.subr.mxu0 0.0
    %494 = vmatpush2.msra.mxu0 0.0
    %495 = vmatprep.subr.mxu0 0.0
    %496 = vmatpush2.msra.mxu0 0.0
    %497 = vmatprep.subr.mxu0 0.0
    %498 = vmatpush2.msra.mxu0 0.0
    %499 = vmatprep.subr.mxu0 0.0
    %500 = vmatpush2.msra.mxu0 0.0
    %501 = vmatprep.subr.mxu0 0.0
    %502 = vmatpush2.msra.mxu0 0.0
    %503 = vmatprep.subr.mxu0 0.0
    %504 = vmatpush2.msra.mxu0 0.0
    %505 = vmatprep.subr.mxu0 0.0
    %506 = vmatpush2.msra.mxu0 0.0
    %507 = vmatprep.subr.mxu0 0.0
    %508 = vmatpush2.msra.mxu0 0.0
    %509 = vmatprep.subr.mxu0 0.0
    %510 = vmatpush2.msra.mxu0 0.0
    %511 = vmatprep.subr.mxu0 0.0
    %512 = vmatpush2.msra.mxu0 0.0
    %513 = vmatprep.subr.mxu0 0.0
    %514 = vmatpush2.msra.mxu0 0.0
    %515 = vmatprep.subr.mxu0 0.0
    %516 = vmatpush2.msra.mxu0 0.0
    %517 = vmatprep.subr.mxu0 0.0
    %518 = vmatpush2.msra.mxu0 0.0
    %519 = vmatprep.subr.mxu0 0.0
    %520 = vmatpush2.msra.mxu0 0.0
    %521 = vmatprep.mubr.f32.mxu0 0.0
    %522 = vmatmul.mubr.f32.gmra.mxu0 %v455
    %v523 = vpop.f32.mrf.mxu0
    %v524 = vadd.f32 0.0, %v523
    %v525 = vpop.f32.mrf.mxu0
    %526 = vdwg.mxu0
    %v527 = vmul.f32 %v282, %v425
    %v528 = vmul.f32 %v283, %v524
    %v529 = vld [vmem:[#allocation14] sm:$0xff]
    %v530 = vld [vmem:[#allocation14 + $0x8] sm:$0xff]
    %v531 = vld [vmem:[#allocation14 + $0x10] sm:$0xff]
    %v532 = vld [vmem:[#allocation14 + $0x18] sm:$0xff]
    %v533 = vld [vmem:[#allocation14 + $0x20] sm:$0xff]
    %v534 = vld [vmem:[#allocation14 + $0x28] sm:$0xff]
    %v535 = vld [vmem:[#allocation14 + $0x30] sm:$0xff]
    %v536 = vld [vmem:[#allocation14 + $0x38] sm:$0xff]
    %v537 = vld [vmem:[#allocation14 + $0x40] sm:$0xff]
    %v538 = vld [vmem:[#allocation14 + $0x48] sm:$0xff]
    %v539 = vld [vmem:[#allocation14 + $0x50] sm:$0xff]
    %v540 = vld [vmem:[#allocation14 + $0x58] sm:$0xff]
    %v541 = vld [vmem:[#allocation14 + $0x60] sm:$0xff]
    %v542 = vld [vmem:[#allocation14 + $0x68] sm:$0xff]
    %v543 = vld [vmem:[#allocation14 + $0x70] sm:$0xff]
    %v544 = vld [vmem:[#allocation14 + $0x78] sm:$0xff]
    %v545 = vld [vmem:[#allocation16] sm:$0xff]
    %v546 = vld [vmem:[#allocation16 + $0x8] sm:$0xff]
    %v547 = vld [vmem:[#allocation16 + $0x10] sm:$0xff]
    %v548 = vld [vmem:[#allocation16 + $0x18] sm:$0xff]
    %v549 = vld [vmem:[#allocation16 + $0x20] sm:$0xff]
    %v550 = vld [vmem:[#allocation16 + $0x28] sm:$0xff]
    %v551 = vld [vmem:[#allocation16 + $0x30] sm:$0xff]
    %v552 = vld [vmem:[#allocation16 + $0x38] sm:$0xff]
    %v553 = vld [vmem:[#allocation16 + $0x40] sm:$0xff]
    %v554 = vld [vmem:[#allocation16 + $0x48] sm:$0xff]
    %v555 = vld [vmem:[#allocation16 + $0x50] sm:$0xff]
    %v556 = vld [vmem:[#allocation16 + $0x58] sm:$0xff]
    %v557 = vld [vmem:[#allocation16 + $0x60] sm:$0xff]
    %v558 = vld [vmem:[#allocation16 + $0x68] sm:$0xff]
    %v559 = vld [vmem:[#allocation16 + $0x70] sm:$0xff]
    %v560 = vld [vmem:[#allocation16 + $0x78] sm:$0xff]
    %561 = vmatprep.subr.mxu0 0.0
    %562 = vmatpush1.msra.mxu0 %v560
    %563 = vmatprep.subr.mxu0 0.0
    %564 = vmatpush1.msra.mxu0 %v559
    %565 = vmatprep.subr.mxu0 0.0
    %566 = vmatpush1.msra.mxu0 %v558
    %567 = vmatprep.subr.mxu0 0.0
    %568 = vmatpush1.msra.mxu0 %v557
    %569 = vmatprep.subr.mxu0 0.0
    %570 = vmatpush1.msra.mxu0 %v556
    %571 = vmatprep.subr.mxu0 0.0
    %572 = vmatpush1.msra.mxu0 %v555
    %573 = vmatprep.subr.mxu0 0.0
    %574 = vmatpush1.msra.mxu0 %v554
    %575 = vmatprep.subr.mxu0 0.0
    %576 = vmatpush1.msra.mxu0 %v553
    %577 = vmatprep.subr.mxu0 0.0
    %578 = vmatpush1.msra.mxu0 %v552
    %579 = vmatprep.subr.mxu0 0.0
    %580 = vmatpush1.msra.mxu0 %v551
    %581 = vmatprep.subr.mxu0 0.0
    %582 = vmatpush1.msra.mxu0 %v550
    %583 = vmatprep.subr.mxu0 0.0
    %584 = vmatpush1.msra.mxu0 %v549
    %585 = vmatprep.subr.mxu0 0.0
    %586 = vmatpush1.msra.mxu0 %v548
    %587 = vmatprep.subr.mxu0 0.0
    %588 = vmatpush1.msra.mxu0 %v547
    %589 = vmatprep.subr.mxu0 0.0
    %590 = vmatpush1.msra.mxu0 %v546
    %591 = vmatprep.subr.mxu0 0.0
    %592 = vmatpush1.msra.mxu0 %v545
    %593 = vmatprep.subr.mxu0 0.0
    %594 = vmatpush2.msra.mxu0 0.0
    %595 = vmatprep.subr.mxu0 0.0
    %596 = vmatpush2.msra.mxu0 0.0
    %597 = vmatprep.subr.mxu0 0.0
    %598 = vmatpush2.msra.mxu0 0.0
    %599 = vmatprep.subr.mxu0 0.0
    %600 = vmatpush2.msra.mxu0 0.0
    %601 = vmatprep.subr.mxu0 0.0
    %602 = vmatpush2.msra.mxu0 0.0
    %603 = vmatprep.subr.mxu0 0.0
    %604 = vmatpush2.msra.mxu0 0.0
    %605 = vmatprep.subr.mxu0 0.0
    %606 = vmatpush2.msra.mxu0 0.0
    %607 = vmatprep.subr.mxu0 0.0
    %608 = vmatpush2.msra.mxu0 0.0
    %609 = vmatprep.subr.mxu0 0.0
    %610 = vmatpush2.msra.mxu0 0.0
    %611 = vmatprep.subr.mxu0 0.0
    %612 = vmatpush2.msra.mxu0 0.0
    %613 = vmatprep.subr.mxu0 0.0
    %614 = vmatpush2.msra.mxu0 0.0
    %615 = vmatprep.subr.mxu0 0.0
    %616 = vmatpush2.msra.mxu0 0.0
    %617 = vmatprep.subr.mxu0 0.0
    %618 = vmatpush2.msra.mxu0 0.0
    %619 = vmatprep.subr.mxu0 0.0
    %620 = vmatpush2.msra.mxu0 0.0
    %621 = vmatprep.subr.mxu0 0.0
    %622 = vmatpush2.msra.mxu0 0.0
    %623 = vmatprep.subr.mxu0 0.0
    %624 = vmatpush2.msra.mxu0 0.0
    %625 = vmatprep.mubr.f32.mxu0 0.0
    %626 = vmatmul.mubr.f32.gmra.mxu0 %v528
    %v627 = vpop.f32.mrf.mxu0
    %v628 = vadd.f32 0.0, %v627
    %v629 = vpop.f32.mrf.mxu0
    %630 = vdwg.mxu0
    %631 = vmatprep.subr.mxu0 0.0
    %632 = vmatpush1.msra.mxu0 %v544
    %633 = vmatprep.subr.mxu0 0.0
    %634 = vmatpush1.msra.mxu0 %v543
    %635 = vmatprep.subr.mxu0 0.0
    %636 = vmatpush1.msra.mxu0 %v542
    %637 = vmatprep.subr.mxu0 0.0
    %638 = vmatpush1.msra.mxu0 %v541
    %639 = vmatprep.subr.mxu0 0.0
    %640 = vmatpush1.msra.mxu0 %v540
    %641 = vmatprep.subr.mxu0 0.0
    %642 = vmatpush1.msra.mxu0 %v539
    %643 = vmatprep.subr.mxu0 0.0
    %644 = vmatpush1.msra.mxu0 %v538
    %645 = vmatprep.subr.mxu0 0.0
    %646 = vmatpush1.msra.mxu0 %v537
    %647 = vmatprep.subr.mxu0 0.0
    %648 = vmatpush1.msra.mxu0 %v536
    %649 = vmatprep.subr.mxu0 0.0
    %650 = vmatpush1.msra.mxu0 %v535
    %651 = vmatprep.subr.mxu0 0.0
    %652 = vmatpush1.msra.mxu0 %v534
    %653 = vmatprep.subr.mxu0 0.0
    %654 = vmatpush1.msra.mxu0 %v533
    %655 = vmatprep.subr.mxu0 0.0
    %656 = vmatpush1.msra.mxu0 %v532
    %657 = vmatprep.subr.mxu0 0.0
    %658 = vmatpush1.msra.mxu0 %v531
    %659 = vmatprep.subr.mxu0 0.0
    %660 = vmatpush1.msra.mxu0 %v530
    %661 = vmatprep.subr.mxu0 0.0
    %662 = vmatpush1.msra.mxu0 %v529
    %663 = vmatprep.subr.mxu0 0.0
    %664 = vmatpush2.msra.mxu0 0.0
    %665 = vmatprep.subr.mxu0 0.0
    %666 = vmatpush2.msra.mxu0 0.0
    %667 = vmatprep.subr.mxu0 0.0
    %668 = vmatpush2.msra.mxu0 0.0
    %669 = vmatprep.subr.mxu0 0.0
    %670 = vmatpush2.msra.mxu0 0.0
    %671 = vmatprep.subr.mxu0 0.0
    %672 = vmatpush2.msra.mxu0 0.0
    %673 = vmatprep.subr.mxu0 0.0
    %674 = vmatpush2.msra.mxu0 0.0
    %675 = vmatprep.subr.mxu0 0.0
    %676 = vmatpush2.msra.mxu0 0.0
    %677 = vmatprep.subr.mxu0 0.0
    %678 = vmatpush2.msra.mxu0 0.0
    %679 = vmatprep.subr.mxu0 0.0
    %680 = vmatpush2.msra.mxu0 0.0
    %681 = vmatprep.subr.mxu0 0.0
    %682 = vmatpush2.msra.mxu0 0.0
    %683 = vmatprep.subr.mxu0 0.0
    %684 = vmatpush2.msra.mxu0 0.0
    %685 = vmatprep.subr.mxu0 0.0
    %686 = vmatpush2.msra.mxu0 0.0
    %687 = vmatprep.subr.mxu0 0.0
    %688 = vmatpush2.msra.mxu0 0.0
    %689 = vmatprep.subr.mxu0 0.0
    %690 = vmatpush2.msra.mxu0 0.0
    %691 = vmatprep.subr.mxu0 0.0
    %692 = vmatpush2.msra.mxu0 0.0
    %693 = vmatprep.subr.mxu0 0.0
    %694 = vmatpush2.msra.mxu0 0.0
    %695 = vmatprep.mubr.f32.mxu0 0.0
    %696 = vmatmul.mubr.f32.gmra.mxu0 %v527
    %v697 = vpop.f32.mrf.mxu0
    %v698 = vadd.f32 %v628, %v697
    %v699 = vpop.f32.mrf.mxu0
    %700 = vdwg.mxu0
    %v701 = vadd.f32 %v698, %v289
    %v702 = vxor.u32 %v701, 2147483648
    %v703 = vmul.f32 %v702, 1.442695
    %v704 = vpow.pop %v703
    %v705 = vadd.f32 %v704, 1.0
    %v706 = vrcp.pop %v705
    %v707 = vmul.f32 1.0, %v706
    %709 = vrot.lane.b32.xlu0 %v707, 32
    %v710 = vpop.permute.xlu0 %709
    %v712 = vmul.f32 %v707, %v710
    %v721 = vrot.slane %v317, 7
    %v722 = vsel %vm335, %v721, %v316
    %v723 = vrot.slane %v318, 6
    %v724 = vsel %vm338, %v723, %v722
    %v725 = vrot.slane %v319, 5
    %v726 = vsel %vm341, %v725, %v724
    %v727 = vrot.slane %v320, 4
    %v728 = vsel %vm344, %v727, %v726
    %v729 = vrot.slane %v321, 3
    %v730 = vsel %vm347, %v729, %v728
    %v731 = vrot.slane %v322, 2
    %v732 = vsel %vm350, %v731, %v730
    %v733 = vrot.slane %v323, 1
    %v734 = vsel %vm353, %v733, %v732
    %735 = vrot.lane.b32.xlu0 %v734, 32
    %v736 = vpop.permute.xlu0 %735
    %v738 = vmul.f32 %v707, %v736
    %740 = vrot.lane.b32.xlu0 %v738, 96
    %v741 = vpop.permute.xlu0 %740
    %v743 = vadd.f32 %v712, %v741
    %v744 = vtanh.pop %v743
    %746 = vrot.lane.b32.xlu0 %v744, 64
    %v747 = vpop.permute.xlu0 %746
    %v749 = vmul.f32 %v707, %v747
    %v750 = vld [vmem:[#allocation19] sm:$0xff]
    %v751 = vld [vmem:[#allocation19 + $0x8] sm:$0xff]
    %v752 = vld [vmem:[#allocation19 + $0x10] sm:$0xff]
    %v753 = vld [vmem:[#allocation19 + $0x18] sm:$0xff]
    %755 = vrot.lane.b32.xlu0 %v749, 64
    %v756 = vpop.permute.xlu0 %755
    %v757 = vsel %vm454, %v756, 0
    %759 = vmatprep.subr.mxu0 0.0
    %760 = vmatpush1.msra.mxu0 0.0
    %761 = vmatprep.subr.mxu0 0.0
    %762 = vmatpush1.msra.mxu0 0.0
    %763 = vmatprep.subr.mxu0 0.0
    %764 = vmatpush1.msra.mxu0 0.0
    %765 = vmatprep.subr.mxu0 0.0
    %766 = vmatpush1.msra.mxu0 0.0
    %767 = vmatprep.subr.mxu0 0.0
    %768 = vmatpush1.msra.mxu0 0.0
    %769 = vmatprep.subr.mxu0 0.0
    %770 = vmatpush1.msra.mxu0 0.0
    %771 = vmatprep.subr.mxu0 0.0
    %772 = vmatpush1.msra.mxu0 0.0
    %773 = vmatprep.subr.mxu0 0.0
    %774 = vmatpush1.msra.mxu0 0.0
    %775 = vmatprep.subr.mxu0 0.0
    %776 = vmatpush1.msra.mxu0 0.0
    %777 = vmatprep.subr.mxu0 0.0
    %778 = vmatpush1.msra.mxu0 0.0
    %779 = vmatprep.subr.mxu0 0.0
    %780 = vmatpush1.msra.mxu0 0.0
    %781 = vmatprep.subr.mxu0 0.0
    %782 = vmatpush1.msra.mxu0 0.0
    %783 = vmatprep.subr.mxu0 0.0
    %784 = vmatpush1.msra.mxu0 %v753
    %785 = vmatprep.subr.mxu0 0.0
    %786 = vmatpush1.msra.mxu0 %v752
    %787 = vmatprep.subr.mxu0 0.0
    %788 = vmatpush1.msra.mxu0 %v751
    %789 = vmatprep.subr.mxu0 0.0
    %790 = vmatpush1.msra.mxu0 %v750
    %791 = vmatprep.subr.mxu0 0.0
    %792 = vmatpush2.msra.mxu0 0.0
    %793 = vmatprep.subr.mxu0 0.0
    %794 = vmatpush2.msra.mxu0 0.0
    %795 = vmatprep.subr.mxu0 0.0
    %796 = vmatpush2.msra.mxu0 0.0
    %797 = vmatprep.subr.mxu0 0.0
    %798 = vmatpush2.msra.mxu0 0.0
    %799 = vmatprep.subr.mxu0 0.0
    %800 = vmatpush2.msra.mxu0 0.0
    %801 = vmatprep.subr.mxu0 0.0
    %802 = vmatpush2.msra.mxu0 0.0
    %803 = vmatprep.subr.mxu0 0.0
    %804 = vmatpush2.msra.mxu0 0.0
    %805 = vmatprep.subr.mxu0 0.0
    %806 = vmatpush2.msra.mxu0 0.0
    %807 = vmatprep.subr.mxu0 0.0
    %808 = vmatpush2.msra.mxu0 0.0
    %809 = vmatprep.subr.mxu0 0.0
    %810 = vmatpush2.msra.mxu0 0.0
    %811 = vmatprep.subr.mxu0 0.0
    %812 = vmatpush2.msra.mxu0 0.0
    %813 = vmatprep.subr.mxu0 0.0
    %814 = vmatpush2.msra.mxu0 0.0
    %815 = vmatprep.subr.mxu0 0.0
    %816 = vmatpush2.msra.mxu0 0.0
    %817 = vmatprep.subr.mxu0 0.0
    %818 = vmatpush2.msra.mxu0 0.0
    %819 = vmatprep.subr.mxu0 0.0
    %820 = vmatpush2.msra.mxu0 0.0
    %821 = vmatprep.subr.mxu0 0.0
    %822 = vmatpush2.msra.mxu0 0.0
    %823 = vmatprep.mubr.f32.mxu0 0.0
    %824 = vmatmul.mubr.f32.gmra.mxu0 %v757
    %v825 = vpop.f32.mrf.mxu0
    %v826 = vadd.f32 0.0, %v825
    %v827 = vpop.f32.mrf.mxu0
    %828 = vdwg.mxu0
    %v829 = vld [vmem:[#allocation20] sm:$0xff]
    %v830 = vld [vmem:[#allocation20 + $0x8] sm:$0xff]
    %v831 = vld [vmem:[#allocation20 + $0x10] sm:$0xff]
    %v832 = vld [vmem:[#allocation20 + $0x18] sm:$0xff]
    %v833 = vrot.slane %v308, 1
    %v834 = vsel %vm335, %v309, %v833
    %v835 = vrot.slane %v310, 7
    %v836 = vsel %vm338, %v835, %v834
    %v837 = vrot.slane %v311, 6
    %v838 = vsel %vm341, %v837, %v836
    %v839 = vrot.slane %v312, 5
    %v840 = vsel %vm344, %v839, %v838
    %v841 = vrot.slane %v313, 4
    %v842 = vsel %vm347, %v841, %v840
    %v843 = vrot.slane %v314, 3
    %v844 = vsel %vm350, %v843, %v842
    %v845 = vrot.slane %v315, 2
    %v846 = vsel %vm353, %v845, %v844
    %v847 = vsel %vm454, %v846, 0
    %849 = vmatprep.subr.mxu0 0.0
    %850 = vmatpush1.msra.mxu0 0.0
    %851 = vmatprep.subr.mxu0 0.0
    %852 = vmatpush1.msra.mxu0 0.0
    %853 = vmatprep.subr.mxu0 0.0
    %854 = vmatpush1.msra.mxu0 0.0
    %855 = vmatprep.subr.mxu0 0.0
    %856 = vmatpush1.msra.mxu0 0.0
    %857 = vmatprep.subr.mxu0 0.0
    %858 = vmatpush1.msra.mxu0 0.0
    %859 = vmatprep.subr.mxu0 0.0
    %860 = vmatpush1.msra.mxu0 0.0
    %861 = vmatprep.subr.mxu0 0.0
    %862 = vmatpush1.msra.mxu0 0.0
    %863 = vmatprep.subr.mxu0 0.0
    %864 = vmatpush1.msra.mxu0 0.0
    %865 = vmatprep.subr.mxu0 0.0
    %866 = vmatpush1.msra.mxu0 0.0
    %867 = vmatprep.subr.mxu0 0.0
    %868 = vmatpush1.msra.mxu0 0.0
    %869 = vmatprep.subr.mxu0 0.0
    %870 = vmatpush1.msra.mxu0 0.0
    %871 = vmatprep.subr.mxu0 0.0
    %872 = vmatpush1.msra.mxu0 0.0
    %873 = vmatprep.subr.mxu0 0.0
    %874 = vmatpush1.msra.mxu0 %v832
    %875 = vmatprep.subr.mxu0 0.0
    %876 = vmatpush1.msra.mxu0 %v831
    %877 = vmatprep.subr.mxu0 0.0
    %878 = vmatpush1.msra.mxu0 %v830
    %879 = vmatprep.subr.mxu0 0.0
    %880 = vmatpush1.msra.mxu0 %v829
    %881 = vmatprep.subr.mxu0 0.0
    %882 = vmatpush2.msra.mxu0 0.0
    %883 = vmatprep.subr.mxu0 0.0
    %884 = vmatpush2.msra.mxu0 0.0
    %885 = vmatprep.subr.mxu0 0.0
    %886 = vmatpush2.msra.mxu0 0.0
    %887 = vmatprep.subr.mxu0 0.0
    %888 = vmatpush2.msra.mxu0 0.0
    %889 = vmatprep.subr.mxu0 0.0
    %890 = vmatpush2.msra.mxu0 0.0
    %891 = vmatprep.subr.mxu0 0.0
    %892 = vmatpush2.msra.mxu0 0.0
    %893 = vmatprep.subr.mxu0 0.0
    %894 = vmatpush2.msra.mxu0 0.0
    %895 = vmatprep.subr.mxu0 0.0
    %896 = vmatpush2.msra.mxu0 0.0
    %897 = vmatprep.subr.mxu0 0.0
    %898 = vmatpush2.msra.mxu0 0.0
    %899 = vmatprep.subr.mxu0 0.0
    %900 = vmatpush2.msra.mxu0 0.0
    %901 = vmatprep.subr.mxu0 0.0
    %902 = vmatpush2.msra.mxu0 0.0
    %903 = vmatprep.subr.mxu0 0.0
    %904 = vmatpush2.msra.mxu0 0.0
    %905 = vmatprep.subr.mxu0 0.0
    %906 = vmatpush2.msra.mxu0 0.0
    %907 = vmatprep.subr.mxu0 0.0
    %908 = vmatpush2.msra.mxu0 0.0
    %909 = vmatprep.subr.mxu0 0.0
    %910 = vmatpush2.msra.mxu0 0.0
    %911 = vmatprep.subr.mxu0 0.0
    %912 = vmatpush2.msra.mxu0 0.0
    %913 = vmatprep.mubr.f32.mxu0 0.0
    %914 = vmatmul.mubr.f32.gmra.mxu0 %v847
    %v915 = vpop.f32.mrf.mxu0
    %v916 = vadd.f32 0.0, %v915
    %v917 = vpop.f32.mrf.mxu0
    %918 = vdwg.mxu0
    %v919 = vmul.f32 %v291, %v826
    %v920 = vmul.f32 %v292, %v916
    %v921 = vld [vmem:[#allocation22] sm:$0xff]
    %v922 = vld [vmem:[#allocation22 + $0x8] sm:$0xff]
    %v923 = vld [vmem:[#allocation22 + $0x10] sm:$0xff]
    %v924 = vld [vmem:[#allocation22 + $0x18] sm:$0xff]
    %v925 = vld [vmem:[#allocation22 + $0x20] sm:$0xff]
    %v926 = vld [vmem:[#allocation22 + $0x28] sm:$0xff]
    %v927 = vld [vmem:[#allocation22 + $0x30] sm:$0xff]
    %v928 = vld [vmem:[#allocation22 + $0x38] sm:$0xff]
    %v929 = vld [vmem:[#allocation22 + $0x40] sm:$0xff]
    %v930 = vld [vmem:[#allocation22 + $0x48] sm:$0xff]
    %v931 = vld [vmem:[#allocation22 + $0x50] sm:$0xff]
    %v932 = vld [vmem:[#allocation22 + $0x58] sm:$0xff]
    %v933 = vld [vmem:[#allocation22 + $0x60] sm:$0xff]
    %v934 = vld [vmem:[#allocation22 + $0x68] sm:$0xff]
    %v935 = vld [vmem:[#allocation22 + $0x70] sm:$0xff]
    %v936 = vld [vmem:[#allocation22 + $0x78] sm:$0xff]
    %v937 = vld [vmem:[#allocation23] sm:$0xff]
    %v938 = vld [vmem:[#allocation23 + $0x8] sm:$0xff]
    %v939 = vld [vmem:[#allocation23 + $0x10] sm:$0xff]
    %v940 = vld [vmem:[#allocation23 + $0x18] sm:$0xff]
    %v941 = vld [vmem:[#allocation23 + $0x20] sm:$0xff]
    %v942 = vld [vmem:[#allocation23 + $0x28] sm:$0xff]
    %v943 = vld [vmem:[#allocation23 + $0x30] sm:$0xff]
    %v944 = vld [vmem:[#allocation23 + $0x38] sm:$0xff]
    %v945 = vld [vmem:[#allocation23 + $0x40] sm:$0xff]
    %v946 = vld [vmem:[#allocation23 + $0x48] sm:$0xff]
    %v947 = vld [vmem:[#allocation23 + $0x50] sm:$0xff]
    %v948 = vld [vmem:[#allocation23 + $0x58] sm:$0xff]
    %v949 = vld [vmem:[#allocation23 + $0x60] sm:$0xff]
    %v950 = vld [vmem:[#allocation23 + $0x68] sm:$0xff]
    %v951 = vld [vmem:[#allocation23 + $0x70] sm:$0xff]
    %v952 = vld [vmem:[#allocation23 + $0x78] sm:$0xff]
    %953 = vmatprep.subr.mxu0 0.0
    %954 = vmatpush1.msra.mxu0 %v952
    %955 = vmatprep.subr.mxu0 0.0
    %956 = vmatpush1.msra.mxu0 %v951
    %957 = vmatprep.subr.mxu0 0.0
    %958 = vmatpush1.msra.mxu0 %v950
    %959 = vmatprep.subr.mxu0 0.0
    %960 = vmatpush1.msra.mxu0 %v949
    %961 = vmatprep.subr.mxu0 0.0
    %962 = vmatpush1.msra.mxu0 %v948
    %963 = vmatprep.subr.mxu0 0.0
    %964 = vmatpush1.msra.mxu0 %v947
    %965 = vmatprep.subr.mxu0 0.0
    %966 = vmatpush1.msra.mxu0 %v946
    %967 = vmatprep.subr.mxu0 0.0
    %968 = vmatpush1.msra.mxu0 %v945
    %969 = vmatprep.subr.mxu0 0.0
    %970 = vmatpush1.msra.mxu0 %v944
    %971 = vmatprep.subr.mxu0 0.0
    %972 = vmatpush1.msra.mxu0 %v943
    %973 = vmatprep.subr.mxu0 0.0
    %974 = vmatpush1.msra.mxu0 %v942
    %975 = vmatprep.subr.mxu0 0.0
    %976 = vmatpush1.msra.mxu0 %v941
    %977 = vmatprep.subr.mxu0 0.0
    %978 = vmatpush1.msra.mxu0 %v940
    %979 = vmatprep.subr.mxu0 0.0
    %980 = vmatpush1.msra.mxu0 %v939
    %981 = vmatprep.subr.mxu0 0.0
    %982 = vmatpush1.msra.mxu0 %v938
    %983 = vmatprep.subr.mxu0 0.0
    %984 = vmatpush1.msra.mxu0 %v937
    %985 = vmatprep.subr.mxu0 0.0
    %986 = vmatpush2.msra.mxu0 0.0
    %987 = vmatprep.subr.mxu0 0.0
    %988 = vmatpush2.msra.mxu0 0.0
    %989 = vmatprep.subr.mxu0 0.0
    %990 = vmatpush2.msra.mxu0 0.0
    %991 = vmatprep.subr.mxu0 0.0
    %992 = vmatpush2.msra.mxu0 0.0
    %993 = vmatprep.subr.mxu0 0.0
    %994 = vmatpush2.msra.mxu0 0.0
    %995 = vmatprep.subr.mxu0 0.0
    %996 = vmatpush2.msra.mxu0 0.0
    %997 = vmatprep.subr.mxu0 0.0
    %998 = vmatpush2.msra.mxu0 0.0
    %999 = vmatprep.subr.mxu0 0.0
    %1000 = vmatpush2.msra.mxu0 0.0
    %1001 = vmatprep.subr.mxu0 0.0
    %1002 = vmatpush2.msra.mxu0 0.0
    %1003 = vmatprep.subr.mxu0 0.0
    %1004 = vmatpush2.msra.mxu0 0.0
    %1005 = vmatprep.subr.mxu0 0.0
    %1006 = vmatpush2.msra.mxu0 0.0
    %1007 = vmatprep.subr.mxu0 0.0
    %1008 = vmatpush2.msra.mxu0 0.0
    %1009 = vmatprep.subr.mxu0 0.0
    %1010 = vmatpush2.msra.mxu0 0.0
    %1011 = vmatprep.subr.mxu0 0.0
    %1012 = vmatpush2.msra.mxu0 0.0
    %1013 = vmatprep.subr.mxu0 0.0
    %1014 = vmatpush2.msra.mxu0 0.0
    %1015 = vmatprep.subr.mxu0 0.0
    %1016 = vmatpush2.msra.mxu0 0.0
    %1017 = vmatprep.mubr.f32.mxu0 0.0
    %1018 = vmatmul.mubr.f32.gmra.mxu0 %v920
    %v1019 = vpop.f32.mrf.mxu0
    %v1020 = vadd.f32 0.0, %v1019
    %v1021 = vpop.f32.mrf.mxu0
    %1022 = vdwg.mxu0
    %1023 = vmatprep.subr.mxu0 0.0
    %1024 = vmatpush1.msra.mxu0 %v936
    %1025 = vmatprep.subr.mxu0 0.0
    %1026 = vmatpush1.msra.mxu0 %v935
    %1027 = vmatprep.subr.mxu0 0.0
    %1028 = vmatpush1.msra.mxu0 %v934
    %1029 = vmatprep.subr.mxu0 0.0
    %1030 = vmatpush1.msra.mxu0 %v933
    %1031 = vmatprep.subr.mxu0 0.0
    %1032 = vmatpush1.msra.mxu0 %v932
    %1033 = vmatprep.subr.mxu0 0.0
    %1034 = vmatpush1.msra.mxu0 %v931
    %1035 = vmatprep.subr.mxu0 0.0
    %1036 = vmatpush1.msra.mxu0 %v930
    %1037 = vmatprep.subr.mxu0 0.0
    %1038 = vmatpush1.msra.mxu0 %v929
    %1039 = vmatprep.subr.mxu0 0.0
    %1040 = vmatpush1.msra.mxu0 %v928
    %1041 = vmatprep.subr.mxu0 0.0
    %1042 = vmatpush1.msra.mxu0 %v927
    %1043 = vmatprep.subr.mxu0 0.0
    %1044 = vmatpush1.msra.mxu0 %v926
    %1045 = vmatprep.subr.mxu0 0.0
    %1046 = vmatpush1.msra.mxu0 %v925
    %1047 = vmatprep.subr.mxu0 0.0
    %1048 = vmatpush1.msra.mxu0 %v924
    %1049 = vmatprep.subr.mxu0 0.0
    %1050 = vmatpush1.msra.mxu0 %v923
    %1051 = vmatprep.subr.mxu0 0.0
    %1052 = vmatpush1.msra.mxu0 %v922
    %1053 = vmatprep.subr.mxu0 0.0
    %1054 = vmatpush1.msra.mxu0 %v921
    %1055 = vmatprep.subr.mxu0 0.0
    %1056 = vmatpush2.msra.mxu0 0.0
    %1057 = vmatprep.subr.mxu0 0.0
    %1058 = vmatpush2.msra.mxu0 0.0
    %1059 = vmatprep.subr.mxu0 0.0
    %1060 = vmatpush2.msra.mxu0 0.0
    %1061 = vmatprep.subr.mxu0 0.0
    %1062 = vmatpush2.msra.mxu0 0.0
    %1063 = vmatprep.subr.mxu0 0.0
    %1064 = vmatpush2.msra.mxu0 0.0
    %1065 = vmatprep.subr.mxu0 0.0
    %1066 = vmatpush2.msra.mxu0 0.0
    %1067 = vmatprep.subr.mxu0 0.0
    %1068 = vmatpush2.msra.mxu0 0.0
    %1069 = vmatprep.subr.mxu0 0.0
    %1070 = vmatpush2.msra.mxu0 0.0
    %1071 = vmatprep.subr.mxu0 0.0
    %1072 = vmatpush2.msra.mxu0 0.0
    %1073 = vmatprep.subr.mxu0 0.0
    %1074 = vmatpush2.msra.mxu0 0.0
    %1075 = vmatprep.subr.mxu0 0.0
    %1076 = vmatpush2.msra.mxu0 0.0
    %1077 = vmatprep.subr.mxu0 0.0
    %1078 = vmatpush2.msra.mxu0 0.0
    %1079 = vmatprep.subr.mxu0 0.0
    %1080 = vmatpush2.msra.mxu0 0.0
    %1081 = vmatprep.subr.mxu0 0.0
    %1082 = vmatpush2.msra.mxu0 0.0
    %1083 = vmatprep.subr.mxu0 0.0
    %1084 = vmatpush2.msra.mxu0 0.0
    %1085 = vmatprep.subr.mxu0 0.0
    %1086 = vmatpush2.msra.mxu0 0.0
    %1087 = vmatprep.mubr.f32.mxu0 0.0
    %1088 = vmatmul.mubr.f32.gmra.mxu0 %v919
    %v1089 = vpop.f32.mrf.mxu0
    %v1090 = vadd.f32 %v1020, %v1089
    %v1091 = vpop.f32.mrf.mxu0
    %1092 = vdwg.mxu0
    %v1093 = vadd.f32 %v1090, %v298
    %v1094 = vxor.u32 %v1093, 2147483648
    %v1095 = vmul.f32 %v1094, 1.442695
    %v1096 = vpow.pop %v1095
    %v1097 = vadd.f32 %v1096, 1.0
    %v1098 = vrcp.pop %v1097
    %v1099 = vmul.f32 1.0, %v1098
    %1101 = vrot.lane.b32.xlu0 %v1099, 32
    %v1102 = vpop.permute.xlu0 %1101
    %v1104 = vmul.f32 %v1099, %v1102
    %v1105 = vrot.slane %v316, 1
    %v1106 = vsel %vm335, %v317, %v1105
    %v1107 = vrot.slane %v318, 7
    %v1108 = vsel %vm338, %v1107, %v1106
    %v1109 = vrot.slane %v319, 6
    %v1110 = vsel %vm341, %v1109, %v1108
    %v1111 = vrot.slane %v320, 5
    %v1112 = vsel %vm344, %v1111, %v1110
    %v1113 = vrot.slane %v321, 4
    %v1114 = vsel %vm347, %v1113, %v1112
    %v1115 = vrot.slane %v322, 3
    %v1116 = vsel %vm350, %v1115, %v1114
    %v1117 = vrot.slane %v323, 2
    %v1118 = vsel %vm353, %v1117, %v1116
    %1119 = vrot.lane.b32.xlu0 %v1118, 32
    %v1120 = vpop.permute.xlu0 %1119
    %v1122 = vmul.f32 %v1099, %v1120
    %1124 = vrot.lane.b32.xlu0 %v1122, 96
    %v1125 = vpop.permute.xlu0 %1124
    %v1127 = vadd.f32 %v1104, %v1125
    %v1128 = vtanh.pop %v1127
    %1130 = vrot.lane.b32.xlu0 %v1128, 64
    %v1131 = vpop.permute.xlu0 %1130
    %v1133 = vmul.f32 %v1099, %v1131
    %v1134 = vrot.slane %v300, 1
    %v1135 = vsel %vm335, %v301, %v1134
    %v1136 = vrot.slane %v302, 7
    %v1137 = vsel %vm338, %v1136, %v1135
    %v1138 = vrot.slane %v303, 6
    %v1139 = vsel %vm341, %v1138, %v1137
    %v1140 = vrot.slane %v304, 5
    %v1141 = vsel %vm344, %v1140, %v1139
    %v1142 = vrot.slane %v305, 4
    %v1143 = vsel %vm347, %v1142, %v1141
    %v1144 = vrot.slane %v306, 3
    %v1145 = vsel %vm350, %v1144, %v1143
    %v1146 = vrot.slane %v307, 2
    %v1147 = vsel %vm353, %v1146, %v1145
    %v1148 = vsel %vm355, %v1147, 0
    %1150 = vmatprep.subr.mxu0 0.0
    %1151 = vmatpush1.msra.mxu0 0.0
    %1152 = vmatprep.subr.mxu0 0.0
    %1153 = vmatpush1.msra.mxu0 0.0
    %1154 = vmatprep.subr.mxu0 0.0
    %1155 = vmatpush1.msra.mxu0 0.0
    %1156 = vmatprep.subr.mxu0 0.0
    %1157 = vmatpush1.msra.mxu0 0.0
    %1158 = vmatprep.subr.mxu0 0.0
    %1159 = vmatpush1.msra.mxu0 0.0
    %1160 = vmatprep.subr.mxu0 0.0
    %1161 = vmatpush1.msra.mxu0 0.0
    %1162 = vmatprep.subr.mxu0 0.0
    %1163 = vmatpush1.msra.mxu0 0.0
    %1164 = vmatprep.subr.mxu0 0.0
    %1165 = vmatpush1.msra.mxu0 0.0
    %1166 = vmatprep.subr.mxu0 0.0
    %1167 = vmatpush1.msra.mxu0 0.0
    %1168 = vmatprep.subr.mxu0 0.0
    %1169 = vmatpush1.msra.mxu0 0.0
    %1170 = vmatprep.subr.mxu0 0.0
    %1171 = vmatpush1.msra.mxu0 0.0
    %1172 = vmatprep.subr.mxu0 0.0
    %1173 = vmatpush1.msra.mxu0 0.0
    %1174 = vmatprep.subr.mxu0 0.0
    %1175 = vmatpush1.msra.mxu0 0.0
    %1176 = vmatprep.subr.mxu0 0.0
    %1177 = vmatpush1.msra.mxu0 0.0
    %1178 = vmatprep.subr.mxu0 0.0
    %1179 = vmatpush1.msra.mxu0 %v325
    %1180 = vmatprep.subr.mxu0 0.0
    %1181 = vmatpush1.msra.mxu0 %v324
    %1182 = vmatprep.subr.mxu0 0.0
    %1183 = vmatpush2.msra.mxu0 0.0
    %1184 = vmatprep.subr.mxu0 0.0
    %1185 = vmatpush2.msra.mxu0 0.0
    %1186 = vmatprep.subr.mxu0 0.0
    %1187 = vmatpush2.msra.mxu0 0.0
    %1188 = vmatprep.subr.mxu0 0.0
    %1189 = vmatpush2.msra.mxu0 0.0
    %1190 = vmatprep.subr.mxu0 0.0
    %1191 = vmatpush2.msra.mxu0 0.0
    %1192 = vmatprep.subr.mxu0 0.0
    %1193 = vmatpush2.msra.mxu0 0.0
    %1194 = vmatprep.subr.mxu0 0.0
    %1195 = vmatpush2.msra.mxu0 0.0
    %1196 = vmatprep.subr.mxu0 0.0
    %1197 = vmatpush2.msra.mxu0 0.0
    %1198 = vmatprep.subr.mxu0 0.0
    %1199 = vmatpush2.msra.mxu0 0.0
    %1200 = vmatprep.subr.mxu0 0.0
    %1201 = vmatpush2.msra.mxu0 0.0
    %1202 = vmatprep.subr.mxu0 0.0
    %1203 = vmatpush2.msra.mxu0 0.0
    %1204 = vmatprep.subr.mxu0 0.0
    %1205 = vmatpush2.msra.mxu0 0.0
    %1206 = vmatprep.subr.mxu0 0.0
    %1207 = vmatpush2.msra.mxu0 0.0
    %1208 = vmatprep.subr.mxu0 0.0
    %1209 = vmatpush2.msra.mxu0 0.0
    %1210 = vmatprep.subr.mxu0 0.0
    %1211 = vmatpush2.msra.mxu0 0.0
    %1212 = vmatprep.subr.mxu0 0.0
    %1213 = vmatpush2.msra.mxu0 0.0
    %1214 = vmatprep.mubr.f32.mxu0 0.0
    %1215 = vmatmul.mubr.f32.gmra.mxu0 %v1148
    %v1216 = vpop.f32.mrf.mxu0
    %v1217 = vadd.f32 0.0, %v1216
    %v1218 = vpop.f32.mrf.mxu0
    %1219 = vdwg.mxu0
    %1220 = vmatprep.subr.mxu0 0.0
    %1221 = vmatpush1.msra.mxu0 0.0
    %1222 = vmatprep.subr.mxu0 0.0
    %1223 = vmatpush1.msra.mxu0 0.0
    %1224 = vmatprep.subr.mxu0 0.0
    %1225 = vmatpush1.msra.mxu0 0.0
    %1226 = vmatprep.subr.mxu0 0.0
    %1227 = vmatpush1.msra.mxu0 0.0
    %1228 = vmatprep.subr.mxu0 0.0
    %1229 = vmatpush1.msra.mxu0 0.0
    %1230 = vmatprep.subr.mxu0 0.0
    %1231 = vmatpush1.msra.mxu0 0.0
    %1232 = vmatprep.subr.mxu0 0.0
    %1233 = vmatpush1.msra.mxu0 0.0
    %1234 = vmatprep.subr.mxu0 0.0
    %1235 = vmatpush1.msra.mxu0 0.0
    %1236 = vmatprep.subr.mxu0 0.0
    %1237 = vmatpush1.msra.mxu0 0.0
    %1238 = vmatprep.subr.mxu0 0.0
    %1239 = vmatpush1.msra.mxu0 0.0
    %1240 = vmatprep.subr.mxu0 0.0
    %1241 = vmatpush1.msra.mxu0 0.0
    %1242 = vmatprep.subr.mxu0 0.0
    %1243 = vmatpush1.msra.mxu0 0.0
    %1244 = vmatprep.subr.mxu0 0.0
    %1245 = vmatpush1.msra.mxu0 %v431
    %1246 = vmatprep.subr.mxu0 0.0
    %1247 = vmatpush1.msra.mxu0 %v430
    %1248 = vmatprep.subr.mxu0 0.0
    %1249 = vmatpush1.msra.mxu0 %v429
    %1250 = vmatprep.subr.mxu0 0.0
    %1251 = vmatpush1.msra.mxu0 %v428
    %1252 = vmatprep.subr.mxu0 0.0
    %1253 = vmatpush2.msra.mxu0 0.0
    %1254 = vmatprep.subr.mxu0 0.0
    %1255 = vmatpush2.msra.mxu0 0.0
    %1256 = vmatprep.subr.mxu0 0.0
    %1257 = vmatpush2.msra.mxu0 0.0
    %1258 = vmatprep.subr.mxu0 0.0
    %1259 = vmatpush2.msra.mxu0 0.0
    %1260 = vmatprep.subr.mxu0 0.0
    %1261 = vmatpush2.msra.mxu0 0.0
    %1262 = vmatprep.subr.mxu0 0.0
    %1263 = vmatpush2.msra.mxu0 0.0
    %1264 = vmatprep.subr.mxu0 0.0
    %1265 = vmatpush2.msra.mxu0 0.0
    %1266 = vmatprep.subr.mxu0 0.0
    %1267 = vmatpush2.msra.mxu0 0.0
    %1268 = vmatprep.subr.mxu0 0.0
    %1269 = vmatpush2.msra.mxu0 0.0
    %1270 = vmatprep.subr.mxu0 0.0
    %1271 = vmatpush2.msra.mxu0 0.0
    %1272 = vmatprep.subr.mxu0 0.0
    %1273 = vmatpush2.msra.mxu0 0.0
    %1274 = vmatprep.subr.mxu0 0.0
    %1275 = vmatpush2.msra.mxu0 0.0
    %1276 = vmatprep.subr.mxu0 0.0
    %1277 = vmatpush2.msra.mxu0 0.0
    %1278 = vmatprep.subr.mxu0 0.0
    %1279 = vmatpush2.msra.mxu0 0.0
    %1280 = vmatprep.subr.mxu0 0.0
    %1281 = vmatpush2.msra.mxu0 0.0
    %1282 = vmatprep.subr.mxu0 0.0
    %1283 = vmatpush2.msra.mxu0 0.0
    %1284 = vmatprep.mubr.f32.mxu0 0.0
    %1285 = vmatmul.mubr.f32.gmra.mxu0 %v757
    %v1286 = vpop.f32.mrf.mxu0
    %v1287 = vadd.f32 0.0, %v1286
    %v1288 = vpop.f32.mrf.mxu0
    %1289 = vdwg.mxu0
    %v1290 = vmul.f32 %v282, %v1217
    %v1291 = vmul.f32 %v283, %v1287
    %1292 = vmatprep.subr.mxu0 0.0
    %1293 = vmatpush1.msra.mxu0 %v560
    %1294 = vmatprep.subr.mxu0 0.0
    %1295 = vmatpush1.msra.mxu0 %v559
    %1296 = vmatprep.subr.mxu0 0.0
    %1297 = vmatpush1.msra.mxu0 %v558
    %1298 = vmatprep.subr.mxu0 0.0
    %1299 = vmatpush1.msra.mxu0 %v557
    %1300 = vmatprep.subr.mxu0 0.0
    %1301 = vmatpush1.msra.mxu0 %v556
    %1302 = vmatprep.subr.mxu0 0.0
    %1303 = vmatpush1.msra.mxu0 %v555
    %1304 = vmatprep.subr.mxu0 0.0
    %1305 = vmatpush1.msra.mxu0 %v554
    %1306 = vmatprep.subr.mxu0 0.0
    %1307 = vmatpush1.msra.mxu0 %v553
    %1308 = vmatprep.subr.mxu0 0.0
    %1309 = vmatpush1.msra.mxu0 %v552
    %1310 = vmatprep.subr.mxu0 0.0
    %1311 = vmatpush1.msra.mxu0 %v551
    %1312 = vmatprep.subr.mxu0 0.0
    %1313 = vmatpush1.msra.mxu0 %v550
    %1314 = vmatprep.subr.mxu0 0.0
    %1315 = vmatpush1.msra.mxu0 %v549
    %1316 = vmatprep.subr.mxu0 0.0
    %1317 = vmatpush1.msra.mxu0 %v548
    %1318 = vmatprep.subr.mxu0 0.0
    %1319 = vmatpush1.msra.mxu0 %v547
    %1320 = vmatprep.subr.mxu0 0.0
    %1321 = vmatpush1.msra.mxu0 %v546
    %1322 = vmatprep.subr.mxu0 0.0
    %1323 = vmatpush1.msra.mxu0 %v545
    %1324 = vmatprep.subr.mxu0 0.0
    %1325 = vmatpush2.msra.mxu0 0.0
    %1326 = vmatprep.subr.mxu0 0.0
    %1327 = vmatpush2.msra.mxu0 0.0
    %1328 = vmatprep.subr.mxu0 0.0
    %1329 = vmatpush2.msra.mxu0 0.0
    %1330 = vmatprep.subr.mxu0 0.0
    %1331 = vmatpush2.msra.mxu0 0.0
    %1332 = vmatprep.subr.mxu0 0.0
    %1333 = vmatpush2.msra.mxu0 0.0
    %1334 = vmatprep.subr.mxu0 0.0
    %1335 = vmatpush2.msra.mxu0 0.0
    %1336 = vmatprep.subr.mxu0 0.0
    %1337 = vmatpush2.msra.mxu0 0.0
    %1338 = vmatprep.subr.mxu0 0.0
    %1339 = vmatpush2.msra.mxu0 0.0
    %1340 = vmatprep.subr.mxu0 0.0
    %1341 = vmatpush2.msra.mxu0 0.0
    %1342 = vmatprep.subr.mxu0 0.0
    %1343 = vmatpush2.msra.mxu0 0.0
    %1344 = vmatprep.subr.mxu0 0.0
    %1345 = vmatpush2.msra.mxu0 0.0
    %1346 = vmatprep.subr.mxu0 0.0
    %1347 = vmatpush2.msra.mxu0 0.0
    %1348 = vmatprep.subr.mxu0 0.0
    %1349 = vmatpush2.msra.mxu0 0.0
    %1350 = vmatprep.subr.mxu0 0.0
    %1351 = vmatpush2.msra.mxu0 0.0
    %1352 = vmatprep.subr.mxu0 0.0
    %1353 = vmatpush2.msra.mxu0 0.0
    %1354 = vmatprep.subr.mxu0 0.0
    %1355 = vmatpush2.msra.mxu0 0.0
    %1356 = vmatprep.mubr.f32.mxu0 0.0
    %1357 = vmatmul.mubr.f32.gmra.mxu0 %v1291
    %v1358 = vpop.f32.mrf.mxu0
    %v1359 = vadd.f32 0.0, %v1358
    %v1360 = vpop.f32.mrf.mxu0
    %1361 = vdwg.mxu0
    %1362 = vmatprep.subr.mxu0 0.0
    %1363 = vmatpush1.msra.mxu0 %v544
    %1364 = vmatprep.subr.mxu0 0.0
    %1365 = vmatpush1.msra.mxu0 %v543
    %1366 = vmatprep.subr.mxu0 0.0
    %1367 = vmatpush1.msra.mxu0 %v542
    %1368 = vmatprep.subr.mxu0 0.0
    %1369 = vmatpush1.msra.mxu0 %v541
    %1370 = vmatprep.subr.mxu0 0.0
    %1371 = vmatpush1.msra.mxu0 %v540
    %1372 = vmatprep.subr.mxu0 0.0
    %1373 = vmatpush1.msra.mxu0 %v539
    %1374 = vmatprep.subr.mxu0 0.0
    %1375 = vmatpush1.msra.mxu0 %v538
    %1376 = vmatprep.subr.mxu0 0.0
    %1377 = vmatpush1.msra.mxu0 %v537
    %1378 = vmatprep.subr.mxu0 0.0
    %1379 = vmatpush1.msra.mxu0 %v536
    %1380 = vmatprep.subr.mxu0 0.0
    %1381 = vmatpush1.msra.mxu0 %v535
    %1382 = vmatprep.subr.mxu0 0.0
    %1383 = vmatpush1.msra.mxu0 %v534
    %1384 = vmatprep.subr.mxu0 0.0
    %1385 = vmatpush1.msra.mxu0 %v533
    %1386 = vmatprep.subr.mxu0 0.0
    %1387 = vmatpush1.msra.mxu0 %v532
    %1388 = vmatprep.subr.mxu0 0.0
    %1389 = vmatpush1.msra.mxu0 %v531
    %1390 = vmatprep.subr.mxu0 0.0
    %1391 = vmatpush1.msra.mxu0 %v530
    %1392 = vmatprep.subr.mxu0 0.0
    %1393 = vmatpush1.msra.mxu0 %v529
    %1394 = vmatprep.subr.mxu0 0.0
    %1395 = vmatpush2.msra.mxu0 0.0
    %1396 = vmatprep.subr.mxu0 0.0
    %1397 = vmatpush2.msra.mxu0 0.0
    %1398 = vmatprep.subr.mxu0 0.0
    %1399 = vmatpush2.msra.mxu0 0.0
    %1400 = vmatprep.subr.mxu0 0.0
    %1401 = vmatpush2.msra.mxu0 0.0
    %1402 = vmatprep.subr.mxu0 0.0
    %1403 = vmatpush2.msra.mxu0 0.0
    %1404 = vmatprep.subr.mxu0 0.0
    %1405 = vmatpush2.msra.mxu0 0.0
    %1406 = vmatprep.subr.mxu0 0.0
    %1407 = vmatpush2.msra.mxu0 0.0
    %1408 = vmatprep.subr.mxu0 0.0
    %1409 = vmatpush2.msra.mxu0 0.0
    %1410 = vmatprep.subr.mxu0 0.0
    %1411 = vmatpush2.msra.mxu0 0.0
    %1412 = vmatprep.subr.mxu0 0.0
    %1413 = vmatpush2.msra.mxu0 0.0
    %1414 = vmatprep.subr.mxu0 0.0
    %1415 = vmatpush2.msra.mxu0 0.0
    %1416 = vmatprep.subr.mxu0 0.0
    %1417 = vmatpush2.msra.mxu0 0.0
    %1418 = vmatprep.subr.mxu0 0.0
    %1419 = vmatpush2.msra.mxu0 0.0
    %1420 = vmatprep.subr.mxu0 0.0
    %1421 = vmatpush2.msra.mxu0 0.0
    %1422 = vmatprep.subr.mxu0 0.0
    %1423 = vmatpush2.msra.mxu0 0.0
    %1424 = vmatprep.subr.mxu0 0.0
    %1425 = vmatpush2.msra.mxu0 0.0
    %1426 = vmatprep.mubr.f32.mxu0 0.0
    %1427 = vmatmul.mubr.f32.gmra.mxu0 %v1290
    %v1428 = vpop.f32.mrf.mxu0
    %v1429 = vadd.f32 %v1359, %v1428
    %v1430 = vpop.f32.mrf.mxu0
    %1431 = vdwg.mxu0
    %v1432 = vadd.f32 %v1429, %v289
    %v1433 = vxor.u32 %v1432, 2147483648
    %v1434 = vmul.f32 %v1433, 1.442695
    %v1435 = vpow.pop %v1434
    %v1436 = vadd.f32 %v1435, 1.0
    %v1437 = vrcp.pop %v1436
    %v1438 = vmul.f32 1.0, %v1437
    %1440 = vrot.lane.b32.xlu0 %v1438, 32
    %v1441 = vpop.permute.xlu0 %1440
    %v1443 = vmul.f32 %v1438, %v1441
    %1445 = vrot.lane.b32.xlu0 %v743, 32
    %v1446 = vpop.permute.xlu0 %1445
    %v1448 = vmul.f32 %v1438, %v1446
    %1450 = vrot.lane.b32.xlu0 %v1448, 96
    %v1451 = vpop.permute.xlu0 %1450
    %v1453 = vadd.f32 %v1443, %v1451
    %v1454 = vtanh.pop %v1453
    %1456 = vrot.lane.b32.xlu0 %v1454, 64
    %v1457 = vpop.permute.xlu0 %1456
    %v1459 = vmul.f32 %v1438, %v1457
    %1461 = vrot.lane.b32.xlu0 %v1459, 64
    %v1462 = vpop.permute.xlu0 %1461
    %v1463 = vsel %vm454, %v1462, 0
    %1465 = vmatprep.subr.mxu0 0.0
    %1466 = vmatpush1.msra.mxu0 0.0
    %1467 = vmatprep.subr.mxu0 0.0
    %1468 = vmatpush1.msra.mxu0 0.0
    %1469 = vmatprep.subr.mxu0 0.0
    %1470 = vmatpush1.msra.mxu0 0.0
    %1471 = vmatprep.subr.mxu0 0.0
    %1472 = vmatpush1.msra.mxu0 0.0
    %1473 = vmatprep.subr.mxu0 0.0
    %1474 = vmatpush1.msra.mxu0 0.0
    %1475 = vmatprep.subr.mxu0 0.0
    %1476 = vmatpush1.msra.mxu0 0.0
    %1477 = vmatprep.subr.mxu0 0.0
    %1478 = vmatpush1.msra.mxu0 0.0
    %1479 = vmatprep.subr.mxu0 0.0
    %1480 = vmatpush1.msra.mxu0 0.0
    %1481 = vmatprep.subr.mxu0 0.0
    %1482 = vmatpush1.msra.mxu0 0.0
    %1483 = vmatprep.subr.mxu0 0.0
    %1484 = vmatpush1.msra.mxu0 0.0
    %1485 = vmatprep.subr.mxu0 0.0
    %1486 = vmatpush1.msra.mxu0 0.0
    %1487 = vmatprep.subr.mxu0 0.0
    %1488 = vmatpush1.msra.mxu0 0.0
    %1489 = vmatprep.subr.mxu0 0.0
    %1490 = vmatpush1.msra.mxu0 %v753
    %1491 = vmatprep.subr.mxu0 0.0
    %1492 = vmatpush1.msra.mxu0 %v752
    %1493 = vmatprep.subr.mxu0 0.0
    %1494 = vmatpush1.msra.mxu0 %v751
    %1495 = vmatprep.subr.mxu0 0.0
    %1496 = vmatpush1.msra.mxu0 %v750
    %1497 = vmatprep.subr.mxu0 0.0
    %1498 = vmatpush2.msra.mxu0 0.0
    %1499 = vmatprep.subr.mxu0 0.0
    %1500 = vmatpush2.msra.mxu0 0.0
    %1501 = vmatprep.subr.mxu0 0.0
    %1502 = vmatpush2.msra.mxu0 0.0
    %1503 = vmatprep.subr.mxu0 0.0
    %1504 = vmatpush2.msra.mxu0 0.0
    %1505 = vmatprep.subr.mxu0 0.0
    %1506 = vmatpush2.msra.mxu0 0.0
    %1507 = vmatprep.subr.mxu0 0.0
    %1508 = vmatpush2.msra.mxu0 0.0
    %1509 = vmatprep.subr.mxu0 0.0
    %1510 = vmatpush2.msra.mxu0 0.0
    %1511 = vmatprep.subr.mxu0 0.0
    %1512 = vmatpush2.msra.mxu0 0.0
    %1513 = vmatprep.subr.mxu0 0.0
    %1514 = vmatpush2.msra.mxu0 0.0
    %1515 = vmatprep.subr.mxu0 0.0
    %1516 = vmatpush2.msra.mxu0 0.0
    %1517 = vmatprep.subr.mxu0 0.0
    %1518 = vmatpush2.msra.mxu0 0.0
    %1519 = vmatprep.subr.mxu0 0.0
    %1520 = vmatpush2.msra.mxu0 0.0
    %1521 = vmatprep.subr.mxu0 0.0
    %1522 = vmatpush2.msra.mxu0 0.0
    %1523 = vmatprep.subr.mxu0 0.0
    %1524 = vmatpush2.msra.mxu0 0.0
    %1525 = vmatprep.subr.mxu0 0.0
    %1526 = vmatpush2.msra.mxu0 0.0
    %1527 = vmatprep.subr.mxu0 0.0
    %1528 = vmatpush2.msra.mxu0 0.0
    %1529 = vmatprep.mubr.f32.mxu0 0.0
    %1530 = vmatmul.mubr.f32.gmra.mxu0 %v1463
    %v1531 = vpop.f32.mrf.mxu0
    %v1532 = vadd.f32 0.0, %v1531
    %v1533 = vpop.f32.mrf.mxu0
    %1534 = vdwg.mxu0
    %1536 = vrot.lane.b32.xlu0 %v1133, 64
    %v1537 = vpop.permute.xlu0 %1536
    %v1538 = vsel %vm454, %v1537, 0
    %1540 = vmatprep.subr.mxu0 0.0
    %1541 = vmatpush1.msra.mxu0 0.0
    %1542 = vmatprep.subr.mxu0 0.0
    %1543 = vmatpush1.msra.mxu0 0.0
    %1544 = vmatprep.subr.mxu0 0.0
    %1545 = vmatpush1.msra.mxu0 0.0
    %1546 = vmatprep.subr.mxu0 0.0
    %1547 = vmatpush1.msra.mxu0 0.0
    %1548 = vmatprep.subr.mxu0 0.0
    %1549 = vmatpush1.msra.mxu0 0.0
    %1550 = vmatprep.subr.mxu0 0.0
    %1551 = vmatpush1.msra.mxu0 0.0
    %1552 = vmatprep.subr.mxu0 0.0
    %1553 = vmatpush1.msra.mxu0 0.0
    %1554 = vmatprep.subr.mxu0 0.0
    %1555 = vmatpush1.msra.mxu0 0.0
    %1556 = vmatprep.subr.mxu0 0.0
    %1557 = vmatpush1.msra.mxu0 0.0
    %1558 = vmatprep.subr.mxu0 0.0
    %1559 = vmatpush1.msra.mxu0 0.0
    %1560 = vmatprep.subr.mxu0 0.0
    %1561 = vmatpush1.msra.mxu0 0.0
    %1562 = vmatprep.subr.mxu0 0.0
    %1563 = vmatpush1.msra.mxu0 0.0
    %1564 = vmatprep.subr.mxu0 0.0
    %1565 = vmatpush1.msra.mxu0 %v832
    %1566 = vmatprep.subr.mxu0 0.0
    %1567 = vmatpush1.msra.mxu0 %v831
    %1568 = vmatprep.subr.mxu0 0.0
    %1569 = vmatpush1.msra.mxu0 %v830
    %1570 = vmatprep.subr.mxu0 0.0
    %1571 = vmatpush1.msra.mxu0 %v829
    %1572 = vmatprep.subr.mxu0 0.0
    %1573 = vmatpush2.msra.mxu0 0.0
    %1574 = vmatprep.subr.mxu0 0.0
    %1575 = vmatpush2.msra.mxu0 0.0
    %1576 = vmatprep.subr.mxu0 0.0
    %1577 = vmatpush2.msra.mxu0 0.0
    %1578 = vmatprep.subr.mxu0 0.0
    %1579 = vmatpush2.msra.mxu0 0.0
    %1580 = vmatprep.subr.mxu0 0.0
    %1581 = vmatpush2.msra.mxu0 0.0
    %1582 = vmatprep.subr.mxu0 0.0
    %1583 = vmatpush2.msra.mxu0 0.0
    %1584 = vmatprep.subr.mxu0 0.0
    %1585 = vmatpush2.msra.mxu0 0.0
    %1586 = vmatprep.subr.mxu0 0.0
    %1587 = vmatpush2.msra.mxu0 0.0
    %1588 = vmatprep.subr.mxu0 0.0
    %1589 = vmatpush2.msra.mxu0 0.0
    %1590 = vmatprep.subr.mxu0 0.0
    %1591 = vmatpush2.msra.mxu0 0.0
    %1592 = vmatprep.subr.mxu0 0.0
    %1593 = vmatpush2.msra.mxu0 0.0
    %1594 = vmatprep.subr.mxu0 0.0
    %1595 = vmatpush2.msra.mxu0 0.0
    %1596 = vmatprep.subr.mxu0 0.0
    %1597 = vmatpush2.msra.mxu0 0.0
    %1598 = vmatprep.subr.mxu0 0.0
    %1599 = vmatpush2.msra.mxu0 0.0
    %1600 = vmatprep.subr.mxu0 0.0
    %1601 = vmatpush2.msra.mxu0 0.0
    %1602 = vmatprep.subr.mxu0 0.0
    %1603 = vmatpush2.msra.mxu0 0.0
    %1604 = vmatprep.mubr.f32.mxu0 0.0
    %1605 = vmatmul.mubr.f32.gmra.mxu0 %v1538
    %v1606 = vpop.f32.mrf.mxu0
    %v1607 = vadd.f32 0.0, %v1606
    %v1608 = vpop.f32.mrf.mxu0
    %1609 = vdwg.mxu0
    %v1610 = vmul.f32 %v291, %v1532
    %v1611 = vmul.f32 %v292, %v1607
    %1612 = vmatprep.subr.mxu0 0.0
    %1613 = vmatpush1.msra.mxu0 %v952
    %1614 = vmatprep.subr.mxu0 0.0
    %1615 = vmatpush1.msra.mxu0 %v951
    %1616 = vmatprep.subr.mxu0 0.0
    %1617 = vmatpush1.msra.mxu0 %v950
    %1618 = vmatprep.subr.mxu0 0.0
    %1619 = vmatpush1.msra.mxu0 %v949
    %1620 = vmatprep.subr.mxu0 0.0
    %1621 = vmatpush1.msra.mxu0 %v948
    %1622 = vmatprep.subr.mxu0 0.0
    %1623 = vmatpush1.msra.mxu0 %v947
    %1624 = vmatprep.subr.mxu0 0.0
    %1625 = vmatpush1.msra.mxu0 %v946
    %1626 = vmatprep.subr.mxu0 0.0
    %1627 = vmatpush1.msra.mxu0 %v945
    %1628 = vmatprep.subr.mxu0 0.0
    %1629 = vmatpush1.msra.mxu0 %v944
    %1630 = vmatprep.subr.mxu0 0.0
    %1631 = vmatpush1.msra.mxu0 %v943
    %1632 = vmatprep.subr.mxu0 0.0
    %1633 = vmatpush1.msra.mxu0 %v942
    %1634 = vmatprep.subr.mxu0 0.0
    %1635 = vmatpush1.msra.mxu0 %v941
    %1636 = vmatprep.subr.mxu0 0.0
    %1637 = vmatpush1.msra.mxu0 %v940
    %1638 = vmatprep.subr.mxu0 0.0
    %1639 = vmatpush1.msra.mxu0 %v939
    %1640 = vmatprep.subr.mxu0 0.0
    %1641 = vmatpush1.msra.mxu0 %v938
    %1642 = vmatprep.subr.mxu0 0.0
    %1643 = vmatpush1.msra.mxu0 %v937
    %1644 = vmatprep.subr.mxu0 0.0
    %1645 = vmatpush2.msra.mxu0 0.0
    %1646 = vmatprep.subr.mxu0 0.0
    %1647 = vmatpush2.msra.mxu0 0.0
    %1648 = vmatprep.subr.mxu0 0.0
    %1649 = vmatpush2.msra.mxu0 0.0
    %1650 = vmatprep.subr.mxu0 0.0
    %1651 = vmatpush2.msra.mxu0 0.0
    %1652 = vmatprep.subr.mxu0 0.0
    %1653 = vmatpush2.msra.mxu0 0.0
    %1654 = vmatprep.subr.mxu0 0.0
    %1655 = vmatpush2.msra.mxu0 0.0
    %1656 = vmatprep.subr.mxu0 0.0
    %1657 = vmatpush2.msra.mxu0 0.0
    %1658 = vmatprep.subr.mxu0 0.0
    %1659 = vmatpush2.msra.mxu0 0.0
    %1660 = vmatprep.subr.mxu0 0.0
    %1661 = vmatpush2.msra.mxu0 0.0
    %1662 = vmatprep.subr.mxu0 0.0
    %1663 = vmatpush2.msra.mxu0 0.0
    %1664 = vmatprep.subr.mxu0 0.0
    %1665 = vmatpush2.msra.mxu0 0.0
    %1666 = vmatprep.subr.mxu0 0.0
    %1667 = vmatpush2.msra.mxu0 0.0
    %1668 = vmatprep.subr.mxu0 0.0
    %1669 = vmatpush2.msra.mxu0 0.0
    %1670 = vmatprep.subr.mxu0 0.0
    %1671 = vmatpush2.msra.mxu0 0.0
    %1672 = vmatprep.subr.mxu0 0.0
    %1673 = vmatpush2.msra.mxu0 0.0
    %1674 = vmatprep.subr.mxu0 0.0
    %1675 = vmatpush2.msra.mxu0 0.0
    %1676 = vmatprep.mubr.f32.mxu0 0.0
    %1677 = vmatmul.mubr.f32.gmra.mxu0 %v1611
    %v1678 = vpop.f32.mrf.mxu0
    %v1679 = vadd.f32 0.0, %v1678
    %v1680 = vpop.f32.mrf.mxu0
    %1681 = vdwg.mxu0
    %1682 = vmatprep.subr.mxu0 0.0
    %1683 = vmatpush1.msra.mxu0 %v936
    %1684 = vmatprep.subr.mxu0 0.0
    %1685 = vmatpush1.msra.mxu0 %v935
    %1686 = vmatprep.subr.mxu0 0.0
    %1687 = vmatpush1.msra.mxu0 %v934
    %1688 = vmatprep.subr.mxu0 0.0
    %1689 = vmatpush1.msra.mxu0 %v933
    %1690 = vmatprep.subr.mxu0 0.0
    %1691 = vmatpush1.msra.mxu0 %v932
    %1692 = vmatprep.subr.mxu0 0.0
    %1693 = vmatpush1.msra.mxu0 %v931
    %1694 = vmatprep.subr.mxu0 0.0
    %1695 = vmatpush1.msra.mxu0 %v930
    %1696 = vmatprep.subr.mxu0 0.0
    %1697 = vmatpush1.msra.mxu0 %v929
    %1698 = vmatprep.subr.mxu0 0.0
    %1699 = vmatpush1.msra.mxu0 %v928
    %1700 = vmatprep.subr.mxu0 0.0
    %1701 = vmatpush1.msra.mxu0 %v927
    %1702 = vmatprep.subr.mxu0 0.0
    %1703 = vmatpush1.msra.mxu0 %v926
    %1704 = vmatprep.subr.mxu0 0.0
    %1705 = vmatpush1.msra.mxu0 %v925
    %1706 = vmatprep.subr.mxu0 0.0
    %1707 = vmatpush1.msra.mxu0 %v924
    %1708 = vmatprep.subr.mxu0 0.0
    %1709 = vmatpush1.msra.mxu0 %v923
    %1710 = vmatprep.subr.mxu0 0.0
    %1711 = vmatpush1.msra.mxu0 %v922
    %1712 = vmatprep.subr.mxu0 0.0
    %1713 = vmatpush1.msra.mxu0 %v921
    %1714 = vmatprep.subr.mxu0 0.0
    %1715 = vmatpush2.msra.mxu0 0.0
    %1716 = vmatprep.subr.mxu0 0.0
    %1717 = vmatpush2.msra.mxu0 0.0
    %1718 = vmatprep.subr.mxu0 0.0
    %1719 = vmatpush2.msra.mxu0 0.0
    %1720 = vmatprep.subr.mxu0 0.0
    %1721 = vmatpush2.msra.mxu0 0.0
    %1722 = vmatprep.subr.mxu0 0.0
    %1723 = vmatpush2.msra.mxu0 0.0
    %1724 = vmatprep.subr.mxu0 0.0
    %1725 = vmatpush2.msra.mxu0 0.0
    %1726 = vmatprep.subr.mxu0 0.0
    %1727 = vmatpush2.msra.mxu0 0.0
    %1728 = vmatprep.subr.mxu0 0.0
    %1729 = vmatpush2.msra.mxu0 0.0
    %1730 = vmatprep.subr.mxu0 0.0
    %1731 = vmatpush2.msra.mxu0 0.0
    %1732 = vmatprep.subr.mxu0 0.0
    %1733 = vmatpush2.msra.mxu0 0.0
    %1734 = vmatprep.subr.mxu0 0.0
    %1735 = vmatpush2.msra.mxu0 0.0
    %1736 = vmatprep.subr.mxu0 0.0
    %1737 = vmatpush2.msra.mxu0 0.0
    %1738 = vmatprep.subr.mxu0 0.0
    %1739 = vmatpush2.msra.mxu0 0.0
    %1740 = vmatprep.subr.mxu0 0.0
    %1741 = vmatpush2.msra.mxu0 0.0
    %1742 = vmatprep.subr.mxu0 0.0
    %1743 = vmatpush2.msra.mxu0 0.0
    %1744 = vmatprep.subr.mxu0 0.0
    %1745 = vmatpush2.msra.mxu0 0.0
    %1746 = vmatprep.mubr.f32.mxu0 0.0
    %1747 = vmatmul.mubr.f32.gmra.mxu0 %v1610
    %v1748 = vpop.f32.mrf.mxu0
    %v1749 = vadd.f32 %v1679, %v1748
    %v1750 = vpop.f32.mrf.mxu0
    %1751 = vdwg.mxu0
    %v1752 = vadd.f32 %v1749, %v298
    %v1753 = vxor.u32 %v1752, 2147483648
    %v1754 = vmul.f32 %v1753, 1.442695
    %v1755 = vpow.pop %v1754
    %v1756 = vadd.f32 %v1755, 1.0
    %v1757 = vrcp.pop %v1756
    %v1758 = vmul.f32 1.0, %v1757
    %1760 = vrot.lane.b32.xlu0 %v1758, 32
    %v1761 = vpop.permute.xlu0 %1760
    %v1763 = vmul.f32 %v1758, %v1761
    %1765 = vrot.lane.b32.xlu0 %v1127, 32
    %v1766 = vpop.permute.xlu0 %1765
    %v1768 = vmul.f32 %v1758, %v1766
    %1770 = vrot.lane.b32.xlu0 %v1768, 96
    %v1771 = vpop.permute.xlu0 %1770
    %v1773 = vadd.f32 %v1763, %v1771
    %v1774 = vtanh.pop %v1773
    %1776 = vrot.lane.b32.xlu0 %v1774, 64
    %v1777 = vpop.permute.xlu0 %1776
    %v1779 = vmul.f32 %v1758, %v1777
    %v1780 = vrot.slane %v300, 2
    %v1781 = vrot.slane %v301, 1
    %v1782 = vsel %vm335, %v1781, %v1780
    %v1783 = vsel %vm338, %v302, %v1782
    %v1784 = vrot.slane %v303, 7
    %v1785 = vsel %vm341, %v1784, %v1783
    %v1786 = vrot.slane %v304, 6
    %v1787 = vsel %vm344, %v1786, %v1785
    %v1788 = vrot.slane %v305, 5
    %v1789 = vsel %vm347, %v1788, %v1787
    %v1790 = vrot.slane %v306, 4
    %v1791 = vsel %vm350, %v1790, %v1789
    %v1792 = vrot.slane %v307, 3
    %v1793 = vsel %vm353, %v1792, %v1791
    %v1794 = vsel %vm355, %v1793, 0
    %1796 = vmatprep.subr.mxu0 0.0
    %1797 = vmatpush1.msra.mxu0 0.0
    %1798 = vmatprep.subr.mxu0 0.0
    %1799 = vmatpush1.msra.mxu0 0.0
    %1800 = vmatprep.subr.mxu0 0.0
    %1801 = vmatpush1.msra.mxu0 0.0
    %1802 = vmatprep.subr.mxu0 0.0
    %1803 = vmatpush1.msra.mxu0 0.0
    %1804 = vmatprep.subr.mxu0 0.0
    %1805 = vmatpush1.msra.mxu0 0.0
    %1806 = vmatprep.subr.mxu0 0.0
    %1807 = vmatpush1.msra.mxu0 0.0
    %1808 = vmatprep.subr.mxu0 0.0
    %1809 = vmatpush1.msra.mxu0 0.0
    %1810 = vmatprep.subr.mxu0 0.0
    %1811 = vmatpush1.msra.mxu0 0.0
    %1812 = vmatprep.subr.mxu0 0.0
    %1813 = vmatpush1.msra.mxu0 0.0
    %1814 = vmatprep.subr.mxu0 0.0
    %1815 = vmatpush1.msra.mxu0 0.0
    %1816 = vmatprep.subr.mxu0 0.0
    %1817 = vmatpush1.msra.mxu0 0.0
    %1818 = vmatprep.subr.mxu0 0.0
    %1819 = vmatpush1.msra.mxu0 0.0
    %1820 = vmatprep.subr.mxu0 0.0
    %1821 = vmatpush1.msra.mxu0 0.0
    %1822 = vmatprep.subr.mxu0 0.0
    %1823 = vmatpush1.msra.mxu0 0.0
    %1824 = vmatprep.subr.mxu0 0.0
    %1825 = vmatpush1.msra.mxu0 %v325
    %1826 = vmatprep.subr.mxu0 0.0
    %1827 = vmatpush1.msra.mxu0 %v324
    %1828 = vmatprep.subr.mxu0 0.0
    %1829 = vmatpush2.msra.mxu0 0.0
    %1830 = vmatprep.subr.mxu0 0.0
    %1831 = vmatpush2.msra.mxu0 0.0
    %1832 = vmatprep.subr.mxu0 0.0
    %1833 = vmatpush2.msra.mxu0 0.0
    %1834 = vmatprep.subr.mxu0 0.0
    %1835 = vmatpush2.msra.mxu0 0.0
    %1836 = vmatprep.subr.mxu0 0.0
    %1837 = vmatpush2.msra.mxu0 0.0
    %1838 = vmatprep.subr.mxu0 0.0
    %1839 = vmatpush2.msra.mxu0 0.0
    %1840 = vmatprep.subr.mxu0 0.0
    %1841 = vmatpush2.msra.mxu0 0.0
    %1842 = vmatprep.subr.mxu0 0.0
    %1843 = vmatpush2.msra.mxu0 0.0
    %1844 = vmatprep.subr.mxu0 0.0
    %1845 = vmatpush2.msra.mxu0 0.0
    %1846 = vmatprep.subr.mxu0 0.0
    %1847 = vmatpush2.msra.mxu0 0.0
    %1848 = vmatprep.subr.mxu0 0.0
    %1849 = vmatpush2.msra.mxu0 0.0
    %1850 = vmatprep.subr.mxu0 0.0
    %1851 = vmatpush2.msra.mxu0 0.0
    %1852 = vmatprep.subr.mxu0 0.0
    %1853 = vmatpush2.msra.mxu0 0.0
    %1854 = vmatprep.subr.mxu0 0.0
    %1855 = vmatpush2.msra.mxu0 0.0
    %1856 = vmatprep.subr.mxu0 0.0
    %1857 = vmatpush2.msra.mxu0 0.0
    %1858 = vmatprep.subr.mxu0 0.0
    %1859 = vmatpush2.msra.mxu0 0.0
    %1860 = vmatprep.mubr.f32.mxu0 0.0
    %1861 = vmatmul.mubr.f32.gmra.mxu0 %v1794
    %v1862 = vpop.f32.mrf.mxu0
    %v1863 = vadd.f32 0.0, %v1862
    %v1864 = vpop.f32.mrf.mxu0
    %1865 = vdwg.mxu0
    %1866 = vmatprep.subr.mxu0 0.0
    %1867 = vmatpush1.msra.mxu0 0.0
    %1868 = vmatprep.subr.mxu0 0.0
    %1869 = vmatpush1.msra.mxu0 0.0
    %1870 = vmatprep.subr.mxu0 0.0
    %1871 = vmatpush1.msra.mxu0 0.0
    %1872 = vmatprep.subr.mxu0 0.0
    %1873 = vmatpush1.msra.mxu0 0.0
    %1874 = vmatprep.subr.mxu0 0.0
    %1875 = vmatpush1.msra.mxu0 0.0
    %1876 = vmatprep.subr.mxu0 0.0
    %1877 = vmatpush1.msra.mxu0 0.0
    %1878 = vmatprep.subr.mxu0 0.0
    %1879 = vmatpush1.msra.mxu0 0.0
    %1880 = vmatprep.subr.mxu0 0.0
    %1881 = vmatpush1.msra.mxu0 0.0
    %1882 = vmatprep.subr.mxu0 0.0
    %1883 = vmatpush1.msra.mxu0 0.0
    %1884 = vmatprep.subr.mxu0 0.0
    %1885 = vmatpush1.msra.mxu0 0.0
    %1886 = vmatprep.subr.mxu0 0.0
    %1887 = vmatpush1.msra.mxu0 0.0
    %1888 = vmatprep.subr.mxu0 0.0
    %1889 = vmatpush1.msra.mxu0 0.0
    %1890 = vmatprep.subr.mxu0 0.0
    %1891 = vmatpush1.msra.mxu0 %v431
    %1892 = vmatprep.subr.mxu0 0.0
    %1893 = vmatpush1.msra.mxu0 %v430
    %1894 = vmatprep.subr.mxu0 0.0
    %1895 = vmatpush1.msra.mxu0 %v429
    %1896 = vmatprep.subr.mxu0 0.0
    %1897 = vmatpush1.msra.mxu0 %v428
    %1898 = vmatprep.subr.mxu0 0.0
    %1899 = vmatpush2.msra.mxu0 0.0
    %1900 = vmatprep.subr.mxu0 0.0
    %1901 = vmatpush2.msra.mxu0 0.0
    %1902 = vmatprep.subr.mxu0 0.0
    %1903 = vmatpush2.msra.mxu0 0.0
    %1904 = vmatprep.subr.mxu0 0.0
    %1905 = vmatpush2.msra.mxu0 0.0
    %1906 = vmatprep.subr.mxu0 0.0
    %1907 = vmatpush2.msra.mxu0 0.0
    %1908 = vmatprep.subr.mxu0 0.0
    %1909 = vmatpush2.msra.mxu0 0.0
    %1910 = vmatprep.subr.mxu0 0.0
    %1911 = vmatpush2.msra.mxu0 0.0
    %1912 = vmatprep.subr.mxu0 0.0
    %1913 = vmatpush2.msra.mxu0 0.0
    %1914 = vmatprep.subr.mxu0 0.0
    %1915 = vmatpush2.msra.mxu0 0.0
    %1916 = vmatprep.subr.mxu0 0.0
    %1917 = vmatpush2.msra.mxu0 0.0
    %1918 = vmatprep.subr.mxu0 0.0
    %1919 = vmatpush2.msra.mxu0 0.0
    %1920 = vmatprep.subr.mxu0 0.0
    %1921 = vmatpush2.msra.mxu0 0.0
    %1922 = vmatprep.subr.mxu0 0.0
    %1923 = vmatpush2.msra.mxu0 0.0
    %1924 = vmatprep.subr.mxu0 0.0
    %1925 = vmatpush2.msra.mxu0 0.0
    %1926 = vmatprep.subr.mxu0 0.0
    %1927 = vmatpush2.msra.mxu0 0.0
    %1928 = vmatprep.subr.mxu0 0.0
    %1929 = vmatpush2.msra.mxu0 0.0
    %1930 = vmatprep.mubr.f32.mxu0 0.0
    %1931 = vmatmul.mubr.f32.gmra.mxu0 %v1463
    %v1932 = vpop.f32.mrf.mxu0
    %v1933 = vadd.f32 0.0, %v1932
    %v1934 = vpop.f32.mrf.mxu0
    %1935 = vdwg.mxu0
    %v1936 = vmul.f32 %v282, %v1863
    %v1937 = vmul.f32 %v283, %v1933
    %1938 = vmatprep.subr.mxu0 0.0
    %1939 = vmatpush1.msra.mxu0 %v560
    %1940 = vmatprep.subr.mxu0 0.0
    %1941 = vmatpush1.msra.mxu0 %v559
    %1942 = vmatprep.subr.mxu0 0.0
    %1943 = vmatpush1.msra.mxu0 %v558
    %1944 = vmatprep.subr.mxu0 0.0
    %1945 = vmatpush1.msra.mxu0 %v557
    %1946 = vmatprep.subr.mxu0 0.0
    %1947 = vmatpush1.msra.mxu0 %v556
    %1948 = vmatprep.subr.mxu0 0.0
    %1949 = vmatpush1.msra.mxu0 %v555
    %1950 = vmatprep.subr.mxu0 0.0
    %1951 = vmatpush1.msra.mxu0 %v554
    %1952 = vmatprep.subr.mxu0 0.0
    %1953 = vmatpush1.msra.mxu0 %v553
    %1954 = vmatprep.subr.mxu0 0.0
    %1955 = vmatpush1.msra.mxu0 %v552
    %1956 = vmatprep.subr.mxu0 0.0
    %1957 = vmatpush1.msra.mxu0 %v551
    %1958 = vmatprep.subr.mxu0 0.0
    %1959 = vmatpush1.msra.mxu0 %v550
    %1960 = vmatprep.subr.mxu0 0.0
    %1961 = vmatpush1.msra.mxu0 %v549
    %1962 = vmatprep.subr.mxu0 0.0
    %1963 = vmatpush1.msra.mxu0 %v548
    %1964 = vmatprep.subr.mxu0 0.0
    %1965 = vmatpush1.msra.mxu0 %v547
    %1966 = vmatprep.subr.mxu0 0.0
    %1967 = vmatpush1.msra.mxu0 %v546
    %1968 = vmatprep.subr.mxu0 0.0
    %1969 = vmatpush1.msra.mxu0 %v545
    %1970 = vmatprep.subr.mxu0 0.0
    %1971 = vmatpush2.msra.mxu0 0.0
    %1972 = vmatprep.subr.mxu0 0.0
    %1973 = vmatpush2.msra.mxu0 0.0
    %1974 = vmatprep.subr.mxu0 0.0
    %1975 = vmatpush2.msra.mxu0 0.0
    %1976 = vmatprep.subr.mxu0 0.0
    %1977 = vmatpush2.msra.mxu0 0.0
    %1978 = vmatprep.subr.mxu0 0.0
    %1979 = vmatpush2.msra.mxu0 0.0
    %1980 = vmatprep.subr.mxu0 0.0
    %1981 = vmatpush2.msra.mxu0 0.0
    %1982 = vmatprep.subr.mxu0 0.0
    %1983 = vmatpush2.msra.mxu0 0.0
    %1984 = vmatprep.subr.mxu0 0.0
    %1985 = vmatpush2.msra.mxu0 0.0
    %1986 = vmatprep.subr.mxu0 0.0
    %1987 = vmatpush2.msra.mxu0 0.0
    %1988 = vmatprep.subr.mxu0 0.0
    %1989 = vmatpush2.msra.mxu0 0.0
    %1990 = vmatprep.subr.mxu0 0.0
    %1991 = vmatpush2.msra.mxu0 0.0
    %1992 = vmatprep.subr.mxu0 0.0
    %1993 = vmatpush2.msra.mxu0 0.0
    %1994 = vmatprep.subr.mxu0 0.0
    %1995 = vmatpush2.msra.mxu0 0.0
    %1996 = vmatprep.subr.mxu0 0.0
    %1997 = vmatpush2.msra.mxu0 0.0
    %1998 = vmatprep.subr.mxu0 0.0
    %1999 = vmatpush2.msra.mxu0 0.0
    %2000 = vmatprep.subr.mxu0 0.0
    %2001 = vmatpush2.msra.mxu0 0.0
    %2002 = vmatprep.mubr.f32.mxu0 0.0
    %2003 = vmatmul.mubr.f32.gmra.mxu0 %v1937
    %v2004 = vpop.f32.mrf.mxu0
    %v2005 = vadd.f32 0.0, %v2004
    %v2006 = vpop.f32.mrf.mxu0
    %2007 = vdwg.mxu0
    %2008 = vmatprep.subr.mxu0 0.0
    %2009 = vmatpush1.msra.mxu0 %v544
    %2010 = vmatprep.subr.mxu0 0.0
    %2011 = vmatpush1.msra.mxu0 %v543
    %2012 = vmatprep.subr.mxu0 0.0
    %2013 = vmatpush1.msra.mxu0 %v542
    %2014 = vmatprep.subr.mxu0 0.0
    %2015 = vmatpush1.msra.mxu0 %v541
    %2016 = vmatprep.subr.mxu0 0.0
    %2017 = vmatpush1.msra.mxu0 %v540
    %2018 = vmatprep.subr.mxu0 0.0
    %2019 = vmatpush1.msra.mxu0 %v539
    %2020 = vmatprep.subr.mxu0 0.0
    %2021 = vmatpush1.msra.mxu0 %v538
    %2022 = vmatprep.subr.mxu0 0.0
    %2023 = vmatpush1.msra.mxu0 %v537
    %2024 = vmatprep.subr.mxu0 0.0
    %2025 = vmatpush1.msra.mxu0 %v536
    %2026 = vmatprep.subr.mxu0 0.0
    %2027 = vmatpush1.msra.mxu0 %v535
    %2028 = vmatprep.subr.mxu0 0.0
    %2029 = vmatpush1.msra.mxu0 %v534
    %2030 = vmatprep.subr.mxu0 0.0
    %2031 = vmatpush1.msra.mxu0 %v533
    %2032 = vmatprep.subr.mxu0 0.0
    %2033 = vmatpush1.msra.mxu0 %v532
    %2034 = vmatprep.subr.mxu0 0.0
    %2035 = vmatpush1.msra.mxu0 %v531
    %2036 = vmatprep.subr.mxu0 0.0
    %2037 = vmatpush1.msra.mxu0 %v530
    %2038 = vmatprep.subr.mxu0 0.0
    %2039 = vmatpush1.msra.mxu0 %v529
    %2040 = vmatprep.subr.mxu0 0.0
    %2041 = vmatpush2.msra.mxu0 0.0
    %2042 = vmatprep.subr.mxu0 0.0
    %2043 = vmatpush2.msra.mxu0 0.0
    %2044 = vmatprep.subr.mxu0 0.0
    %2045 = vmatpush2.msra.mxu0 0.0
    %2046 = vmatprep.subr.mxu0 0.0
    %2047 = vmatpush2.msra.mxu0 0.0
    %2048 = vmatprep.subr.mxu0 0.0
    %2049 = vmatpush2.msra.mxu0 0.0
    %2050 = vmatprep.subr.mxu0 0.0
    %2051 = vmatpush2.msra.mxu0 0.0
    %2052 = vmatprep.subr.mxu0 0.0
    %2053 = vmatpush2.msra.mxu0 0.0
    %2054 = vmatprep.subr.mxu0 0.0
    %2055 = vmatpush2.msra.mxu0 0.0
    %2056 = vmatprep.subr.mxu0 0.0
    %2057 = vmatpush2.msra.mxu0 0.0
    %2058 = vmatprep.subr.mxu0 0.0
    %2059 = vmatpush2.msra.mxu0 0.0
    %2060 = vmatprep.subr.mxu0 0.0
    %2061 = vmatpush2.msra.mxu0 0.0
    %2062 = vmatprep.subr.mxu0 0.0
    %2063 = vmatpush2.msra.mxu0 0.0
    %2064 = vmatprep.subr.mxu0 0.0
    %2065 = vmatpush2.msra.mxu0 0.0
    %2066 = vmatprep.subr.mxu0 0.0
    %2067 = vmatpush2.msra.mxu0 0.0
    %2068 = vmatprep.subr.mxu0 0.0
    %2069 = vmatpush2.msra.mxu0 0.0
    %2070 = vmatprep.subr.mxu0 0.0
    %2071 = vmatpush2.msra.mxu0 0.0
    %2072 = vmatprep.mubr.f32.mxu0 0.0
    %2073 = vmatmul.mubr.f32.gmra.mxu0 %v1936
    %v2074 = vpop.f32.mrf.mxu0
    %v2075 = vadd.f32 %v2005, %v2074
    %v2076 = vpop.f32.mrf.mxu0
    %2077 = vdwg.mxu0
    %v2078 = vadd.f32 %v2075, %v289
    %v2079 = vxor.u32 %v2078, 2147483648
    %v2080 = vmul.f32 %v2079, 1.442695
    %v2081 = vpow.pop %v2080
    %v2082 = vadd.f32 %v2081, 1.0
    %v2083 = vrcp.pop %v2082
    %v2084 = vmul.f32 1.0, %v2083
    %2086 = vrot.lane.b32.xlu0 %v2084, 32
    %v2087 = vpop.permute.xlu0 %2086
    %v2089 = vmul.f32 %v2084, %v2087
    %2091 = vrot.lane.b32.xlu0 %v1453, 32
    %v2092 = vpop.permute.xlu0 %2091
    %v2094 = vmul.f32 %v2084, %v2092
    %2096 = vrot.lane.b32.xlu0 %v2094, 96
    %v2097 = vpop.permute.xlu0 %2096
    %v2099 = vadd.f32 %v2089, %v2097
    %v2100 = vtanh.pop %v2099
    %2102 = vrot.lane.b32.xlu0 %v2100, 64
    %v2103 = vpop.permute.xlu0 %2102
    %v2105 = vmul.f32 %v2084, %v2103
    %2107 = vrot.lane.b32.xlu0 %v2105, 64
    %v2108 = vpop.permute.xlu0 %2107
    %v2109 = vsel %vm454, %v2108, 0
    %2111 = vmatprep.subr.mxu0 0.0
    %2112 = vmatpush1.msra.mxu0 0.0
    %2113 = vmatprep.subr.mxu0 0.0
    %2114 = vmatpush1.msra.mxu0 0.0
    %2115 = vmatprep.subr.mxu0 0.0
    %2116 = vmatpush1.msra.mxu0 0.0
    %2117 = vmatprep.subr.mxu0 0.0
    %2118 = vmatpush1.msra.mxu0 0.0
    %2119 = vmatprep.subr.mxu0 0.0
    %2120 = vmatpush1.msra.mxu0 0.0
    %2121 = vmatprep.subr.mxu0 0.0
    %2122 = vmatpush1.msra.mxu0 0.0
    %2123 = vmatprep.subr.mxu0 0.0
    %2124 = vmatpush1.msra.mxu0 0.0
    %2125 = vmatprep.subr.mxu0 0.0
    %2126 = vmatpush1.msra.mxu0 0.0
    %2127 = vmatprep.subr.mxu0 0.0
    %2128 = vmatpush1.msra.mxu0 0.0
    %2129 = vmatprep.subr.mxu0 0.0
    %2130 = vmatpush1.msra.mxu0 0.0
    %2131 = vmatprep.subr.mxu0 0.0
    %2132 = vmatpush1.msra.mxu0 0.0
    %2133 = vmatprep.subr.mxu0 0.0
    %2134 = vmatpush1.msra.mxu0 0.0
    %2135 = vmatprep.subr.mxu0 0.0
    %2136 = vmatpush1.msra.mxu0 %v753
    %2137 = vmatprep.subr.mxu0 0.0
    %2138 = vmatpush1.msra.mxu0 %v752
    %2139 = vmatprep.subr.mxu0 0.0
    %2140 = vmatpush1.msra.mxu0 %v751
    %2141 = vmatprep.subr.mxu0 0.0
    %2142 = vmatpush1.msra.mxu0 %v750
    %2143 = vmatprep.subr.mxu0 0.0
    %2144 = vmatpush2.msra.mxu0 0.0
    %2145 = vmatprep.subr.mxu0 0.0
    %2146 = vmatpush2.msra.mxu0 0.0
    %2147 = vmatprep.subr.mxu0 0.0
    %2148 = vmatpush2.msra.mxu0 0.0
    %2149 = vmatprep.subr.mxu0 0.0
    %2150 = vmatpush2.msra.mxu0 0.0
    %2151 = vmatprep.subr.mxu0 0.0
    %2152 = vmatpush2.msra.mxu0 0.0
    %2153 = vmatprep.subr.mxu0 0.0
    %2154 = vmatpush2.msra.mxu0 0.0
    %2155 = vmatprep.subr.mxu0 0.0
    %2156 = vmatpush2.msra.mxu0 0.0
    %2157 = vmatprep.subr.mxu0 0.0
    %2158 = vmatpush2.msra.mxu0 0.0
    %2159 = vmatprep.subr.mxu0 0.0
    %2160 = vmatpush2.msra.mxu0 0.0
    %2161 = vmatprep.subr.mxu0 0.0
    %2162 = vmatpush2.msra.mxu0 0.0
    %2163 = vmatprep.subr.mxu0 0.0
    %2164 = vmatpush2.msra.mxu0 0.0
    %2165 = vmatprep.subr.mxu0 0.0
    %2166 = vmatpush2.msra.mxu0 0.0
    %2167 = vmatprep.subr.mxu0 0.0
    %2168 = vmatpush2.msra.mxu0 0.0
    %2169 = vmatprep.subr.mxu0 0.0
    %2170 = vmatpush2.msra.mxu0 0.0
    %2171 = vmatprep.subr.mxu0 0.0
    %2172 = vmatpush2.msra.mxu0 0.0
    %2173 = vmatprep.subr.mxu0 0.0
    %2174 = vmatpush2.msra.mxu0 0.0
    %2175 = vmatprep.mubr.f32.mxu0 0.0
    %2176 = vmatmul.mubr.f32.gmra.mxu0 %v2109
    %v2177 = vpop.f32.mrf.mxu0
    %v2178 = vadd.f32 0.0, %v2177
    %v2179 = vpop.f32.mrf.mxu0
    %2180 = vdwg.mxu0
    %2182 = vrot.lane.b32.xlu0 %v1779, 64
    %v2183 = vpop.permute.xlu0 %2182
    %v2184 = vsel %vm454, %v2183, 0
    %2186 = vmatprep.subr.mxu0 0.0
    %2187 = vmatpush1.msra.mxu0 0.0
    %2188 = vmatprep.subr.mxu0 0.0
    %2189 = vmatpush1.msra.mxu0 0.0
    %2190 = vmatprep.subr.mxu0 0.0
    %2191 = vmatpush1.msra.mxu0 0.0
    %2192 = vmatprep.subr.mxu0 0.0
    %2193 = vmatpush1.msra.mxu0 0.0
    %2194 = vmatprep.subr.mxu0 0.0
    %2195 = vmatpush1.msra.mxu0 0.0
    %2196 = vmatprep.subr.mxu0 0.0
    %2197 = vmatpush1.msra.mxu0 0.0
    %2198 = vmatprep.subr.mxu0 0.0
    %2199 = vmatpush1.msra.mxu0 0.0
    %2200 = vmatprep.subr.mxu0 0.0
    %2201 = vmatpush1.msra.mxu0 0.0
    %2202 = vmatprep.subr.mxu0 0.0
    %2203 = vmatpush1.msra.mxu0 0.0
    %2204 = vmatprep.subr.mxu0 0.0
    %2205 = vmatpush1.msra.mxu0 0.0
    %2206 = vmatprep.subr.mxu0 0.0
    %2207 = vmatpush1.msra.mxu0 0.0
    %2208 = vmatprep.subr.mxu0 0.0
    %2209 = vmatpush1.msra.mxu0 0.0
    %2210 = vmatprep.subr.mxu0 0.0
    %2211 = vmatpush1.msra.mxu0 %v832
    %2212 = vmatprep.subr.mxu0 0.0
    %2213 = vmatpush1.msra.mxu0 %v831
    %2214 = vmatprep.subr.mxu0 0.0
    %2215 = vmatpush1.msra.mxu0 %v830
    %2216 = vmatprep.subr.mxu0 0.0
    %2217 = vmatpush1.msra.mxu0 %v829
    %2218 = vmatprep.subr.mxu0 0.0
    %2219 = vmatpush2.msra.mxu0 0.0
    %2220 = vmatprep.subr.mxu0 0.0
    %2221 = vmatpush2.msra.mxu0 0.0
    %2222 = vmatprep.subr.mxu0 0.0
    %2223 = vmatpush2.msra.mxu0 0.0
    %2224 = vmatprep.subr.mxu0 0.0
    %2225 = vmatpush2.msra.mxu0 0.0
    %2226 = vmatprep.subr.mxu0 0.0
    %2227 = vmatpush2.msra.mxu0 0.0
    %2228 = vmatprep.subr.mxu0 0.0
    %2229 = vmatpush2.msra.mxu0 0.0
    %2230 = vmatprep.subr.mxu0 0.0
    %2231 = vmatpush2.msra.mxu0 0.0
    %2232 = vmatprep.subr.mxu0 0.0
    %2233 = vmatpush2.msra.mxu0 0.0
    %2234 = vmatprep.subr.mxu0 0.0
    %2235 = vmatpush2.msra.mxu0 0.0
    %2236 = vmatprep.subr.mxu0 0.0
    %2237 = vmatpush2.msra.mxu0 0.0
    %2238 = vmatprep.subr.mxu0 0.0
    %2239 = vmatpush2.msra.mxu0 0.0
    %2240 = vmatprep.subr.mxu0 0.0
    %2241 = vmatpush2.msra.mxu0 0.0
    %2242 = vmatprep.subr.mxu0 0.0
    %2243 = vmatpush2.msra.mxu0 0.0
    %2244 = vmatprep.subr.mxu0 0.0
    %2245 = vmatpush2.msra.mxu0 0.0
    %2246 = vmatprep.subr.mxu0 0.0
    %2247 = vmatpush2.msra.mxu0 0.0
    %2248 = vmatprep.subr.mxu0 0.0
    %2249 = vmatpush2.msra.mxu0 0.0
    %2250 = vmatprep.mubr.f32.mxu0 0.0
    %2251 = vmatmul.mubr.f32.gmra.mxu0 %v2184
    %v2252 = vpop.f32.mrf.mxu0
    %v2253 = vadd.f32 0.0, %v2252
    %v2254 = vpop.f32.mrf.mxu0
    %2255 = vdwg.mxu0
    %v2256 = vmul.f32 %v291, %v2178
    %v2257 = vmul.f32 %v292, %v2253
    %2258 = vmatprep.subr.mxu0 0.0
    %2259 = vmatpush1.msra.mxu0 %v952
    %2260 = vmatprep.subr.mxu0 0.0
    %2261 = vmatpush1.msra.mxu0 %v951
    %2262 = vmatprep.subr.mxu0 0.0
    %2263 = vmatpush1.msra.mxu0 %v950
    %2264 = vmatprep.subr.mxu0 0.0
    %2265 = vmatpush1.msra.mxu0 %v949
    %2266 = vmatprep.subr.mxu0 0.0
    %2267 = vmatpush1.msra.mxu0 %v948
    %2268 = vmatprep.subr.mxu0 0.0
    %2269 = vmatpush1.msra.mxu0 %v947
    %2270 = vmatprep.subr.mxu0 0.0
    %2271 = vmatpush1.msra.mxu0 %v946
    %2272 = vmatprep.subr.mxu0 0.0
    %2273 = vmatpush1.msra.mxu0 %v945
    %2274 = vmatprep.subr.mxu0 0.0
    %2275 = vmatpush1.msra.mxu0 %v944
    %2276 = vmatprep.subr.mxu0 0.0
    %2277 = vmatpush1.msra.mxu0 %v943
    %2278 = vmatprep.subr.mxu0 0.0
    %2279 = vmatpush1.msra.mxu0 %v942
    %2280 = vmatprep.subr.mxu0 0.0
    %2281 = vmatpush1.msra.mxu0 %v941
    %2282 = vmatprep.subr.mxu0 0.0
    %2283 = vmatpush1.msra.mxu0 %v940
    %2284 = vmatprep.subr.mxu0 0.0
    %2285 = vmatpush1.msra.mxu0 %v939
    %2286 = vmatprep.subr.mxu0 0.0
    %2287 = vmatpush1.msra.mxu0 %v938
    %2288 = vmatprep.subr.mxu0 0.0
    %2289 = vmatpush1.msra.mxu0 %v937
    %2290 = vmatprep.subr.mxu0 0.0
    %2291 = vmatpush2.msra.mxu0 0.0
    %2292 = vmatprep.subr.mxu0 0.0
    %2293 = vmatpush2.msra.mxu0 0.0
    %2294 = vmatprep.subr.mxu0 0.0
    %2295 = vmatpush2.msra.mxu0 0.0
    %2296 = vmatprep.subr.mxu0 0.0
    %2297 = vmatpush2.msra.mxu0 0.0
    %2298 = vmatprep.subr.mxu0 0.0
    %2299 = vmatpush2.msra.mxu0 0.0
    %2300 = vmatprep.subr.mxu0 0.0
    %2301 = vmatpush2.msra.mxu0 0.0
    %2302 = vmatprep.subr.mxu0 0.0
    %2303 = vmatpush2.msra.mxu0 0.0
    %2304 = vmatprep.subr.mxu0 0.0
    %2305 = vmatpush2.msra.mxu0 0.0
    %2306 = vmatprep.subr.mxu0 0.0
    %2307 = vmatpush2.msra.mxu0 0.0
    %2308 = vmatprep.subr.mxu0 0.0
    %2309 = vmatpush2.msra.mxu0 0.0
    %2310 = vmatprep.subr.mxu0 0.0
    %2311 = vmatpush2.msra.mxu0 0.0
    %2312 = vmatprep.subr.mxu0 0.0
    %2313 = vmatpush2.msra.mxu0 0.0
    %2314 = vmatprep.subr.mxu0 0.0
    %2315 = vmatpush2.msra.mxu0 0.0
    %2316 = vmatprep.subr.mxu0 0.0
    %2317 = vmatpush2.msra.mxu0 0.0
    %2318 = vmatprep.subr.mxu0 0.0
    %2319 = vmatpush2.msra.mxu0 0.0
    %2320 = vmatprep.subr.mxu0 0.0
    %2321 = vmatpush2.msra.mxu0 0.0
    %2322 = vmatprep.mubr.f32.mxu0 0.0
    %2323 = vmatmul.mubr.f32.gmra.mxu0 %v2257
    %v2324 = vpop.f32.mrf.mxu0
    %v2325 = vadd.f32 0.0, %v2324
    %v2326 = vpop.f32.mrf.mxu0
    %2327 = vdwg.mxu0
    %2328 = vmatprep.subr.mxu0 0.0
    %2329 = vmatpush1.msra.mxu0 %v936
    %2330 = vmatprep.subr.mxu0 0.0
    %2331 = vmatpush1.msra.mxu0 %v935
    %2332 = vmatprep.subr.mxu0 0.0
    %2333 = vmatpush1.msra.mxu0 %v934
    %2334 = vmatprep.subr.mxu0 0.0
    %2335 = vmatpush1.msra.mxu0 %v933
    %2336 = vmatprep.subr.mxu0 0.0
    %2337 = vmatpush1.msra.mxu0 %v932
    %2338 = vmatprep.subr.mxu0 0.0
    %2339 = vmatpush1.msra.mxu0 %v931
    %2340 = vmatprep.subr.mxu0 0.0
    %2341 = vmatpush1.msra.mxu0 %v930
    %2342 = vmatprep.subr.mxu0 0.0
    %2343 = vmatpush1.msra.mxu0 %v929
    %2344 = vmatprep.subr.mxu0 0.0
    %2345 = vmatpush1.msra.mxu0 %v928
    %2346 = vmatprep.subr.mxu0 0.0
    %2347 = vmatpush1.msra.mxu0 %v927
    %2348 = vmatprep.subr.mxu0 0.0
    %2349 = vmatpush1.msra.mxu0 %v926
    %2350 = vmatprep.subr.mxu0 0.0
    %2351 = vmatpush1.msra.mxu0 %v925
    %2352 = vmatprep.subr.mxu0 0.0
    %2353 = vmatpush1.msra.mxu0 %v924
    %2354 = vmatprep.subr.mxu0 0.0
    %2355 = vmatpush1.msra.mxu0 %v923
    %2356 = vmatprep.subr.mxu0 0.0
    %2357 = vmatpush1.msra.mxu0 %v922
    %2358 = vmatprep.subr.mxu0 0.0
    %2359 = vmatpush1.msra.mxu0 %v921
    %2360 = vmatprep.subr.mxu0 0.0
    %2361 = vmatpush2.msra.mxu0 0.0
    %2362 = vmatprep.subr.mxu0 0.0
    %2363 = vmatpush2.msra.mxu0 0.0
    %2364 = vmatprep.subr.mxu0 0.0
    %2365 = vmatpush2.msra.mxu0 0.0
    %2366 = vmatprep.subr.mxu0 0.0
    %2367 = vmatpush2.msra.mxu0 0.0
    %2368 = vmatprep.subr.mxu0 0.0
    %2369 = vmatpush2.msra.mxu0 0.0
    %2370 = vmatprep.subr.mxu0 0.0
    %2371 = vmatpush2.msra.mxu0 0.0
    %2372 = vmatprep.subr.mxu0 0.0
    %2373 = vmatpush2.msra.mxu0 0.0
    %2374 = vmatprep.subr.mxu0 0.0
    %2375 = vmatpush2.msra.mxu0 0.0
    %2376 = vmatprep.subr.mxu0 0.0
    %2377 = vmatpush2.msra.mxu0 0.0
    %2378 = vmatprep.subr.mxu0 0.0
    %2379 = vmatpush2.msra.mxu0 0.0
    %2380 = vmatprep.subr.mxu0 0.0
    %2381 = vmatpush2.msra.mxu0 0.0
    %2382 = vmatprep.subr.mxu0 0.0
    %2383 = vmatpush2.msra.mxu0 0.0
    %2384 = vmatprep.subr.mxu0 0.0
    %2385 = vmatpush2.msra.mxu0 0.0
    %2386 = vmatprep.subr.mxu0 0.0
    %2387 = vmatpush2.msra.mxu0 0.0
    %2388 = vmatprep.subr.mxu0 0.0
    %2389 = vmatpush2.msra.mxu0 0.0
    %2390 = vmatprep.subr.mxu0 0.0
    %2391 = vmatpush2.msra.mxu0 0.0
    %2392 = vmatprep.mubr.f32.mxu0 0.0
    %2393 = vmatmul.mubr.f32.gmra.mxu0 %v2256
    %v2394 = vpop.f32.mrf.mxu0
    %v2395 = vadd.f32 %v2325, %v2394
    %v2396 = vpop.f32.mrf.mxu0
    %2397 = vdwg.mxu0
    %v2398 = vadd.f32 %v2395, %v298
    %v2399 = vxor.u32 %v2398, 2147483648
    %v2400 = vmul.f32 %v2399, 1.442695
    %v2401 = vpow.pop %v2400
    %v2402 = vadd.f32 %v2401, 1.0
    %v2403 = vrcp.pop %v2402
    %v2404 = vmul.f32 1.0, %v2403
    %2406 = vrot.lane.b32.xlu0 %v2404, 32
    %v2407 = vpop.permute.xlu0 %2406
    %v2409 = vmul.f32 %v2404, %v2407
    %2411 = vrot.lane.b32.xlu0 %v1773, 32
    %v2412 = vpop.permute.xlu0 %2411
    %v2414 = vmul.f32 %v2404, %v2412
    %2416 = vrot.lane.b32.xlu0 %v2414, 96
    %v2417 = vpop.permute.xlu0 %2416
    %v2419 = vadd.f32 %v2409, %v2417
    %v2420 = vtanh.pop %v2419
    %2422 = vrot.lane.b32.xlu0 %v2420, 64
    %v2423 = vpop.permute.xlu0 %2422
    %v2425 = vmul.f32 %v2404, %v2423
    %v2426 = vrot.slane %v300, 3
    %v2427 = vrot.slane %v301, 2
    %v2428 = vsel %vm335, %v2427, %v2426
    %v2429 = vrot.slane %v302, 1
    %v2430 = vsel %vm338, %v2429, %v2428
    %v2431 = vsel %vm341, %v303, %v2430
    %v2432 = vrot.slane %v304, 7
    %v2433 = vsel %vm344, %v2432, %v2431
    %v2434 = vrot.slane %v305, 6
    %v2435 = vsel %vm347, %v2434, %v2433
    %v2436 = vrot.slane %v306, 5
    %v2437 = vsel %vm350, %v2436, %v2435
    %v2438 = vrot.slane %v307, 4
    %v2439 = vsel %vm353, %v2438, %v2437
    %v2440 = vsel %vm355, %v2439, 0
    %2442 = vmatprep.subr.mxu0 0.0
    %2443 = vmatpush1.msra.mxu0 0.0
    %2444 = vmatprep.subr.mxu0 0.0
    %2445 = vmatpush1.msra.mxu0 0.0
    %2446 = vmatprep.subr.mxu0 0.0
    %2447 = vmatpush1.msra.mxu0 0.0
    %2448 = vmatprep.subr.mxu0 0.0
    %2449 = vmatpush1.msra.mxu0 0.0
    %2450 = vmatprep.subr.mxu0 0.0
    %2451 = vmatpush1.msra.mxu0 0.0
    %2452 = vmatprep.subr.mxu0 0.0
    %2453 = vmatpush1.msra.mxu0 0.0
    %2454 = vmatprep.subr.mxu0 0.0
    %2455 = vmatpush1.msra.mxu0 0.0
    %2456 = vmatprep.subr.mxu0 0.0
    %2457 = vmatpush1.msra.mxu0 0.0
    %2458 = vmatprep.subr.mxu0 0.0
    %2459 = vmatpush1.msra.mxu0 0.0
    %2460 = vmatprep.subr.mxu0 0.0
    %2461 = vmatpush1.msra.mxu0 0.0
    %2462 = vmatprep.subr.mxu0 0.0
    %2463 = vmatpush1.msra.mxu0 0.0
    %2464 = vmatprep.subr.mxu0 0.0
    %2465 = vmatpush1.msra.mxu0 0.0
    %2466 = vmatprep.subr.mxu0 0.0
    %2467 = vmatpush1.msra.mxu0 0.0
    %2468 = vmatprep.subr.mxu0 0.0
    %2469 = vmatpush1.msra.mxu0 0.0
    %2470 = vmatprep.subr.mxu0 0.0
    %2471 = vmatpush1.msra.mxu0 %v325
    %2472 = vmatprep.subr.mxu0 0.0
    %2473 = vmatpush1.msra.mxu0 %v324
    %2474 = vmatprep.subr.mxu0 0.0
    %2475 = vmatpush2.msra.mxu0 0.0
    %2476 = vmatprep.subr.mxu0 0.0
    %2477 = vmatpush2.msra.mxu0 0.0
    %2478 = vmatprep.subr.mxu0 0.0
    %2479 = vmatpush2.msra.mxu0 0.0
    %2480 = vmatprep.subr.mxu0 0.0
    %2481 = vmatpush2.msra.mxu0 0.0
    %2482 = vmatprep.subr.mxu0 0.0
    %2483 = vmatpush2.msra.mxu0 0.0
    %2484 = vmatprep.subr.mxu0 0.0
    %2485 = vmatpush2.msra.mxu0 0.0
    %2486 = vmatprep.subr.mxu0 0.0
    %2487 = vmatpush2.msra.mxu0 0.0
    %2488 = vmatprep.subr.mxu0 0.0
    %2489 = vmatpush2.msra.mxu0 0.0
    %2490 = vmatprep.subr.mxu0 0.0
    %2491 = vmatpush2.msra.mxu0 0.0
    %2492 = vmatprep.subr.mxu0 0.0
    %2493 = vmatpush2.msra.mxu0 0.0
    %2494 = vmatprep.subr.mxu0 0.0
    %2495 = vmatpush2.msra.mxu0 0.0
    %2496 = vmatprep.subr.mxu0 0.0
    %2497 = vmatpush2.msra.mxu0 0.0
    %2498 = vmatprep.subr.mxu0 0.0
    %2499 = vmatpush2.msra.mxu0 0.0
    %2500 = vmatprep.subr.mxu0 0.0
    %2501 = vmatpush2.msra.mxu0 0.0
    %2502 = vmatprep.subr.mxu0 0.0
    %2503 = vmatpush2.msra.mxu0 0.0
    %2504 = vmatprep.subr.mxu0 0.0
    %2505 = vmatpush2.msra.mxu0 0.0
    %2506 = vmatprep.mubr.f32.mxu0 0.0
    %2507 = vmatmul.mubr.f32.gmra.mxu0 %v2440
    %v2508 = vpop.f32.mrf.mxu0
    %v2509 = vadd.f32 0.0, %v2508
    %v2510 = vpop.f32.mrf.mxu0
    %2511 = vdwg.mxu0
    %2512 = vmatprep.subr.mxu0 0.0
    %2513 = vmatpush1.msra.mxu0 0.0
    %2514 = vmatprep.subr.mxu0 0.0
    %2515 = vmatpush1.msra.mxu0 0.0
    %2516 = vmatprep.subr.mxu0 0.0
    %2517 = vmatpush1.msra.mxu0 0.0
    %2518 = vmatprep.subr.mxu0 0.0
    %2519 = vmatpush1.msra.mxu0 0.0
    %2520 = vmatprep.subr.mxu0 0.0
    %2521 = vmatpush1.msra.mxu0 0.0
    %2522 = vmatprep.subr.mxu0 0.0
    %2523 = vmatpush1.msra.mxu0 0.0
    %2524 = vmatprep.subr.mxu0 0.0
    %2525 = vmatpush1.msra.mxu0 0.0
    %2526 = vmatprep.subr.mxu0 0.0
    %2527 = vmatpush1.msra.mxu0 0.0
    %2528 = vmatprep.subr.mxu0 0.0
    %2529 = vmatpush1.msra.mxu0 0.0
    %2530 = vmatprep.subr.mxu0 0.0
    %2531 = vmatpush1.msra.mxu0 0.0
    %2532 = vmatprep.subr.mxu0 0.0
    %2533 = vmatpush1.msra.mxu0 0.0
    %2534 = vmatprep.subr.mxu0 0.0
    %2535 = vmatpush1.msra.mxu0 0.0
    %2536 = vmatprep.subr.mxu0 0.0
    %2537 = vmatpush1.msra.mxu0 %v431
    %2538 = vmatprep.subr.mxu0 0.0
    %2539 = vmatpush1.msra.mxu0 %v430
    %2540 = vmatprep.subr.mxu0 0.0
    %2541 = vmatpush1.msra.mxu0 %v429
    %2542 = vmatprep.subr.mxu0 0.0
    %2543 = vmatpush1.msra.mxu0 %v428
    %2544 = vmatprep.subr.mxu0 0.0
    %2545 = vmatpush2.msra.mxu0 0.0
    %2546 = vmatprep.subr.mxu0 0.0
    %2547 = vmatpush2.msra.mxu0 0.0
    %2548 = vmatprep.subr.mxu0 0.0
    %2549 = vmatpush2.msra.mxu0 0.0
    %2550 = vmatprep.subr.mxu0 0.0
    %2551 = vmatpush2.msra.mxu0 0.0
    %2552 = vmatprep.subr.mxu0 0.0
    %2553 = vmatpush2.msra.mxu0 0.0
    %2554 = vmatprep.subr.mxu0 0.0
    %2555 = vmatpush2.msra.mxu0 0.0
    %2556 = vmatprep.subr.mxu0 0.0
    %2557 = vmatpush2.msra.mxu0 0.0
    %2558 = vmatprep.subr.mxu0 0.0
    %2559 = vmatpush2.msra.mxu0 0.0
    %2560 = vmatprep.subr.mxu0 0.0
    %2561 = vmatpush2.msra.mxu0 0.0
    %2562 = vmatprep.subr.mxu0 0.0
    %2563 = vmatpush2.msra.mxu0 0.0
    %2564 = vmatprep.subr.mxu0 0.0
    %2565 = vmatpush2.msra.mxu0 0.0
    %2566 = vmatprep.subr.mxu0 0.0
    %2567 = vmatpush2.msra.mxu0 0.0
    %2568 = vmatprep.subr.mxu0 0.0
    %2569 = vmatpush2.msra.mxu0 0.0
    %2570 = vmatprep.subr.mxu0 0.0
    %2571 = vmatpush2.msra.mxu0 0.0
    %2572 = vmatprep.subr.mxu0 0.0
    %2573 = vmatpush2.msra.mxu0 0.0
    %2574 = vmatprep.subr.mxu0 0.0
    %2575 = vmatpush2.msra.mxu0 0.0
    %2576 = vmatprep.mubr.f32.mxu0 0.0
    %2577 = vmatmul.mubr.f32.gmra.mxu0 %v2109
    %v2578 = vpop.f32.mrf.mxu0
    %v2579 = vadd.f32 0.0, %v2578
    %v2580 = vpop.f32.mrf.mxu0
    %2581 = vdwg.mxu0
    %v2582 = vmul.f32 %v282, %v2509
    %v2583 = vmul.f32 %v283, %v2579
    %2584 = vmatprep.subr.mxu0 0.0
    %2585 = vmatpush1.msra.mxu0 %v560
    %2586 = vmatprep.subr.mxu0 0.0
    %2587 = vmatpush1.msra.mxu0 %v559
    %2588 = vmatprep.subr.mxu0 0.0
    %2589 = vmatpush1.msra.mxu0 %v558
    %2590 = vmatprep.subr.mxu0 0.0
    %2591 = vmatpush1.msra.mxu0 %v557
    %2592 = vmatprep.subr.mxu0 0.0
    %2593 = vmatpush1.msra.mxu0 %v556
    %2594 = vmatprep.subr.mxu0 0.0
    %2595 = vmatpush1.msra.mxu0 %v555
    %2596 = vmatprep.subr.mxu0 0.0
    %2597 = vmatpush1.msra.mxu0 %v554
    %2598 = vmatprep.subr.mxu0 0.0
    %2599 = vmatpush1.msra.mxu0 %v553
    %2600 = vmatprep.subr.mxu0 0.0
    %2601 = vmatpush1.msra.mxu0 %v552
    %2602 = vmatprep.subr.mxu0 0.0
    %2603 = vmatpush1.msra.mxu0 %v551
    %2604 = vmatprep.subr.mxu0 0.0
    %2605 = vmatpush1.msra.mxu0 %v550
    %2606 = vmatprep.subr.mxu0 0.0
    %2607 = vmatpush1.msra.mxu0 %v549
    %2608 = vmatprep.subr.mxu0 0.0
    %2609 = vmatpush1.msra.mxu0 %v548
    %2610 = vmatprep.subr.mxu0 0.0
    %2611 = vmatpush1.msra.mxu0 %v547
    %2612 = vmatprep.subr.mxu0 0.0
    %2613 = vmatpush1.msra.mxu0 %v546
    %2614 = vmatprep.subr.mxu0 0.0
    %2615 = vmatpush1.msra.mxu0 %v545
    %2616 = vmatprep.subr.mxu0 0.0
    %2617 = vmatpush2.msra.mxu0 0.0
    %2618 = vmatprep.subr.mxu0 0.0
    %2619 = vmatpush2.msra.mxu0 0.0
    %2620 = vmatprep.subr.mxu0 0.0
    %2621 = vmatpush2.msra.mxu0 0.0
    %2622 = vmatprep.subr.mxu0 0.0
    %2623 = vmatpush2.msra.mxu0 0.0
    %2624 = vmatprep.subr.mxu0 0.0
    %2625 = vmatpush2.msra.mxu0 0.0
    %2626 = vmatprep.subr.mxu0 0.0
    %2627 = vmatpush2.msra.mxu0 0.0
    %2628 = vmatprep.subr.mxu0 0.0
    %2629 = vmatpush2.msra.mxu0 0.0
    %2630 = vmatprep.subr.mxu0 0.0
    %2631 = vmatpush2.msra.mxu0 0.0
    %2632 = vmatprep.subr.mxu0 0.0
    %2633 = vmatpush2.msra.mxu0 0.0
    %2634 = vmatprep.subr.mxu0 0.0
    %2635 = vmatpush2.msra.mxu0 0.0
    %2636 = vmatprep.subr.mxu0 0.0
    %2637 = vmatpush2.msra.mxu0 0.0
    %2638 = vmatprep.subr.mxu0 0.0
    %2639 = vmatpush2.msra.mxu0 0.0
    %2640 = vmatprep.subr.mxu0 0.0
    %2641 = vmatpush2.msra.mxu0 0.0
    %2642 = vmatprep.subr.mxu0 0.0
    %2643 = vmatpush2.msra.mxu0 0.0
    %2644 = vmatprep.subr.mxu0 0.0
    %2645 = vmatpush2.msra.mxu0 0.0
    %2646 = vmatprep.subr.mxu0 0.0
    %2647 = vmatpush2.msra.mxu0 0.0
    %2648 = vmatprep.mubr.f32.mxu0 0.0
    %2649 = vmatmul.mubr.f32.gmra.mxu0 %v2583
    %v2650 = vpop.f32.mrf.mxu0
    %v2651 = vadd.f32 0.0, %v2650
    %v2652 = vpop.f32.mrf.mxu0
    %2653 = vdwg.mxu0
    %2654 = vmatprep.subr.mxu0 0.0
    %2655 = vmatpush1.msra.mxu0 %v544
    %2656 = vmatprep.subr.mxu0 0.0
    %2657 = vmatpush1.msra.mxu0 %v543
    %2658 = vmatprep.subr.mxu0 0.0
    %2659 = vmatpush1.msra.mxu0 %v542
    %2660 = vmatprep.subr.mxu0 0.0
    %2661 = vmatpush1.msra.mxu0 %v541
    %2662 = vmatprep.subr.mxu0 0.0
    %2663 = vmatpush1.msra.mxu0 %v540
    %2664 = vmatprep.subr.mxu0 0.0
    %2665 = vmatpush1.msra.mxu0 %v539
    %2666 = vmatprep.subr.mxu0 0.0
    %2667 = vmatpush1.msra.mxu0 %v538
    %2668 = vmatprep.subr.mxu0 0.0
    %2669 = vmatpush1.msra.mxu0 %v537
    %2670 = vmatprep.subr.mxu0 0.0
    %2671 = vmatpush1.msra.mxu0 %v536
    %2672 = vmatprep.subr.mxu0 0.0
    %2673 = vmatpush1.msra.mxu0 %v535
    %2674 = vmatprep.subr.mxu0 0.0
    %2675 = vmatpush1.msra.mxu0 %v534
    %2676 = vmatprep.subr.mxu0 0.0
    %2677 = vmatpush1.msra.mxu0 %v533
    %2678 = vmatprep.subr.mxu0 0.0
    %2679 = vmatpush1.msra.mxu0 %v532
    %2680 = vmatprep.subr.mxu0 0.0
    %2681 = vmatpush1.msra.mxu0 %v531
    %2682 = vmatprep.subr.mxu0 0.0
    %2683 = vmatpush1.msra.mxu0 %v530
    %2684 = vmatprep.subr.mxu0 0.0
    %2685 = vmatpush1.msra.mxu0 %v529
    %2686 = vmatprep.subr.mxu0 0.0
    %2687 = vmatpush2.msra.mxu0 0.0
    %2688 = vmatprep.subr.mxu0 0.0
    %2689 = vmatpush2.msra.mxu0 0.0
    %2690 = vmatprep.subr.mxu0 0.0
    %2691 = vmatpush2.msra.mxu0 0.0
    %2692 = vmatprep.subr.mxu0 0.0
    %2693 = vmatpush2.msra.mxu0 0.0
    %2694 = vmatprep.subr.mxu0 0.0
    %2695 = vmatpush2.msra.mxu0 0.0
    %2696 = vmatprep.subr.mxu0 0.0
    %2697 = vmatpush2.msra.mxu0 0.0
    %2698 = vmatprep.subr.mxu0 0.0
    %2699 = vmatpush2.msra.mxu0 0.0
    %2700 = vmatprep.subr.mxu0 0.0
    %2701 = vmatpush2.msra.mxu0 0.0
    %2702 = vmatprep.subr.mxu0 0.0
    %2703 = vmatpush2.msra.mxu0 0.0
    %2704 = vmatprep.subr.mxu0 0.0
    %2705 = vmatpush2.msra.mxu0 0.0
    %2706 = vmatprep.subr.mxu0 0.0
    %2707 = vmatpush2.msra.mxu0 0.0
    %2708 = vmatprep.subr.mxu0 0.0
    %2709 = vmatpush2.msra.mxu0 0.0
    %2710 = vmatprep.subr.mxu0 0.0
    %2711 = vmatpush2.msra.mxu0 0.0
    %2712 = vmatprep.subr.mxu0 0.0
    %2713 = vmatpush2.msra.mxu0 0.0
    %2714 = vmatprep.subr.mxu0 0.0
    %2715 = vmatpush2.msra.mxu0 0.0
    %2716 = vmatprep.subr.mxu0 0.0
    %2717 = vmatpush2.msra.mxu0 0.0
    %2718 = vmatprep.mubr.f32.mxu0 0.0
    %2719 = vmatmul.mubr.f32.gmra.mxu0 %v2582
    %v2720 = vpop.f32.mrf.mxu0
    %v2721 = vadd.f32 %v2651, %v2720
    %v2722 = vpop.f32.mrf.mxu0
    %2723 = vdwg.mxu0
    %v2724 = vadd.f32 %v2721, %v289
    %v2725 = vxor.u32 %v2724, 2147483648
    %v2726 = vmul.f32 %v2725, 1.442695
    %v2727 = vpow.pop %v2726
    %v2728 = vadd.f32 %v2727, 1.0
    %v2729 = vrcp.pop %v2728
    %v2730 = vmul.f32 1.0, %v2729
    %2732 = vrot.lane.b32.xlu0 %v2730, 32
    %v2733 = vpop.permute.xlu0 %2732
    %v2735 = vmul.f32 %v2730, %v2733
    %2737 = vrot.lane.b32.xlu0 %v2099, 32
    %v2738 = vpop.permute.xlu0 %2737
    %v2740 = vmul.f32 %v2730, %v2738
    %2742 = vrot.lane.b32.xlu0 %v2740, 96
    %v2743 = vpop.permute.xlu0 %2742
    %v2745 = vadd.f32 %v2735, %v2743
    %v2746 = vtanh.pop %v2745
    %2748 = vrot.lane.b32.xlu0 %v2746, 64
    %v2749 = vpop.permute.xlu0 %2748
    %v2751 = vmul.f32 %v2730, %v2749
    %2753 = vrot.lane.b32.xlu0 %v2751, 64
    %v2754 = vpop.permute.xlu0 %2753
    %v2755 = vsel %vm454, %v2754, 0
    %2757 = vmatprep.subr.mxu0 0.0
    %2758 = vmatpush1.msra.mxu0 0.0
    %2759 = vmatprep.subr.mxu0 0.0
    %2760 = vmatpush1.msra.mxu0 0.0
    %2761 = vmatprep.subr.mxu0 0.0
    %2762 = vmatpush1.msra.mxu0 0.0
    %2763 = vmatprep.subr.mxu0 0.0
    %2764 = vmatpush1.msra.mxu0 0.0
    %2765 = vmatprep.subr.mxu0 0.0
    %2766 = vmatpush1.msra.mxu0 0.0
    %2767 = vmatprep.subr.mxu0 0.0
    %2768 = vmatpush1.msra.mxu0 0.0
    %2769 = vmatprep.subr.mxu0 0.0
    %2770 = vmatpush1.msra.mxu0 0.0
    %2771 = vmatprep.subr.mxu0 0.0
    %2772 = vmatpush1.msra.mxu0 0.0
    %2773 = vmatprep.subr.mxu0 0.0
    %2774 = vmatpush1.msra.mxu0 0.0
    %2775 = vmatprep.subr.mxu0 0.0
    %2776 = vmatpush1.msra.mxu0 0.0
    %2777 = vmatprep.subr.mxu0 0.0
    %2778 = vmatpush1.msra.mxu0 0.0
    %2779 = vmatprep.subr.mxu0 0.0
    %2780 = vmatpush1.msra.mxu0 0.0
    %2781 = vmatprep.subr.mxu0 0.0
    %2782 = vmatpush1.msra.mxu0 %v753
    %2783 = vmatprep.subr.mxu0 0.0
    %2784 = vmatpush1.msra.mxu0 %v752
    %2785 = vmatprep.subr.mxu0 0.0
    %2786 = vmatpush1.msra.mxu0 %v751
    %2787 = vmatprep.subr.mxu0 0.0
    %2788 = vmatpush1.msra.mxu0 %v750
    %2789 = vmatprep.subr.mxu0 0.0
    %2790 = vmatpush2.msra.mxu0 0.0
    %2791 = vmatprep.subr.mxu0 0.0
    %2792 = vmatpush2.msra.mxu0 0.0
    %2793 = vmatprep.subr.mxu0 0.0
    %2794 = vmatpush2.msra.mxu0 0.0
    %2795 = vmatprep.subr.mxu0 0.0
    %2796 = vmatpush2.msra.mxu0 0.0
    %2797 = vmatprep.subr.mxu0 0.0
    %2798 = vmatpush2.msra.mxu0 0.0
    %2799 = vmatprep.subr.mxu0 0.0
    %2800 = vmatpush2.msra.mxu0 0.0
    %2801 = vmatprep.subr.mxu0 0.0
    %2802 = vmatpush2.msra.mxu0 0.0
    %2803 = vmatprep.subr.mxu0 0.0
    %2804 = vmatpush2.msra.mxu0 0.0
    %2805 = vmatprep.subr.mxu0 0.0
    %2806 = vmatpush2.msra.mxu0 0.0
    %2807 = vmatprep.subr.mxu0 0.0
    %2808 = vmatpush2.msra.mxu0 0.0
    %2809 = vmatprep.subr.mxu0 0.0
    %2810 = vmatpush2.msra.mxu0 0.0
    %2811 = vmatprep.subr.mxu0 0.0
    %2812 = vmatpush2.msra.mxu0 0.0
    %2813 = vmatprep.subr.mxu0 0.0
    %2814 = vmatpush2.msra.mxu0 0.0
    %2815 = vmatprep.subr.mxu0 0.0
    %2816 = vmatpush2.msra.mxu0 0.0
    %2817 = vmatprep.subr.mxu0 0.0
    %2818 = vmatpush2.msra.mxu0 0.0
    %2819 = vmatprep.subr.mxu0 0.0
    %2820 = vmatpush2.msra.mxu0 0.0
    %2821 = vmatprep.mubr.f32.mxu0 0.0
    %2822 = vmatmul.mubr.f32.gmra.mxu0 %v2755
    %v2823 = vpop.f32.mrf.mxu0
    %v2824 = vadd.f32 0.0, %v2823
    %v2825 = vpop.f32.mrf.mxu0
    %2826 = vdwg.mxu0
    %2828 = vrot.lane.b32.xlu0 %v2425, 64
    %v2829 = vpop.permute.xlu0 %2828
    %v2830 = vsel %vm454, %v2829, 0
    %2832 = vmatprep.subr.mxu0 0.0
    %2833 = vmatpush1.msra.mxu0 0.0
    %2834 = vmatprep.subr.mxu0 0.0
    %2835 = vmatpush1.msra.mxu0 0.0
    %2836 = vmatprep.subr.mxu0 0.0
    %2837 = vmatpush1.msra.mxu0 0.0
    %2838 = vmatprep.subr.mxu0 0.0
    %2839 = vmatpush1.msra.mxu0 0.0
    %2840 = vmatprep.subr.mxu0 0.0
    %2841 = vmatpush1.msra.mxu0 0.0
    %2842 = vmatprep.subr.mxu0 0.0
    %2843 = vmatpush1.msra.mxu0 0.0
    %2844 = vmatprep.subr.mxu0 0.0
    %2845 = vmatpush1.msra.mxu0 0.0
    %2846 = vmatprep.subr.mxu0 0.0
    %2847 = vmatpush1.msra.mxu0 0.0
    %2848 = vmatprep.subr.mxu0 0.0
    %2849 = vmatpush1.msra.mxu0 0.0
    %2850 = vmatprep.subr.mxu0 0.0
    %2851 = vmatpush1.msra.mxu0 0.0
    %2852 = vmatprep.subr.mxu0 0.0
    %2853 = vmatpush1.msra.mxu0 0.0
    %2854 = vmatprep.subr.mxu0 0.0
    %2855 = vmatpush1.msra.mxu0 0.0
    %2856 = vmatprep.subr.mxu0 0.0
    %2857 = vmatpush1.msra.mxu0 %v832
    %2858 = vmatprep.subr.mxu0 0.0
    %2859 = vmatpush1.msra.mxu0 %v831
    %2860 = vmatprep.subr.mxu0 0.0
    %2861 = vmatpush1.msra.mxu0 %v830
    %2862 = vmatprep.subr.mxu0 0.0
    %2863 = vmatpush1.msra.mxu0 %v829
    %2864 = vmatprep.subr.mxu0 0.0
    %2865 = vmatpush2.msra.mxu0 0.0
    %2866 = vmatprep.subr.mxu0 0.0
    %2867 = vmatpush2.msra.mxu0 0.0
    %2868 = vmatprep.subr.mxu0 0.0
    %2869 = vmatpush2.msra.mxu0 0.0
    %2870 = vmatprep.subr.mxu0 0.0
    %2871 = vmatpush2.msra.mxu0 0.0
    %2872 = vmatprep.subr.mxu0 0.0
    %2873 = vmatpush2.msra.mxu0 0.0
    %2874 = vmatprep.subr.mxu0 0.0
    %2875 = vmatpush2.msra.mxu0 0.0
    %2876 = vmatprep.subr.mxu0 0.0
    %2877 = vmatpush2.msra.mxu0 0.0
    %2878 = vmatprep.subr.mxu0 0.0
    %2879 = vmatpush2.msra.mxu0 0.0
    %2880 = vmatprep.subr.mxu0 0.0
    %2881 = vmatpush2.msra.mxu0 0.0
    %2882 = vmatprep.subr.mxu0 0.0
    %2883 = vmatpush2.msra.mxu0 0.0
    %2884 = vmatprep.subr.mxu0 0.0
    %2885 = vmatpush2.msra.mxu0 0.0
    %2886 = vmatprep.subr.mxu0 0.0
    %2887 = vmatpush2.msra.mxu0 0.0
    %2888 = vmatprep.subr.mxu0 0.0
    %2889 = vmatpush2.msra.mxu0 0.0
    %2890 = vmatprep.subr.mxu0 0.0
    %2891 = vmatpush2.msra.mxu0 0.0
    %2892 = vmatprep.subr.mxu0 0.0
    %2893 = vmatpush2.msra.mxu0 0.0
    %2894 = vmatprep.subr.mxu0 0.0
    %2895 = vmatpush2.msra.mxu0 0.0
    %2896 = vmatprep.mubr.f32.mxu0 0.0
    %2897 = vmatmul.mubr.f32.gmra.mxu0 %v2830
    %v2898 = vpop.f32.mrf.mxu0
    %v2899 = vadd.f32 0.0, %v2898
    %v2900 = vpop.f32.mrf.mxu0
    %2901 = vdwg.mxu0
    %v2902 = vmul.f32 %v291, %v2824
    %v2903 = vmul.f32 %v292, %v2899
    %2904 = vmatprep.subr.mxu0 0.0
    %2905 = vmatpush1.msra.mxu0 %v952
    %2906 = vmatprep.subr.mxu0 0.0
    %2907 = vmatpush1.msra.mxu0 %v951
    %2908 = vmatprep.subr.mxu0 0.0
    %2909 = vmatpush1.msra.mxu0 %v950
    %2910 = vmatprep.subr.mxu0 0.0
    %2911 = vmatpush1.msra.mxu0 %v949
    %2912 = vmatprep.subr.mxu0 0.0
    %2913 = vmatpush1.msra.mxu0 %v948
    %2914 = vmatprep.subr.mxu0 0.0
    %2915 = vmatpush1.msra.mxu0 %v947
    %2916 = vmatprep.subr.mxu0 0.0
    %2917 = vmatpush1.msra.mxu0 %v946
    %2918 = vmatprep.subr.mxu0 0.0
    %2919 = vmatpush1.msra.mxu0 %v945
    %2920 = vmatprep.subr.mxu0 0.0
    %2921 = vmatpush1.msra.mxu0 %v944
    %2922 = vmatprep.subr.mxu0 0.0
    %2923 = vmatpush1.msra.mxu0 %v943
    %2924 = vmatprep.subr.mxu0 0.0
    %2925 = vmatpush1.msra.mxu0 %v942
    %2926 = vmatprep.subr.mxu0 0.0
    %2927 = vmatpush1.msra.mxu0 %v941
    %2928 = vmatprep.subr.mxu0 0.0
    %2929 = vmatpush1.msra.mxu0 %v940
    %2930 = vmatprep.subr.mxu0 0.0
    %2931 = vmatpush1.msra.mxu0 %v939
    %2932 = vmatprep.subr.mxu0 0.0
    %2933 = vmatpush1.msra.mxu0 %v938
    %2934 = vmatprep.subr.mxu0 0.0
    %2935 = vmatpush1.msra.mxu0 %v937
    %2936 = vmatprep.subr.mxu0 0.0
    %2937 = vmatpush2.msra.mxu0 0.0
    %2938 = vmatprep.subr.mxu0 0.0
    %2939 = vmatpush2.msra.mxu0 0.0
    %2940 = vmatprep.subr.mxu0 0.0
    %2941 = vmatpush2.msra.mxu0 0.0
    %2942 = vmatprep.subr.mxu0 0.0
    %2943 = vmatpush2.msra.mxu0 0.0
    %2944 = vmatprep.subr.mxu0 0.0
    %2945 = vmatpush2.msra.mxu0 0.0
    %2946 = vmatprep.subr.mxu0 0.0
    %2947 = vmatpush2.msra.mxu0 0.0
    %2948 = vmatprep.subr.mxu0 0.0
    %2949 = vmatpush2.msra.mxu0 0.0
    %2950 = vmatprep.subr.mxu0 0.0
    %2951 = vmatpush2.msra.mxu0 0.0
    %2952 = vmatprep.subr.mxu0 0.0
    %2953 = vmatpush2.msra.mxu0 0.0
    %2954 = vmatprep.subr.mxu0 0.0
    %2955 = vmatpush2.msra.mxu0 0.0
    %2956 = vmatprep.subr.mxu0 0.0
    %2957 = vmatpush2.msra.mxu0 0.0
    %2958 = vmatprep.subr.mxu0 0.0
    %2959 = vmatpush2.msra.mxu0 0.0
    %2960 = vmatprep.subr.mxu0 0.0
    %2961 = vmatpush2.msra.mxu0 0.0
    %2962 = vmatprep.subr.mxu0 0.0
    %2963 = vmatpush2.msra.mxu0 0.0
    %2964 = vmatprep.subr.mxu0 0.0
    %2965 = vmatpush2.msra.mxu0 0.0
    %2966 = vmatprep.subr.mxu0 0.0
    %2967 = vmatpush2.msra.mxu0 0.0
    %2968 = vmatprep.mubr.f32.mxu0 0.0
    %2969 = vmatmul.mubr.f32.gmra.mxu0 %v2903
    %v2970 = vpop.f32.mrf.mxu0
    %v2971 = vadd.f32 0.0, %v2970
    %v2972 = vpop.f32.mrf.mxu0
    %2973 = vdwg.mxu0
    %2974 = vmatprep.subr.mxu0 0.0
    %2975 = vmatpush1.msra.mxu0 %v936
    %2976 = vmatprep.subr.mxu0 0.0
    %2977 = vmatpush1.msra.mxu0 %v935
    %2978 = vmatprep.subr.mxu0 0.0
    %2979 = vmatpush1.msra.mxu0 %v934
    %2980 = vmatprep.subr.mxu0 0.0
    %2981 = vmatpush1.msra.mxu0 %v933
    %2982 = vmatprep.subr.mxu0 0.0
    %2983 = vmatpush1.msra.mxu0 %v932
    %2984 = vmatprep.subr.mxu0 0.0
    %2985 = vmatpush1.msra.mxu0 %v931
    %2986 = vmatprep.subr.mxu0 0.0
    %2987 = vmatpush1.msra.mxu0 %v930
    %2988 = vmatprep.subr.mxu0 0.0
    %2989 = vmatpush1.msra.mxu0 %v929
    %2990 = vmatprep.subr.mxu0 0.0
    %2991 = vmatpush1.msra.mxu0 %v928
    %2992 = vmatprep.subr.mxu0 0.0
    %2993 = vmatpush1.msra.mxu0 %v927
    %2994 = vmatprep.subr.mxu0 0.0
    %2995 = vmatpush1.msra.mxu0 %v926
    %2996 = vmatprep.subr.mxu0 0.0
    %2997 = vmatpush1.msra.mxu0 %v925
    %2998 = vmatprep.subr.mxu0 0.0
    %2999 = vmatpush1.msra.mxu0 %v924
    %3000 = vmatprep.subr.mxu0 0.0
    %3001 = vmatpush1.msra.mxu0 %v923
    %3002 = vmatprep.subr.mxu0 0.0
    %3003 = vmatpush1.msra.mxu0 %v922
    %3004 = vmatprep.subr.mxu0 0.0
    %3005 = vmatpush1.msra.mxu0 %v921
    %3006 = vmatprep.subr.mxu0 0.0
    %3007 = vmatpush2.msra.mxu0 0.0
    %3008 = vmatprep.subr.mxu0 0.0
    %3009 = vmatpush2.msra.mxu0 0.0
    %3010 = vmatprep.subr.mxu0 0.0
    %3011 = vmatpush2.msra.mxu0 0.0
    %3012 = vmatprep.subr.mxu0 0.0
    %3013 = vmatpush2.msra.mxu0 0.0
    %3014 = vmatprep.subr.mxu0 0.0
    %3015 = vmatpush2.msra.mxu0 0.0
    %3016 = vmatprep.subr.mxu0 0.0
    %3017 = vmatpush2.msra.mxu0 0.0
    %3018 = vmatprep.subr.mxu0 0.0
    %3019 = vmatpush2.msra.mxu0 0.0
    %3020 = vmatprep.subr.mxu0 0.0
    %3021 = vmatpush2.msra.mxu0 0.0
    %3022 = vmatprep.subr.mxu0 0.0
    %3023 = vmatpush2.msra.mxu0 0.0
    %3024 = vmatprep.subr.mxu0 0.0
    %3025 = vmatpush2.msra.mxu0 0.0
    %3026 = vmatprep.subr.mxu0 0.0
    %3027 = vmatpush2.msra.mxu0 0.0
    %3028 = vmatprep.subr.mxu0 0.0
    %3029 = vmatpush2.msra.mxu0 0.0
    %3030 = vmatprep.subr.mxu0 0.0
    %3031 = vmatpush2.msra.mxu0 0.0
    %3032 = vmatprep.subr.mxu0 0.0
    %3033 = vmatpush2.msra.mxu0 0.0
    %3034 = vmatprep.subr.mxu0 0.0
    %3035 = vmatpush2.msra.mxu0 0.0
    %3036 = vmatprep.subr.mxu0 0.0
    %3037 = vmatpush2.msra.mxu0 0.0
    %3038 = vmatprep.mubr.f32.mxu0 0.0
    %3039 = vmatmul.mubr.f32.gmra.mxu0 %v2902
    %v3040 = vpop.f32.mrf.mxu0
    %v3041 = vadd.f32 %v2971, %v3040
    %v3042 = vpop.f32.mrf.mxu0
    %3043 = vdwg.mxu0
    %v3044 = vadd.f32 %v3041, %v298
    %v3045 = vxor.u32 %v3044, 2147483648
    %v3046 = vmul.f32 %v3045, 1.442695
    %v3047 = vpow.pop %v3046
    %v3048 = vadd.f32 %v3047, 1.0
    %v3049 = vrcp.pop %v3048
    %v3050 = vmul.f32 1.0, %v3049
    %3052 = vrot.lane.b32.xlu0 %v3050, 32
    %v3053 = vpop.permute.xlu0 %3052
    %v3055 = vmul.f32 %v3050, %v3053
    %3057 = vrot.lane.b32.xlu0 %v2419, 32
    %v3058 = vpop.permute.xlu0 %3057
    %v3060 = vmul.f32 %v3050, %v3058
    %3062 = vrot.lane.b32.xlu0 %v3060, 96
    %v3063 = vpop.permute.xlu0 %3062
    %v3065 = vadd.f32 %v3055, %v3063
    %v3066 = vtanh.pop %v3065
    %3068 = vrot.lane.b32.xlu0 %v3066, 64
    %v3069 = vpop.permute.xlu0 %3068
    %v3071 = vmul.f32 %v3050, %v3069
    %v3072 = vrot.slane %v300, 4
    %v3073 = vrot.slane %v301, 3
    %v3074 = vsel %vm335, %v3073, %v3072
    %v3075 = vrot.slane %v302, 2
    %v3076 = vsel %vm338, %v3075, %v3074
    %v3077 = vrot.slane %v303, 1
    %v3078 = vsel %vm341, %v3077, %v3076
    %v3079 = vsel %vm344, %v304, %v3078
    %v3080 = vrot.slane %v305, 7
    %v3081 = vsel %vm347, %v3080, %v3079
    %v3082 = vrot.slane %v306, 6
    %v3083 = vsel %vm350, %v3082, %v3081
    %v3084 = vrot.slane %v307, 5
    %v3085 = vsel %vm353, %v3084, %v3083
    %v3086 = vsel %vm355, %v3085, 0
    %3088 = vmatprep.subr.mxu0 0.0
    %3089 = vmatpush1.msra.mxu0 0.0
    %3090 = vmatprep.subr.mxu0 0.0
    %3091 = vmatpush1.msra.mxu0 0.0
    %3092 = vmatprep.subr.mxu0 0.0
    %3093 = vmatpush1.msra.mxu0 0.0
    %3094 = vmatprep.subr.mxu0 0.0
    %3095 = vmatpush1.msra.mxu0 0.0
    %3096 = vmatprep.subr.mxu0 0.0
    %3097 = vmatpush1.msra.mxu0 0.0
    %3098 = vmatprep.subr.mxu0 0.0
    %3099 = vmatpush1.msra.mxu0 0.0
    %3100 = vmatprep.subr.mxu0 0.0
    %3101 = vmatpush1.msra.mxu0 0.0
    %3102 = vmatprep.subr.mxu0 0.0
    %3103 = vmatpush1.msra.mxu0 0.0
    %3104 = vmatprep.subr.mxu0 0.0
    %3105 = vmatpush1.msra.mxu0 0.0
    %3106 = vmatprep.subr.mxu0 0.0
    %3107 = vmatpush1.msra.mxu0 0.0
    %3108 = vmatprep.subr.mxu0 0.0
    %3109 = vmatpush1.msra.mxu0 0.0
    %3110 = vmatprep.subr.mxu0 0.0
    %3111 = vmatpush1.msra.mxu0 0.0
    %3112 = vmatprep.subr.mxu0 0.0
    %3113 = vmatpush1.msra.mxu0 0.0
    %3114 = vmatprep.subr.mxu0 0.0
    %3115 = vmatpush1.msra.mxu0 0.0
    %3116 = vmatprep.subr.mxu0 0.0
    %3117 = vmatpush1.msra.mxu0 %v325
    %3118 = vmatprep.subr.mxu0 0.0
    %3119 = vmatpush1.msra.mxu0 %v324
    %3120 = vmatprep.subr.mxu0 0.0
    %3121 = vmatpush2.msra.mxu0 0.0
    %3122 = vmatprep.subr.mxu0 0.0
    %3123 = vmatpush2.msra.mxu0 0.0
    %3124 = vmatprep.subr.mxu0 0.0
    %3125 = vmatpush2.msra.mxu0 0.0
    %3126 = vmatprep.subr.mxu0 0.0
    %3127 = vmatpush2.msra.mxu0 0.0
    %3128 = vmatprep.subr.mxu0 0.0
    %3129 = vmatpush2.msra.mxu0 0.0
    %3130 = vmatprep.subr.mxu0 0.0
    %3131 = vmatpush2.msra.mxu0 0.0
    %3132 = vmatprep.subr.mxu0 0.0
    %3133 = vmatpush2.msra.mxu0 0.0
    %3134 = vmatprep.subr.mxu0 0.0
    %3135 = vmatpush2.msra.mxu0 0.0
    %3136 = vmatprep.subr.mxu0 0.0
    %3137 = vmatpush2.msra.mxu0 0.0
    %3138 = vmatprep.subr.mxu0 0.0
    %3139 = vmatpush2.msra.mxu0 0.0
    %3140 = vmatprep.subr.mxu0 0.0
    %3141 = vmatpush2.msra.mxu0 0.0
    %3142 = vmatprep.subr.mxu0 0.0
    %3143 = vmatpush2.msra.mxu0 0.0
    %3144 = vmatprep.subr.mxu0 0.0
    %3145 = vmatpush2.msra.mxu0 0.0
    %3146 = vmatprep.subr.mxu0 0.0
    %3147 = vmatpush2.msra.mxu0 0.0
    %3148 = vmatprep.subr.mxu0 0.0
    %3149 = vmatpush2.msra.mxu0 0.0
    %3150 = vmatprep.subr.mxu0 0.0
    %3151 = vmatpush2.msra.mxu0 0.0
    %3152 = vmatprep.mubr.f32.mxu0 0.0
    %3153 = vmatmul.mubr.f32.gmra.mxu0 %v3086
    %v3154 = vpop.f32.mrf.mxu0
    %v3155 = vadd.f32 0.0, %v3154
    %v3156 = vpop.f32.mrf.mxu0
    %3157 = vdwg.mxu0
    %3158 = vmatprep.subr.mxu0 0.0
    %3159 = vmatpush1.msra.mxu0 0.0
    %3160 = vmatprep.subr.mxu0 0.0
    %3161 = vmatpush1.msra.mxu0 0.0
    %3162 = vmatprep.subr.mxu0 0.0
    %3163 = vmatpush1.msra.mxu0 0.0
    %3164 = vmatprep.subr.mxu0 0.0
    %3165 = vmatpush1.msra.mxu0 0.0
    %3166 = vmatprep.subr.mxu0 0.0
    %3167 = vmatpush1.msra.mxu0 0.0
    %3168 = vmatprep.subr.mxu0 0.0
    %3169 = vmatpush1.msra.mxu0 0.0
    %3170 = vmatprep.subr.mxu0 0.0
    %3171 = vmatpush1.msra.mxu0 0.0
    %3172 = vmatprep.subr.mxu0 0.0
    %3173 = vmatpush1.msra.mxu0 0.0
    %3174 = vmatprep.subr.mxu0 0.0
    %3175 = vmatpush1.msra.mxu0 0.0
    %3176 = vmatprep.subr.mxu0 0.0
    %3177 = vmatpush1.msra.mxu0 0.0
    %3178 = vmatprep.subr.mxu0 0.0
    %3179 = vmatpush1.msra.mxu0 0.0
    %3180 = vmatprep.subr.mxu0 0.0
    %3181 = vmatpush1.msra.mxu0 0.0
    %3182 = vmatprep.subr.mxu0 0.0
    %3183 = vmatpush1.msra.mxu0 %v431
    %3184 = vmatprep.subr.mxu0 0.0
    %3185 = vmatpush1.msra.mxu0 %v430
    %3186 = vmatprep.subr.mxu0 0.0
    %3187 = vmatpush1.msra.mxu0 %v429
    %3188 = vmatprep.subr.mxu0 0.0
    %3189 = vmatpush1.msra.mxu0 %v428
    %3190 = vmatprep.subr.mxu0 0.0
    %3191 = vmatpush2.msra.mxu0 0.0
    %3192 = vmatprep.subr.mxu0 0.0
    %3193 = vmatpush2.msra.mxu0 0.0
    %3194 = vmatprep.subr.mxu0 0.0
    %3195 = vmatpush2.msra.mxu0 0.0
    %3196 = vmatprep.subr.mxu0 0.0
    %3197 = vmatpush2.msra.mxu0 0.0
    %3198 = vmatprep.subr.mxu0 0.0
    %3199 = vmatpush2.msra.mxu0 0.0
    %3200 = vmatprep.subr.mxu0 0.0
    %3201 = vmatpush2.msra.mxu0 0.0
    %3202 = vmatprep.subr.mxu0 0.0
    %3203 = vmatpush2.msra.mxu0 0.0
    %3204 = vmatprep.subr.mxu0 0.0
    %3205 = vmatpush2.msra.mxu0 0.0
    %3206 = vmatprep.subr.mxu0 0.0
    %3207 = vmatpush2.msra.mxu0 0.0
    %3208 = vmatprep.subr.mxu0 0.0
    %3209 = vmatpush2.msra.mxu0 0.0
    %3210 = vmatprep.subr.mxu0 0.0
    %3211 = vmatpush2.msra.mxu0 0.0
    %3212 = vmatprep.subr.mxu0 0.0
    %3213 = vmatpush2.msra.mxu0 0.0
    %3214 = vmatprep.subr.mxu0 0.0
    %3215 = vmatpush2.msra.mxu0 0.0
    %3216 = vmatprep.subr.mxu0 0.0
    %3217 = vmatpush2.msra.mxu0 0.0
    %3218 = vmatprep.subr.mxu0 0.0
    %3219 = vmatpush2.msra.mxu0 0.0
    %3220 = vmatprep.subr.mxu0 0.0
    %3221 = vmatpush2.msra.mxu0 0.0
    %3222 = vmatprep.mubr.f32.mxu0 0.0
    %3223 = vmatmul.mubr.f32.gmra.mxu0 %v2755
    %v3224 = vpop.f32.mrf.mxu0
    %v3225 = vadd.f32 0.0, %v3224
    %v3226 = vpop.f32.mrf.mxu0
    %3227 = vdwg.mxu0
    %v3228 = vmul.f32 %v282, %v3155
    %v3229 = vmul.f32 %v283, %v3225
    %3230 = vmatprep.subr.mxu0 0.0
    %3231 = vmatpush1.msra.mxu0 %v560
    %3232 = vmatprep.subr.mxu0 0.0
    %3233 = vmatpush1.msra.mxu0 %v559
    %3234 = vmatprep.subr.mxu0 0.0
    %3235 = vmatpush1.msra.mxu0 %v558
    %3236 = vmatprep.subr.mxu0 0.0
    %3237 = vmatpush1.msra.mxu0 %v557
    %3238 = vmatprep.subr.mxu0 0.0
    %3239 = vmatpush1.msra.mxu0 %v556
    %3240 = vmatprep.subr.mxu0 0.0
    %3241 = vmatpush1.msra.mxu0 %v555
    %3242 = vmatprep.subr.mxu0 0.0
    %3243 = vmatpush1.msra.mxu0 %v554
    %3244 = vmatprep.subr.mxu0 0.0
    %3245 = vmatpush1.msra.mxu0 %v553
    %3246 = vmatprep.subr.mxu0 0.0
    %3247 = vmatpush1.msra.mxu0 %v552
    %3248 = vmatprep.subr.mxu0 0.0
    %3249 = vmatpush1.msra.mxu0 %v551
    %3250 = vmatprep.subr.mxu0 0.0
    %3251 = vmatpush1.msra.mxu0 %v550
    %3252 = vmatprep.subr.mxu0 0.0
    %3253 = vmatpush1.msra.mxu0 %v549
    %3254 = vmatprep.subr.mxu0 0.0
    %3255 = vmatpush1.msra.mxu0 %v548
    %3256 = vmatprep.subr.mxu0 0.0
    %3257 = vmatpush1.msra.mxu0 %v547
    %3258 = vmatprep.subr.mxu0 0.0
    %3259 = vmatpush1.msra.mxu0 %v546
    %3260 = vmatprep.subr.mxu0 0.0
    %3261 = vmatpush1.msra.mxu0 %v545
    %3262 = vmatprep.subr.mxu0 0.0
    %3263 = vmatpush2.msra.mxu0 0.0
    %3264 = vmatprep.subr.mxu0 0.0
    %3265 = vmatpush2.msra.mxu0 0.0
    %3266 = vmatprep.subr.mxu0 0.0
    %3267 = vmatpush2.msra.mxu0 0.0
    %3268 = vmatprep.subr.mxu0 0.0
    %3269 = vmatpush2.msra.mxu0 0.0
    %3270 = vmatprep.subr.mxu0 0.0
    %3271 = vmatpush2.msra.mxu0 0.0
    %3272 = vmatprep.subr.mxu0 0.0
    %3273 = vmatpush2.msra.mxu0 0.0
    %3274 = vmatprep.subr.mxu0 0.0
    %3275 = vmatpush2.msra.mxu0 0.0
    %3276 = vmatprep.subr.mxu0 0.0
    %3277 = vmatpush2.msra.mxu0 0.0
    %3278 = vmatprep.subr.mxu0 0.0
    %3279 = vmatpush2.msra.mxu0 0.0
    %3280 = vmatprep.subr.mxu0 0.0
    %3281 = vmatpush2.msra.mxu0 0.0
    %3282 = vmatprep.subr.mxu0 0.0
    %3283 = vmatpush2.msra.mxu0 0.0
    %3284 = vmatprep.subr.mxu0 0.0
    %3285 = vmatpush2.msra.mxu0 0.0
    %3286 = vmatprep.subr.mxu0 0.0
    %3287 = vmatpush2.msra.mxu0 0.0
    %3288 = vmatprep.subr.mxu0 0.0
    %3289 = vmatpush2.msra.mxu0 0.0
    %3290 = vmatprep.subr.mxu0 0.0
    %3291 = vmatpush2.msra.mxu0 0.0
    %3292 = vmatprep.subr.mxu0 0.0
    %3293 = vmatpush2.msra.mxu0 0.0
    %3294 = vmatprep.mubr.f32.mxu0 0.0
    %3295 = vmatmul.mubr.f32.gmra.mxu0 %v3229
    %v3296 = vpop.f32.mrf.mxu0
    %v3297 = vadd.f32 0.0, %v3296
    %v3298 = vpop.f32.mrf.mxu0
    %3299 = vdwg.mxu0
    %3300 = vmatprep.subr.mxu0 0.0
    %3301 = vmatpush1.msra.mxu0 %v544
    %3302 = vmatprep.subr.mxu0 0.0
    %3303 = vmatpush1.msra.mxu0 %v543
    %3304 = vmatprep.subr.mxu0 0.0
    %3305 = vmatpush1.msra.mxu0 %v542
    %3306 = vmatprep.subr.mxu0 0.0
    %3307 = vmatpush1.msra.mxu0 %v541
    %3308 = vmatprep.subr.mxu0 0.0
    %3309 = vmatpush1.msra.mxu0 %v540
    %3310 = vmatprep.subr.mxu0 0.0
    %3311 = vmatpush1.msra.mxu0 %v539
    %3312 = vmatprep.subr.mxu0 0.0
    %3313 = vmatpush1.msra.mxu0 %v538
    %3314 = vmatprep.subr.mxu0 0.0
    %3315 = vmatpush1.msra.mxu0 %v537
    %3316 = vmatprep.subr.mxu0 0.0
    %3317 = vmatpush1.msra.mxu0 %v536
    %3318 = vmatprep.subr.mxu0 0.0
    %3319 = vmatpush1.msra.mxu0 %v535
    %3320 = vmatprep.subr.mxu0 0.0
    %3321 = vmatpush1.msra.mxu0 %v534
    %3322 = vmatprep.subr.mxu0 0.0
    %3323 = vmatpush1.msra.mxu0 %v533
    %3324 = vmatprep.subr.mxu0 0.0
    %3325 = vmatpush1.msra.mxu0 %v532
    %3326 = vmatprep.subr.mxu0 0.0
    %3327 = vmatpush1.msra.mxu0 %v531
    %3328 = vmatprep.subr.mxu0 0.0
    %3329 = vmatpush1.msra.mxu0 %v530
    %3330 = vmatprep.subr.mxu0 0.0
    %3331 = vmatpush1.msra.mxu0 %v529
    %3332 = vmatprep.subr.mxu0 0.0
    %3333 = vmatpush2.msra.mxu0 0.0
    %3334 = vmatprep.subr.mxu0 0.0
    %3335 = vmatpush2.msra.mxu0 0.0
    %3336 = vmatprep.subr.mxu0 0.0
    %3337 = vmatpush2.msra.mxu0 0.0
    %3338 = vmatprep.subr.mxu0 0.0
    %3339 = vmatpush2.msra.mxu0 0.0
    %3340 = vmatprep.subr.mxu0 0.0
    %3341 = vmatpush2.msra.mxu0 0.0
    %3342 = vmatprep.subr.mxu0 0.0
    %3343 = vmatpush2.msra.mxu0 0.0
    %3344 = vmatprep.subr.mxu0 0.0
    %3345 = vmatpush2.msra.mxu0 0.0
    %3346 = vmatprep.subr.mxu0 0.0
    %3347 = vmatpush2.msra.mxu0 0.0
    %3348 = vmatprep.subr.mxu0 0.0
    %3349 = vmatpush2.msra.mxu0 0.0
    %3350 = vmatprep.subr.mxu0 0.0
    %3351 = vmatpush2.msra.mxu0 0.0
    %3352 = vmatprep.subr.mxu0 0.0
    %3353 = vmatpush2.msra.mxu0 0.0
    %3354 = vmatprep.subr.mxu0 0.0
    %3355 = vmatpush2.msra.mxu0 0.0
    %3356 = vmatprep.subr.mxu0 0.0
    %3357 = vmatpush2.msra.mxu0 0.0
    %3358 = vmatprep.subr.mxu0 0.0
    %3359 = vmatpush2.msra.mxu0 0.0
    %3360 = vmatprep.subr.mxu0 0.0
    %3361 = vmatpush2.msra.mxu0 0.0
    %3362 = vmatprep.subr.mxu0 0.0
    %3363 = vmatpush2.msra.mxu0 0.0
    %3364 = vmatprep.mubr.f32.mxu0 0.0
    %3365 = vmatmul.mubr.f32.gmra.mxu0 %v3228
    %v3366 = vpop.f32.mrf.mxu0
    %v3367 = vadd.f32 %v3297, %v3366
    %v3368 = vpop.f32.mrf.mxu0
    %3369 = vdwg.mxu0
    %v3370 = vadd.f32 %v3367, %v289
    %v3371 = vxor.u32 %v3370, 2147483648
    %v3372 = vmul.f32 %v3371, 1.442695
    %v3373 = vpow.pop %v3372
    %v3374 = vadd.f32 %v3373, 1.0
    %v3375 = vrcp.pop %v3374
    %v3376 = vmul.f32 1.0, %v3375
    %3378 = vrot.lane.b32.xlu0 %v3376, 32
    %v3379 = vpop.permute.xlu0 %3378
    %v3381 = vmul.f32 %v3376, %v3379
    %3383 = vrot.lane.b32.xlu0 %v2745, 32
    %v3384 = vpop.permute.xlu0 %3383
    %v3386 = vmul.f32 %v3376, %v3384
    %3388 = vrot.lane.b32.xlu0 %v3386, 96
    %v3389 = vpop.permute.xlu0 %3388
    %v3391 = vadd.f32 %v3381, %v3389
    %v3392 = vtanh.pop %v3391
    %3394 = vrot.lane.b32.xlu0 %v3392, 64
    %v3395 = vpop.permute.xlu0 %3394
    %v3397 = vmul.f32 %v3376, %v3395
    %3399 = vrot.lane.b32.xlu0 %v3397, 64
    %v3400 = vpop.permute.xlu0 %3399
    %v3401 = vsel %vm454, %v3400, 0
    %3403 = vmatprep.subr.mxu0 0.0
    %3404 = vmatpush1.msra.mxu0 0.0
    %3405 = vmatprep.subr.mxu0 0.0
    %3406 = vmatpush1.msra.mxu0 0.0
    %3407 = vmatprep.subr.mxu0 0.0
    %3408 = vmatpush1.msra.mxu0 0.0
    %3409 = vmatprep.subr.mxu0 0.0
    %3410 = vmatpush1.msra.mxu0 0.0
    %3411 = vmatprep.subr.mxu0 0.0
    %3412 = vmatpush1.msra.mxu0 0.0
    %3413 = vmatprep.subr.mxu0 0.0
    %3414 = vmatpush1.msra.mxu0 0.0
    %3415 = vmatprep.subr.mxu0 0.0
    %3416 = vmatpush1.msra.mxu0 0.0
    %3417 = vmatprep.subr.mxu0 0.0
    %3418 = vmatpush1.msra.mxu0 0.0
    %3419 = vmatprep.subr.mxu0 0.0
    %3420 = vmatpush1.msra.mxu0 0.0
    %3421 = vmatprep.subr.mxu0 0.0
    %3422 = vmatpush1.msra.mxu0 0.0
    %3423 = vmatprep.subr.mxu0 0.0
    %3424 = vmatpush1.msra.mxu0 0.0
    %3425 = vmatprep.subr.mxu0 0.0
    %3426 = vmatpush1.msra.mxu0 0.0
    %3427 = vmatprep.subr.mxu0 0.0
    %3428 = vmatpush1.msra.mxu0 %v753
    %3429 = vmatprep.subr.mxu0 0.0
    %3430 = vmatpush1.msra.mxu0 %v752
    %3431 = vmatprep.subr.mxu0 0.0
    %3432 = vmatpush1.msra.mxu0 %v751
    %3433 = vmatprep.subr.mxu0 0.0
    %3434 = vmatpush1.msra.mxu0 %v750
    %3435 = vmatprep.subr.mxu0 0.0
    %3436 = vmatpush2.msra.mxu0 0.0
    %3437 = vmatprep.subr.mxu0 0.0
    %3438 = vmatpush2.msra.mxu0 0.0
    %3439 = vmatprep.subr.mxu0 0.0
    %3440 = vmatpush2.msra.mxu0 0.0
    %3441 = vmatprep.subr.mxu0 0.0
    %3442 = vmatpush2.msra.mxu0 0.0
    %3443 = vmatprep.subr.mxu0 0.0
    %3444 = vmatpush2.msra.mxu0 0.0
    %3445 = vmatprep.subr.mxu0 0.0
    %3446 = vmatpush2.msra.mxu0 0.0
    %3447 = vmatprep.subr.mxu0 0.0
    %3448 = vmatpush2.msra.mxu0 0.0
    %3449 = vmatprep.subr.mxu0 0.0
    %3450 = vmatpush2.msra.mxu0 0.0
    %3451 = vmatprep.subr.mxu0 0.0
    %3452 = vmatpush2.msra.mxu0 0.0
    %3453 = vmatprep.subr.mxu0 0.0
    %3454 = vmatpush2.msra.mxu0 0.0
    %3455 = vmatprep.subr.mxu0 0.0
    %3456 = vmatpush2.msra.mxu0 0.0
    %3457 = vmatprep.subr.mxu0 0.0
    %3458 = vmatpush2.msra.mxu0 0.0
    %3459 = vmatprep.subr.mxu0 0.0
    %3460 = vmatpush2.msra.mxu0 0.0
    %3461 = vmatprep.subr.mxu0 0.0
    %3462 = vmatpush2.msra.mxu0 0.0
    %3463 = vmatprep.subr.mxu0 0.0
    %3464 = vmatpush2.msra.mxu0 0.0
    %3465 = vmatprep.subr.mxu0 0.0
    %3466 = vmatpush2.msra.mxu0 0.0
    %3467 = vmatprep.mubr.f32.mxu0 0.0
    %3468 = vmatmul.mubr.f32.gmra.mxu0 %v3401
    %v3469 = vpop.f32.mrf.mxu0
    %v3470 = vadd.f32 0.0, %v3469
    %v3471 = vpop.f32.mrf.mxu0
    %3472 = vdwg.mxu0
    %3474 = vrot.lane.b32.xlu0 %v3071, 64
    %v3475 = vpop.permute.xlu0 %3474
    %v3476 = vsel %vm454, %v3475, 0
    %3478 = vmatprep.subr.mxu0 0.0
    %3479 = vmatpush1.msra.mxu0 0.0
    %3480 = vmatprep.subr.mxu0 0.0
    %3481 = vmatpush1.msra.mxu0 0.0
    %3482 = vmatprep.subr.mxu0 0.0
    %3483 = vmatpush1.msra.mxu0 0.0
    %3484 = vmatprep.subr.mxu0 0.0
    %3485 = vmatpush1.msra.mxu0 0.0
    %3486 = vmatprep.subr.mxu0 0.0
    %3487 = vmatpush1.msra.mxu0 0.0
    %3488 = vmatprep.subr.mxu0 0.0
    %3489 = vmatpush1.msra.mxu0 0.0
    %3490 = vmatprep.subr.mxu0 0.0
    %3491 = vmatpush1.msra.mxu0 0.0
    %3492 = vmatprep.subr.mxu0 0.0
    %3493 = vmatpush1.msra.mxu0 0.0
    %3494 = vmatprep.subr.mxu0 0.0
    %3495 = vmatpush1.msra.mxu0 0.0
    %3496 = vmatprep.subr.mxu0 0.0
    %3497 = vmatpush1.msra.mxu0 0.0
    %3498 = vmatprep.subr.mxu0 0.0
    %3499 = vmatpush1.msra.mxu0 0.0
    %3500 = vmatprep.subr.mxu0 0.0
    %3501 = vmatpush1.msra.mxu0 0.0
    %3502 = vmatprep.subr.mxu0 0.0
    %3503 = vmatpush1.msra.mxu0 %v832
    %3504 = vmatprep.subr.mxu0 0.0
    %3505 = vmatpush1.msra.mxu0 %v831
    %3506 = vmatprep.subr.mxu0 0.0
    %3507 = vmatpush1.msra.mxu0 %v830
    %3508 = vmatprep.subr.mxu0 0.0
    %3509 = vmatpush1.msra.mxu0 %v829
    %3510 = vmatprep.subr.mxu0 0.0
    %3511 = vmatpush2.msra.mxu0 0.0
    %3512 = vmatprep.subr.mxu0 0.0
    %3513 = vmatpush2.msra.mxu0 0.0
    %3514 = vmatprep.subr.mxu0 0.0
    %3515 = vmatpush2.msra.mxu0 0.0
    %3516 = vmatprep.subr.mxu0 0.0
    %3517 = vmatpush2.msra.mxu0 0.0
    %3518 = vmatprep.subr.mxu0 0.0
    %3519 = vmatpush2.msra.mxu0 0.0
    %3520 = vmatprep.subr.mxu0 0.0
    %3521 = vmatpush2.msra.mxu0 0.0
    %3522 = vmatprep.subr.mxu0 0.0
    %3523 = vmatpush2.msra.mxu0 0.0
    %3524 = vmatprep.subr.mxu0 0.0
    %3525 = vmatpush2.msra.mxu0 0.0
    %3526 = vmatprep.subr.mxu0 0.0
    %3527 = vmatpush2.msra.mxu0 0.0
    %3528 = vmatprep.subr.mxu0 0.0
    %3529 = vmatpush2.msra.mxu0 0.0
    %3530 = vmatprep.subr.mxu0 0.0
    %3531 = vmatpush2.msra.mxu0 0.0
    %3532 = vmatprep.subr.mxu0 0.0
    %3533 = vmatpush2.msra.mxu0 0.0
    %3534 = vmatprep.subr.mxu0 0.0
    %3535 = vmatpush2.msra.mxu0 0.0
    %3536 = vmatprep.subr.mxu0 0.0
    %3537 = vmatpush2.msra.mxu0 0.0
    %3538 = vmatprep.subr.mxu0 0.0
    %3539 = vmatpush2.msra.mxu0 0.0
    %3540 = vmatprep.subr.mxu0 0.0
    %3541 = vmatpush2.msra.mxu0 0.0
    %3542 = vmatprep.mubr.f32.mxu0 0.0
    %3543 = vmatmul.mubr.f32.gmra.mxu0 %v3476
    %v3544 = vpop.f32.mrf.mxu0
    %v3545 = vadd.f32 0.0, %v3544
    %v3546 = vpop.f32.mrf.mxu0
    %3547 = vdwg.mxu0
    %v3548 = vmul.f32 %v291, %v3470
    %v3549 = vmul.f32 %v292, %v3545
    %3550 = vmatprep.subr.mxu0 0.0
    %3551 = vmatpush1.msra.mxu0 %v952
    %3552 = vmatprep.subr.mxu0 0.0
    %3553 = vmatpush1.msra.mxu0 %v951
    %3554 = vmatprep.subr.mxu0 0.0
    %3555 = vmatpush1.msra.mxu0 %v950
    %3556 = vmatprep.subr.mxu0 0.0
    %3557 = vmatpush1.msra.mxu0 %v949
    %3558 = vmatprep.subr.mxu0 0.0
    %3559 = vmatpush1.msra.mxu0 %v948
    %3560 = vmatprep.subr.mxu0 0.0
    %3561 = vmatpush1.msra.mxu0 %v947
    %3562 = vmatprep.subr.mxu0 0.0
    %3563 = vmatpush1.msra.mxu0 %v946
    %3564 = vmatprep.subr.mxu0 0.0
    %3565 = vmatpush1.msra.mxu0 %v945
    %3566 = vmatprep.subr.mxu0 0.0
    %3567 = vmatpush1.msra.mxu0 %v944
    %3568 = vmatprep.subr.mxu0 0.0
    %3569 = vmatpush1.msra.mxu0 %v943
    %3570 = vmatprep.subr.mxu0 0.0
    %3571 = vmatpush1.msra.mxu0 %v942
    %3572 = vmatprep.subr.mxu0 0.0
    %3573 = vmatpush1.msra.mxu0 %v941
    %3574 = vmatprep.subr.mxu0 0.0
    %3575 = vmatpush1.msra.mxu0 %v940
    %3576 = vmatprep.subr.mxu0 0.0
    %3577 = vmatpush1.msra.mxu0 %v939
    %3578 = vmatprep.subr.mxu0 0.0
    %3579 = vmatpush1.msra.mxu0 %v938
    %3580 = vmatprep.subr.mxu0 0.0
    %3581 = vmatpush1.msra.mxu0 %v937
    %3582 = vmatprep.subr.mxu0 0.0
    %3583 = vmatpush2.msra.mxu0 0.0
    %3584 = vmatprep.subr.mxu0 0.0
    %3585 = vmatpush2.msra.mxu0 0.0
    %3586 = vmatprep.subr.mxu0 0.0
    %3587 = vmatpush2.msra.mxu0 0.0
    %3588 = vmatprep.subr.mxu0 0.0
    %3589 = vmatpush2.msra.mxu0 0.0
    %3590 = vmatprep.subr.mxu0 0.0
    %3591 = vmatpush2.msra.mxu0 0.0
    %3592 = vmatprep.subr.mxu0 0.0
    %3593 = vmatpush2.msra.mxu0 0.0
    %3594 = vmatprep.subr.mxu0 0.0
    %3595 = vmatpush2.msra.mxu0 0.0
    %3596 = vmatprep.subr.mxu0 0.0
    %3597 = vmatpush2.msra.mxu0 0.0
    %3598 = vmatprep.subr.mxu0 0.0
    %3599 = vmatpush2.msra.mxu0 0.0
    %3600 = vmatprep.subr.mxu0 0.0
    %3601 = vmatpush2.msra.mxu0 0.0
    %3602 = vmatprep.subr.mxu0 0.0
    %3603 = vmatpush2.msra.mxu0 0.0
    %3604 = vmatprep.subr.mxu0 0.0
    %3605 = vmatpush2.msra.mxu0 0.0
    %3606 = vmatprep.subr.mxu0 0.0
    %3607 = vmatpush2.msra.mxu0 0.0
    %3608 = vmatprep.subr.mxu0 0.0
    %3609 = vmatpush2.msra.mxu0 0.0
    %3610 = vmatprep.subr.mxu0 0.0
    %3611 = vmatpush2.msra.mxu0 0.0
    %3612 = vmatprep.subr.mxu0 0.0
    %3613 = vmatpush2.msra.mxu0 0.0
    %3614 = vmatprep.mubr.f32.mxu0 0.0
    %3615 = vmatmul.mubr.f32.gmra.mxu0 %v3549
    %v3616 = vpop.f32.mrf.mxu0
    %v3617 = vadd.f32 0.0, %v3616
    %v3618 = vpop.f32.mrf.mxu0
    %3619 = vdwg.mxu0
    %3620 = vmatprep.subr.mxu0 0.0
    %3621 = vmatpush1.msra.mxu0 %v936
    %3622 = vmatprep.subr.mxu0 0.0
    %3623 = vmatpush1.msra.mxu0 %v935
    %3624 = vmatprep.subr.mxu0 0.0
    %3625 = vmatpush1.msra.mxu0 %v934
    %3626 = vmatprep.subr.mxu0 0.0
    %3627 = vmatpush1.msra.mxu0 %v933
    %3628 = vmatprep.subr.mxu0 0.0
    %3629 = vmatpush1.msra.mxu0 %v932
    %3630 = vmatprep.subr.mxu0 0.0
    %3631 = vmatpush1.msra.mxu0 %v931
    %3632 = vmatprep.subr.mxu0 0.0
    %3633 = vmatpush1.msra.mxu0 %v930
    %3634 = vmatprep.subr.mxu0 0.0
    %3635 = vmatpush1.msra.mxu0 %v929
    %3636 = vmatprep.subr.mxu0 0.0
    %3637 = vmatpush1.msra.mxu0 %v928
    %3638 = vmatprep.subr.mxu0 0.0
    %3639 = vmatpush1.msra.mxu0 %v927
    %3640 = vmatprep.subr.mxu0 0.0
    %3641 = vmatpush1.msra.mxu0 %v926
    %3642 = vmatprep.subr.mxu0 0.0
    %3643 = vmatpush1.msra.mxu0 %v925
    %3644 = vmatprep.subr.mxu0 0.0
    %3645 = vmatpush1.msra.mxu0 %v924
    %3646 = vmatprep.subr.mxu0 0.0
    %3647 = vmatpush1.msra.mxu0 %v923
    %3648 = vmatprep.subr.mxu0 0.0
    %3649 = vmatpush1.msra.mxu0 %v922
    %3650 = vmatprep.subr.mxu0 0.0
    %3651 = vmatpush1.msra.mxu0 %v921
    %3652 = vmatprep.subr.mxu0 0.0
    %3653 = vmatpush2.msra.mxu0 0.0
    %3654 = vmatprep.subr.mxu0 0.0
    %3655 = vmatpush2.msra.mxu0 0.0
    %3656 = vmatprep.subr.mxu0 0.0
    %3657 = vmatpush2.msra.mxu0 0.0
    %3658 = vmatprep.subr.mxu0 0.0
    %3659 = vmatpush2.msra.mxu0 0.0
    %3660 = vmatprep.subr.mxu0 0.0
    %3661 = vmatpush2.msra.mxu0 0.0
    %3662 = vmatprep.subr.mxu0 0.0
    %3663 = vmatpush2.msra.mxu0 0.0
    %3664 = vmatprep.subr.mxu0 0.0
    %3665 = vmatpush2.msra.mxu0 0.0
    %3666 = vmatprep.subr.mxu0 0.0
    %3667 = vmatpush2.msra.mxu0 0.0
    %3668 = vmatprep.subr.mxu0 0.0
    %3669 = vmatpush2.msra.mxu0 0.0
    %3670 = vmatprep.subr.mxu0 0.0
    %3671 = vmatpush2.msra.mxu0 0.0
    %3672 = vmatprep.subr.mxu0 0.0
    %3673 = vmatpush2.msra.mxu0 0.0
    %3674 = vmatprep.subr.mxu0 0.0
    %3675 = vmatpush2.msra.mxu0 0.0
    %3676 = vmatprep.subr.mxu0 0.0
    %3677 = vmatpush2.msra.mxu0 0.0
    %3678 = vmatprep.subr.mxu0 0.0
    %3679 = vmatpush2.msra.mxu0 0.0
    %3680 = vmatprep.subr.mxu0 0.0
    %3681 = vmatpush2.msra.mxu0 0.0
    %3682 = vmatprep.subr.mxu0 0.0
    %3683 = vmatpush2.msra.mxu0 0.0
    %3684 = vmatprep.mubr.f32.mxu0 0.0
    %3685 = vmatmul.mubr.f32.gmra.mxu0 %v3548
    %v3686 = vpop.f32.mrf.mxu0
    %v3687 = vadd.f32 %v3617, %v3686
    %v3688 = vpop.f32.mrf.mxu0
    %3689 = vdwg.mxu0
    %v3690 = vadd.f32 %v3687, %v298
    %v3691 = vxor.u32 %v3690, 2147483648
    %v3692 = vmul.f32 %v3691, 1.442695
    %v3693 = vpow.pop %v3692
    %v3694 = vadd.f32 %v3693, 1.0
    %v3695 = vrcp.pop %v3694
    %v3696 = vmul.f32 1.0, %v3695
    %3698 = vrot.lane.b32.xlu0 %v3696, 32
    %v3699 = vpop.permute.xlu0 %3698
    %v3701 = vmul.f32 %v3696, %v3699
    %3703 = vrot.lane.b32.xlu0 %v3065, 32
    %v3704 = vpop.permute.xlu0 %3703
    %v3706 = vmul.f32 %v3696, %v3704
    %3708 = vrot.lane.b32.xlu0 %v3706, 96
    %v3709 = vpop.permute.xlu0 %3708
    %v3711 = vadd.f32 %v3701, %v3709
    %v3712 = vtanh.pop %v3711
    %3714 = vrot.lane.b32.xlu0 %v3712, 64
    %v3715 = vpop.permute.xlu0 %3714
    %v3717 = vmul.f32 %v3696, %v3715
    %v3718 = vrot.slane %v300, 5
    %v3719 = vrot.slane %v301, 4
    %v3720 = vsel %vm335, %v3719, %v3718
    %v3721 = vrot.slane %v302, 3
    %v3722 = vsel %vm338, %v3721, %v3720
    %v3723 = vrot.slane %v303, 2
    %v3724 = vsel %vm341, %v3723, %v3722
    %v3725 = vrot.slane %v304, 1
    %v3726 = vsel %vm344, %v3725, %v3724
    %v3727 = vsel %vm347, %v305, %v3726
    %v3728 = vrot.slane %v306, 7
    %v3729 = vsel %vm350, %v3728, %v3727
    %v3730 = vrot.slane %v307, 6
    %v3731 = vsel %vm353, %v3730, %v3729
    %v3732 = vsel %vm355, %v3731, 0
    %3734 = vmatprep.subr.mxu0 0.0
    %3735 = vmatpush1.msra.mxu0 0.0
    %3736 = vmatprep.subr.mxu0 0.0
    %3737 = vmatpush1.msra.mxu0 0.0
    %3738 = vmatprep.subr.mxu0 0.0
    %3739 = vmatpush1.msra.mxu0 0.0
    %3740 = vmatprep.subr.mxu0 0.0
    %3741 = vmatpush1.msra.mxu0 0.0
    %3742 = vmatprep.subr.mxu0 0.0
    %3743 = vmatpush1.msra.mxu0 0.0
    %3744 = vmatprep.subr.mxu0 0.0
    %3745 = vmatpush1.msra.mxu0 0.0
    %3746 = vmatprep.subr.mxu0 0.0
    %3747 = vmatpush1.msra.mxu0 0.0
    %3748 = vmatprep.subr.mxu0 0.0
    %3749 = vmatpush1.msra.mxu0 0.0
    %3750 = vmatprep.subr.mxu0 0.0
    %3751 = vmatpush1.msra.mxu0 0.0
    %3752 = vmatprep.subr.mxu0 0.0
    %3753 = vmatpush1.msra.mxu0 0.0
    %3754 = vmatprep.subr.mxu0 0.0
    %3755 = vmatpush1.msra.mxu0 0.0
    %3756 = vmatprep.subr.mxu0 0.0
    %3757 = vmatpush1.msra.mxu0 0.0
    %3758 = vmatprep.subr.mxu0 0.0
    %3759 = vmatpush1.msra.mxu0 0.0
    %3760 = vmatprep.subr.mxu0 0.0
    %3761 = vmatpush1.msra.mxu0 0.0
    %3762 = vmatprep.subr.mxu0 0.0
    %3763 = vmatpush1.msra.mxu0 %v325
    %3764 = vmatprep.subr.mxu0 0.0
    %3765 = vmatpush1.msra.mxu0 %v324
    %3766 = vmatprep.subr.mxu0 0.0
    %3767 = vmatpush2.msra.mxu0 0.0
    %3768 = vmatprep.subr.mxu0 0.0
    %3769 = vmatpush2.msra.mxu0 0.0
    %3770 = vmatprep.subr.mxu0 0.0
    %3771 = vmatpush2.msra.mxu0 0.0
    %3772 = vmatprep.subr.mxu0 0.0
    %3773 = vmatpush2.msra.mxu0 0.0
    %3774 = vmatprep.subr.mxu0 0.0
    %3775 = vmatpush2.msra.mxu0 0.0
    %3776 = vmatprep.subr.mxu0 0.0
    %3777 = vmatpush2.msra.mxu0 0.0
    %3778 = vmatprep.subr.mxu0 0.0
    %3779 = vmatpush2.msra.mxu0 0.0
    %3780 = vmatprep.subr.mxu0 0.0
    %3781 = vmatpush2.msra.mxu0 0.0
    %3782 = vmatprep.subr.mxu0 0.0
    %3783 = vmatpush2.msra.mxu0 0.0
    %3784 = vmatprep.subr.mxu0 0.0
    %3785 = vmatpush2.msra.mxu0 0.0
    %3786 = vmatprep.subr.mxu0 0.0
    %3787 = vmatpush2.msra.mxu0 0.0
    %3788 = vmatprep.subr.mxu0 0.0
    %3789 = vmatpush2.msra.mxu0 0.0
    %3790 = vmatprep.subr.mxu0 0.0
    %3791 = vmatpush2.msra.mxu0 0.0
    %3792 = vmatprep.subr.mxu0 0.0
    %3793 = vmatpush2.msra.mxu0 0.0
    %3794 = vmatprep.subr.mxu0 0.0
    %3795 = vmatpush2.msra.mxu0 0.0
    %3796 = vmatprep.subr.mxu0 0.0
    %3797 = vmatpush2.msra.mxu0 0.0
    %3798 = vmatprep.mubr.f32.mxu0 0.0
    %3799 = vmatmul.mubr.f32.gmra.mxu0 %v3732
    %v3800 = vpop.f32.mrf.mxu0
    %v3801 = vadd.f32 0.0, %v3800
    %v3802 = vpop.f32.mrf.mxu0
    %3803 = vdwg.mxu0
    %3804 = vmatprep.subr.mxu0 0.0
    %3805 = vmatpush1.msra.mxu0 0.0
    %3806 = vmatprep.subr.mxu0 0.0
    %3807 = vmatpush1.msra.mxu0 0.0
    %3808 = vmatprep.subr.mxu0 0.0
    %3809 = vmatpush1.msra.mxu0 0.0
    %3810 = vmatprep.subr.mxu0 0.0
    %3811 = vmatpush1.msra.mxu0 0.0
    %3812 = vmatprep.subr.mxu0 0.0
    %3813 = vmatpush1.msra.mxu0 0.0
    %3814 = vmatprep.subr.mxu0 0.0
    %3815 = vmatpush1.msra.mxu0 0.0
    %3816 = vmatprep.subr.mxu0 0.0
    %3817 = vmatpush1.msra.mxu0 0.0
    %3818 = vmatprep.subr.mxu0 0.0
    %3819 = vmatpush1.msra.mxu0 0.0
    %3820 = vmatprep.subr.mxu0 0.0
    %3821 = vmatpush1.msra.mxu0 0.0
    %3822 = vmatprep.subr.mxu0 0.0
    %3823 = vmatpush1.msra.mxu0 0.0
    %3824 = vmatprep.subr.mxu0 0.0
    %3825 = vmatpush1.msra.mxu0 0.0
    %3826 = vmatprep.subr.mxu0 0.0
    %3827 = vmatpush1.msra.mxu0 0.0
    %3828 = vmatprep.subr.mxu0 0.0
    %3829 = vmatpush1.msra.mxu0 %v431
    %3830 = vmatprep.subr.mxu0 0.0
    %3831 = vmatpush1.msra.mxu0 %v430
    %3832 = vmatprep.subr.mxu0 0.0
    %3833 = vmatpush1.msra.mxu0 %v429
    %3834 = vmatprep.subr.mxu0 0.0
    %3835 = vmatpush1.msra.mxu0 %v428
    %3836 = vmatprep.subr.mxu0 0.0
    %3837 = vmatpush2.msra.mxu0 0.0
    %3838 = vmatprep.subr.mxu0 0.0
    %3839 = vmatpush2.msra.mxu0 0.0
    %3840 = vmatprep.subr.mxu0 0.0
    %3841 = vmatpush2.msra.mxu0 0.0
    %3842 = vmatprep.subr.mxu0 0.0
    %3843 = vmatpush2.msra.mxu0 0.0
    %3844 = vmatprep.subr.mxu0 0.0
    %3845 = vmatpush2.msra.mxu0 0.0
    %3846 = vmatprep.subr.mxu0 0.0
    %3847 = vmatpush2.msra.mxu0 0.0
    %3848 = vmatprep.subr.mxu0 0.0
    %3849 = vmatpush2.msra.mxu0 0.0
    %3850 = vmatprep.subr.mxu0 0.0
    %3851 = vmatpush2.msra.mxu0 0.0
    %3852 = vmatprep.subr.mxu0 0.0
    %3853 = vmatpush2.msra.mxu0 0.0
    %3854 = vmatprep.subr.mxu0 0.0
    %3855 = vmatpush2.msra.mxu0 0.0
    %3856 = vmatprep.subr.mxu0 0.0
    %3857 = vmatpush2.msra.mxu0 0.0
    %3858 = vmatprep.subr.mxu0 0.0
    %3859 = vmatpush2.msra.mxu0 0.0
    %3860 = vmatprep.subr.mxu0 0.0
    %3861 = vmatpush2.msra.mxu0 0.0
    %3862 = vmatprep.subr.mxu0 0.0
    %3863 = vmatpush2.msra.mxu0 0.0
    %3864 = vmatprep.subr.mxu0 0.0
    %3865 = vmatpush2.msra.mxu0 0.0
    %3866 = vmatprep.subr.mxu0 0.0
    %3867 = vmatpush2.msra.mxu0 0.0
    %3868 = vmatprep.mubr.f32.mxu0 0.0
    %3869 = vmatmul.mubr.f32.gmra.mxu0 %v3401
    %v3870 = vpop.f32.mrf.mxu0
    %v3871 = vadd.f32 0.0, %v3870
    %v3872 = vpop.f32.mrf.mxu0
    %3873 = vdwg.mxu0
    %v3874 = vmul.f32 %v282, %v3801
    %v3875 = vmul.f32 %v283, %v3871
    %3876 = vmatprep.subr.mxu0 0.0
    %3877 = vmatpush1.msra.mxu0 %v560
    %3878 = vmatprep.subr.mxu0 0.0
    %3879 = vmatpush1.msra.mxu0 %v559
    %3880 = vmatprep.subr.mxu0 0.0
    %3881 = vmatpush1.msra.mxu0 %v558
    %3882 = vmatprep.subr.mxu0 0.0
    %3883 = vmatpush1.msra.mxu0 %v557
    %3884 = vmatprep.subr.mxu0 0.0
    %3885 = vmatpush1.msra.mxu0 %v556
    %3886 = vmatprep.subr.mxu0 0.0
    %3887 = vmatpush1.msra.mxu0 %v555
    %3888 = vmatprep.subr.mxu0 0.0
    %3889 = vmatpush1.msra.mxu0 %v554
    %3890 = vmatprep.subr.mxu0 0.0
    %3891 = vmatpush1.msra.mxu0 %v553
    %3892 = vmatprep.subr.mxu0 0.0
    %3893 = vmatpush1.msra.mxu0 %v552
    %3894 = vmatprep.subr.mxu0 0.0
    %3895 = vmatpush1.msra.mxu0 %v551
    %3896 = vmatprep.subr.mxu0 0.0
    %3897 = vmatpush1.msra.mxu0 %v550
    %3898 = vmatprep.subr.mxu0 0.0
    %3899 = vmatpush1.msra.mxu0 %v549
    %3900 = vmatprep.subr.mxu0 0.0
    %3901 = vmatpush1.msra.mxu0 %v548
    %3902 = vmatprep.subr.mxu0 0.0
    %3903 = vmatpush1.msra.mxu0 %v547
    %3904 = vmatprep.subr.mxu0 0.0
    %3905 = vmatpush1.msra.mxu0 %v546
    %3906 = vmatprep.subr.mxu0 0.0
    %3907 = vmatpush1.msra.mxu0 %v545
    %3908 = vmatprep.subr.mxu0 0.0
    %3909 = vmatpush2.msra.mxu0 0.0
    %3910 = vmatprep.subr.mxu0 0.0
    %3911 = vmatpush2.msra.mxu0 0.0
    %3912 = vmatprep.subr.mxu0 0.0
    %3913 = vmatpush2.msra.mxu0 0.0
    %3914 = vmatprep.subr.mxu0 0.0
    %3915 = vmatpush2.msra.mxu0 0.0
    %3916 = vmatprep.subr.mxu0 0.0
    %3917 = vmatpush2.msra.mxu0 0.0
    %3918 = vmatprep.subr.mxu0 0.0
    %3919 = vmatpush2.msra.mxu0 0.0
    %3920 = vmatprep.subr.mxu0 0.0
    %3921 = vmatpush2.msra.mxu0 0.0
    %3922 = vmatprep.subr.mxu0 0.0
    %3923 = vmatpush2.msra.mxu0 0.0
    %3924 = vmatprep.subr.mxu0 0.0
    %3925 = vmatpush2.msra.mxu0 0.0
    %3926 = vmatprep.subr.mxu0 0.0
    %3927 = vmatpush2.msra.mxu0 0.0
    %3928 = vmatprep.subr.mxu0 0.0
    %3929 = vmatpush2.msra.mxu0 0.0
    %3930 = vmatprep.subr.mxu0 0.0
    %3931 = vmatpush2.msra.mxu0 0.0
    %3932 = vmatprep.subr.mxu0 0.0
    %3933 = vmatpush2.msra.mxu0 0.0
    %3934 = vmatprep.subr.mxu0 0.0
    %3935 = vmatpush2.msra.mxu0 0.0
    %3936 = vmatprep.subr.mxu0 0.0
    %3937 = vmatpush2.msra.mxu0 0.0
    %3938 = vmatprep.subr.mxu0 0.0
    %3939 = vmatpush2.msra.mxu0 0.0
    %3940 = vmatprep.mubr.f32.mxu0 0.0
    %3941 = vmatmul.mubr.f32.gmra.mxu0 %v3875
    %v3942 = vpop.f32.mrf.mxu0
    %v3943 = vadd.f32 0.0, %v3942
    %v3944 = vpop.f32.mrf.mxu0
    %3945 = vdwg.mxu0
    %3946 = vmatprep.subr.mxu0 0.0
    %3947 = vmatpush1.msra.mxu0 %v544
    %3948 = vmatprep.subr.mxu0 0.0
    %3949 = vmatpush1.msra.mxu0 %v543
    %3950 = vmatprep.subr.mxu0 0.0
    %3951 = vmatpush1.msra.mxu0 %v542
    %3952 = vmatprep.subr.mxu0 0.0
    %3953 = vmatpush1.msra.mxu0 %v541
    %3954 = vmatprep.subr.mxu0 0.0
    %3955 = vmatpush1.msra.mxu0 %v540
    %3956 = vmatprep.subr.mxu0 0.0
    %3957 = vmatpush1.msra.mxu0 %v539
    %3958 = vmatprep.subr.mxu0 0.0
    %3959 = vmatpush1.msra.mxu0 %v538
    %3960 = vmatprep.subr.mxu0 0.0
    %3961 = vmatpush1.msra.mxu0 %v537
    %3962 = vmatprep.subr.mxu0 0.0
    %3963 = vmatpush1.msra.mxu0 %v536
    %3964 = vmatprep.subr.mxu0 0.0
    %3965 = vmatpush1.msra.mxu0 %v535
    %3966 = vmatprep.subr.mxu0 0.0
    %3967 = vmatpush1.msra.mxu0 %v534
    %3968 = vmatprep.subr.mxu0 0.0
    %3969 = vmatpush1.msra.mxu0 %v533
    %3970 = vmatprep.subr.mxu0 0.0
    %3971 = vmatpush1.msra.mxu0 %v532
    %3972 = vmatprep.subr.mxu0 0.0
    %3973 = vmatpush1.msra.mxu0 %v531
    %3974 = vmatprep.subr.mxu0 0.0
    %3975 = vmatpush1.msra.mxu0 %v530
    %3976 = vmatprep.subr.mxu0 0.0
    %3977 = vmatpush1.msra.mxu0 %v529
    %3978 = vmatprep.subr.mxu0 0.0
    %3979 = vmatpush2.msra.mxu0 0.0
    %3980 = vmatprep.subr.mxu0 0.0
    %3981 = vmatpush2.msra.mxu0 0.0
    %3982 = vmatprep.subr.mxu0 0.0
    %3983 = vmatpush2.msra.mxu0 0.0
    %3984 = vmatprep.subr.mxu0 0.0
    %3985 = vmatpush2.msra.mxu0 0.0
    %3986 = vmatprep.subr.mxu0 0.0
    %3987 = vmatpush2.msra.mxu0 0.0
    %3988 = vmatprep.subr.mxu0 0.0
    %3989 = vmatpush2.msra.mxu0 0.0
    %3990 = vmatprep.subr.mxu0 0.0
    %3991 = vmatpush2.msra.mxu0 0.0
    %3992 = vmatprep.subr.mxu0 0.0
    %3993 = vmatpush2.msra.mxu0 0.0
    %3994 = vmatprep.subr.mxu0 0.0
    %3995 = vmatpush2.msra.mxu0 0.0
    %3996 = vmatprep.subr.mxu0 0.0
    %3997 = vmatpush2.msra.mxu0 0.0
    %3998 = vmatprep.subr.mxu0 0.0
    %3999 = vmatpush2.msra.mxu0 0.0
    %4000 = vmatprep.subr.mxu0 0.0
    %4001 = vmatpush2.msra.mxu0 0.0
    %4002 = vmatprep.subr.mxu0 0.0
    %4003 = vmatpush2.msra.mxu0 0.0
    %4004 = vmatprep.subr.mxu0 0.0
    %4005 = vmatpush2.msra.mxu0 0.0
    %4006 = vmatprep.subr.mxu0 0.0
    %4007 = vmatpush2.msra.mxu0 0.0
    %4008 = vmatprep.subr.mxu0 0.0
    %4009 = vmatpush2.msra.mxu0 0.0
    %4010 = vmatprep.mubr.f32.mxu0 0.0
    %4011 = vmatmul.mubr.f32.gmra.mxu0 %v3874
    %v4012 = vpop.f32.mrf.mxu0
    %v4013 = vadd.f32 %v3943, %v4012
    %v4014 = vpop.f32.mrf.mxu0
    %4015 = vdwg.mxu0
    %v4016 = vadd.f32 %v4013, %v289
    %v4017 = vxor.u32 %v4016, 2147483648
    %v4018 = vmul.f32 %v4017, 1.442695
    %v4019 = vpow.pop %v4018
    %v4020 = vadd.f32 %v4019, 1.0
    %v4021 = vrcp.pop %v4020
    %v4022 = vmul.f32 1.0, %v4021
    %4024 = vrot.lane.b32.xlu0 %v4022, 32
    %v4025 = vpop.permute.xlu0 %4024
    %v4027 = vmul.f32 %v4022, %v4025
    %4029 = vrot.lane.b32.xlu0 %v3391, 32
    %v4030 = vpop.permute.xlu0 %4029
    %v4032 = vmul.f32 %v4022, %v4030
    %4034 = vrot.lane.b32.xlu0 %v4032, 96
    %v4035 = vpop.permute.xlu0 %4034
    %v4037 = vadd.f32 %v4027, %v4035
    %v4038 = vtanh.pop %v4037
    %4040 = vrot.lane.b32.xlu0 %v4038, 64
    %v4041 = vpop.permute.xlu0 %4040
    %v4043 = vmul.f32 %v4022, %v4041
    %4045 = vrot.lane.b32.xlu0 %v4043, 64
    %v4046 = vpop.permute.xlu0 %4045
    %v4047 = vsel %vm454, %v4046, 0
    %4049 = vmatprep.subr.mxu0 0.0
    %4050 = vmatpush1.msra.mxu0 0.0
    %4051 = vmatprep.subr.mxu0 0.0
    %4052 = vmatpush1.msra.mxu0 0.0
    %4053 = vmatprep.subr.mxu0 0.0
    %4054 = vmatpush1.msra.mxu0 0.0
    %4055 = vmatprep.subr.mxu0 0.0
    %4056 = vmatpush1.msra.mxu0 0.0
    %4057 = vmatprep.subr.mxu0 0.0
    %4058 = vmatpush1.msra.mxu0 0.0
    %4059 = vmatprep.subr.mxu0 0.0
    %4060 = vmatpush1.msra.mxu0 0.0
    %4061 = vmatprep.subr.mxu0 0.0
    %4062 = vmatpush1.msra.mxu0 0.0
    %4063 = vmatprep.subr.mxu0 0.0
    %4064 = vmatpush1.msra.mxu0 0.0
    %4065 = vmatprep.subr.mxu0 0.0
    %4066 = vmatpush1.msra.mxu0 0.0
    %4067 = vmatprep.subr.mxu0 0.0
    %4068 = vmatpush1.msra.mxu0 0.0
    %4069 = vmatprep.subr.mxu0 0.0
    %4070 = vmatpush1.msra.mxu0 0.0
    %4071 = vmatprep.subr.mxu0 0.0
    %4072 = vmatpush1.msra.mxu0 0.0
    %4073 = vmatprep.subr.mxu0 0.0
    %4074 = vmatpush1.msra.mxu0 %v753
    %4075 = vmatprep.subr.mxu0 0.0
    %4076 = vmatpush1.msra.mxu0 %v752
    %4077 = vmatprep.subr.mxu0 0.0
    %4078 = vmatpush1.msra.mxu0 %v751
    %4079 = vmatprep.subr.mxu0 0.0
    %4080 = vmatpush1.msra.mxu0 %v750
    %4081 = vmatprep.subr.mxu0 0.0
    %4082 = vmatpush2.msra.mxu0 0.0
    %4083 = vmatprep.subr.mxu0 0.0
    %4084 = vmatpush2.msra.mxu0 0.0
    %4085 = vmatprep.subr.mxu0 0.0
    %4086 = vmatpush2.msra.mxu0 0.0
    %4087 = vmatprep.subr.mxu0 0.0
    %4088 = vmatpush2.msra.mxu0 0.0
    %4089 = vmatprep.subr.mxu0 0.0
    %4090 = vmatpush2.msra.mxu0 0.0
    %4091 = vmatprep.subr.mxu0 0.0
    %4092 = vmatpush2.msra.mxu0 0.0
    %4093 = vmatprep.subr.mxu0 0.0
    %4094 = vmatpush2.msra.mxu0 0.0
    %4095 = vmatprep.subr.mxu0 0.0
    %4096 = vmatpush2.msra.mxu0 0.0
    %4097 = vmatprep.subr.mxu0 0.0
    %4098 = vmatpush2.msra.mxu0 0.0
    %4099 = vmatprep.subr.mxu0 0.0
    %4100 = vmatpush2.msra.mxu0 0.0
    %4101 = vmatprep.subr.mxu0 0.0
    %4102 = vmatpush2.msra.mxu0 0.0
    %4103 = vmatprep.subr.mxu0 0.0
    %4104 = vmatpush2.msra.mxu0 0.0
    %4105 = vmatprep.subr.mxu0 0.0
    %4106 = vmatpush2.msra.mxu0 0.0
    %4107 = vmatprep.subr.mxu0 0.0
    %4108 = vmatpush2.msra.mxu0 0.0
    %4109 = vmatprep.subr.mxu0 0.0
    %4110 = vmatpush2.msra.mxu0 0.0
    %4111 = vmatprep.subr.mxu0 0.0
    %4112 = vmatpush2.msra.mxu0 0.0
    %4113 = vmatprep.mubr.f32.mxu0 0.0
    %4114 = vmatmul.mubr.f32.gmra.mxu0 %v4047
    %v4115 = vpop.f32.mrf.mxu0
    %v4116 = vadd.f32 0.0, %v4115
    %v4117 = vpop.f32.mrf.mxu0
    %4118 = vdwg.mxu0
    %4120 = vrot.lane.b32.xlu0 %v3717, 64
    %v4121 = vpop.permute.xlu0 %4120
    %v4122 = vsel %vm454, %v4121, 0
    %4124 = vmatprep.subr.mxu0 0.0
    %4125 = vmatpush1.msra.mxu0 0.0
    %4126 = vmatprep.subr.mxu0 0.0
    %4127 = vmatpush1.msra.mxu0 0.0
    %4128 = vmatprep.subr.mxu0 0.0
    %4129 = vmatpush1.msra.mxu0 0.0
    %4130 = vmatprep.subr.mxu0 0.0
    %4131 = vmatpush1.msra.mxu0 0.0
    %4132 = vmatprep.subr.mxu0 0.0
    %4133 = vmatpush1.msra.mxu0 0.0
    %4134 = vmatprep.subr.mxu0 0.0
    %4135 = vmatpush1.msra.mxu0 0.0
    %4136 = vmatprep.subr.mxu0 0.0
    %4137 = vmatpush1.msra.mxu0 0.0
    %4138 = vmatprep.subr.mxu0 0.0
    %4139 = vmatpush1.msra.mxu0 0.0
    %4140 = vmatprep.subr.mxu0 0.0
    %4141 = vmatpush1.msra.mxu0 0.0
    %4142 = vmatprep.subr.mxu0 0.0
    %4143 = vmatpush1.msra.mxu0 0.0
    %4144 = vmatprep.subr.mxu0 0.0
    %4145 = vmatpush1.msra.mxu0 0.0
    %4146 = vmatprep.subr.mxu0 0.0
    %4147 = vmatpush1.msra.mxu0 0.0
    %4148 = vmatprep.subr.mxu0 0.0
    %4149 = vmatpush1.msra.mxu0 %v832
    %4150 = vmatprep.subr.mxu0 0.0
    %4151 = vmatpush1.msra.mxu0 %v831
    %4152 = vmatprep.subr.mxu0 0.0
    %4153 = vmatpush1.msra.mxu0 %v830
    %4154 = vmatprep.subr.mxu0 0.0
    %4155 = vmatpush1.msra.mxu0 %v829
    %4156 = vmatprep.subr.mxu0 0.0
    %4157 = vmatpush2.msra.mxu0 0.0
    %4158 = vmatprep.subr.mxu0 0.0
    %4159 = vmatpush2.msra.mxu0 0.0
    %4160 = vmatprep.subr.mxu0 0.0
    %4161 = vmatpush2.msra.mxu0 0.0
    %4162 = vmatprep.subr.mxu0 0.0
    %4163 = vmatpush2.msra.mxu0 0.0
    %4164 = vmatprep.subr.mxu0 0.0
    %4165 = vmatpush2.msra.mxu0 0.0
    %4166 = vmatprep.subr.mxu0 0.0
    %4167 = vmatpush2.msra.mxu0 0.0
    %4168 = vmatprep.subr.mxu0 0.0
    %4169 = vmatpush2.msra.mxu0 0.0
    %4170 = vmatprep.subr.mxu0 0.0
    %4171 = vmatpush2.msra.mxu0 0.0
    %4172 = vmatprep.subr.mxu0 0.0
    %4173 = vmatpush2.msra.mxu0 0.0
    %4174 = vmatprep.subr.mxu0 0.0
    %4175 = vmatpush2.msra.mxu0 0.0
    %4176 = vmatprep.subr.mxu0 0.0
    %4177 = vmatpush2.msra.mxu0 0.0
    %4178 = vmatprep.subr.mxu0 0.0
    %4179 = vmatpush2.msra.mxu0 0.0
    %4180 = vmatprep.subr.mxu0 0.0
    %4181 = vmatpush2.msra.mxu0 0.0
    %4182 = vmatprep.subr.mxu0 0.0
    %4183 = vmatpush2.msra.mxu0 0.0
    %4184 = vmatprep.subr.mxu0 0.0
    %4185 = vmatpush2.msra.mxu0 0.0
    %4186 = vmatprep.subr.mxu0 0.0
    %4187 = vmatpush2.msra.mxu0 0.0
    %4188 = vmatprep.mubr.f32.mxu0 0.0
    %4189 = vmatmul.mubr.f32.gmra.mxu0 %v4122
    %v4190 = vpop.f32.mrf.mxu0
    %v4191 = vadd.f32 0.0, %v4190
    %v4192 = vpop.f32.mrf.mxu0
    %4193 = vdwg.mxu0
    %v4194 = vmul.f32 %v291, %v4116
    %v4195 = vmul.f32 %v292, %v4191
    %4196 = vmatprep.subr.mxu0 0.0
    %4197 = vmatpush1.msra.mxu0 %v952
    %4198 = vmatprep.subr.mxu0 0.0
    %4199 = vmatpush1.msra.mxu0 %v951
    %4200 = vmatprep.subr.mxu0 0.0
    %4201 = vmatpush1.msra.mxu0 %v950
    %4202 = vmatprep.subr.mxu0 0.0
    %4203 = vmatpush1.msra.mxu0 %v949
    %4204 = vmatprep.subr.mxu0 0.0
    %4205 = vmatpush1.msra.mxu0 %v948
    %4206 = vmatprep.subr.mxu0 0.0
    %4207 = vmatpush1.msra.mxu0 %v947
    %4208 = vmatprep.subr.mxu0 0.0
    %4209 = vmatpush1.msra.mxu0 %v946
    %4210 = vmatprep.subr.mxu0 0.0
    %4211 = vmatpush1.msra.mxu0 %v945
    %4212 = vmatprep.subr.mxu0 0.0
    %4213 = vmatpush1.msra.mxu0 %v944
    %4214 = vmatprep.subr.mxu0 0.0
    %4215 = vmatpush1.msra.mxu0 %v943
    %4216 = vmatprep.subr.mxu0 0.0
    %4217 = vmatpush1.msra.mxu0 %v942
    %4218 = vmatprep.subr.mxu0 0.0
    %4219 = vmatpush1.msra.mxu0 %v941
    %4220 = vmatprep.subr.mxu0 0.0
    %4221 = vmatpush1.msra.mxu0 %v940
    %4222 = vmatprep.subr.mxu0 0.0
    %4223 = vmatpush1.msra.mxu0 %v939
    %4224 = vmatprep.subr.mxu0 0.0
    %4225 = vmatpush1.msra.mxu0 %v938
    %4226 = vmatprep.subr.mxu0 0.0
    %4227 = vmatpush1.msra.mxu0 %v937
    %4228 = vmatprep.subr.mxu0 0.0
    %4229 = vmatpush2.msra.mxu0 0.0
    %4230 = vmatprep.subr.mxu0 0.0
    %4231 = vmatpush2.msra.mxu0 0.0
    %4232 = vmatprep.subr.mxu0 0.0
    %4233 = vmatpush2.msra.mxu0 0.0
    %4234 = vmatprep.subr.mxu0 0.0
    %4235 = vmatpush2.msra.mxu0 0.0
    %4236 = vmatprep.subr.mxu0 0.0
    %4237 = vmatpush2.msra.mxu0 0.0
    %4238 = vmatprep.subr.mxu0 0.0
    %4239 = vmatpush2.msra.mxu0 0.0
    %4240 = vmatprep.subr.mxu0 0.0
    %4241 = vmatpush2.msra.mxu0 0.0
    %4242 = vmatprep.subr.mxu0 0.0
    %4243 = vmatpush2.msra.mxu0 0.0
    %4244 = vmatprep.subr.mxu0 0.0
    %4245 = vmatpush2.msra.mxu0 0.0
    %4246 = vmatprep.subr.mxu0 0.0
    %4247 = vmatpush2.msra.mxu0 0.0
    %4248 = vmatprep.subr.mxu0 0.0
    %4249 = vmatpush2.msra.mxu0 0.0
    %4250 = vmatprep.subr.mxu0 0.0
    %4251 = vmatpush2.msra.mxu0 0.0
    %4252 = vmatprep.subr.mxu0 0.0
    %4253 = vmatpush2.msra.mxu0 0.0
    %4254 = vmatprep.subr.mxu0 0.0
    %4255 = vmatpush2.msra.mxu0 0.0
    %4256 = vmatprep.subr.mxu0 0.0
    %4257 = vmatpush2.msra.mxu0 0.0
    %4258 = vmatprep.subr.mxu0 0.0
    %4259 = vmatpush2.msra.mxu0 0.0
    %4260 = vmatprep.mubr.f32.mxu0 0.0
    %4261 = vmatmul.mubr.f32.gmra.mxu0 %v4195
    %v4262 = vpop.f32.mrf.mxu0
    %v4263 = vadd.f32 0.0, %v4262
    %v4264 = vpop.f32.mrf.mxu0
    %4265 = vdwg.mxu0
    %4266 = vmatprep.subr.mxu0 0.0
    %4267 = vmatpush1.msra.mxu0 %v936
    %4268 = vmatprep.subr.mxu0 0.0
    %4269 = vmatpush1.msra.mxu0 %v935
    %4270 = vmatprep.subr.mxu0 0.0
    %4271 = vmatpush1.msra.mxu0 %v934
    %4272 = vmatprep.subr.mxu0 0.0
    %4273 = vmatpush1.msra.mxu0 %v933
    %4274 = vmatprep.subr.mxu0 0.0
    %4275 = vmatpush1.msra.mxu0 %v932
    %4276 = vmatprep.subr.mxu0 0.0
    %4277 = vmatpush1.msra.mxu0 %v931
    %4278 = vmatprep.subr.mxu0 0.0
    %4279 = vmatpush1.msra.mxu0 %v930
    %4280 = vmatprep.subr.mxu0 0.0
    %4281 = vmatpush1.msra.mxu0 %v929
    %4282 = vmatprep.subr.mxu0 0.0
    %4283 = vmatpush1.msra.mxu0 %v928
    %4284 = vmatprep.subr.mxu0 0.0
    %4285 = vmatpush1.msra.mxu0 %v927
    %4286 = vmatprep.subr.mxu0 0.0
    %4287 = vmatpush1.msra.mxu0 %v926
    %4288 = vmatprep.subr.mxu0 0.0
    %4289 = vmatpush1.msra.mxu0 %v925
    %4290 = vmatprep.subr.mxu0 0.0
    %4291 = vmatpush1.msra.mxu0 %v924
    %4292 = vmatprep.subr.mxu0 0.0
    %4293 = vmatpush1.msra.mxu0 %v923
    %4294 = vmatprep.subr.mxu0 0.0
    %4295 = vmatpush1.msra.mxu0 %v922
    %4296 = vmatprep.subr.mxu0 0.0
    %4297 = vmatpush1.msra.mxu0 %v921
    %4298 = vmatprep.subr.mxu0 0.0
    %4299 = vmatpush2.msra.mxu0 0.0
    %4300 = vmatprep.subr.mxu0 0.0
    %4301 = vmatpush2.msra.mxu0 0.0
    %4302 = vmatprep.subr.mxu0 0.0
    %4303 = vmatpush2.msra.mxu0 0.0
    %4304 = vmatprep.subr.mxu0 0.0
    %4305 = vmatpush2.msra.mxu0 0.0
    %4306 = vmatprep.subr.mxu0 0.0
    %4307 = vmatpush2.msra.mxu0 0.0
    %4308 = vmatprep.subr.mxu0 0.0
    %4309 = vmatpush2.msra.mxu0 0.0
    %4310 = vmatprep.subr.mxu0 0.0
    %4311 = vmatpush2.msra.mxu0 0.0
    %4312 = vmatprep.subr.mxu0 0.0
    %4313 = vmatpush2.msra.mxu0 0.0
    %4314 = vmatprep.subr.mxu0 0.0
    %4315 = vmatpush2.msra.mxu0 0.0
    %4316 = vmatprep.subr.mxu0 0.0
    %4317 = vmatpush2.msra.mxu0 0.0
    %4318 = vmatprep.subr.mxu0 0.0
    %4319 = vmatpush2.msra.mxu0 0.0
    %4320 = vmatprep.subr.mxu0 0.0
    %4321 = vmatpush2.msra.mxu0 0.0
    %4322 = vmatprep.subr.mxu0 0.0
    %4323 = vmatpush2.msra.mxu0 0.0
    %4324 = vmatprep.subr.mxu0 0.0
    %4325 = vmatpush2.msra.mxu0 0.0
    %4326 = vmatprep.subr.mxu0 0.0
    %4327 = vmatpush2.msra.mxu0 0.0
    %4328 = vmatprep.subr.mxu0 0.0
    %4329 = vmatpush2.msra.mxu0 0.0
    %4330 = vmatprep.mubr.f32.mxu0 0.0
    %4331 = vmatmul.mubr.f32.gmra.mxu0 %v4194
    %v4332 = vpop.f32.mrf.mxu0
    %v4333 = vadd.f32 %v4263, %v4332
    %v4334 = vpop.f32.mrf.mxu0
    %4335 = vdwg.mxu0
    %v4336 = vadd.f32 %v4333, %v298
    %v4337 = vxor.u32 %v4336, 2147483648
    %v4338 = vmul.f32 %v4337, 1.442695
    %v4339 = vpow.pop %v4338
    %v4340 = vadd.f32 %v4339, 1.0
    %v4341 = vrcp.pop %v4340
    %v4342 = vmul.f32 1.0, %v4341
    %4344 = vrot.lane.b32.xlu0 %v4342, 32
    %v4345 = vpop.permute.xlu0 %4344
    %v4347 = vmul.f32 %v4342, %v4345
    %4349 = vrot.lane.b32.xlu0 %v3711, 32
    %v4350 = vpop.permute.xlu0 %4349
    %v4352 = vmul.f32 %v4342, %v4350
    %4354 = vrot.lane.b32.xlu0 %v4352, 96
    %v4355 = vpop.permute.xlu0 %4354
    %v4357 = vadd.f32 %v4347, %v4355
    %v4358 = vtanh.pop %v4357
    %4360 = vrot.lane.b32.xlu0 %v4358, 64
    %v4361 = vpop.permute.xlu0 %4360
    %v4363 = vmul.f32 %v4342, %v4361
    %v4364 = vrot.slane %v300, 6
    %v4365 = vrot.slane %v301, 5
    %v4366 = vsel %vm335, %v4365, %v4364
    %v4367 = vrot.slane %v302, 4
    %v4368 = vsel %vm338, %v4367, %v4366
    %v4369 = vrot.slane %v303, 3
    %v4370 = vsel %vm341, %v4369, %v4368
    %v4371 = vrot.slane %v304, 2
    %v4372 = vsel %vm344, %v4371, %v4370
    %v4373 = vrot.slane %v305, 1
    %v4374 = vsel %vm347, %v4373, %v4372
    %v4375 = vsel %vm350, %v306, %v4374
    %v4376 = vrot.slane %v307, 7
    %v4377 = vsel %vm353, %v4376, %v4375
    %v4378 = vsel %vm355, %v4377, 0
    %4380 = vmatprep.subr.mxu0 0.0
    %4381 = vmatpush1.msra.mxu0 0.0
    %4382 = vmatprep.subr.mxu0 0.0
    %4383 = vmatpush1.msra.mxu0 0.0
    %4384 = vmatprep.subr.mxu0 0.0
    %4385 = vmatpush1.msra.mxu0 0.0
    %4386 = vmatprep.subr.mxu0 0.0
    %4387 = vmatpush1.msra.mxu0 0.0
    %4388 = vmatprep.subr.mxu0 0.0
    %4389 = vmatpush1.msra.mxu0 0.0
    %4390 = vmatprep.subr.mxu0 0.0
    %4391 = vmatpush1.msra.mxu0 0.0
    %4392 = vmatprep.subr.mxu0 0.0
    %4393 = vmatpush1.msra.mxu0 0.0
    %4394 = vmatprep.subr.mxu0 0.0
    %4395 = vmatpush1.msra.mxu0 0.0
    %4396 = vmatprep.subr.mxu0 0.0
    %4397 = vmatpush1.msra.mxu0 0.0
    %4398 = vmatprep.subr.mxu0 0.0
    %4399 = vmatpush1.msra.mxu0 0.0
    %4400 = vmatprep.subr.mxu0 0.0
    %4401 = vmatpush1.msra.mxu0 0.0
    %4402 = vmatprep.subr.mxu0 0.0
    %4403 = vmatpush1.msra.mxu0 0.0
    %4404 = vmatprep.subr.mxu0 0.0
    %4405 = vmatpush1.msra.mxu0 0.0
    %4406 = vmatprep.subr.mxu0 0.0
    %4407 = vmatpush1.msra.mxu0 0.0
    %4408 = vmatprep.subr.mxu0 0.0
    %4409 = vmatpush1.msra.mxu0 %v325
    %4410 = vmatprep.subr.mxu0 0.0
    %4411 = vmatpush1.msra.mxu0 %v324
    %4412 = vmatprep.subr.mxu0 0.0
    %4413 = vmatpush2.msra.mxu0 0.0
    %4414 = vmatprep.subr.mxu0 0.0
    %4415 = vmatpush2.msra.mxu0 0.0
    %4416 = vmatprep.subr.mxu0 0.0
    %4417 = vmatpush2.msra.mxu0 0.0
    %4418 = vmatprep.subr.mxu0 0.0
    %4419 = vmatpush2.msra.mxu0 0.0
    %4420 = vmatprep.subr.mxu0 0.0
    %4421 = vmatpush2.msra.mxu0 0.0
    %4422 = vmatprep.subr.mxu0 0.0
    %4423 = vmatpush2.msra.mxu0 0.0
    %4424 = vmatprep.subr.mxu0 0.0
    %4425 = vmatpush2.msra.mxu0 0.0
    %4426 = vmatprep.subr.mxu0 0.0
    %4427 = vmatpush2.msra.mxu0 0.0
    %4428 = vmatprep.subr.mxu0 0.0
    %4429 = vmatpush2.msra.mxu0 0.0
    %4430 = vmatprep.subr.mxu0 0.0
    %4431 = vmatpush2.msra.mxu0 0.0
    %4432 = vmatprep.subr.mxu0 0.0
    %4433 = vmatpush2.msra.mxu0 0.0
    %4434 = vmatprep.subr.mxu0 0.0
    %4435 = vmatpush2.msra.mxu0 0.0
    %4436 = vmatprep.subr.mxu0 0.0
    %4437 = vmatpush2.msra.mxu0 0.0
    %4438 = vmatprep.subr.mxu0 0.0
    %4439 = vmatpush2.msra.mxu0 0.0
    %4440 = vmatprep.subr.mxu0 0.0
    %4441 = vmatpush2.msra.mxu0 0.0
    %4442 = vmatprep.subr.mxu0 0.0
    %4443 = vmatpush2.msra.mxu0 0.0
    %4444 = vmatprep.mubr.f32.mxu0 0.0
    %4445 = vmatmul.mubr.f32.gmra.mxu0 %v4378
    %v4446 = vpop.f32.mrf.mxu0
    %v4447 = vadd.f32 0.0, %v4446
    %v4448 = vpop.f32.mrf.mxu0
    %4449 = vdwg.mxu0
    %4450 = vmatprep.subr.mxu0 0.0
    %4451 = vmatpush1.msra.mxu0 0.0
    %4452 = vmatprep.subr.mxu0 0.0
    %4453 = vmatpush1.msra.mxu0 0.0
    %4454 = vmatprep.subr.mxu0 0.0
    %4455 = vmatpush1.msra.mxu0 0.0
    %4456 = vmatprep.subr.mxu0 0.0
    %4457 = vmatpush1.msra.mxu0 0.0
    %4458 = vmatprep.subr.mxu0 0.0
    %4459 = vmatpush1.msra.mxu0 0.0
    %4460 = vmatprep.subr.mxu0 0.0
    %4461 = vmatpush1.msra.mxu0 0.0
    %4462 = vmatprep.subr.mxu0 0.0
    %4463 = vmatpush1.msra.mxu0 0.0
    %4464 = vmatprep.subr.mxu0 0.0
    %4465 = vmatpush1.msra.mxu0 0.0
    %4466 = vmatprep.subr.mxu0 0.0
    %4467 = vmatpush1.msra.mxu0 0.0
    %4468 = vmatprep.subr.mxu0 0.0
    %4469 = vmatpush1.msra.mxu0 0.0
    %4470 = vmatprep.subr.mxu0 0.0
    %4471 = vmatpush1.msra.mxu0 0.0
    %4472 = vmatprep.subr.mxu0 0.0
    %4473 = vmatpush1.msra.mxu0 0.0
    %4474 = vmatprep.subr.mxu0 0.0
    %4475 = vmatpush1.msra.mxu0 %v431
    %4476 = vmatprep.subr.mxu0 0.0
    %4477 = vmatpush1.msra.mxu0 %v430
    %4478 = vmatprep.subr.mxu0 0.0
    %4479 = vmatpush1.msra.mxu0 %v429
    %4480 = vmatprep.subr.mxu0 0.0
    %4481 = vmatpush1.msra.mxu0 %v428
    %4482 = vmatprep.subr.mxu0 0.0
    %4483 = vmatpush2.msra.mxu0 0.0
    %4484 = vmatprep.subr.mxu0 0.0
    %4485 = vmatpush2.msra.mxu0 0.0
    %4486 = vmatprep.subr.mxu0 0.0
    %4487 = vmatpush2.msra.mxu0 0.0
    %4488 = vmatprep.subr.mxu0 0.0
    %4489 = vmatpush2.msra.mxu0 0.0
    %4490 = vmatprep.subr.mxu0 0.0
    %4491 = vmatpush2.msra.mxu0 0.0
    %4492 = vmatprep.subr.mxu0 0.0
    %4493 = vmatpush2.msra.mxu0 0.0
    %4494 = vmatprep.subr.mxu0 0.0
    %4495 = vmatpush2.msra.mxu0 0.0
    %4496 = vmatprep.subr.mxu0 0.0
    %4497 = vmatpush2.msra.mxu0 0.0
    %4498 = vmatprep.subr.mxu0 0.0
    %4499 = vmatpush2.msra.mxu0 0.0
    %4500 = vmatprep.subr.mxu0 0.0
    %4501 = vmatpush2.msra.mxu0 0.0
    %4502 = vmatprep.subr.mxu0 0.0
    %4503 = vmatpush2.msra.mxu0 0.0
    %4504 = vmatprep.subr.mxu0 0.0
    %4505 = vmatpush2.msra.mxu0 0.0
    %4506 = vmatprep.subr.mxu0 0.0
    %4507 = vmatpush2.msra.mxu0 0.0
    %4508 = vmatprep.subr.mxu0 0.0
    %4509 = vmatpush2.msra.mxu0 0.0
    %4510 = vmatprep.subr.mxu0 0.0
    %4511 = vmatpush2.msra.mxu0 0.0
    %4512 = vmatprep.subr.mxu0 0.0
    %4513 = vmatpush2.msra.mxu0 0.0
    %4514 = vmatprep.mubr.f32.mxu0 0.0
    %4515 = vmatmul.mubr.f32.gmra.mxu0 %v4047
    %v4516 = vpop.f32.mrf.mxu0
    %v4517 = vadd.f32 0.0, %v4516
    %v4518 = vpop.f32.mrf.mxu0
    %4519 = vdwg.mxu0
    %v4520 = vmul.f32 %v282, %v4447
    %v4521 = vmul.f32 %v283, %v4517
    %4522 = vmatprep.subr.mxu0 0.0
    %4523 = vmatpush1.msra.mxu0 %v560
    %4524 = vmatprep.subr.mxu0 0.0
    %4525 = vmatpush1.msra.mxu0 %v559
    %4526 = vmatprep.subr.mxu0 0.0
    %4527 = vmatpush1.msra.mxu0 %v558
    %4528 = vmatprep.subr.mxu0 0.0
    %4529 = vmatpush1.msra.mxu0 %v557
    %4530 = vmatprep.subr.mxu0 0.0
    %4531 = vmatpush1.msra.mxu0 %v556
    %4532 = vmatprep.subr.mxu0 0.0
    %4533 = vmatpush1.msra.mxu0 %v555
    %4534 = vmatprep.subr.mxu0 0.0
    %4535 = vmatpush1.msra.mxu0 %v554
    %4536 = vmatprep.subr.mxu0 0.0
    %4537 = vmatpush1.msra.mxu0 %v553
    %4538 = vmatprep.subr.mxu0 0.0
    %4539 = vmatpush1.msra.mxu0 %v552
    %4540 = vmatprep.subr.mxu0 0.0
    %4541 = vmatpush1.msra.mxu0 %v551
    %4542 = vmatprep.subr.mxu0 0.0
    %4543 = vmatpush1.msra.mxu0 %v550
    %4544 = vmatprep.subr.mxu0 0.0
    %4545 = vmatpush1.msra.mxu0 %v549
    %4546 = vmatprep.subr.mxu0 0.0
    %4547 = vmatpush1.msra.mxu0 %v548
    %4548 = vmatprep.subr.mxu0 0.0
    %4549 = vmatpush1.msra.mxu0 %v547
    %4550 = vmatprep.subr.mxu0 0.0
    %4551 = vmatpush1.msra.mxu0 %v546
    %4552 = vmatprep.subr.mxu0 0.0
    %4553 = vmatpush1.msra.mxu0 %v545
    %4554 = vmatprep.subr.mxu0 0.0
    %4555 = vmatpush2.msra.mxu0 0.0
    %4556 = vmatprep.subr.mxu0 0.0
    %4557 = vmatpush2.msra.mxu0 0.0
    %4558 = vmatprep.subr.mxu0 0.0
    %4559 = vmatpush2.msra.mxu0 0.0
    %4560 = vmatprep.subr.mxu0 0.0
    %4561 = vmatpush2.msra.mxu0 0.0
    %4562 = vmatprep.subr.mxu0 0.0
    %4563 = vmatpush2.msra.mxu0 0.0
    %4564 = vmatprep.subr.mxu0 0.0
    %4565 = vmatpush2.msra.mxu0 0.0
    %4566 = vmatprep.subr.mxu0 0.0
    %4567 = vmatpush2.msra.mxu0 0.0
    %4568 = vmatprep.subr.mxu0 0.0
    %4569 = vmatpush2.msra.mxu0 0.0
    %4570 = vmatprep.subr.mxu0 0.0
    %4571 = vmatpush2.msra.mxu0 0.0
    %4572 = vmatprep.subr.mxu0 0.0
    %4573 = vmatpush2.msra.mxu0 0.0
    %4574 = vmatprep.subr.mxu0 0.0
    %4575 = vmatpush2.msra.mxu0 0.0
    %4576 = vmatprep.subr.mxu0 0.0
    %4577 = vmatpush2.msra.mxu0 0.0
    %4578 = vmatprep.subr.mxu0 0.0
    %4579 = vmatpush2.msra.mxu0 0.0
    %4580 = vmatprep.subr.mxu0 0.0
    %4581 = vmatpush2.msra.mxu0 0.0
    %4582 = vmatprep.subr.mxu0 0.0
    %4583 = vmatpush2.msra.mxu0 0.0
    %4584 = vmatprep.subr.mxu0 0.0
    %4585 = vmatpush2.msra.mxu0 0.0
    %4586 = vmatprep.mubr.f32.mxu0 0.0
    %4587 = vmatmul.mubr.f32.gmra.mxu0 %v4521
    %v4588 = vpop.f32.mrf.mxu0
    %v4589 = vadd.f32 0.0, %v4588
    %v4590 = vpop.f32.mrf.mxu0
    %4591 = vdwg.mxu0
    %4592 = vmatprep.subr.mxu0 0.0
    %4593 = vmatpush1.msra.mxu0 %v544
    %4594 = vmatprep.subr.mxu0 0.0
    %4595 = vmatpush1.msra.mxu0 %v543
    %4596 = vmatprep.subr.mxu0 0.0
    %4597 = vmatpush1.msra.mxu0 %v542
    %4598 = vmatprep.subr.mxu0 0.0
    %4599 = vmatpush1.msra.mxu0 %v541
    %4600 = vmatprep.subr.mxu0 0.0
    %4601 = vmatpush1.msra.mxu0 %v540
    %4602 = vmatprep.subr.mxu0 0.0
    %4603 = vmatpush1.msra.mxu0 %v539
    %4604 = vmatprep.subr.mxu0 0.0
    %4605 = vmatpush1.msra.mxu0 %v538
    %4606 = vmatprep.subr.mxu0 0.0
    %4607 = vmatpush1.msra.mxu0 %v537
    %4608 = vmatprep.subr.mxu0 0.0
    %4609 = vmatpush1.msra.mxu0 %v536
    %4610 = vmatprep.subr.mxu0 0.0
    %4611 = vmatpush1.msra.mxu0 %v535
    %4612 = vmatprep.subr.mxu0 0.0
    %4613 = vmatpush1.msra.mxu0 %v534
    %4614 = vmatprep.subr.mxu0 0.0
    %4615 = vmatpush1.msra.mxu0 %v533
    %4616 = vmatprep.subr.mxu0 0.0
    %4617 = vmatpush1.msra.mxu0 %v532
    %4618 = vmatprep.subr.mxu0 0.0
    %4619 = vmatpush1.msra.mxu0 %v531
    %4620 = vmatprep.subr.mxu0 0.0
    %4621 = vmatpush1.msra.mxu0 %v530
    %4622 = vmatprep.subr.mxu0 0.0
    %4623 = vmatpush1.msra.mxu0 %v529
    %4624 = vmatprep.subr.mxu0 0.0
    %4625 = vmatpush2.msra.mxu0 0.0
    %4626 = vmatprep.subr.mxu0 0.0
    %4627 = vmatpush2.msra.mxu0 0.0
    %4628 = vmatprep.subr.mxu0 0.0
    %4629 = vmatpush2.msra.mxu0 0.0
    %4630 = vmatprep.subr.mxu0 0.0
    %4631 = vmatpush2.msra.mxu0 0.0
    %4632 = vmatprep.subr.mxu0 0.0
    %4633 = vmatpush2.msra.mxu0 0.0
    %4634 = vmatprep.subr.mxu0 0.0
    %4635 = vmatpush2.msra.mxu0 0.0
    %4636 = vmatprep.subr.mxu0 0.0
    %4637 = vmatpush2.msra.mxu0 0.0
    %4638 = vmatprep.subr.mxu0 0.0
    %4639 = vmatpush2.msra.mxu0 0.0
    %4640 = vmatprep.subr.mxu0 0.0
    %4641 = vmatpush2.msra.mxu0 0.0
    %4642 = vmatprep.subr.mxu0 0.0
    %4643 = vmatpush2.msra.mxu0 0.0
    %4644 = vmatprep.subr.mxu0 0.0
    %4645 = vmatpush2.msra.mxu0 0.0
    %4646 = vmatprep.subr.mxu0 0.0
    %4647 = vmatpush2.msra.mxu0 0.0
    %4648 = vmatprep.subr.mxu0 0.0
    %4649 = vmatpush2.msra.mxu0 0.0
    %4650 = vmatprep.subr.mxu0 0.0
    %4651 = vmatpush2.msra.mxu0 0.0
    %4652 = vmatprep.subr.mxu0 0.0
    %4653 = vmatpush2.msra.mxu0 0.0
    %4654 = vmatprep.subr.mxu0 0.0
    %4655 = vmatpush2.msra.mxu0 0.0
    %4656 = vmatprep.mubr.f32.mxu0 0.0
    %4657 = vmatmul.mubr.f32.gmra.mxu0 %v4520
    %v4658 = vpop.f32.mrf.mxu0
    %v4659 = vadd.f32 %v4589, %v4658
    %v4660 = vpop.f32.mrf.mxu0
    %4661 = vdwg.mxu0
    %v4662 = vadd.f32 %v4659, %v289
    %v4663 = vxor.u32 %v4662, 2147483648
    %v4664 = vmul.f32 %v4663, 1.442695
    %v4665 = vpow.pop %v4664
    %v4666 = vadd.f32 %v4665, 1.0
    %v4667 = vrcp.pop %v4666
    %v4668 = vmul.f32 1.0, %v4667
    %4670 = vrot.lane.b32.xlu0 %v4668, 32
    %v4671 = vpop.permute.xlu0 %4670
    %v4673 = vmul.f32 %v4668, %v4671
    %4675 = vrot.lane.b32.xlu0 %v4037, 32
    %v4676 = vpop.permute.xlu0 %4675
    %v4678 = vmul.f32 %v4668, %v4676
    %4680 = vrot.lane.b32.xlu0 %v4678, 96
    %v4681 = vpop.permute.xlu0 %4680
    %v4683 = vadd.f32 %v4673, %v4681
    %v4684 = vtanh.pop %v4683
    %4686 = vrot.lane.b32.xlu0 %v4684, 64
    %v4687 = vpop.permute.xlu0 %4686
    %v4689 = vmul.f32 %v4668, %v4687
    %4691 = vrot.lane.b32.xlu0 %v4689, 64
    %v4692 = vpop.permute.xlu0 %4691
    %v4693 = vsel %vm454, %v4692, 0
    %4695 = vmatprep.subr.mxu0 0.0
    %4696 = vmatpush1.msra.mxu0 0.0
    %4697 = vmatprep.subr.mxu0 0.0
    %4698 = vmatpush1.msra.mxu0 0.0
    %4699 = vmatprep.subr.mxu0 0.0
    %4700 = vmatpush1.msra.mxu0 0.0
    %4701 = vmatprep.subr.mxu0 0.0
    %4702 = vmatpush1.msra.mxu0 0.0
    %4703 = vmatprep.subr.mxu0 0.0
    %4704 = vmatpush1.msra.mxu0 0.0
    %4705 = vmatprep.subr.mxu0 0.0
    %4706 = vmatpush1.msra.mxu0 0.0
    %4707 = vmatprep.subr.mxu0 0.0
    %4708 = vmatpush1.msra.mxu0 0.0
    %4709 = vmatprep.subr.mxu0 0.0
    %4710 = vmatpush1.msra.mxu0 0.0
    %4711 = vmatprep.subr.mxu0 0.0
    %4712 = vmatpush1.msra.mxu0 0.0
    %4713 = vmatprep.subr.mxu0 0.0
    %4714 = vmatpush1.msra.mxu0 0.0
    %4715 = vmatprep.subr.mxu0 0.0
    %4716 = vmatpush1.msra.mxu0 0.0
    %4717 = vmatprep.subr.mxu0 0.0
    %4718 = vmatpush1.msra.mxu0 0.0
    %4719 = vmatprep.subr.mxu0 0.0
    %4720 = vmatpush1.msra.mxu0 %v753
    %4721 = vmatprep.subr.mxu0 0.0
    %4722 = vmatpush1.msra.mxu0 %v752
    %4723 = vmatprep.subr.mxu0 0.0
    %4724 = vmatpush1.msra.mxu0 %v751
    %4725 = vmatprep.subr.mxu0 0.0
    %4726 = vmatpush1.msra.mxu0 %v750
    %4727 = vmatprep.subr.mxu0 0.0
    %4728 = vmatpush2.msra.mxu0 0.0
    %4729 = vmatprep.subr.mxu0 0.0
    %4730 = vmatpush2.msra.mxu0 0.0
    %4731 = vmatprep.subr.mxu0 0.0
    %4732 = vmatpush2.msra.mxu0 0.0
    %4733 = vmatprep.subr.mxu0 0.0
    %4734 = vmatpush2.msra.mxu0 0.0
    %4735 = vmatprep.subr.mxu0 0.0
    %4736 = vmatpush2.msra.mxu0 0.0
    %4737 = vmatprep.subr.mxu0 0.0
    %4738 = vmatpush2.msra.mxu0 0.0
    %4739 = vmatprep.subr.mxu0 0.0
    %4740 = vmatpush2.msra.mxu0 0.0
    %4741 = vmatprep.subr.mxu0 0.0
    %4742 = vmatpush2.msra.mxu0 0.0
    %4743 = vmatprep.subr.mxu0 0.0
    %4744 = vmatpush2.msra.mxu0 0.0
    %4745 = vmatprep.subr.mxu0 0.0
    %4746 = vmatpush2.msra.mxu0 0.0
    %4747 = vmatprep.subr.mxu0 0.0
    %4748 = vmatpush2.msra.mxu0 0.0
    %4749 = vmatprep.subr.mxu0 0.0
    %4750 = vmatpush2.msra.mxu0 0.0
    %4751 = vmatprep.subr.mxu0 0.0
    %4752 = vmatpush2.msra.mxu0 0.0
    %4753 = vmatprep.subr.mxu0 0.0
    %4754 = vmatpush2.msra.mxu0 0.0
    %4755 = vmatprep.subr.mxu0 0.0
    %4756 = vmatpush2.msra.mxu0 0.0
    %4757 = vmatprep.subr.mxu0 0.0
    %4758 = vmatpush2.msra.mxu0 0.0
    %4759 = vmatprep.mubr.f32.mxu0 0.0
    %4760 = vmatmul.mubr.f32.gmra.mxu0 %v4693
    %v4761 = vpop.f32.mrf.mxu0
    %v4762 = vadd.f32 0.0, %v4761
    %v4763 = vpop.f32.mrf.mxu0
    %4764 = vdwg.mxu0
    %4766 = vrot.lane.b32.xlu0 %v4363, 64
    %v4767 = vpop.permute.xlu0 %4766
    %v4768 = vsel %vm454, %v4767, 0
    %4770 = vmatprep.subr.mxu0 0.0
    %4771 = vmatpush1.msra.mxu0 0.0
    %4772 = vmatprep.subr.mxu0 0.0
    %4773 = vmatpush1.msra.mxu0 0.0
    %4774 = vmatprep.subr.mxu0 0.0
    %4775 = vmatpush1.msra.mxu0 0.0
    %4776 = vmatprep.subr.mxu0 0.0
    %4777 = vmatpush1.msra.mxu0 0.0
    %4778 = vmatprep.subr.mxu0 0.0
    %4779 = vmatpush1.msra.mxu0 0.0
    %4780 = vmatprep.subr.mxu0 0.0
    %4781 = vmatpush1.msra.mxu0 0.0
    %4782 = vmatprep.subr.mxu0 0.0
    %4783 = vmatpush1.msra.mxu0 0.0
    %4784 = vmatprep.subr.mxu0 0.0
    %4785 = vmatpush1.msra.mxu0 0.0
    %4786 = vmatprep.subr.mxu0 0.0
    %4787 = vmatpush1.msra.mxu0 0.0
    %4788 = vmatprep.subr.mxu0 0.0
    %4789 = vmatpush1.msra.mxu0 0.0
    %4790 = vmatprep.subr.mxu0 0.0
    %4791 = vmatpush1.msra.mxu0 0.0
    %4792 = vmatprep.subr.mxu0 0.0
    %4793 = vmatpush1.msra.mxu0 0.0
    %4794 = vmatprep.subr.mxu0 0.0
    %4795 = vmatpush1.msra.mxu0 %v832
    %4796 = vmatprep.subr.mxu0 0.0
    %4797 = vmatpush1.msra.mxu0 %v831
    %4798 = vmatprep.subr.mxu0 0.0
    %4799 = vmatpush1.msra.mxu0 %v830
    %4800 = vmatprep.subr.mxu0 0.0
    %4801 = vmatpush1.msra.mxu0 %v829
    %4802 = vmatprep.subr.mxu0 0.0
    %4803 = vmatpush2.msra.mxu0 0.0
    %4804 = vmatprep.subr.mxu0 0.0
    %4805 = vmatpush2.msra.mxu0 0.0
    %4806 = vmatprep.subr.mxu0 0.0
    %4807 = vmatpush2.msra.mxu0 0.0
    %4808 = vmatprep.subr.mxu0 0.0
    %4809 = vmatpush2.msra.mxu0 0.0
    %4810 = vmatprep.subr.mxu0 0.0
    %4811 = vmatpush2.msra.mxu0 0.0
    %4812 = vmatprep.subr.mxu0 0.0
    %4813 = vmatpush2.msra.mxu0 0.0
    %4814 = vmatprep.subr.mxu0 0.0
    %4815 = vmatpush2.msra.mxu0 0.0
    %4816 = vmatprep.subr.mxu0 0.0
    %4817 = vmatpush2.msra.mxu0 0.0
    %4818 = vmatprep.subr.mxu0 0.0
    %4819 = vmatpush2.msra.mxu0 0.0
    %4820 = vmatprep.subr.mxu0 0.0
    %4821 = vmatpush2.msra.mxu0 0.0
    %4822 = vmatprep.subr.mxu0 0.0
    %4823 = vmatpush2.msra.mxu0 0.0
    %4824 = vmatprep.subr.mxu0 0.0
    %4825 = vmatpush2.msra.mxu0 0.0
    %4826 = vmatprep.subr.mxu0 0.0
    %4827 = vmatpush2.msra.mxu0 0.0
    %4828 = vmatprep.subr.mxu0 0.0
    %4829 = vmatpush2.msra.mxu0 0.0
    %4830 = vmatprep.subr.mxu0 0.0
    %4831 = vmatpush2.msra.mxu0 0.0
    %4832 = vmatprep.subr.mxu0 0.0
    %4833 = vmatpush2.msra.mxu0 0.0
    %4834 = vmatprep.mubr.f32.mxu0 0.0
    %4835 = vmatmul.mubr.f32.gmra.mxu0 %v4768
    %v4836 = vpop.f32.mrf.mxu0
    %v4837 = vadd.f32 0.0, %v4836
    %v4838 = vpop.f32.mrf.mxu0
    %4839 = vdwg.mxu0
    %v4840 = vmul.f32 %v291, %v4762
    %v4841 = vmul.f32 %v292, %v4837
    %4842 = vmatprep.subr.mxu0 0.0
    %4843 = vmatpush1.msra.mxu0 %v952
    %4844 = vmatprep.subr.mxu0 0.0
    %4845 = vmatpush1.msra.mxu0 %v951
    %4846 = vmatprep.subr.mxu0 0.0
    %4847 = vmatpush1.msra.mxu0 %v950
    %4848 = vmatprep.subr.mxu0 0.0
    %4849 = vmatpush1.msra.mxu0 %v949
    %4850 = vmatprep.subr.mxu0 0.0
    %4851 = vmatpush1.msra.mxu0 %v948
    %4852 = vmatprep.subr.mxu0 0.0
    %4853 = vmatpush1.msra.mxu0 %v947
    %4854 = vmatprep.subr.mxu0 0.0
    %4855 = vmatpush1.msra.mxu0 %v946
    %4856 = vmatprep.subr.mxu0 0.0
    %4857 = vmatpush1.msra.mxu0 %v945
    %4858 = vmatprep.subr.mxu0 0.0
    %4859 = vmatpush1.msra.mxu0 %v944
    %4860 = vmatprep.subr.mxu0 0.0
    %4861 = vmatpush1.msra.mxu0 %v943
    %4862 = vmatprep.subr.mxu0 0.0
    %4863 = vmatpush1.msra.mxu0 %v942
    %4864 = vmatprep.subr.mxu0 0.0
    %4865 = vmatpush1.msra.mxu0 %v941
    %4866 = vmatprep.subr.mxu0 0.0
    %4867 = vmatpush1.msra.mxu0 %v940
    %4868 = vmatprep.subr.mxu0 0.0
    %4869 = vmatpush1.msra.mxu0 %v939
    %4870 = vmatprep.subr.mxu0 0.0
    %4871 = vmatpush1.msra.mxu0 %v938
    %4872 = vmatprep.subr.mxu0 0.0
    %4873 = vmatpush1.msra.mxu0 %v937
    %4874 = vmatprep.subr.mxu0 0.0
    %4875 = vmatpush2.msra.mxu0 0.0
    %4876 = vmatprep.subr.mxu0 0.0
    %4877 = vmatpush2.msra.mxu0 0.0
    %4878 = vmatprep.subr.mxu0 0.0
    %4879 = vmatpush2.msra.mxu0 0.0
    %4880 = vmatprep.subr.mxu0 0.0
    %4881 = vmatpush2.msra.mxu0 0.0
    %4882 = vmatprep.subr.mxu0 0.0
    %4883 = vmatpush2.msra.mxu0 0.0
    %4884 = vmatprep.subr.mxu0 0.0
    %4885 = vmatpush2.msra.mxu0 0.0
    %4886 = vmatprep.subr.mxu0 0.0
    %4887 = vmatpush2.msra.mxu0 0.0
    %4888 = vmatprep.subr.mxu0 0.0
    %4889 = vmatpush2.msra.mxu0 0.0
    %4890 = vmatprep.subr.mxu0 0.0
    %4891 = vmatpush2.msra.mxu0 0.0
    %4892 = vmatprep.subr.mxu0 0.0
    %4893 = vmatpush2.msra.mxu0 0.0
    %4894 = vmatprep.subr.mxu0 0.0
    %4895 = vmatpush2.msra.mxu0 0.0
    %4896 = vmatprep.subr.mxu0 0.0
    %4897 = vmatpush2.msra.mxu0 0.0
    %4898 = vmatprep.subr.mxu0 0.0
    %4899 = vmatpush2.msra.mxu0 0.0
    %4900 = vmatprep.subr.mxu0 0.0
    %4901 = vmatpush2.msra.mxu0 0.0
    %4902 = vmatprep.subr.mxu0 0.0
    %4903 = vmatpush2.msra.mxu0 0.0
    %4904 = vmatprep.subr.mxu0 0.0
    %4905 = vmatpush2.msra.mxu0 0.0
    %4906 = vmatprep.mubr.f32.mxu0 0.0
    %4907 = vmatmul.mubr.f32.gmra.mxu0 %v4841
    %v4908 = vpop.f32.mrf.mxu0
    %v4909 = vadd.f32 0.0, %v4908
    %v4910 = vpop.f32.mrf.mxu0
    %4911 = vdwg.mxu0
    %4912 = vmatprep.subr.mxu0 0.0
    %4913 = vmatpush1.msra.mxu0 %v936
    %4914 = vmatprep.subr.mxu0 0.0
    %4915 = vmatpush1.msra.mxu0 %v935
    %4916 = vmatprep.subr.mxu0 0.0
    %4917 = vmatpush1.msra.mxu0 %v934
    %4918 = vmatprep.subr.mxu0 0.0
    %4919 = vmatpush1.msra.mxu0 %v933
    %4920 = vmatprep.subr.mxu0 0.0
    %4921 = vmatpush1.msra.mxu0 %v932
    %4922 = vmatprep.subr.mxu0 0.0
    %4923 = vmatpush1.msra.mxu0 %v931
    %4924 = vmatprep.subr.mxu0 0.0
    %4925 = vmatpush1.msra.mxu0 %v930
    %4926 = vmatprep.subr.mxu0 0.0
    %4927 = vmatpush1.msra.mxu0 %v929
    %4928 = vmatprep.subr.mxu0 0.0
    %4929 = vmatpush1.msra.mxu0 %v928
    %4930 = vmatprep.subr.mxu0 0.0
    %4931 = vmatpush1.msra.mxu0 %v927
    %4932 = vmatprep.subr.mxu0 0.0
    %4933 = vmatpush1.msra.mxu0 %v926
    %4934 = vmatprep.subr.mxu0 0.0
    %4935 = vmatpush1.msra.mxu0 %v925
    %4936 = vmatprep.subr.mxu0 0.0
    %4937 = vmatpush1.msra.mxu0 %v924
    %4938 = vmatprep.subr.mxu0 0.0
    %4939 = vmatpush1.msra.mxu0 %v923
    %4940 = vmatprep.subr.mxu0 0.0
    %4941 = vmatpush1.msra.mxu0 %v922
    %4942 = vmatprep.subr.mxu0 0.0
    %4943 = vmatpush1.msra.mxu0 %v921
    %4944 = vmatprep.subr.mxu0 0.0
    %4945 = vmatpush2.msra.mxu0 0.0
    %4946 = vmatprep.subr.mxu0 0.0
    %4947 = vmatpush2.msra.mxu0 0.0
    %4948 = vmatprep.subr.mxu0 0.0
    %4949 = vmatpush2.msra.mxu0 0.0
    %4950 = vmatprep.subr.mxu0 0.0
    %4951 = vmatpush2.msra.mxu0 0.0
    %4952 = vmatprep.subr.mxu0 0.0
    %4953 = vmatpush2.msra.mxu0 0.0
    %4954 = vmatprep.subr.mxu0 0.0
    %4955 = vmatpush2.msra.mxu0 0.0
    %4956 = vmatprep.subr.mxu0 0.0
    %4957 = vmatpush2.msra.mxu0 0.0
    %4958 = vmatprep.subr.mxu0 0.0
    %4959 = vmatpush2.msra.mxu0 0.0
    %4960 = vmatprep.subr.mxu0 0.0
    %4961 = vmatpush2.msra.mxu0 0.0
    %4962 = vmatprep.subr.mxu0 0.0
    %4963 = vmatpush2.msra.mxu0 0.0
    %4964 = vmatprep.subr.mxu0 0.0
    %4965 = vmatpush2.msra.mxu0 0.0
    %4966 = vmatprep.subr.mxu0 0.0
    %4967 = vmatpush2.msra.mxu0 0.0
    %4968 = vmatprep.subr.mxu0 0.0
    %4969 = vmatpush2.msra.mxu0 0.0
    %4970 = vmatprep.subr.mxu0 0.0
    %4971 = vmatpush2.msra.mxu0 0.0
    %4972 = vmatprep.subr.mxu0 0.0
    %4973 = vmatpush2.msra.mxu0 0.0
    %4974 = vmatprep.subr.mxu0 0.0
    %4975 = vmatpush2.msra.mxu0 0.0
    %4976 = vmatprep.mubr.f32.mxu0 0.0
    %4977 = vmatmul.mubr.f32.gmra.mxu0 %v4840
    %v4978 = vpop.f32.mrf.mxu0
    %v4979 = vadd.f32 %v4909, %v4978
    %v4980 = vpop.f32.mrf.mxu0
    %4981 = vdwg.mxu0
    %v4982 = vadd.f32 %v4979, %v298
    %v4983 = vxor.u32 %v4982, 2147483648
    %v4984 = vmul.f32 %v4983, 1.442695
    %v4985 = vpow.pop %v4984
    %v4986 = vadd.f32 %v4985, 1.0
    %v4987 = vrcp.pop %v4986
    %v4988 = vmul.f32 1.0, %v4987
    %4990 = vrot.lane.b32.xlu0 %v4988, 32
    %v4991 = vpop.permute.xlu0 %4990
    %v4993 = vmul.f32 %v4988, %v4991
    %4995 = vrot.lane.b32.xlu0 %v4357, 32
    %v4996 = vpop.permute.xlu0 %4995
    %v4998 = vmul.f32 %v4988, %v4996
    %5000 = vrot.lane.b32.xlu0 %v4998, 96
    %v5001 = vpop.permute.xlu0 %5000
    %v5003 = vadd.f32 %v4993, %v5001
    %v5004 = vtanh.pop %v5003
    %5006 = vrot.lane.b32.xlu0 %v5004, 64
    %v5007 = vpop.permute.xlu0 %5006
    %v5009 = vmul.f32 %v4988, %v5007
    %v5010 = vrot.slane %v300, 7
    %v5011 = vrot.slane %v301, 6
    %v5012 = vsel %vm335, %v5011, %v5010
    %v5013 = vrot.slane %v302, 5
    %v5014 = vsel %vm338, %v5013, %v5012
    %v5015 = vrot.slane %v303, 4
    %v5016 = vsel %vm341, %v5015, %v5014
    %v5017 = vrot.slane %v304, 3
    %v5018 = vsel %vm344, %v5017, %v5016
    %v5019 = vrot.slane %v305, 2
    %v5020 = vsel %vm347, %v5019, %v5018
    %v5021 = vrot.slane %v306, 1
    %v5022 = vsel %vm350, %v5021, %v5020
    %v5023 = vsel %vm353, %v307, %v5022
    %v5024 = vsel %vm355, %v5023, 0
    %5026 = vmatprep.subr.mxu0 0.0
    %5027 = vmatpush1.msra.mxu0 0.0
    %5028 = vmatprep.subr.mxu0 0.0
    %5029 = vmatpush1.msra.mxu0 0.0
    %5030 = vmatprep.subr.mxu0 0.0
    %5031 = vmatpush1.msra.mxu0 0.0
    %5032 = vmatprep.subr.mxu0 0.0
    %5033 = vmatpush1.msra.mxu0 0.0
    %5034 = vmatprep.subr.mxu0 0.0
    %5035 = vmatpush1.msra.mxu0 0.0
    %5036 = vmatprep.subr.mxu0 0.0
    %5037 = vmatpush1.msra.mxu0 0.0
    %5038 = vmatprep.subr.mxu0 0.0
    %5039 = vmatpush1.msra.mxu0 0.0
    %5040 = vmatprep.subr.mxu0 0.0
    %5041 = vmatpush1.msra.mxu0 0.0
    %5042 = vmatprep.subr.mxu0 0.0
    %5043 = vmatpush1.msra.mxu0 0.0
    %5044 = vmatprep.subr.mxu0 0.0
    %5045 = vmatpush1.msra.mxu0 0.0
    %5046 = vmatprep.subr.mxu0 0.0
    %5047 = vmatpush1.msra.mxu0 0.0
    %5048 = vmatprep.subr.mxu0 0.0
    %5049 = vmatpush1.msra.mxu0 0.0
    %5050 = vmatprep.subr.mxu0 0.0
    %5051 = vmatpush1.msra.mxu0 0.0
    %5052 = vmatprep.subr.mxu0 0.0
    %5053 = vmatpush1.msra.mxu0 0.0
    %5054 = vmatprep.subr.mxu0 0.0
    %5055 = vmatpush1.msra.mxu0 %v325
    %5056 = vmatprep.subr.mxu0 0.0
    %5057 = vmatpush1.msra.mxu0 %v324
    %5058 = vmatprep.subr.mxu0 0.0
    %5059 = vmatpush2.msra.mxu0 0.0
    %5060 = vmatprep.subr.mxu0 0.0
    %5061 = vmatpush2.msra.mxu0 0.0
    %5062 = vmatprep.subr.mxu0 0.0
    %5063 = vmatpush2.msra.mxu0 0.0
    %5064 = vmatprep.subr.mxu0 0.0
    %5065 = vmatpush2.msra.mxu0 0.0
    %5066 = vmatprep.subr.mxu0 0.0
    %5067 = vmatpush2.msra.mxu0 0.0
    %5068 = vmatprep.subr.mxu0 0.0
    %5069 = vmatpush2.msra.mxu0 0.0
    %5070 = vmatprep.subr.mxu0 0.0
    %5071 = vmatpush2.msra.mxu0 0.0
    %5072 = vmatprep.subr.mxu0 0.0
    %5073 = vmatpush2.msra.mxu0 0.0
    %5074 = vmatprep.subr.mxu0 0.0
    %5075 = vmatpush2.msra.mxu0 0.0
    %5076 = vmatprep.subr.mxu0 0.0
    %5077 = vmatpush2.msra.mxu0 0.0
    %5078 = vmatprep.subr.mxu0 0.0
    %5079 = vmatpush2.msra.mxu0 0.0
    %5080 = vmatprep.subr.mxu0 0.0
    %5081 = vmatpush2.msra.mxu0 0.0
    %5082 = vmatprep.subr.mxu0 0.0
    %5083 = vmatpush2.msra.mxu0 0.0
    %5084 = vmatprep.subr.mxu0 0.0
    %5085 = vmatpush2.msra.mxu0 0.0
    %5086 = vmatprep.subr.mxu0 0.0
    %5087 = vmatpush2.msra.mxu0 0.0
    %5088 = vmatprep.subr.mxu0 0.0
    %5089 = vmatpush2.msra.mxu0 0.0
    %5090 = vmatprep.mubr.f32.mxu0 0.0
    %5091 = vmatmul.mubr.f32.gmra.mxu0 %v5024
    %v5092 = vpop.f32.mrf.mxu0
    %v5093 = vadd.f32 0.0, %v5092
    %v5094 = vpop.f32.mrf.mxu0
    %5095 = vdwg.mxu0
    %5096 = vmatprep.subr.mxu0 0.0
    %5097 = vmatpush1.msra.mxu0 0.0
    %5098 = vmatprep.subr.mxu0 0.0
    %5099 = vmatpush1.msra.mxu0 0.0
    %5100 = vmatprep.subr.mxu0 0.0
    %5101 = vmatpush1.msra.mxu0 0.0
    %5102 = vmatprep.subr.mxu0 0.0
    %5103 = vmatpush1.msra.mxu0 0.0
    %5104 = vmatprep.subr.mxu0 0.0
    %5105 = vmatpush1.msra.mxu0 0.0
    %5106 = vmatprep.subr.mxu0 0.0
    %5107 = vmatpush1.msra.mxu0 0.0
    %5108 = vmatprep.subr.mxu0 0.0
    %5109 = vmatpush1.msra.mxu0 0.0
    %5110 = vmatprep.subr.mxu0 0.0
    %5111 = vmatpush1.msra.mxu0 0.0
    %5112 = vmatprep.subr.mxu0 0.0
    %5113 = vmatpush1.msra.mxu0 0.0
    %5114 = vmatprep.subr.mxu0 0.0
    %5115 = vmatpush1.msra.mxu0 0.0
    %5116 = vmatprep.subr.mxu0 0.0
    %5117 = vmatpush1.msra.mxu0 0.0
    %5118 = vmatprep.subr.mxu0 0.0
    %5119 = vmatpush1.msra.mxu0 0.0
    %5120 = vmatprep.subr.mxu0 0.0
    %5121 = vmatpush1.msra.mxu0 %v431
    %5122 = vmatprep.subr.mxu0 0.0
    %5123 = vmatpush1.msra.mxu0 %v430
    %5124 = vmatprep.subr.mxu0 0.0
    %5125 = vmatpush1.msra.mxu0 %v429
    %5126 = vmatprep.subr.mxu0 0.0
    %5127 = vmatpush1.msra.mxu0 %v428
    %5128 = vmatprep.subr.mxu0 0.0
    %5129 = vmatpush2.msra.mxu0 0.0
    %5130 = vmatprep.subr.mxu0 0.0
    %5131 = vmatpush2.msra.mxu0 0.0
    %5132 = vmatprep.subr.mxu0 0.0
    %5133 = vmatpush2.msra.mxu0 0.0
    %5134 = vmatprep.subr.mxu0 0.0
    %5135 = vmatpush2.msra.mxu0 0.0
    %5136 = vmatprep.subr.mxu0 0.0
    %5137 = vmatpush2.msra.mxu0 0.0
    %5138 = vmatprep.subr.mxu0 0.0
    %5139 = vmatpush2.msra.mxu0 0.0
    %5140 = vmatprep.subr.mxu0 0.0
    %5141 = vmatpush2.msra.mxu0 0.0
    %5142 = vmatprep.subr.mxu0 0.0
    %5143 = vmatpush2.msra.mxu0 0.0
    %5144 = vmatprep.subr.mxu0 0.0
    %5145 = vmatpush2.msra.mxu0 0.0
    %5146 = vmatprep.subr.mxu0 0.0
    %5147 = vmatpush2.msra.mxu0 0.0
    %5148 = vmatprep.subr.mxu0 0.0
    %5149 = vmatpush2.msra.mxu0 0.0
    %5150 = vmatprep.subr.mxu0 0.0
    %5151 = vmatpush2.msra.mxu0 0.0
    %5152 = vmatprep.subr.mxu0 0.0
    %5153 = vmatpush2.msra.mxu0 0.0
    %5154 = vmatprep.subr.mxu0 0.0
    %5155 = vmatpush2.msra.mxu0 0.0
    %5156 = vmatprep.subr.mxu0 0.0
    %5157 = vmatpush2.msra.mxu0 0.0
    %5158 = vmatprep.subr.mxu0 0.0
    %5159 = vmatpush2.msra.mxu0 0.0
    %5160 = vmatprep.mubr.f32.mxu0 0.0
    %5161 = vmatmul.mubr.f32.gmra.mxu0 %v4693
    %v5162 = vpop.f32.mrf.mxu0
    %v5163 = vadd.f32 0.0, %v5162
    %v5164 = vpop.f32.mrf.mxu0
    %5165 = vdwg.mxu0
    %v5166 = vmul.f32 %v282, %v5093
    %v5167 = vmul.f32 %v283, %v5163
    %5168 = vmatprep.subr.mxu0 0.0
    %5169 = vmatpush1.msra.mxu0 %v560
    %5170 = vmatprep.subr.mxu0 0.0
    %5171 = vmatpush1.msra.mxu0 %v559
    %5172 = vmatprep.subr.mxu0 0.0
    %5173 = vmatpush1.msra.mxu0 %v558
    %5174 = vmatprep.subr.mxu0 0.0
    %5175 = vmatpush1.msra.mxu0 %v557
    %5176 = vmatprep.subr.mxu0 0.0
    %5177 = vmatpush1.msra.mxu0 %v556
    %5178 = vmatprep.subr.mxu0 0.0
    %5179 = vmatpush1.msra.mxu0 %v555
    %5180 = vmatprep.subr.mxu0 0.0
    %5181 = vmatpush1.msra.mxu0 %v554
    %5182 = vmatprep.subr.mxu0 0.0
    %5183 = vmatpush1.msra.mxu0 %v553
    %5184 = vmatprep.subr.mxu0 0.0
    %5185 = vmatpush1.msra.mxu0 %v552
    %5186 = vmatprep.subr.mxu0 0.0
    %5187 = vmatpush1.msra.mxu0 %v551
    %5188 = vmatprep.subr.mxu0 0.0
    %5189 = vmatpush1.msra.mxu0 %v550
    %5190 = vmatprep.subr.mxu0 0.0
    %5191 = vmatpush1.msra.mxu0 %v549
    %5192 = vmatprep.subr.mxu0 0.0
    %5193 = vmatpush1.msra.mxu0 %v548
    %5194 = vmatprep.subr.mxu0 0.0
    %5195 = vmatpush1.msra.mxu0 %v547
    %5196 = vmatprep.subr.mxu0 0.0
    %5197 = vmatpush1.msra.mxu0 %v546
    %5198 = vmatprep.subr.mxu0 0.0
    %5199 = vmatpush1.msra.mxu0 %v545
    %5200 = vmatprep.subr.mxu0 0.0
    %5201 = vmatpush2.msra.mxu0 0.0
    %5202 = vmatprep.subr.mxu0 0.0
    %5203 = vmatpush2.msra.mxu0 0.0
    %5204 = vmatprep.subr.mxu0 0.0
    %5205 = vmatpush2.msra.mxu0 0.0
    %5206 = vmatprep.subr.mxu0 0.0
    %5207 = vmatpush2.msra.mxu0 0.0
    %5208 = vmatprep.subr.mxu0 0.0
    %5209 = vmatpush2.msra.mxu0 0.0
    %5210 = vmatprep.subr.mxu0 0.0
    %5211 = vmatpush2.msra.mxu0 0.0
    %5212 = vmatprep.subr.mxu0 0.0
    %5213 = vmatpush2.msra.mxu0 0.0
    %5214 = vmatprep.subr.mxu0 0.0
    %5215 = vmatpush2.msra.mxu0 0.0
    %5216 = vmatprep.subr.mxu0 0.0
    %5217 = vmatpush2.msra.mxu0 0.0
    %5218 = vmatprep.subr.mxu0 0.0
    %5219 = vmatpush2.msra.mxu0 0.0
    %5220 = vmatprep.subr.mxu0 0.0
    %5221 = vmatpush2.msra.mxu0 0.0
    %5222 = vmatprep.subr.mxu0 0.0
    %5223 = vmatpush2.msra.mxu0 0.0
    %5224 = vmatprep.subr.mxu0 0.0
    %5225 = vmatpush2.msra.mxu0 0.0
    %5226 = vmatprep.subr.mxu0 0.0
    %5227 = vmatpush2.msra.mxu0 0.0
    %5228 = vmatprep.subr.mxu0 0.0
    %5229 = vmatpush2.msra.mxu0 0.0
    %5230 = vmatprep.subr.mxu0 0.0
    %5231 = vmatpush2.msra.mxu0 0.0
    %5232 = vmatprep.mubr.f32.mxu0 0.0
    %5233 = vmatmul.mubr.f32.gmra.mxu0 %v5167
    %v5234 = vpop.f32.mrf.mxu0
    %v5235 = vadd.f32 0.0, %v5234
    %v5236 = vpop.f32.mrf.mxu0
    %5237 = vdwg.mxu0
    %5238 = vmatprep.subr.mxu0 0.0
    %5239 = vmatpush1.msra.mxu0 %v544
    %5240 = vmatprep.subr.mxu0 0.0
    %5241 = vmatpush1.msra.mxu0 %v543
    %5242 = vmatprep.subr.mxu0 0.0
    %5243 = vmatpush1.msra.mxu0 %v542
    %5244 = vmatprep.subr.mxu0 0.0
    %5245 = vmatpush1.msra.mxu0 %v541
    %5246 = vmatprep.subr.mxu0 0.0
    %5247 = vmatpush1.msra.mxu0 %v540
    %5248 = vmatprep.subr.mxu0 0.0
    %5249 = vmatpush1.msra.mxu0 %v539
    %5250 = vmatprep.subr.mxu0 0.0
    %5251 = vmatpush1.msra.mxu0 %v538
    %5252 = vmatprep.subr.mxu0 0.0
    %5253 = vmatpush1.msra.mxu0 %v537
    %5254 = vmatprep.subr.mxu0 0.0
    %5255 = vmatpush1.msra.mxu0 %v536
    %5256 = vmatprep.subr.mxu0 0.0
    %5257 = vmatpush1.msra.mxu0 %v535
    %5258 = vmatprep.subr.mxu0 0.0
    %5259 = vmatpush1.msra.mxu0 %v534
    %5260 = vmatprep.subr.mxu0 0.0
    %5261 = vmatpush1.msra.mxu0 %v533
    %5262 = vmatprep.subr.mxu0 0.0
    %5263 = vmatpush1.msra.mxu0 %v532
    %5264 = vmatprep.subr.mxu0 0.0
    %5265 = vmatpush1.msra.mxu0 %v531
    %5266 = vmatprep.subr.mxu0 0.0
    %5267 = vmatpush1.msra.mxu0 %v530
    %5268 = vmatprep.subr.mxu0 0.0
    %5269 = vmatpush1.msra.mxu0 %v529
    %5270 = vmatprep.subr.mxu0 0.0
    %5271 = vmatpush2.msra.mxu0 0.0
    %5272 = vmatprep.subr.mxu0 0.0
    %5273 = vmatpush2.msra.mxu0 0.0
    %5274 = vmatprep.subr.mxu0 0.0
    %5275 = vmatpush2.msra.mxu0 0.0
    %5276 = vmatprep.subr.mxu0 0.0
    %5277 = vmatpush2.msra.mxu0 0.0
    %5278 = vmatprep.subr.mxu0 0.0
    %5279 = vmatpush2.msra.mxu0 0.0
    %5280 = vmatprep.subr.mxu0 0.0
    %5281 = vmatpush2.msra.mxu0 0.0
    %5282 = vmatprep.subr.mxu0 0.0
    %5283 = vmatpush2.msra.mxu0 0.0
    %5284 = vmatprep.subr.mxu0 0.0
    %5285 = vmatpush2.msra.mxu0 0.0
    %5286 = vmatprep.subr.mxu0 0.0
    %5287 = vmatpush2.msra.mxu0 0.0
    %5288 = vmatprep.subr.mxu0 0.0
    %5289 = vmatpush2.msra.mxu0 0.0
    %5290 = vmatprep.subr.mxu0 0.0
    %5291 = vmatpush2.msra.mxu0 0.0
    %5292 = vmatprep.subr.mxu0 0.0
    %5293 = vmatpush2.msra.mxu0 0.0
    %5294 = vmatprep.subr.mxu0 0.0
    %5295 = vmatpush2.msra.mxu0 0.0
    %5296 = vmatprep.subr.mxu0 0.0
    %5297 = vmatpush2.msra.mxu0 0.0
    %5298 = vmatprep.subr.mxu0 0.0
    %5299 = vmatpush2.msra.mxu0 0.0
    %5300 = vmatprep.subr.mxu0 0.0
    %5301 = vmatpush2.msra.mxu0 0.0
    %5302 = vmatprep.mubr.f32.mxu0 0.0
    %5303 = vmatmul.mubr.f32.gmra.mxu0 %v5166
    %v5304 = vpop.f32.mrf.mxu0
    %v5305 = vadd.f32 %v5235, %v5304
    %v5306 = vpop.f32.mrf.mxu0
    %5307 = vdwg.mxu0
    %v5308 = vadd.f32 %v5305, %v289
    %v5309 = vxor.u32 %v5308, 2147483648
    %v5310 = vmul.f32 %v5309, 1.442695
    %v5311 = vpow.pop %v5310
    %v5312 = vadd.f32 %v5311, 1.0
    %v5313 = vrcp.pop %v5312
    %v5314 = vmul.f32 1.0, %v5313
    %5316 = vrot.lane.b32.xlu0 %v5314, 32
    %v5317 = vpop.permute.xlu0 %5316
    %v5319 = vmul.f32 %v5314, %v5317
    %5321 = vrot.lane.b32.xlu0 %v4683, 32
    %v5322 = vpop.permute.xlu0 %5321
    %v5324 = vmul.f32 %v5314, %v5322
    %5326 = vrot.lane.b32.xlu0 %v5324, 96
    %v5327 = vpop.permute.xlu0 %5326
    %v5329 = vadd.f32 %v5319, %v5327
    %v5330 = vtanh.pop %v5329
    %5332 = vrot.lane.b32.xlu0 %v5330, 64
    %v5333 = vpop.permute.xlu0 %5332
    %v5335 = vmul.f32 %v5314, %v5333
    %5337 = vrot.lane.b32.xlu0 %v5335, 64
    %v5338 = vpop.permute.xlu0 %5337
    %v5339 = vsel %vm454, %v5338, 0
    %5341 = vmatprep.subr.mxu0 0.0
    %5342 = vmatpush1.msra.mxu0 0.0
    %5343 = vmatprep.subr.mxu0 0.0
    %5344 = vmatpush1.msra.mxu0 0.0
    %5345 = vmatprep.subr.mxu0 0.0
    %5346 = vmatpush1.msra.mxu0 0.0
    %5347 = vmatprep.subr.mxu0 0.0
    %5348 = vmatpush1.msra.mxu0 0.0
    %5349 = vmatprep.subr.mxu0 0.0
    %5350 = vmatpush1.msra.mxu0 0.0
    %5351 = vmatprep.subr.mxu0 0.0
    %5352 = vmatpush1.msra.mxu0 0.0
    %5353 = vmatprep.subr.mxu0 0.0
    %5354 = vmatpush1.msra.mxu0 0.0
    %5355 = vmatprep.subr.mxu0 0.0
    %5356 = vmatpush1.msra.mxu0 0.0
    %5357 = vmatprep.subr.mxu0 0.0
    %5358 = vmatpush1.msra.mxu0 0.0
    %5359 = vmatprep.subr.mxu0 0.0
    %5360 = vmatpush1.msra.mxu0 0.0
    %5361 = vmatprep.subr.mxu0 0.0
    %5362 = vmatpush1.msra.mxu0 0.0
    %5363 = vmatprep.subr.mxu0 0.0
    %5364 = vmatpush1.msra.mxu0 0.0
    %5365 = vmatprep.subr.mxu0 0.0
    %5366 = vmatpush1.msra.mxu0 %v753
    %5367 = vmatprep.subr.mxu0 0.0
    %5368 = vmatpush1.msra.mxu0 %v752
    %5369 = vmatprep.subr.mxu0 0.0
    %5370 = vmatpush1.msra.mxu0 %v751
    %5371 = vmatprep.subr.mxu0 0.0
    %5372 = vmatpush1.msra.mxu0 %v750
    %5373 = vmatprep.subr.mxu0 0.0
    %5374 = vmatpush2.msra.mxu0 0.0
    %5375 = vmatprep.subr.mxu0 0.0
    %5376 = vmatpush2.msra.mxu0 0.0
    %5377 = vmatprep.subr.mxu0 0.0
    %5378 = vmatpush2.msra.mxu0 0.0
    %5379 = vmatprep.subr.mxu0 0.0
    %5380 = vmatpush2.msra.mxu0 0.0
    %5381 = vmatprep.subr.mxu0 0.0
    %5382 = vmatpush2.msra.mxu0 0.0
    %5383 = vmatprep.subr.mxu0 0.0
    %5384 = vmatpush2.msra.mxu0 0.0
    %5385 = vmatprep.subr.mxu0 0.0
    %5386 = vmatpush2.msra.mxu0 0.0
    %5387 = vmatprep.subr.mxu0 0.0
    %5388 = vmatpush2.msra.mxu0 0.0
    %5389 = vmatprep.subr.mxu0 0.0
    %5390 = vmatpush2.msra.mxu0 0.0
    %5391 = vmatprep.subr.mxu0 0.0
    %5392 = vmatpush2.msra.mxu0 0.0
    %5393 = vmatprep.subr.mxu0 0.0
    %5394 = vmatpush2.msra.mxu0 0.0
    %5395 = vmatprep.subr.mxu0 0.0
    %5396 = vmatpush2.msra.mxu0 0.0
    %5397 = vmatprep.subr.mxu0 0.0
    %5398 = vmatpush2.msra.mxu0 0.0
    %5399 = vmatprep.subr.mxu0 0.0
    %5400 = vmatpush2.msra.mxu0 0.0
    %5401 = vmatprep.subr.mxu0 0.0
    %5402 = vmatpush2.msra.mxu0 0.0
    %5403 = vmatprep.subr.mxu0 0.0
    %5404 = vmatpush2.msra.mxu0 0.0
    %5405 = vmatprep.mubr.f32.mxu0 0.0
    %5406 = vmatmul.mubr.f32.gmra.mxu0 %v5339
    %v5407 = vpop.f32.mrf.mxu0
    %v5408 = vadd.f32 0.0, %v5407
    %v5409 = vpop.f32.mrf.mxu0
    %5410 = vdwg.mxu0
    %5412 = vrot.lane.b32.xlu0 %v5009, 64
    %v5413 = vpop.permute.xlu0 %5412
    %v5414 = vsel %vm454, %v5413, 0
    %5416 = vmatprep.subr.mxu0 0.0
    %5417 = vmatpush1.msra.mxu0 0.0
    %5418 = vmatprep.subr.mxu0 0.0
    %5419 = vmatpush1.msra.mxu0 0.0
    %5420 = vmatprep.subr.mxu0 0.0
    %5421 = vmatpush1.msra.mxu0 0.0
    %5422 = vmatprep.subr.mxu0 0.0
    %5423 = vmatpush1.msra.mxu0 0.0
    %5424 = vmatprep.subr.mxu0 0.0
    %5425 = vmatpush1.msra.mxu0 0.0
    %5426 = vmatprep.subr.mxu0 0.0
    %5427 = vmatpush1.msra.mxu0 0.0
    %5428 = vmatprep.subr.mxu0 0.0
    %5429 = vmatpush1.msra.mxu0 0.0
    %5430 = vmatprep.subr.mxu0 0.0
    %5431 = vmatpush1.msra.mxu0 0.0
    %5432 = vmatprep.subr.mxu0 0.0
    %5433 = vmatpush1.msra.mxu0 0.0
    %5434 = vmatprep.subr.mxu0 0.0
    %5435 = vmatpush1.msra.mxu0 0.0
    %5436 = vmatprep.subr.mxu0 0.0
    %5437 = vmatpush1.msra.mxu0 0.0
    %5438 = vmatprep.subr.mxu0 0.0
    %5439 = vmatpush1.msra.mxu0 0.0
    %5440 = vmatprep.subr.mxu0 0.0
    %5441 = vmatpush1.msra.mxu0 %v832
    %5442 = vmatprep.subr.mxu0 0.0
    %5443 = vmatpush1.msra.mxu0 %v831
    %5444 = vmatprep.subr.mxu0 0.0
    %5445 = vmatpush1.msra.mxu0 %v830
    %5446 = vmatprep.subr.mxu0 0.0
    %5447 = vmatpush1.msra.mxu0 %v829
    %5448 = vmatprep.subr.mxu0 0.0
    %5449 = vmatpush2.msra.mxu0 0.0
    %5450 = vmatprep.subr.mxu0 0.0
    %5451 = vmatpush2.msra.mxu0 0.0
    %5452 = vmatprep.subr.mxu0 0.0
    %5453 = vmatpush2.msra.mxu0 0.0
    %5454 = vmatprep.subr.mxu0 0.0
    %5455 = vmatpush2.msra.mxu0 0.0
    %5456 = vmatprep.subr.mxu0 0.0
    %5457 = vmatpush2.msra.mxu0 0.0
    %5458 = vmatprep.subr.mxu0 0.0
    %5459 = vmatpush2.msra.mxu0 0.0
    %5460 = vmatprep.subr.mxu0 0.0
    %5461 = vmatpush2.msra.mxu0 0.0
    %5462 = vmatprep.subr.mxu0 0.0
    %5463 = vmatpush2.msra.mxu0 0.0
    %5464 = vmatprep.subr.mxu0 0.0
    %5465 = vmatpush2.msra.mxu0 0.0
    %5466 = vmatprep.subr.mxu0 0.0
    %5467 = vmatpush2.msra.mxu0 0.0
    %5468 = vmatprep.subr.mxu0 0.0
    %5469 = vmatpush2.msra.mxu0 0.0
    %5470 = vmatprep.subr.mxu0 0.0
    %5471 = vmatpush2.msra.mxu0 0.0
    %5472 = vmatprep.subr.mxu0 0.0
    %5473 = vmatpush2.msra.mxu0 0.0
    %5474 = vmatprep.subr.mxu0 0.0
    %5475 = vmatpush2.msra.mxu0 0.0
    %5476 = vmatprep.subr.mxu0 0.0
    %5477 = vmatpush2.msra.mxu0 0.0
    %5478 = vmatprep.subr.mxu0 0.0
    %5479 = vmatpush2.msra.mxu0 0.0
    %5480 = vmatprep.mubr.f32.mxu0 0.0
    %5481 = vmatmul.mubr.f32.gmra.mxu0 %v5414
    %v5482 = vpop.f32.mrf.mxu0
    %v5483 = vadd.f32 0.0, %v5482
    %v5484 = vpop.f32.mrf.mxu0
    %5485 = vdwg.mxu0
    %v5486 = vmul.f32 %v291, %v5408
    %v5487 = vmul.f32 %v292, %v5483
    %5488 = vmatprep.subr.mxu0 0.0
    %5489 = vmatpush1.msra.mxu0 %v952
    %5490 = vmatprep.subr.mxu0 0.0
    %5491 = vmatpush1.msra.mxu0 %v951
    %5492 = vmatprep.subr.mxu0 0.0
    %5493 = vmatpush1.msra.mxu0 %v950
    %5494 = vmatprep.subr.mxu0 0.0
    %5495 = vmatpush1.msra.mxu0 %v949
    %5496 = vmatprep.subr.mxu0 0.0
    %5497 = vmatpush1.msra.mxu0 %v948
    %5498 = vmatprep.subr.mxu0 0.0
    %5499 = vmatpush1.msra.mxu0 %v947
    %5500 = vmatprep.subr.mxu0 0.0
    %5501 = vmatpush1.msra.mxu0 %v946
    %5502 = vmatprep.subr.mxu0 0.0
    %5503 = vmatpush1.msra.mxu0 %v945
    %5504 = vmatprep.subr.mxu0 0.0
    %5505 = vmatpush1.msra.mxu0 %v944
    %5506 = vmatprep.subr.mxu0 0.0
    %5507 = vmatpush1.msra.mxu0 %v943
    %5508 = vmatprep.subr.mxu0 0.0
    %5509 = vmatpush1.msra.mxu0 %v942
    %5510 = vmatprep.subr.mxu0 0.0
    %5511 = vmatpush1.msra.mxu0 %v941
    %5512 = vmatprep.subr.mxu0 0.0
    %5513 = vmatpush1.msra.mxu0 %v940
    %5514 = vmatprep.subr.mxu0 0.0
    %5515 = vmatpush1.msra.mxu0 %v939
    %5516 = vmatprep.subr.mxu0 0.0
    %5517 = vmatpush1.msra.mxu0 %v938
    %5518 = vmatprep.subr.mxu0 0.0
    %5519 = vmatpush1.msra.mxu0 %v937
    %5520 = vmatprep.subr.mxu0 0.0
    %5521 = vmatpush2.msra.mxu0 0.0
    %5522 = vmatprep.subr.mxu0 0.0
    %5523 = vmatpush2.msra.mxu0 0.0
    %5524 = vmatprep.subr.mxu0 0.0
    %5525 = vmatpush2.msra.mxu0 0.0
    %5526 = vmatprep.subr.mxu0 0.0
    %5527 = vmatpush2.msra.mxu0 0.0
    %5528 = vmatprep.subr.mxu0 0.0
    %5529 = vmatpush2.msra.mxu0 0.0
    %5530 = vmatprep.subr.mxu0 0.0
    %5531 = vmatpush2.msra.mxu0 0.0
    %5532 = vmatprep.subr.mxu0 0.0
    %5533 = vmatpush2.msra.mxu0 0.0
    %5534 = vmatprep.subr.mxu0 0.0
    %5535 = vmatpush2.msra.mxu0 0.0
    %5536 = vmatprep.subr.mxu0 0.0
    %5537 = vmatpush2.msra.mxu0 0.0
    %5538 = vmatprep.subr.mxu0 0.0
    %5539 = vmatpush2.msra.mxu0 0.0
    %5540 = vmatprep.subr.mxu0 0.0
    %5541 = vmatpush2.msra.mxu0 0.0
    %5542 = vmatprep.subr.mxu0 0.0
    %5543 = vmatpush2.msra.mxu0 0.0
    %5544 = vmatprep.subr.mxu0 0.0
    %5545 = vmatpush2.msra.mxu0 0.0
    %5546 = vmatprep.subr.mxu0 0.0
    %5547 = vmatpush2.msra.mxu0 0.0
    %5548 = vmatprep.subr.mxu0 0.0
    %5549 = vmatpush2.msra.mxu0 0.0
    %5550 = vmatprep.subr.mxu0 0.0
    %5551 = vmatpush2.msra.mxu0 0.0
    %5552 = vmatprep.mubr.f32.mxu0 0.0
    %5553 = vmatmul.mubr.f32.gmra.mxu0 %v5487
    %v5554 = vpop.f32.mrf.mxu0
    %v5555 = vadd.f32 0.0, %v5554
    %v5556 = vpop.f32.mrf.mxu0
    %5557 = vdwg.mxu0
    %5558 = vmatprep.subr.mxu0 0.0
    %5559 = vmatpush1.msra.mxu0 %v936
    %5560 = vmatprep.subr.mxu0 0.0
    %5561 = vmatpush1.msra.mxu0 %v935
    %5562 = vmatprep.subr.mxu0 0.0
    %5563 = vmatpush1.msra.mxu0 %v934
    %5564 = vmatprep.subr.mxu0 0.0
    %5565 = vmatpush1.msra.mxu0 %v933
    %5566 = vmatprep.subr.mxu0 0.0
    %5567 = vmatpush1.msra.mxu0 %v932
    %5568 = vmatprep.subr.mxu0 0.0
    %5569 = vmatpush1.msra.mxu0 %v931
    %5570 = vmatprep.subr.mxu0 0.0
    %5571 = vmatpush1.msra.mxu0 %v930
    %5572 = vmatprep.subr.mxu0 0.0
    %5573 = vmatpush1.msra.mxu0 %v929
    %5574 = vmatprep.subr.mxu0 0.0
    %5575 = vmatpush1.msra.mxu0 %v928
    %5576 = vmatprep.subr.mxu0 0.0
    %5577 = vmatpush1.msra.mxu0 %v927
    %5578 = vmatprep.subr.mxu0 0.0
    %5579 = vmatpush1.msra.mxu0 %v926
    %5580 = vmatprep.subr.mxu0 0.0
    %5581 = vmatpush1.msra.mxu0 %v925
    %5582 = vmatprep.subr.mxu0 0.0
    %5583 = vmatpush1.msra.mxu0 %v924
    %5584 = vmatprep.subr.mxu0 0.0
    %5585 = vmatpush1.msra.mxu0 %v923
    %5586 = vmatprep.subr.mxu0 0.0
    %5587 = vmatpush1.msra.mxu0 %v922
    %5588 = vmatprep.subr.mxu0 0.0
    %5589 = vmatpush1.msra.mxu0 %v921
    %5590 = vmatprep.subr.mxu0 0.0
    %5591 = vmatpush2.msra.mxu0 0.0
    %5592 = vmatprep.subr.mxu0 0.0
    %5593 = vmatpush2.msra.mxu0 0.0
    %5594 = vmatprep.subr.mxu0 0.0
    %5595 = vmatpush2.msra.mxu0 0.0
    %5596 = vmatprep.subr.mxu0 0.0
    %5597 = vmatpush2.msra.mxu0 0.0
    %5598 = vmatprep.subr.mxu0 0.0
    %5599 = vmatpush2.msra.mxu0 0.0
    %5600 = vmatprep.subr.mxu0 0.0
    %5601 = vmatpush2.msra.mxu0 0.0
    %5602 = vmatprep.subr.mxu0 0.0
    %5603 = vmatpush2.msra.mxu0 0.0
    %5604 = vmatprep.subr.mxu0 0.0
    %5605 = vmatpush2.msra.mxu0 0.0
    %5606 = vmatprep.subr.mxu0 0.0
    %5607 = vmatpush2.msra.mxu0 0.0
    %5608 = vmatprep.subr.mxu0 0.0
    %5609 = vmatpush2.msra.mxu0 0.0
    %5610 = vmatprep.subr.mxu0 0.0
    %5611 = vmatpush2.msra.mxu0 0.0
    %5612 = vmatprep.subr.mxu0 0.0
    %5613 = vmatpush2.msra.mxu0 0.0
    %5614 = vmatprep.subr.mxu0 0.0
    %5615 = vmatpush2.msra.mxu0 0.0
    %5616 = vmatprep.subr.mxu0 0.0
    %5617 = vmatpush2.msra.mxu0 0.0
    %5618 = vmatprep.subr.mxu0 0.0
    %5619 = vmatpush2.msra.mxu0 0.0
    %5620 = vmatprep.subr.mxu0 0.0
    %5621 = vmatpush2.msra.mxu0 0.0
    %5622 = vmatprep.mubr.f32.mxu0 0.0
    %5623 = vmatmul.mubr.f32.gmra.mxu0 %v5486
    %v5624 = vpop.f32.mrf.mxu0
    %v5625 = vadd.f32 %v5555, %v5624
    %v5626 = vpop.f32.mrf.mxu0
    %5627 = vdwg.mxu0
    %v5628 = vadd.f32 %v5625, %v298
    %v5629 = vxor.u32 %v5628, 2147483648
    %v5630 = vmul.f32 %v5629, 1.442695
    %v5631 = vpow.pop %v5630
    %v5632 = vadd.f32 %v5631, 1.0
    %v5633 = vrcp.pop %v5632
    %v5634 = vmul.f32 1.0, %v5633
    %5636 = vrot.lane.b32.xlu0 %v5634, 32
    %v5637 = vpop.permute.xlu0 %5636
    %v5639 = vmul.f32 %v5634, %v5637
    %5641 = vrot.lane.b32.xlu0 %v5003, 32
    %v5642 = vpop.permute.xlu0 %5641
    %v5644 = vmul.f32 %v5634, %v5642
    %5646 = vrot.lane.b32.xlu0 %v5644, 96
    %v5647 = vpop.permute.xlu0 %5646
    %v5649 = vadd.f32 %v5639, %v5647
    %v5650 = vtanh.pop %v5649
    %5652 = vrot.lane.b32.xlu0 %v5650, 64
    %v5653 = vpop.permute.xlu0 %5652
    %v5655 = vmul.f32 %v5634, %v5653
    %v5656 = vcombine.high %v1133, %v1133
    %v5658 = vunpack.c.l.s4 1966171168
    %v5659 = vunpack.c.0.s8 %v5658
    %v5660 = vlaneseq
    %v5661 = vshrl.u32 %v5660, 7
    %v5662 = vsub.s32 %v5659, %v5661
    %v5663 = vrot.slane %v1133, %v5662
    %v5665 = vunpack.c.l.s4 1966171168
    %v5666 = vunpack.c.0.s8 %v5665
    %v5667 = vlaneseq
    %v5668 = vshrl.u32 %v5667, 7
    %v5669 = vsub.s32 %v5666, %v5668
    %v5670 = vrot.slane %v5656, %v5669
    %v5671 = vcombine.high %v5663, %v5663
    %v5672 = vcombine.high %v5670, %v5670
    %v5674 = vunpack.c.l.s4 1966171168
    %v5675 = vunpack.c.0.s8 %v5674
    %v5676 = vlaneseq
    %v5677 = vshrl.u32 %v5676, 7
    %v5678 = vsub.s32 %v5675, %v5677
    %v5679 = vrot.slane %v5663, %v5678
    %v5681 = vunpack.c.l.s4 1966171168
    %v5682 = vunpack.c.0.s8 %v5681
    %v5683 = vlaneseq
    %v5684 = vshrl.u32 %v5683, 7
    %v5685 = vsub.s32 %v5682, %v5684
    %v5686 = vrot.slane %v5670, %v5685
    %v5688 = vunpack.c.l.s4 1966171168
    %v5689 = vunpack.c.0.s8 %v5688
    %v5690 = vlaneseq
    %v5691 = vshrl.u32 %v5690, 7
    %v5692 = vsub.s32 %v5689, %v5691
    %v5693 = vrot.slane %v5671, %v5692
    %v5695 = vunpack.c.l.s4 1966171168
    %v5696 = vunpack.c.0.s8 %v5695
    %v5697 = vlaneseq
    %v5698 = vshrl.u32 %v5697, 7
    %v5699 = vsub.s32 %v5696, %v5698
    %v5700 = vrot.slane %v5672, %v5699
    %v5701 = vcombine.high %v5679, %v5679
    %v5702 = vcombine.high %v5686, %v5686
    %v5703 = vcombine.high %v5693, %v5693
    %v5704 = vcombine.high %v5700, %v5700
    %v5713 = vcombine.high %v1779, %v1779
    %v5715 = vunpack.c.l.s4 1966171168
    %v5716 = vunpack.c.0.s8 %v5715
    %v5717 = vlaneseq
    %v5718 = vshrl.u32 %v5717, 7
    %v5719 = vsub.s32 %v5716, %v5718
    %v5720 = vrot.slane %v1779, %v5719
    %v5722 = vunpack.c.l.s4 1966171168
    %v5723 = vunpack.c.0.s8 %v5722
    %v5724 = vlaneseq
    %v5725 = vshrl.u32 %v5724, 7
    %v5726 = vsub.s32 %v5723, %v5725
    %v5727 = vrot.slane %v5713, %v5726
    %v5728 = vcombine.high %v5720, %v5720
    %v5729 = vcombine.high %v5727, %v5727
    %v5731 = vunpack.c.l.s4 1966171168
    %v5732 = vunpack.c.0.s8 %v5731
    %v5733 = vlaneseq
    %v5734 = vshrl.u32 %v5733, 7
    %v5735 = vsub.s32 %v5732, %v5734
    %v5736 = vrot.slane %v5720, %v5735
    %v5738 = vunpack.c.l.s4 1966171168
    %v5739 = vunpack.c.0.s8 %v5738
    %v5740 = vlaneseq
    %v5741 = vshrl.u32 %v5740, 7
    %v5742 = vsub.s32 %v5739, %v5741
    %v5743 = vrot.slane %v5727, %v5742
    %v5745 = vunpack.c.l.s4 1966171168
    %v5746 = vunpack.c.0.s8 %v5745
    %v5747 = vlaneseq
    %v5748 = vshrl.u32 %v5747, 7
    %v5749 = vsub.s32 %v5746, %v5748
    %v5750 = vrot.slane %v5728, %v5749
    %v5752 = vunpack.c.l.s4 1966171168
    %v5753 = vunpack.c.0.s8 %v5752
    %v5754 = vlaneseq
    %v5755 = vshrl.u32 %v5754, 7
    %v5756 = vsub.s32 %v5753, %v5755
    %v5757 = vrot.slane %v5729, %v5756
    %v5758 = vcombine.high %v5736, %v5736
    %v5759 = vcombine.high %v5743, %v5743
    %v5760 = vcombine.high %v5750, %v5750
    %v5761 = vcombine.high %v5757, %v5757
    %v5762 = vcombine.high %v2425, %v2425
    %v5764 = vunpack.c.l.s4 1966171168
    %v5765 = vunpack.c.0.s8 %v5764
    %v5766 = vlaneseq
    %v5767 = vshrl.u32 %v5766, 7
    %v5768 = vsub.s32 %v5765, %v5767
    %v5769 = vrot.slane %v2425, %v5768
    %v5771 = vunpack.c.l.s4 1966171168
    %v5772 = vunpack.c.0.s8 %v5771
    %v5773 = vlaneseq
    %v5774 = vshrl.u32 %v5773, 7
    %v5775 = vsub.s32 %v5772, %v5774
    %v5776 = vrot.slane %v5762, %v5775
    %v5777 = vcombine.high %v5769, %v5769
    %v5778 = vcombine.high %v5776, %v5776
    %v5780 = vunpack.c.l.s4 1966171168
    %v5781 = vunpack.c.0.s8 %v5780
    %v5782 = vlaneseq
    %v5783 = vshrl.u32 %v5782, 7
    %v5784 = vsub.s32 %v5781, %v5783
    %v5785 = vrot.slane %v5769, %v5784
    %v5787 = vunpack.c.l.s4 1966171168
    %v5788 = vunpack.c.0.s8 %v5787
    %v5789 = vlaneseq
    %v5790 = vshrl.u32 %v5789, 7
    %v5791 = vsub.s32 %v5788, %v5790
    %v5792 = vrot.slane %v5776, %v5791
    %v5794 = vunpack.c.l.s4 1966171168
    %v5795 = vunpack.c.0.s8 %v5794
    %v5796 = vlaneseq
    %v5797 = vshrl.u32 %v5796, 7
    %v5798 = vsub.s32 %v5795, %v5797
    %v5799 = vrot.slane %v5777, %v5798
    %v5801 = vunpack.c.l.s4 1966171168
    %v5802 = vunpack.c.0.s8 %v5801
    %v5803 = vlaneseq
    %v5804 = vshrl.u32 %v5803, 7
    %v5805 = vsub.s32 %v5802, %v5804
    %v5806 = vrot.slane %v5778, %v5805
    %v5807 = vcombine.high %v5785, %v5785
    %v5808 = vcombine.high %v5792, %v5792
    %v5809 = vcombine.high %v5799, %v5799
    %v5810 = vcombine.high %v5806, %v5806
    %v5811 = vcombine.high %v3071, %v3071
    %v5813 = vunpack.c.l.s4 1966171168
    %v5814 = vunpack.c.0.s8 %v5813
    %v5815 = vlaneseq
    %v5816 = vshrl.u32 %v5815, 7
    %v5817 = vsub.s32 %v5814, %v5816
    %v5818 = vrot.slane %v3071, %v5817
    %v5820 = vunpack.c.l.s4 1966171168
    %v5821 = vunpack.c.0.s8 %v5820
    %v5822 = vlaneseq
    %v5823 = vshrl.u32 %v5822, 7
    %v5824 = vsub.s32 %v5821, %v5823
    %v5825 = vrot.slane %v5811, %v5824
    %v5826 = vcombine.high %v5818, %v5818
    %v5827 = vcombine.high %v5825, %v5825
    %v5829 = vunpack.c.l.s4 1966171168
    %v5830 = vunpack.c.0.s8 %v5829
    %v5831 = vlaneseq
    %v5832 = vshrl.u32 %v5831, 7
    %v5833 = vsub.s32 %v5830, %v5832
    %v5834 = vrot.slane %v5818, %v5833
    %v5836 = vunpack.c.l.s4 1966171168
    %v5837 = vunpack.c.0.s8 %v5836
    %v5838 = vlaneseq
    %v5839 = vshrl.u32 %v5838, 7
    %v5840 = vsub.s32 %v5837, %v5839
    %v5841 = vrot.slane %v5825, %v5840
    %v5843 = vunpack.c.l.s4 1966171168
    %v5844 = vunpack.c.0.s8 %v5843
    %v5845 = vlaneseq
    %v5846 = vshrl.u32 %v5845, 7
    %v5847 = vsub.s32 %v5844, %v5846
    %v5848 = vrot.slane %v5826, %v5847
    %v5850 = vunpack.c.l.s4 1966171168
    %v5851 = vunpack.c.0.s8 %v5850
    %v5852 = vlaneseq
    %v5853 = vshrl.u32 %v5852, 7
    %v5854 = vsub.s32 %v5851, %v5853
    %v5855 = vrot.slane %v5827, %v5854
    %v5856 = vcombine.high %v5834, %v5834
    %v5857 = vcombine.high %v5841, %v5841
    %v5858 = vcombine.high %v5848, %v5848
    %v5859 = vcombine.high %v5855, %v5855
    %v5860 = vcombine.high %v3717, %v3717
    %v5862 = vunpack.c.l.s4 1966171168
    %v5863 = vunpack.c.0.s8 %v5862
    %v5864 = vlaneseq
    %v5865 = vshrl.u32 %v5864, 7
    %v5866 = vsub.s32 %v5863, %v5865
    %v5867 = vrot.slane %v3717, %v5866
    %v5869 = vunpack.c.l.s4 1966171168
    %v5870 = vunpack.c.0.s8 %v5869
    %v5871 = vlaneseq
    %v5872 = vshrl.u32 %v5871, 7
    %v5873 = vsub.s32 %v5870, %v5872
    %v5874 = vrot.slane %v5860, %v5873
    %v5875 = vcombine.high %v5867, %v5867
    %v5876 = vcombine.high %v5874, %v5874
    %v5878 = vunpack.c.l.s4 1966171168
    %v5879 = vunpack.c.0.s8 %v5878
    %v5880 = vlaneseq
    %v5881 = vshrl.u32 %v5880, 7
    %v5882 = vsub.s32 %v5879, %v5881
    %v5883 = vrot.slane %v5867, %v5882
    %v5885 = vunpack.c.l.s4 1966171168
    %v5886 = vunpack.c.0.s8 %v5885
    %v5887 = vlaneseq
    %v5888 = vshrl.u32 %v5887, 7
    %v5889 = vsub.s32 %v5886, %v5888
    %v5890 = vrot.slane %v5874, %v5889
    %v5892 = vunpack.c.l.s4 1966171168
    %v5893 = vunpack.c.0.s8 %v5892
    %v5894 = vlaneseq
    %v5895 = vshrl.u32 %v5894, 7
    %v5896 = vsub.s32 %v5893, %v5895
    %v5897 = vrot.slane %v5875, %v5896
    %v5899 = vunpack.c.l.s4 1966171168
    %v5900 = vunpack.c.0.s8 %v5899
    %v5901 = vlaneseq
    %v5902 = vshrl.u32 %v5901, 7
    %v5903 = vsub.s32 %v5900, %v5902
    %v5904 = vrot.slane %v5876, %v5903
    %v5905 = vcombine.high %v5883, %v5883
    %v5906 = vcombine.high %v5890, %v5890
    %v5907 = vcombine.high %v5897, %v5897
    %v5908 = vcombine.high %v5904, %v5904
    %v5909 = vcombine.high %v4363, %v4363
    %v5911 = vunpack.c.l.s4 1966171168
    %v5912 = vunpack.c.0.s8 %v5911
    %v5913 = vlaneseq
    %v5914 = vshrl.u32 %v5913, 7
    %v5915 = vsub.s32 %v5912, %v5914
    %v5916 = vrot.slane %v4363, %v5915
    %v5918 = vunpack.c.l.s4 1966171168
    %v5919 = vunpack.c.0.s8 %v5918
    %v5920 = vlaneseq
    %v5921 = vshrl.u32 %v5920, 7
    %v5922 = vsub.s32 %v5919, %v5921
    %v5923 = vrot.slane %v5909, %v5922
    %v5924 = vcombine.high %v5916, %v5916
    %v5925 = vcombine.high %v5923, %v5923
    %v5927 = vunpack.c.l.s4 1966171168
    %v5928 = vunpack.c.0.s8 %v5927
    %v5929 = vlaneseq
    %v5930 = vshrl.u32 %v5929, 7
    %v5931 = vsub.s32 %v5928, %v5930
    %v5932 = vrot.slane %v5916, %v5931
    %v5934 = vunpack.c.l.s4 1966171168
    %v5935 = vunpack.c.0.s8 %v5934
    %v5936 = vlaneseq
    %v5937 = vshrl.u32 %v5936, 7
    %v5938 = vsub.s32 %v5935, %v5937
    %v5939 = vrot.slane %v5923, %v5938
    %v5941 = vunpack.c.l.s4 1966171168
    %v5942 = vunpack.c.0.s8 %v5941
    %v5943 = vlaneseq
    %v5944 = vshrl.u32 %v5943, 7
    %v5945 = vsub.s32 %v5942, %v5944
    %v5946 = vrot.slane %v5924, %v5945
    %v5948 = vunpack.c.l.s4 1966171168
    %v5949 = vunpack.c.0.s8 %v5948
    %v5950 = vlaneseq
    %v5951 = vshrl.u32 %v5950, 7
    %v5952 = vsub.s32 %v5949, %v5951
    %v5953 = vrot.slane %v5925, %v5952
    %v5954 = vcombine.high %v5932, %v5932
    %v5955 = vcombine.high %v5939, %v5939
    %v5956 = vcombine.high %v5946, %v5946
    %v5957 = vcombine.high %v5953, %v5953
    %v5958 = vcombine.high %v5009, %v5009
    %v5960 = vunpack.c.l.s4 1966171168
    %v5961 = vunpack.c.0.s8 %v5960
    %v5962 = vlaneseq
    %v5963 = vshrl.u32 %v5962, 7
    %v5964 = vsub.s32 %v5961, %v5963
    %v5965 = vrot.slane %v5009, %v5964
    %v5967 = vunpack.c.l.s4 1966171168
    %v5968 = vunpack.c.0.s8 %v5967
    %v5969 = vlaneseq
    %v5970 = vshrl.u32 %v5969, 7
    %v5971 = vsub.s32 %v5968, %v5970
    %v5972 = vrot.slane %v5958, %v5971
    %v5973 = vcombine.high %v5965, %v5965
    %v5974 = vcombine.high %v5972, %v5972
    %v5976 = vunpack.c.l.s4 1966171168
    %v5977 = vunpack.c.0.s8 %v5976
    %v5978 = vlaneseq
    %v5979 = vshrl.u32 %v5978, 7
    %v5980 = vsub.s32 %v5977, %v5979
    %v5981 = vrot.slane %v5965, %v5980
    %v5983 = vunpack.c.l.s4 1966171168
    %v5984 = vunpack.c.0.s8 %v5983
    %v5985 = vlaneseq
    %v5986 = vshrl.u32 %v5985, 7
    %v5987 = vsub.s32 %v5984, %v5986
    %v5988 = vrot.slane %v5972, %v5987
    %v5990 = vunpack.c.l.s4 1966171168
    %v5991 = vunpack.c.0.s8 %v5990
    %v5992 = vlaneseq
    %v5993 = vshrl.u32 %v5992, 7
    %v5994 = vsub.s32 %v5991, %v5993
    %v5995 = vrot.slane %v5973, %v5994
    %v5997 = vunpack.c.l.s4 1966171168
    %v5998 = vunpack.c.0.s8 %v5997
    %v5999 = vlaneseq
    %v6000 = vshrl.u32 %v5999, 7
    %v6001 = vsub.s32 %v5998, %v6000
    %v6002 = vrot.slane %v5974, %v6001
    %v6003 = vcombine.high %v5981, %v5981
    %v6004 = vcombine.high %v5988, %v5988
    %v6005 = vcombine.high %v5995, %v5995
    %v6006 = vcombine.high %v6002, %v6002
    %v6008 = vcombine.high %v5655, %v5655
    %v6010 = vunpack.c.l.s4 1966171168
    %v6011 = vunpack.c.0.s8 %v6010
    %v6012 = vlaneseq
    %v6013 = vshrl.u32 %v6012, 7
    %v6014 = vsub.s32 %v6011, %v6013
    %v6015 = vrot.slane %v5655, %v6014
    %v6017 = vunpack.c.l.s4 1966171168
    %v6018 = vunpack.c.0.s8 %v6017
    %v6019 = vlaneseq
    %v6020 = vshrl.u32 %v6019, 7
    %v6021 = vsub.s32 %v6018, %v6020
    %v6022 = vrot.slane %v6008, %v6021
    %v6023 = vcombine.high %v6015, %v6015
    %v6024 = vcombine.high %v6022, %v6022
    %v6026 = vunpack.c.l.s4 1966171168
    %v6027 = vunpack.c.0.s8 %v6026
    %v6028 = vlaneseq
    %v6029 = vshrl.u32 %v6028, 7
    %v6030 = vsub.s32 %v6027, %v6029
    %v6031 = vrot.slane %v6015, %v6030
    %v6033 = vunpack.c.l.s4 1966171168
    %v6034 = vunpack.c.0.s8 %v6033
    %v6035 = vlaneseq
    %v6036 = vshrl.u32 %v6035, 7
    %v6037 = vsub.s32 %v6034, %v6036
    %v6038 = vrot.slane %v6022, %v6037
    %v6040 = vunpack.c.l.s4 1966171168
    %v6041 = vunpack.c.0.s8 %v6040
    %v6042 = vlaneseq
    %v6043 = vshrl.u32 %v6042, 7
    %v6044 = vsub.s32 %v6041, %v6043
    %v6045 = vrot.slane %v6023, %v6044
    %v6047 = vunpack.c.l.s4 1966171168
    %v6048 = vunpack.c.0.s8 %v6047
    %v6049 = vlaneseq
    %v6050 = vshrl.u32 %v6049, 7
    %v6051 = vsub.s32 %v6048, %v6050
    %v6052 = vrot.slane %v6024, %v6051
    %v6053 = vcombine.high %v6031, %v6031
    %v6054 = vcombine.high %v6038, %v6038
    %v6055 = vcombine.high %v6045, %v6045
    %v6056 = vcombine.high %v6052, %v6052
    %v6057 = vlaneseq
    %v6058 = vshrl.u32 %v6057, 7
    %v6059 = vsub.s32 0, %v6058
    %v6060 = vrot.slane %v5736, %v6059
    %v6061 = vlaneseq
    %v6062 = vshrl.u32 %v6061, 7
    %v6063 = vsub.s32 0, %v6062
    %v6064 = vrot.slane %v5750, %v6063
    %v6065 = vlaneseq
    %v6066 = vshrl.u32 %v6065, 7
    %v6067 = vsub.s32 0, %v6066
    %v6068 = vrot.slane %v5758, %v6067
    %v6069 = vlaneseq
    %v6070 = vshrl.u32 %v6069, 7
    %v6071 = vsub.s32 0, %v6070
    %v6072 = vrot.slane %v5760, %v6071
    %v6073 = vlaneseq
    %v6074 = vshrl.u32 %v6073, 7
    %v6075 = vsub.s32 0, %v6074
    %v6076 = vrot.slane %v5743, %v6075
    %v6077 = vlaneseq
    %v6078 = vshrl.u32 %v6077, 7
    %v6079 = vsub.s32 0, %v6078
    %v6080 = vrot.slane %v5757, %v6079
    %v6081 = vlaneseq
    %v6082 = vshrl.u32 %v6081, 7
    %v6083 = vsub.s32 0, %v6082
    %v6084 = vrot.slane %v5759, %v6083
    %v6085 = vlaneseq
    %v6086 = vshrl.u32 %v6085, 7
    %v6087 = vsub.s32 0, %v6086
    %v6088 = vrot.slane %v5761, %v6087
    %v6097 = vlaneseq
    %v6098 = vshrl.u32 %v6097, 7
    %v6099 = vsub.s32 0, %v6098
    %v6100 = vrot.slane %v5785, %v6099
    %v6101 = vlaneseq
    %v6102 = vshrl.u32 %v6101, 7
    %v6103 = vsub.s32 0, %v6102
    %v6104 = vrot.slane %v5799, %v6103
    %v6105 = vlaneseq
    %v6106 = vshrl.u32 %v6105, 7
    %v6107 = vsub.s32 0, %v6106
    %v6108 = vrot.slane %v5807, %v6107
    %v6109 = vlaneseq
    %v6110 = vshrl.u32 %v6109, 7
    %v6111 = vsub.s32 0, %v6110
    %v6112 = vrot.slane %v5809, %v6111
    %v6113 = vlaneseq
    %v6114 = vshrl.u32 %v6113, 7
    %v6115 = vsub.s32 0, %v6114
    %v6116 = vrot.slane %v5792, %v6115
    %v6117 = vlaneseq
    %v6118 = vshrl.u32 %v6117, 7
    %v6119 = vsub.s32 0, %v6118
    %v6120 = vrot.slane %v5806, %v6119
    %v6121 = vlaneseq
    %v6122 = vshrl.u32 %v6121, 7
    %v6123 = vsub.s32 0, %v6122
    %v6124 = vrot.slane %v5808, %v6123
    %v6125 = vlaneseq
    %v6126 = vshrl.u32 %v6125, 7
    %v6127 = vsub.s32 0, %v6126
    %v6128 = vrot.slane %v5810, %v6127
    %v6137 = vlaneseq
    %v6138 = vshrl.u32 %v6137, 7
    %v6139 = vsub.s32 0, %v6138
    %v6140 = vrot.slane %v5834, %v6139
    %v6141 = vlaneseq
    %v6142 = vshrl.u32 %v6141, 7
    %v6143 = vsub.s32 0, %v6142
    %v6144 = vrot.slane %v5848, %v6143
    %v6145 = vlaneseq
    %v6146 = vshrl.u32 %v6145, 7
    %v6147 = vsub.s32 0, %v6146
    %v6148 = vrot.slane %v5856, %v6147
    %v6149 = vlaneseq
    %v6150 = vshrl.u32 %v6149, 7
    %v6151 = vsub.s32 0, %v6150
    %v6152 = vrot.slane %v5858, %v6151
    %v6153 = vlaneseq
    %v6154 = vshrl.u32 %v6153, 7
    %v6155 = vsub.s32 0, %v6154
    %v6156 = vrot.slane %v5841, %v6155
    %v6157 = vlaneseq
    %v6158 = vshrl.u32 %v6157, 7
    %v6159 = vsub.s32 0, %v6158
    %v6160 = vrot.slane %v5855, %v6159
    %v6161 = vlaneseq
    %v6162 = vshrl.u32 %v6161, 7
    %v6163 = vsub.s32 0, %v6162
    %v6164 = vrot.slane %v5857, %v6163
    %v6165 = vlaneseq
    %v6166 = vshrl.u32 %v6165, 7
    %v6167 = vsub.s32 0, %v6166
    %v6168 = vrot.slane %v5859, %v6167
    %v6177 = vlaneseq
    %v6178 = vshrl.u32 %v6177, 7
    %v6179 = vsub.s32 0, %v6178
    %v6180 = vrot.slane %v5883, %v6179
    %v6181 = vlaneseq
    %v6182 = vshrl.u32 %v6181, 7
    %v6183 = vsub.s32 0, %v6182
    %v6184 = vrot.slane %v5897, %v6183
    %v6185 = vlaneseq
    %v6186 = vshrl.u32 %v6185, 7
    %v6187 = vsub.s32 0, %v6186
    %v6188 = vrot.slane %v5905, %v6187
    %v6189 = vlaneseq
    %v6190 = vshrl.u32 %v6189, 7
    %v6191 = vsub.s32 0, %v6190
    %v6192 = vrot.slane %v5907, %v6191
    %v6193 = vlaneseq
    %v6194 = vshrl.u32 %v6193, 7
    %v6195 = vsub.s32 0, %v6194
    %v6196 = vrot.slane %v5890, %v6195
    %v6197 = vlaneseq
    %v6198 = vshrl.u32 %v6197, 7
    %v6199 = vsub.s32 0, %v6198
    %v6200 = vrot.slane %v5904, %v6199
    %v6201 = vlaneseq
    %v6202 = vshrl.u32 %v6201, 7
    %v6203 = vsub.s32 0, %v6202
    %v6204 = vrot.slane %v5906, %v6203
    %v6205 = vlaneseq
    %v6206 = vshrl.u32 %v6205, 7
    %v6207 = vsub.s32 0, %v6206
    %v6208 = vrot.slane %v5908, %v6207
    %v6217 = vlaneseq
    %v6218 = vshrl.u32 %v6217, 7
    %v6219 = vsub.s32 0, %v6218
    %v6220 = vrot.slane %v5932, %v6219
    %v6221 = vlaneseq
    %v6222 = vshrl.u32 %v6221, 7
    %v6223 = vsub.s32 0, %v6222
    %v6224 = vrot.slane %v5946, %v6223
    %v6225 = vlaneseq
    %v6226 = vshrl.u32 %v6225, 7
    %v6227 = vsub.s32 0, %v6226
    %v6228 = vrot.slane %v5954, %v6227
    %v6229 = vlaneseq
    %v6230 = vshrl.u32 %v6229, 7
    %v6231 = vsub.s32 0, %v6230
    %v6232 = vrot.slane %v5956, %v6231
    %v6233 = vlaneseq
    %v6234 = vshrl.u32 %v6233, 7
    %v6235 = vsub.s32 0, %v6234
    %v6236 = vrot.slane %v5939, %v6235
    %v6237 = vlaneseq
    %v6238 = vshrl.u32 %v6237, 7
    %v6239 = vsub.s32 0, %v6238
    %v6240 = vrot.slane %v5953, %v6239
    %v6241 = vlaneseq
    %v6242 = vshrl.u32 %v6241, 7
    %v6243 = vsub.s32 0, %v6242
    %v6244 = vrot.slane %v5955, %v6243
    %v6245 = vlaneseq
    %v6246 = vshrl.u32 %v6245, 7
    %v6247 = vsub.s32 0, %v6246
    %v6248 = vrot.slane %v5957, %v6247
    %v6257 = vlaneseq
    %v6258 = vshrl.u32 %v6257, 7
    %v6259 = vsub.s32 0, %v6258
    %v6260 = vrot.slane %v5981, %v6259
    %v6261 = vlaneseq
    %v6262 = vshrl.u32 %v6261, 7
    %v6263 = vsub.s32 0, %v6262
    %v6264 = vrot.slane %v5995, %v6263
    %v6265 = vlaneseq
    %v6266 = vshrl.u32 %v6265, 7
    %v6267 = vsub.s32 0, %v6266
    %v6268 = vrot.slane %v6003, %v6267
    %v6269 = vlaneseq
    %v6270 = vshrl.u32 %v6269, 7
    %v6271 = vsub.s32 0, %v6270
    %v6272 = vrot.slane %v6005, %v6271
    %v6273 = vlaneseq
    %v6274 = vshrl.u32 %v6273, 7
    %v6275 = vsub.s32 0, %v6274
    %v6276 = vrot.slane %v5988, %v6275
    %v6277 = vlaneseq
    %v6278 = vshrl.u32 %v6277, 7
    %v6279 = vsub.s32 0, %v6278
    %v6280 = vrot.slane %v6002, %v6279
    %v6281 = vlaneseq
    %v6282 = vshrl.u32 %v6281, 7
    %v6283 = vsub.s32 0, %v6282
    %v6284 = vrot.slane %v6004, %v6283
    %v6285 = vlaneseq
    %v6286 = vshrl.u32 %v6285, 7
    %v6287 = vsub.s32 0, %v6286
    %v6288 = vrot.slane %v6006, %v6287
    %v6297 = vlaneseq
    %v6298 = vshrl.u32 %v6297, 7
    %v6299 = vsub.s32 0, %v6298
    %v6300 = vrot.slane %v6031, %v6299
    %v6301 = vlaneseq
    %v6302 = vshrl.u32 %v6301, 7
    %v6303 = vsub.s32 0, %v6302
    %v6304 = vrot.slane %v6045, %v6303
    %v6305 = vlaneseq
    %v6306 = vshrl.u32 %v6305, 7
    %v6307 = vsub.s32 0, %v6306
    %v6308 = vrot.slane %v6053, %v6307
    %v6309 = vlaneseq
    %v6310 = vshrl.u32 %v6309, 7
    %v6311 = vsub.s32 0, %v6310
    %v6312 = vrot.slane %v6055, %v6311
    %v6313 = vlaneseq
    %v6314 = vshrl.u32 %v6313, 7
    %v6315 = vsub.s32 0, %v6314
    %v6316 = vrot.slane %v6038, %v6315
    %v6317 = vlaneseq
    %v6318 = vshrl.u32 %v6317, 7
    %v6319 = vsub.s32 0, %v6318
    %v6320 = vrot.slane %v6052, %v6319
    %v6321 = vlaneseq
    %v6322 = vshrl.u32 %v6321, 7
    %v6323 = vsub.s32 0, %v6322
    %v6324 = vrot.slane %v6054, %v6323
    %v6325 = vlaneseq
    %v6326 = vshrl.u32 %v6325, 7
    %v6327 = vsub.s32 0, %v6326
    %v6328 = vrot.slane %v6056, %v6327
    %vm6337 = vcmask 1040384
    %v6338 = vsel %vm6337, %v5679, %v6060
    %v6339 = vsel %vm6337, %v5693, %v6064
    %v6340 = vsel %vm6337, %v5701, %v6068
    %v6341 = vsel %vm6337, %v5703, %v6072
    %v6342 = vsel %vm6337, %v5686, %v6076
    %v6343 = vsel %vm6337, %v5700, %v6080
    %v6344 = vsel %vm6337, %v5702, %v6084
    %v6345 = vsel %vm6337, %v5704, %v6088
    %vm6346 = vcmask 1041408
    %v6347 = vsel %vm6346, %v6338, %v6100
    %v6348 = vsel %vm6346, %v6339, %v6104
    %v6349 = vsel %vm6346, %v6340, %v6108
    %v6350 = vsel %vm6346, %v6341, %v6112
    %v6351 = vsel %vm6346, %v6342, %v6116
    %v6352 = vsel %vm6346, %v6343, %v6120
    %v6353 = vsel %vm6346, %v6344, %v6124
    %v6354 = vsel %vm6346, %v6345, %v6128
    %vm6355 = vcmask 1042432
    %v6356 = vsel %vm6355, %v6347, %v6140
    %v6357 = vsel %vm6355, %v6348, %v6144
    %v6358 = vsel %vm6355, %v6349, %v6148
    %v6359 = vsel %vm6355, %v6350, %v6152
    %v6360 = vsel %vm6355, %v6351, %v6156
    %v6361 = vsel %vm6355, %v6352, %v6160
    %v6362 = vsel %vm6355, %v6353, %v6164
    %v6363 = vsel %vm6355, %v6354, %v6168
    %vm6364 = vcmask 1043456
    %v6365 = vsel %vm6364, %v6356, %v6180
    %v6366 = vsel %vm6364, %v6357, %v6184
    %v6367 = vsel %vm6364, %v6358, %v6188
    %v6368 = vsel %vm6364, %v6359, %v6192
    %v6369 = vsel %vm6364, %v6360, %v6196
    %v6370 = vsel %vm6364, %v6361, %v6200
    %v6371 = vsel %vm6364, %v6362, %v6204
    %v6372 = vsel %vm6364, %v6363, %v6208
    %vm6373 = vcmask 1044480
    %v6374 = vsel %vm6373, %v6365, %v6220
    %v6375 = vsel %vm6373, %v6366, %v6224
    %v6376 = vsel %vm6373, %v6367, %v6228
    %v6377 = vsel %vm6373, %v6368, %v6232
    %v6378 = vsel %vm6373, %v6369, %v6236
    %v6379 = vsel %vm6373, %v6370, %v6240
    %v6380 = vsel %vm6373, %v6371, %v6244
    %v6381 = vsel %vm6373, %v6372, %v6248
    %vm6382 = vcmask 1045504
    %v6383 = vsel %vm6382, %v6374, %v6260
    %v6384 = vsel %vm6382, %v6375, %v6264
    %v6385 = vsel %vm6382, %v6376, %v6268
    %v6386 = vsel %vm6382, %v6377, %v6272
    %v6387 = vsel %vm6382, %v6378, %v6276
    %v6388 = vsel %vm6382, %v6379, %v6280
    %v6389 = vsel %vm6382, %v6380, %v6284
    %v6390 = vsel %vm6382, %v6381, %v6288
    %vm6391 = vcmask 1046528
    %v6392 = vsel %vm6391, %v6383, %v6300
    %v6393 = vsel %vm6391, %v6384, %v6304
    %v6394 = vsel %vm6391, %v6385, %v6308
    %v6395 = vsel %vm6391, %v6386, %v6312
    %v6396 = vsel %vm6391, %v6387, %v6316
    %v6397 = vsel %vm6391, %v6388, %v6320
    %v6398 = vsel %vm6391, %v6389, %v6324
    %v6399 = vsel %vm6391, %v6390, %v6328
    %6408 = vrot.lane.b32.xlu0 %v6392, 64
    %v6409 = vpop.permute.xlu0 %6408
    %6410 = vrot.lane.b32.xlu0 %v6393, 64
    %v6411 = vpop.permute.xlu0 %6410
    %6412 = vrot.lane.b32.xlu0 %v6394, 64
    %v6413 = vpop.permute.xlu0 %6412
    %6414 = vrot.lane.b32.xlu0 %v6395, 64
    %v6415 = vpop.permute.xlu0 %6414
    %6416 = vrot.lane.b32.xlu0 %v6396, 64
    %v6417 = vpop.permute.xlu0 %6416
    %6418 = vrot.lane.b32.xlu0 %v6397, 64
    %v6419 = vpop.permute.xlu0 %6418
    %6420 = vrot.lane.b32.xlu0 %v6398, 64
    %v6421 = vpop.permute.xlu0 %6420
    %6422 = vrot.lane.b32.xlu0 %v6399, 64
    %v6423 = vpop.permute.xlu0 %6422
    %6432 = vst.msk [vmem:[#allocation25] sm:$0xff] %vm454, %v6409
    %6433 = vst.msk [vmem:[#allocation25 + $0x8] sm:$0xff] %vm454, %v6411
    %6434 = vst.msk [vmem:[#allocation25 + $0x10] sm:$0xff] %vm454, %v6413
    %6435 = vst.msk [vmem:[#allocation25 + $0x18] sm:$0xff] %vm454, %v6415
    %6436 = vst.msk [vmem:[#allocation25 + $0x20] sm:$0xff] %vm454, %v6417
    %6437 = vst.msk [vmem:[#allocation25 + $0x28] sm:$0xff] %vm454, %v6419
    %6438 = vst.msk [vmem:[#allocation25 + $0x30] sm:$0xff] %vm454, %v6421
    %6439 = vst.msk [vmem:[#allocation25 + $0x38] sm:$0xff] %vm454, %v6423
    %v6440 = vcombine.high %v5335, %v5335
    %v6442 = vunpack.c.l.s4 1966171168
    %v6443 = vunpack.c.0.s8 %v6442
    %v6444 = vlaneseq
    %v6445 = vshrl.u32 %v6444, 7
    %v6446 = vsub.s32 %v6443, %v6445
    %v6447 = vrot.slane %v5335, %v6446
    %v6449 = vunpack.c.l.s4 1966171168
    %v6450 = vunpack.c.0.s8 %v6449
    %v6451 = vlaneseq
    %v6452 = vshrl.u32 %v6451, 7
    %v6453 = vsub.s32 %v6450, %v6452
    %v6454 = vrot.slane %v6440, %v6453
    %v6455 = vcombine.high %v6447, %v6447
    %v6456 = vcombine.high %v6454, %v6454
    %v6458 = vunpack.c.l.s4 1966171168
    %v6459 = vunpack.c.0.s8 %v6458
    %v6460 = vlaneseq
    %v6461 = vshrl.u32 %v6460, 7
    %v6462 = vsub.s32 %v6459, %v6461
    %v6463 = vrot.slane %v6447, %v6462
    %v6465 = vunpack.c.l.s4 1966171168
    %v6466 = vunpack.c.0.s8 %v6465
    %v6467 = vlaneseq
    %v6468 = vshrl.u32 %v6467, 7
    %v6469 = vsub.s32 %v6466, %v6468
    %v6470 = vrot.slane %v6454, %v6469
    %v6472 = vunpack.c.l.s4 1966171168
    %v6473 = vunpack.c.0.s8 %v6472
    %v6474 = vlaneseq
    %v6475 = vshrl.u32 %v6474, 7
    %v6476 = vsub.s32 %v6473, %v6475
    %v6477 = vrot.slane %v6455, %v6476
    %v6479 = vunpack.c.l.s4 1966171168
    %v6480 = vunpack.c.0.s8 %v6479
    %v6481 = vlaneseq
    %v6482 = vshrl.u32 %v6481, 7
    %v6483 = vsub.s32 %v6480, %v6482
    %v6484 = vrot.slane %v6456, %v6483
    %v6485 = vcombine.high %v6463, %v6463
    %v6486 = vcombine.high %v6470, %v6470
    %v6487 = vcombine.high %v6477, %v6477
    %v6488 = vcombine.high %v6484, %v6484
    %v6497 = vsel %vm6337, %v6463, %v6300
    %v6498 = vsel %vm6337, %v6477, %v6304
    %v6499 = vsel %vm6337, %v6485, %v6308
    %v6500 = vsel %vm6337, %v6487, %v6312
    %v6501 = vsel %vm6337, %v6470, %v6316
    %v6502 = vsel %vm6337, %v6484, %v6320
    %v6503 = vsel %vm6337, %v6486, %v6324
    %v6504 = vsel %vm6337, %v6488, %v6328
    %6513 = vrot.lane.b32.xlu0 %v6497, 64
    %v6514 = vpop.permute.xlu0 %6513
    %6515 = vrot.lane.b32.xlu0 %v6498, 64
    %v6516 = vpop.permute.xlu0 %6515
    %6517 = vrot.lane.b32.xlu0 %v6499, 64
    %v6518 = vpop.permute.xlu0 %6517
    %6519 = vrot.lane.b32.xlu0 %v6500, 64
    %v6520 = vpop.permute.xlu0 %6519
    %6521 = vrot.lane.b32.xlu0 %v6501, 64
    %v6522 = vpop.permute.xlu0 %6521
    %6523 = vrot.lane.b32.xlu0 %v6502, 64
    %v6524 = vpop.permute.xlu0 %6523
    %6525 = vrot.lane.b32.xlu0 %v6503, 64
    %v6526 = vpop.permute.xlu0 %6525
    %6527 = vrot.lane.b32.xlu0 %v6504, 64
    %v6528 = vpop.permute.xlu0 %6527
    %vm6537 = vcmask 254976
    %6538 = vst.msk [vmem:[#allocation26] sm:$0x3] %vm6537, %v6514
    %6539 = vst.msk [vmem:[#allocation26 + $0x2] sm:$0x3] %vm6537, %v6516
    %6540 = vst.msk [vmem:[#allocation26 + $0x4] sm:$0x3] %vm6537, %v6518
    %6541 = vst.msk [vmem:[#allocation26 + $0x6] sm:$0x3] %vm6537, %v6520
    %6542 = vst.msk [vmem:[#allocation26 + $0x8] sm:$0x3] %vm6537, %v6522
    %6543 = vst.msk [vmem:[#allocation26 + $0xa] sm:$0x3] %vm6537, %v6524
    %6544 = vst.msk [vmem:[#allocation26 + $0xc] sm:$0x3] %vm6537, %v6526
    %6545 = vst.msk [vmem:[#allocation26 + $0xe] sm:$0x3] %vm6537, %v6528
    %v6547 = vcombine.high %v5329, %v5329
    %v6549 = vunpack.c.l.s4 1966171168
    %v6550 = vunpack.c.0.s8 %v6549
    %v6551 = vlaneseq
    %v6552 = vshrl.u32 %v6551, 7
    %v6553 = vsub.s32 %v6550, %v6552
    %v6554 = vrot.slane %v5329, %v6553
    %v6556 = vunpack.c.l.s4 1966171168
    %v6557 = vunpack.c.0.s8 %v6556
    %v6558 = vlaneseq
    %v6559 = vshrl.u32 %v6558, 7
    %v6560 = vsub.s32 %v6557, %v6559
    %v6561 = vrot.slane %v6547, %v6560
    %v6562 = vcombine.high %v6554, %v6554
    %v6563 = vcombine.high %v6561, %v6561
    %v6565 = vunpack.c.l.s4 1966171168
    %v6566 = vunpack.c.0.s8 %v6565
    %v6567 = vlaneseq
    %v6568 = vshrl.u32 %v6567, 7
    %v6569 = vsub.s32 %v6566, %v6568
    %v6570 = vrot.slane %v6554, %v6569
    %v6572 = vunpack.c.l.s4 1966171168
    %v6573 = vunpack.c.0.s8 %v6572
    %v6574 = vlaneseq
    %v6575 = vshrl.u32 %v6574, 7
    %v6576 = vsub.s32 %v6573, %v6575
    %v6577 = vrot.slane %v6561, %v6576
    %v6579 = vunpack.c.l.s4 1966171168
    %v6580 = vunpack.c.0.s8 %v6579
    %v6581 = vlaneseq
    %v6582 = vshrl.u32 %v6581, 7
    %v6583 = vsub.s32 %v6580, %v6582
    %v6584 = vrot.slane %v6562, %v6583
    %v6586 = vunpack.c.l.s4 1966171168
    %v6587 = vunpack.c.0.s8 %v6586
    %v6588 = vlaneseq
    %v6589 = vshrl.u32 %v6588, 7
    %v6590 = vsub.s32 %v6587, %v6589
    %v6591 = vrot.slane %v6563, %v6590
    %v6592 = vcombine.high %v6570, %v6570
    %v6593 = vcombine.high %v6577, %v6577
    %v6594 = vcombine.high %v6584, %v6584
    %v6595 = vcombine.high %v6591, %v6591
    %v6605 = vcombine.high %v5649, %v5649
    %v6607 = vunpack.c.l.s4 1966171168
    %v6608 = vunpack.c.0.s8 %v6607
    %v6609 = vlaneseq
    %v6610 = vshrl.u32 %v6609, 7
    %v6611 = vsub.s32 %v6608, %v6610
    %v6612 = vrot.slane %v5649, %v6611
    %v6614 = vunpack.c.l.s4 1966171168
    %v6615 = vunpack.c.0.s8 %v6614
    %v6616 = vlaneseq
    %v6617 = vshrl.u32 %v6616, 7
    %v6618 = vsub.s32 %v6615, %v6617
    %v6619 = vrot.slane %v6605, %v6618
    %v6620 = vcombine.high %v6612, %v6612
    %v6621 = vcombine.high %v6619, %v6619
    %v6623 = vunpack.c.l.s4 1966171168
    %v6624 = vunpack.c.0.s8 %v6623
    %v6625 = vlaneseq
    %v6626 = vshrl.u32 %v6625, 7
    %v6627 = vsub.s32 %v6624, %v6626
    %v6628 = vrot.slane %v6612, %v6627
    %v6630 = vunpack.c.l.s4 1966171168
    %v6631 = vunpack.c.0.s8 %v6630
    %v6632 = vlaneseq
    %v6633 = vshrl.u32 %v6632, 7
    %v6634 = vsub.s32 %v6631, %v6633
    %v6635 = vrot.slane %v6619, %v6634
    %v6637 = vunpack.c.l.s4 1966171168
    %v6638 = vunpack.c.0.s8 %v6637
    %v6639 = vlaneseq
    %v6640 = vshrl.u32 %v6639, 7
    %v6641 = vsub.s32 %v6638, %v6640
    %v6642 = vrot.slane %v6620, %v6641
    %v6644 = vunpack.c.l.s4 1966171168
    %v6645 = vunpack.c.0.s8 %v6644
    %v6646 = vlaneseq
    %v6647 = vshrl.u32 %v6646, 7
    %v6648 = vsub.s32 %v6645, %v6647
    %v6649 = vrot.slane %v6621, %v6648
    %v6650 = vcombine.high %v6628, %v6628
    %v6651 = vcombine.high %v6635, %v6635
    %v6652 = vcombine.high %v6642, %v6642
    %v6653 = vcombine.high %v6649, %v6649
    %v6654 = vlaneseq
    %v6655 = vshrl.u32 %v6654, 7
    %v6656 = vsub.s32 0, %v6655
    %v6657 = vrot.slane %v6628, %v6656
    %v6658 = vlaneseq
    %v6659 = vshrl.u32 %v6658, 7
    %v6660 = vsub.s32 0, %v6659
    %v6661 = vrot.slane %v6642, %v6660
    %v6662 = vlaneseq
    %v6663 = vshrl.u32 %v6662, 7
    %v6664 = vsub.s32 0, %v6663
    %v6665 = vrot.slane %v6650, %v6664
    %v6666 = vlaneseq
    %v6667 = vshrl.u32 %v6666, 7
    %v6668 = vsub.s32 0, %v6667
    %v6669 = vrot.slane %v6652, %v6668
    %v6670 = vlaneseq
    %v6671 = vshrl.u32 %v6670, 7
    %v6672 = vsub.s32 0, %v6671
    %v6673 = vrot.slane %v6635, %v6672
    %v6674 = vlaneseq
    %v6675 = vshrl.u32 %v6674, 7
    %v6676 = vsub.s32 0, %v6675
    %v6677 = vrot.slane %v6649, %v6676
    %v6678 = vlaneseq
    %v6679 = vshrl.u32 %v6678, 7
    %v6680 = vsub.s32 0, %v6679
    %v6681 = vrot.slane %v6651, %v6680
    %v6682 = vlaneseq
    %v6683 = vshrl.u32 %v6682, 7
    %v6684 = vsub.s32 0, %v6683
    %v6685 = vrot.slane %v6653, %v6684
    %v6694 = vsel %vm6337, %v6570, %v6657
    %v6695 = vsel %vm6337, %v6584, %v6661
    %v6696 = vsel %vm6337, %v6592, %v6665
    %v6697 = vsel %vm6337, %v6594, %v6669
    %v6698 = vsel %vm6337, %v6577, %v6673
    %v6699 = vsel %vm6337, %v6591, %v6677
    %v6700 = vsel %vm6337, %v6593, %v6681
    %v6701 = vsel %vm6337, %v6595, %v6685
    %6702 = vst.msk [vmem:[#allocation28] sm:$0x3] %vm6537, %v6694
    %6703 = vst.msk [vmem:[#allocation28 + $0x2] sm:$0x3] %vm6537, %v6695
    %6704 = vst.msk [vmem:[#allocation28 + $0x4] sm:$0x3] %vm6537, %v6696
    %6705 = vst.msk [vmem:[#allocation28 + $0x6] sm:$0x3] %vm6537, %v6697
    %6706 = vst.msk [vmem:[#allocation28 + $0x8] sm:$0x3] %vm6537, %v6698
    %6707 = vst.msk [vmem:[#allocation28 + $0xa] sm:$0x3] %vm6537, %v6699
    %6708 = vst.msk [vmem:[#allocation28 + $0xc] sm:$0x3] %vm6537, %v6700
    %6709 = vst.msk [vmem:[#allocation28 + $0xe] sm:$0x3] %vm6537, %v6701
    // Predicated region
    $region130: #{tpu_custom_call.1} parent=1 // pred_check
      _
    $region131: #{tpu_custom_call.1} parent=1 // pred_check_branch
      %6711 = sbr.rel (0) target = $region133
    $region132: #{tpu_custom_call.1} parent=1 // pred_region
      %s6713 = ssub.s32 1024, 1024
      %6714 = vsyncadd [#allocation4], %s6713
      %s6715 = sshll.u32 [#allocation25], 4
      %s6716 = int_to_ptr.vmem [resolvable:$true] %s6715
      %6721 = dma.vmem_to_hbm [thread:$0]  %s6716, 1024, %s17, [#allocation4], 128, 128, 8
    $region133: #{tpu_custom_call.1} parent=1 // pred_fallthru
      _
    // Predicated region
    $region134: #{tpu_custom_call.1} parent=1 // pred_check
      _
    $region135: #{tpu_custom_call.1} parent=1 // pred_check_branch
      %6723 = sbr.rel (0) target = $region137
    $region136: #{tpu_custom_call.1} parent=1 // pred_region
      %s6725 = ssub.s32 256, 256
      %6726 = vsyncadd [#allocation27], %s6725
      %s6727 = sshll.u32 [#allocation26], 4
      %s6728 = int_to_ptr.vmem [resolvable:$true] %s6727
      %6733 = dma.vmem_to_hbm [thread:$0]  %s6728, 256, %s18, [#allocation27], 32, 32, 2
    $region137: #{tpu_custom_call.1} parent=1 // pred_fallthru
      _
    // Predicated region
    $region138: #{tpu_custom_call.1} parent=1 // pred_check
      _
    $region139: #{tpu_custom_call.1} parent=1 // pred_check_branch
      %6735 = sbr.rel (0) target = $region141
    $region140: #{tpu_custom_call.1} parent=1 // pred_region
      %s6737 = ssub.s32 256, 256
      %6738 = vsyncadd [#allocation27], %s6737
      %s6739 = sshll.u32 [#allocation28], 4
      %s6740 = int_to_ptr.vmem [resolvable:$true] %s6739
      %6745 = dma.vmem_to_hbm [thread:$0]  %s6740, 256, %s19, [#allocation27], 32, 32, 2
    $region141: #{tpu_custom_call.1} parent=1 // pred_fallthru
      _
    // Predicated region
    $region142: #{tpu_custom_call.1} parent=1 // pred_check
      _
    $region143: #{tpu_custom_call.1} parent=1 // pred_check_branch
      %6747 = sbr.rel (0) target = $region145
    $region144: #{tpu_custom_call.1} parent=1 // pred_region
      %6748 = dma.done [#allocation4], 1024
    $region145: #{tpu_custom_call.1} parent=1 // pred_fallthru
      _
    // Predicated region
    $region146: #{tpu_custom_call.1} parent=1 // pred_check
      _
    $region147: #{tpu_custom_call.1} parent=1 // pred_check_branch
      %6750 = sbr.rel (0) target = $region149
    $region148: #{tpu_custom_call.1} parent=1 // pred_region
      %6751 = dma.done [#allocation27], 256
    $region149: #{tpu_custom_call.1} parent=1 // pred_fallthru
      _
    // Predicated region
    $region150: #{tpu_custom_call.1} parent=1 // pred_check
      _
    $region151: #{tpu_custom_call.1} parent=1 // pred_check_branch
      %6753 = sbr.rel (0) target = $region153
    $region152: #{tpu_custom_call.1} parent=1 // pred_region
      %6754 = dma.done [#allocation27], 256
    $region153: #{tpu_custom_call.1} parent=1 // pred_fallthru
      _
    %6755 = vsyncpa [#allocation3], 1
    %6756 = vsyncpa [#allocation6], 1
    %6757 = vsyncpa [#allocation9], 1
    %6758 = vsyncpa [#allocation12], 1
    %6759 = vsyncpa [#allocation15], 1
    %6760 = vsyncpa [#allocation18], 1
    %6761 = vsyncpa [#allocation21], 1
    %6762 = vsyncpa [#allocation24], 1
    %6763 = vsyncpa [#allocation4], 1
    %6764 = vsyncpa [#allocation27], 1

</llo_original>
